<compile_context>
chip_gen: v6e
topology: v6e:2x2x1
jax: 0.10.0
libtpu: 0.0.40
codegen_flags: <defaults>
</compile_context>

<pallas_src>
import jax
import jax.numpy as jnp
from jax.experimental import pallas as pl
from jax.experimental.pallas import tpu as pltpu

KSZ = 5
PAD = 2


def _pick_group(batch):
    for g in (8, 4, 2, 1):
        if batch % g == 0:
            return g
    return 1


# ---------------------------------------------------------------------------
# XLA-side prep (tiny): parity-split + kw-folded input tile
#   P[b, a, r*Wo + wo, j*C + c] = Xpad[b, 2r + a, 2wo + j, c],  j in 0..5
# Inside the kernel every (pool-phase, kh) term is then an aligned row slice of
# P and a single matmul over K = 6*C.
# ---------------------------------------------------------------------------
def _prep(x_nhwc):
    B, H, W, C = x_nhwc.shape
    Ho, Wo = H // 2, W // 2
    Hq = Ho + 2                                                     # (H+4)/2
    xb = x_nhwc.astype(jnp.bfloat16)
    xp = jnp.pad(xb, ((0, 0), (PAD, PAD), (PAD, PAD), (0, 0)))      # (B,H+4,W+4,C)
    xph = xp.reshape(B, Hq, 2, W + 4, C).transpose(0, 2, 1, 3, 4)   # (B,2,Hq,W+4,C)
    cols = [xph[:, :, :, j:j + 2 * Wo:2, :] for j in range(6)]      # 6x(B,2,Hq,Wo,C)
    p = jnp.stack(cols, axis=4)                                     # (B,2,Hq,Wo,6,C)
    return p.reshape(B, 2, Hq * Wo, 6 * C)


# ---------------------------------------------------------------------------
# In-kernel helper: conv contribution of one pool row-phase `ph`.
# Returns (G*Mo, 2*Cout) f32: columns [0:Cout] = pool phase pw=0,
# columns [Cout:2*Cout] = pool phase pw=1 (pw folded into the weights).
# Row offsets dr*Wo are multiples of Wo (16/8/4) -> (mostly) aligned slices.
# ---------------------------------------------------------------------------
def _conv_phase(pf_ref, w_ref, ph, G, Mo, Wo, K6):
    acc = None
    for kh in range(KSZ):
        u = ph + kh
        a, dr = u % 2, u // 2
        lhs = pf_ref[:, a, dr * Wo:dr * Wo + Mo, :].reshape(G * Mo, K6)
        t = jnp.dot(lhs, w_ref[kh], preferred_element_type=jnp.float32)
        acc = t if acc is None else acc + t
    return acc


# ---------------------------------------------------------------------------
# Fused Conv2d(5x5, pad=2) + MaxPool2d(2)  (stages 1 and 2)
# ---------------------------------------------------------------------------
def _make_conv_pool_kernel(G, Ho, Wo, C, Cout):
    Mo, K6 = Ho * Wo, 6 * C

    def kernel(pf_ref, w_ref, b_ref, o_ref):
        # pf_ref: (G, 2, Lq, K6) bf16   w_ref: (5, K6, 2*Cout) bf16
        # b_ref : (1, Cout) f32         o_ref: (G, Mo, Cout) bf16
        s0 = _conv_phase(pf_ref, w_ref, 0, G, Mo, Wo, K6)
        s1 = _conv_phase(pf_ref, w_ref, 1, G, Mo, Wo, K6)
        m = jnp.maximum(s0, s1)                                  # (G*Mo, 2*Cout)
        pooled = jnp.maximum(m[:, :Cout], m[:, Cout:]) + b_ref[...]
        o_ref[...] = pooled.reshape(G, Mo, Cout).astype(o_ref.dtype)

    return kernel


def conv_pool_stage(pf, wcat, bias, *, Ho, Wo, C, Cout, G):
    B, _, Lq, K6 = pf.shape
    Mo = Ho * Wo
    kernel = _make_conv_pool_kernel(G, Ho, Wo, C, Cout)
    return pl.pallas_call(
        kernel,
        out_shape=jax.ShapeDtypeStruct((B, Mo, Cout), jnp.bfloat16),
        grid=(B // G,),
        in_specs=[
            pl.BlockSpec((G, 2, Lq, K6), lambda i: (i, 0, 0, 0)),
            pl.BlockSpec((KSZ, K6, 2 * Cout), lambda i: (0, 0, 0)),
            pl.BlockSpec((1, Cout), lambda i: (0, 0)),
        ],
        out_specs=pl.BlockSpec((G, Mo, Cout), lambda i: (i, 0, 0)),
        compiler_params=pltpu.CompilerParams(
            dimension_semantics=("parallel",)),
    )(pf, wcat, bias)


# ---------------------------------------------------------------------------
# Stage 3: Conv+Pool fused with Flatten -> Linear(1024,64) -> Linear(64,10)
# (second Linear padded to 128 output lanes; sliced to 10 wrapper-side)
# ---------------------------------------------------------------------------
def _make_stage3_mlp_kernel(G, Ho, Wo, C, Cout):
    Mo, K6 = Ho * Wo, 6 * C          # 16, 192

    def kernel(pf_ref, w_ref, b_ref, w1_ref, b1_ref, w2_ref, b2_ref, o_ref):
        s0 = _conv_phase(pf_ref, w_ref, 0, G, Mo, Wo, K6)
        s1 = _conv_phase(pf_ref, w_ref, 1, G, Mo, Wo, K6)
        m = jnp.maximum(s0, s1)
        pooled = jnp.maximum(m[:, :Cout], m[:, Cout:]) + b_ref[...]   # (G*16, 64)
        featb = pooled.reshape(G, Mo, Cout).astype(jnp.bfloat16)
        # Linear(1024, 64): contract over the 16 pooled positions and 64 channels.
        h1 = jnp.zeros((G, 64), jnp.float32)
        for mm in range(Mo):
            h1 = h1 + jnp.dot(featb[:, mm, :], w1_ref[mm],
                              preferred_element_type=jnp.float32)
        h1 = h1 + b1_ref[...]
        # Linear(64, 10) padded to 128 lanes -> lane-dense final store.
        logits = jnp.dot(h1.astype(jnp.bfloat16), w2_ref[...],
                         preferred_element_type=jnp.float32) + b2_ref[...]
        o_ref[0] = logits                                             # (G, 128)

    return kernel


def stage3_mlp(pf, params, *, G):
    B, _, Lq, K6 = pf.shape
    kernel = _make_stage3_mlp_kernel(G, 4, 4, 32, 64)
    return pl.pallas_call(
        kernel,
        out_shape=jax.ShapeDtypeStruct((B // G, G, 128), jnp.float32),
        grid=(B // G,),
        in_specs=[
            pl.BlockSpec((G, 2, Lq, K6), lambda i: (i, 0, 0, 0)),
            pl.BlockSpec((KSZ, K6, 128), lambda i: (0, 0, 0)),
            pl.BlockSpec((1, 64), lambda i: (0, 0)),
            pl.BlockSpec((16, 64, 64), lambda i: (0, 0, 0)),
            pl.BlockSpec((1, 64), lambda i: (0, 0)),
            pl.BlockSpec((64, 128), lambda i: (0, 0)),
            pl.BlockSpec((1, 128), lambda i: (0, 0)),
        ],
        out_specs=pl.BlockSpec((1, G, 128), lambda i: (i, 0, 0)),
        compiler_params=pltpu.CompilerParams(
            dimension_semantics=("parallel",)),
    )(pf, params["wcat2"], params["cb2"], params["w1"], params["b1"],
      params["w2"], params["b2"])


# ---------------------------------------------------------------------------
# Parameter init (deterministic, PyTorch-style uniform bounds).
# Conv weights are stored pre-folded as Wcat[kh, j*Cin+c, pw*Cout+co]
#   = W5[kh, j-pw, c, co]  (zero outside 0<=j-pw<=4), i.e. kw + pool-pw folded
# into K / N once at init.
# ---------------------------------------------------------------------------
def _uniform(key, shape, bound):
    return jax.random.uniform(key, shape, jnp.float32, -bound, bound)


def init_params(key):
    ks = jax.random.split(key, 10)
    p = {}
    for i, (cin, cout) in enumerate([(3, 32), (32, 32), (32, 64)]):
        bound = 1.0 / (cin * KSZ * KSZ) ** 0.5
        w5 = _uniform(ks[2 * i], (KSZ, KSZ, cin, cout), bound)
        wcat = jnp.zeros((KSZ, 6 * cin, 2 * cout), jnp.float32)
        for kh in range(KSZ):
            for kw in range(KSZ):
                wcat = wcat.at[kh, kw * cin:(kw + 1) * cin, :cout].set(w5[kh, kw])
                wcat = wcat.at[kh, (kw + 1) * cin:(kw + 2) * cin, cout:].set(w5[kh, kw])
        p[f"wcat{i}"] = wcat.astype(jnp.bfloat16)
        p[f"cb{i}"] = _uniform(ks[2 * i + 1], (1, cout), bound)
    # Linear(1024, 64): PyTorch flatten order of the (64,4,4) feature map is
    # (c, h, w); our in-kernel rows are m = h*4+w with channel last, so permute
    # the weight rows once at init to (m, c, n).
    b1b = 1.0 / 1024 ** 0.5
    w1_chw = _uniform(ks[6], (1024, 64), b1b)                 # rows ordered (c, m)
    p["w1"] = (w1_chw.reshape(64, 16, 64)
               .transpose(1, 0, 2)).astype(jnp.bfloat16)      # (m, c, n)
    p["b1"] = _uniform(ks[7], (1, 64), b1b)
    b2b = 1.0 / 64 ** 0.5
    w2 = _uniform(ks[8], (64, 10), b2b)
    p["w2"] = jnp.pad(w2, ((0, 0), (0, 118))).astype(jnp.bfloat16)   # lane-dense
    p["b2"] = jnp.pad(_uniform(ks[9], (1, 10), b2b), ((0, 0), (0, 118)))
    return p


# ---------------------------------------------------------------------------
# Full forward pass
# ---------------------------------------------------------------------------
def forward(params, x_nchw):
    B = x_nchw.shape[0]
    G = _pick_group(B)
    x = jnp.transpose(x_nchw, (0, 2, 3, 1))                           # NCHW->NHWC
    y = conv_pool_stage(_prep(x), params["wcat0"], params["cb0"],
                        Ho=16, Wo=16, C=3, Cout=32, G=G)              # (B,256,32)
    y = conv_pool_stage(_prep(y.reshape(B, 16, 16, 32)),
                        params["wcat1"], params["cb1"],
                        Ho=8, Wo=8, C=32, Cout=32, G=G)               # (B, 64,32)
    logits = stage3_mlp(_prep(y.reshape(B, 8, 8, 32)), params, G=G)   # (B/G,G,128)
    return logits.reshape(B, 128)[:, :10]


if __name__ == "__main__":
    key = jax.random.PRNGKey(0)
    k_param, k_x = jax.random.split(key)
    params = init_params(k_param)

    # Linear(1024, 64) implies 32x32 spatial input (three /2 pools -> 4*4*64).
    x = jax.random.normal(k_x, (2, 3, 32, 32), dtype=jnp.float32)

    out = jax.jit(forward)(params, x)
    out = jax.block_until_ready(out)
    assert out.shape == (2, 10), out.shape
    assert bool(jnp.all(jnp.isfinite(out)))
    print("KERNEL_OK")
</pallas_src>

<mosaic_0001>
module attributes {stable_mosaic.version = 11 : i64} {
  func.func @kernel(%arg0: i32, %arg1: memref<2x2x288x18xbf16, #tpu.memory_space<vmem>>, %arg2: memref<5x18x64xbf16, #tpu.memory_space<vmem>>, %arg3: memref<1x32xf32, #tpu.memory_space<vmem>>, %arg4: memref<2x256x32xbf16, #tpu.memory_space<vmem>>) attributes {dimension_semantics = [#tpu.dimension_semantics<parallel>], iteration_bounds = array<i64: 1>, scalar_prefetch = 0 : i64, scratch_operands = 0 : i64, tpu.core_type = #tpu.core_type<tc>, window_params = [{transform_indices = @transform_0, window_bounds = array<i64: 2, 2, 288, 18>}, {pipeline_mode = #tpu.pipeline_mode<synchronous>, transform_indices = @transform_1, window_bounds = array<i64: 5, 18, 64>}, {pipeline_mode = #tpu.pipeline_mode<synchronous>, transform_indices = @transform_2, window_bounds = array<i64: 1, 32>}, {transform_indices = @transform_3, window_bounds = array<i64: 2, 256, 32>}]} {
    %c0 = arith.constant 0 : index
    %c0_0 = arith.constant 0 : index
    %c0_1 = arith.constant 0 : index
    %c0_2 = arith.constant 0 : index
    %0 = vector.load %arg1[%c0, %c0_0, %c0_1, %c0_2] : memref<2x2x288x18xbf16, #tpu.memory_space<vmem>>, vector<2x1x256x18xbf16>
    %1 = vector.shape_cast %0 : vector<2x1x256x18xbf16> to vector<2x256x18xbf16>
    %2 = vector.shape_cast %1 : vector<2x256x18xbf16> to vector<512x18xbf16>
    %c0_3 = arith.constant 0 : index
    %c0_4 = arith.constant 0 : index
    %c0_5 = arith.constant 0 : index
    %3 = vector.load %arg2[%c0_3, %c0_4, %c0_5] : memref<5x18x64xbf16, #tpu.memory_space<vmem>>, vector<1x18x64xbf16>
    %4 = vector.shape_cast %3 : vector<1x18x64xbf16> to vector<18x64xbf16>
    %cst = arith.constant dense<0.000000e+00> : vector<512x64xf32>
    %5 = tpu.matmul %2, %4, %cst {dimension_numbers = #tpu.dot_dimension_numbers<[1], [0], [0], [1], [0, 0, 1, 1], [], []>} : vector<512x18xbf16>, vector<18x64xbf16>, vector<512x64xf32> -> vector<512x64xf32>
    %c0_6 = arith.constant 0 : index
    %c1 = arith.constant 1 : index
    %c0_7 = arith.constant 0 : index
    %c0_8 = arith.constant 0 : index
    %6 = vector.load %arg1[%c0_6, %c1, %c0_7, %c0_8] : memref<2x2x288x18xbf16, #tpu.memory_space<vmem>>, vector<2x1x256x18xbf16>
    %7 = vector.shape_cast %6 : vector<2x1x256x18xbf16> to vector<2x256x18xbf16>
    %8 = vector.shape_cast %7 : vector<2x256x18xbf16> to vector<512x18xbf16>
    %c1_9 = arith.constant 1 : index
    %c0_10 = arith.constant 0 : index
    %c0_11 = arith.constant 0 : index
    %9 = vector.load %arg2[%c1_9, %c0_10, %c0_11] : memref<5x18x64xbf16, #tpu.memory_space<vmem>>, vector<1x18x64xbf16>
    %10 = vector.shape_cast %9 : vector<1x18x64xbf16> to vector<18x64xbf16>
    %cst_12 = arith.constant dense<0.000000e+00> : vector<512x64xf32>
    %11 = tpu.matmul %8, %10, %cst_12 {dimension_numbers = #tpu.dot_dimension_numbers<[1], [0], [0], [1], [0, 0, 1, 1], [], []>} : vector<512x18xbf16>, vector<18x64xbf16>, vector<512x64xf32> -> vector<512x64xf32>
    %12 = arith.addf %5, %11 : vector<512x64xf32>
    %c0_13 = arith.constant 0 : index
    %c0_14 = arith.constant 0 : index
    %c16 = arith.constant 16 : index
    %c0_15 = arith.constant 0 : index
    %13 = vector.load %arg1[%c0_13, %c0_14, %c16, %c0_15] : memref<2x2x288x18xbf16, #tpu.memory_space<vmem>>, vector<2x1x256x18xbf16>
    %14 = vector.shape_cast %13 : vector<2x1x256x18xbf16> to vector<2x256x18xbf16>
    %15 = vector.shape_cast %14 : vector<2x256x18xbf16> to vector<512x18xbf16>
    %c2 = arith.constant 2 : index
    %c0_16 = arith.constant 0 : index
    %c0_17 = arith.constant 0 : index
    %16 = vector.load %arg2[%c2, %c0_16, %c0_17] : memref<5x18x64xbf16, #tpu.memory_space<vmem>>, vector<1x18x64xbf16>
    %17 = vector.shape_cast %16 : vector<1x18x64xbf16> to vector<18x64xbf16>
    %cst_18 = arith.constant dense<0.000000e+00> : vector<512x64xf32>
    %18 = tpu.matmul %15, %17, %cst_18 {dimension_numbers = #tpu.dot_dimension_numbers<[1], [0], [0], [1], [0, 0, 1, 1], [], []>} : vector<512x18xbf16>, vector<18x64xbf16>, vector<512x64xf32> -> vector<512x64xf32>
    %19 = arith.addf %12, %18 : vector<512x64xf32>
    %c0_19 = arith.constant 0 : index
    %c1_20 = arith.constant 1 : index
    %c16_21 = arith.constant 16 : index
    %c0_22 = arith.constant 0 : index
    %20 = vector.load %arg1[%c0_19, %c1_20, %c16_21, %c0_22] : memref<2x2x288x18xbf16, #tpu.memory_space<vmem>>, vector<2x1x256x18xbf16>
    %21 = vector.shape_cast %20 : vector<2x1x256x18xbf16> to vector<2x256x18xbf16>
    %22 = vector.shape_cast %21 : vector<2x256x18xbf16> to vector<512x18xbf16>
    %c3 = arith.constant 3 : index
    %c0_23 = arith.constant 0 : index
    %c0_24 = arith.constant 0 : index
    %23 = vector.load %arg2[%c3, %c0_23, %c0_24] : memref<5x18x64xbf16, #tpu.memory_space<vmem>>, vector<1x18x64xbf16>
    %24 = vector.shape_cast %23 : vector<1x18x64xbf16> to vector<18x64xbf16>
    %cst_25 = arith.constant dense<0.000000e+00> : vector<512x64xf32>
    %25 = tpu.matmul %22, %24, %cst_25 {dimension_numbers = #tpu.dot_dimension_numbers<[1], [0], [0], [1], [0, 0, 1, 1], [], []>} : vector<512x18xbf16>, vector<18x64xbf16>, vector<512x64xf32> -> vector<512x64xf32>
    %26 = arith.addf %19, %25 : vector<512x64xf32>
    %c0_26 = arith.constant 0 : index
    %c0_27 = arith.constant 0 : index
    %c32 = arith.constant 32 : index
    %c0_28 = arith.constant 0 : index
    %27 = vector.load %arg1[%c0_26, %c0_27, %c32, %c0_28] : memref<2x2x288x18xbf16, #tpu.memory_space<vmem>>, vector<2x1x256x18xbf16>
    %28 = vector.shape_cast %27 : vector<2x1x256x18xbf16> to vector<2x256x18xbf16>
    %29 = vector.shape_cast %28 : vector<2x256x18xbf16> to vector<512x18xbf16>
    %c4 = arith.constant 4 : index
    %c0_29 = arith.constant 0 : index
    %c0_30 = arith.constant 0 : index
    %30 = vector.load %arg2[%c4, %c0_29, %c0_30] : memref<5x18x64xbf16, #tpu.memory_space<vmem>>, vector<1x18x64xbf16>
    %31 = vector.shape_cast %30 : vector<1x18x64xbf16> to vector<18x64xbf16>
    %cst_31 = arith.constant dense<0.000000e+00> : vector<512x64xf32>
    %32 = tpu.matmul %29, %31, %cst_31 {dimension_numbers = #tpu.dot_dimension_numbers<[1], [0], [0], [1], [0, 0, 1, 1], [], []>} : vector<512x18xbf16>, vector<18x64xbf16>, vector<512x64xf32> -> vector<512x64xf32>
    %33 = arith.addf %26, %32 : vector<512x64xf32>
    %c0_32 = arith.constant 0 : index
    %c1_33 = arith.constant 1 : index
    %c0_34 = arith.constant 0 : index
    %c0_35 = arith.constant 0 : index
    %34 = vector.load %arg1[%c0_32, %c1_33, %c0_34, %c0_35] : memref<2x2x288x18xbf16, #tpu.memory_space<vmem>>, vector<2x1x256x18xbf16>
    %35 = vector.shape_cast %34 : vector<2x1x256x18xbf16> to vector<2x256x18xbf16>
    %36 = vector.shape_cast %35 : vector<2x256x18xbf16> to vector<512x18xbf16>
    %c0_36 = arith.constant 0 : index
    %c0_37 = arith.constant 0 : index
    %c0_38 = arith.constant 0 : index
    %37 = vector.load %arg2[%c0_36, %c0_37, %c0_38] : memref<5x18x64xbf16, #tpu.memory_space<vmem>>, vector<1x18x64xbf16>
    %38 = vector.shape_cast %37 : vector<1x18x64xbf16> to vector<18x64xbf16>
    %cst_39 = arith.constant dense<0.000000e+00> : vector<512x64xf32>
    %39 = tpu.matmul %36, %38, %cst_39 {dimension_numbers = #tpu.dot_dimension_numbers<[1], [0], [0], [1], [0, 0, 1, 1], [], []>} : vector<512x18xbf16>, vector<18x64xbf16>, vector<512x64xf32> -> vector<512x64xf32>
    %c0_40 = arith.constant 0 : index
    %c0_41 = arith.constant 0 : index
    %c16_42 = arith.constant 16 : index
    %c0_43 = arith.constant 0 : index
    %40 = vector.load %arg1[%c0_40, %c0_41, %c16_42, %c0_43] : memref<2x2x288x18xbf16, #tpu.memory_space<vmem>>, vector<2x1x256x18xbf16>
    %41 = vector.shape_cast %40 : vector<2x1x256x18xbf16> to vector<2x256x18xbf16>
    %42 = vector.shape_cast %41 : vector<2x256x18xbf16> to vector<512x18xbf16>
    %c1_44 = arith.constant 1 : index
    %c0_45 = arith.constant 0 : index
    %c0_46 = arith.constant 0 : index
    %43 = vector.load %arg2[%c1_44, %c0_45, %c0_46] : memref<5x18x64xbf16, #tpu.memory_space<vmem>>, vector<1x18x64xbf16>
    %44 = vector.shape_cast %43 : vector<1x18x64xbf16> to vector<18x64xbf16>
    %cst_47 = arith.constant dense<0.000000e+00> : vector<512x64xf32>
    %45 = tpu.matmul %42, %44, %cst_47 {dimension_numbers = #tpu.dot_dimension_numbers<[1], [0], [0], [1], [0, 0, 1, 1], [], []>} : vector<512x18xbf16>, vector<18x64xbf16>, vector<512x64xf32> -> vector<512x64xf32>
    %46 = arith.addf %39, %45 : vector<512x64xf32>
    %c0_48 = arith.constant 0 : index
    %c1_49 = arith.constant 1 : index
    %c16_50 = arith.constant 16 : index
    %c0_51 = arith.constant 0 : index
    %47 = vector.load %arg1[%c0_48, %c1_49, %c16_50, %c0_51] : memref<2x2x288x18xbf16, #tpu.memory_space<vmem>>, vector<2x1x256x18xbf16>
    %48 = vector.shape_cast %47 : vector<2x1x256x18xbf16> to vector<2x256x18xbf16>
    %49 = vector.shape_cast %48 : vector<2x256x18xbf16> to vector<512x18xbf16>
    %c2_52 = arith.constant 2 : index
    %c0_53 = arith.constant 0 : index
    %c0_54 = arith.constant 0 : index
    %50 = vector.load %arg2[%c2_52, %c0_53, %c0_54] : memref<5x18x64xbf16, #tpu.memory_space<vmem>>, vector<1x18x64xbf16>
    %51 = vector.shape_cast %50 : vector<1x18x64xbf16> to vector<18x64xbf16>
    %cst_55 = arith.constant dense<0.000000e+00> : vector<512x64xf32>
    %52 = tpu.matmul %49, %51, %cst_55 {dimension_numbers = #tpu.dot_dimension_numbers<[1], [0], [0], [1], [0, 0, 1, 1], [], []>} : vector<512x18xbf16>, vector<18x64xbf16>, vector<512x64xf32> -> vector<512x64xf32>
    %53 = arith.addf %46, %52 : vector<512x64xf32>
    %c0_56 = arith.constant 0 : index
    %c0_57 = arith.constant 0 : index
    %c32_58 = arith.constant 32 : index
    %c0_59 = arith.constant 0 : index
    %54 = vector.load %arg1[%c0_56, %c0_57, %c32_58, %c0_59] : memref<2x2x288x18xbf16, #tpu.memory_space<vmem>>, vector<2x1x256x18xbf16>
    %55 = vector.shape_cast %54 : vector<2x1x256x18xbf16> to vector<2x256x18xbf16>
    %56 = vector.shape_cast %55 : vector<2x256x18xbf16> to vector<512x18xbf16>
    %c3_60 = arith.constant 3 : index
    %c0_61 = arith.constant 0 : index
    %c0_62 = arith.constant 0 : index
    %57 = vector.load %arg2[%c3_60, %c0_61, %c0_62] : memref<5x18x64xbf16, #tpu.memory_space<vmem>>, vector<1x18x64xbf16>
    %58 = vector.shape_cast %57 : vector<1x18x64xbf16> to vector<18x64xbf16>
    %cst_63 = arith.constant dense<0.000000e+00> : vector<512x64xf32>
    %59 = tpu.matmul %56, %58, %cst_63 {dimension_numbers = #tpu.dot_dimension_numbers<[1], [0], [0], [1], [0, 0, 1, 1], [], []>} : vector<512x18xbf16>, vector<18x64xbf16>, vector<512x64xf32> -> vector<512x64xf32>
    %60 = arith.addf %53, %59 : vector<512x64xf32>
    %c0_64 = arith.constant 0 : index
    %c1_65 = arith.constant 1 : index
    %c32_66 = arith.constant 32 : index
    %c0_67 = arith.constant 0 : index
    %61 = vector.load %arg1[%c0_64, %c1_65, %c32_66, %c0_67] : memref<2x2x288x18xbf16, #tpu.memory_space<vmem>>, vector<2x1x256x18xbf16>
    %62 = vector.shape_cast %61 : vector<2x1x256x18xbf16> to vector<2x256x18xbf16>
    %63 = vector.shape_cast %62 : vector<2x256x18xbf16> to vector<512x18xbf16>
    %c4_68 = arith.constant 4 : index
    %c0_69 = arith.constant 0 : index
    %c0_70 = arith.constant 0 : index
    %64 = vector.load %arg2[%c4_68, %c0_69, %c0_70] : memref<5x18x64xbf16, #tpu.memory_space<vmem>>, vector<1x18x64xbf16>
    %65 = vector.shape_cast %64 : vector<1x18x64xbf16> to vector<18x64xbf16>
    %cst_71 = arith.constant dense<0.000000e+00> : vector<512x64xf32>
    %66 = tpu.matmul %63, %65, %cst_71 {dimension_numbers = #tpu.dot_dimension_numbers<[1], [0], [0], [1], [0, 0, 1, 1], [], []>} : vector<512x18xbf16>, vector<18x64xbf16>, vector<512x64xf32> -> vector<512x64xf32>
    %67 = arith.addf %60, %66 : vector<512x64xf32>
    %68 = arith.maximumf %33, %67 : vector<512x64xf32>
    %69 = vector.extract_strided_slice %68 {offsets = [0, 0], sizes = [512, 32], strides = [1, 1]} : vector<512x64xf32> to vector<512x32xf32>
    %70 = vector.extract_strided_slice %68 {offsets = [0, 32], sizes = [512, 32], strides = [1, 1]} : vector<512x64xf32> to vector<512x32xf32>
    %71 = arith.maximumf %69, %70 : vector<512x32xf32>
    %c0_72 = arith.constant 0 : index
    %c0_73 = arith.constant 0 : index
    %72 = vector.load %arg3[%c0_72, %c0_73] : memref<1x32xf32, #tpu.memory_space<vmem>>, vector<1x32xf32>
    %73 = vector.broadcast %72 : vector<1x32xf32> to vector<512x32xf32>
    %74 = arith.addf %71, %73 : vector<512x32xf32>
    %75 = vector.shape_cast %74 : vector<512x32xf32> to vector<2x256x32xf32>
    %76 = arith.truncf %75 : vector<2x256x32xf32> to vector<2x256x32xbf16>
    %c0_74 = arith.constant 0 : index
    %c0_75 = arith.constant 0 : index
    %c0_76 = arith.constant 0 : index
    %77 = vector.load %arg4[%c0_74, %c0_75, %c0_76] : memref<2x256x32xbf16, #tpu.memory_space<vmem>>, vector<2x256x32xbf16>
    tpu.vector_store %arg4[%c0_74, %c0_75, %c0_76], %76 {strides = array<i32>} : memref<2x256x32xbf16, #tpu.memory_space<vmem>>, vector<2x256x32xbf16>,
    return
  }
  func.func @transform_0(%arg0: i32) -> (i32, i32, i32, i32) {
    %c0_i32 = arith.constant 0 : i32
    %c0_i32_0 = arith.constant 0 : i32
    %c0_i32_1 = arith.constant 0 : i32
    %c0_i32_2 = arith.constant 0 : i32
    return %arg0, %c0_i32, %c0_i32_0, %c0_i32_1 : i32, i32, i32, i32
  }
  func.func @transform_1(%arg0: i32) -> (i32, i32, i32) {
    %c0_i32 = arith.constant 0 : i32
    %c0_i32_0 = arith.constant 0 : i32
    %c0_i32_1 = arith.constant 0 : i32
    %c0_i32_2 = arith.constant 0 : i32
    return %c0_i32, %c0_i32_0, %c0_i32_1 : i32, i32, i32
  }
  func.func @transform_2(%arg0: i32) -> (i32, i32) {
    %c0_i32 = arith.constant 0 : i32
    %c0_i32_0 = arith.constant 0 : i32
    %c0_i32_1 = arith.constant 0 : i32
    return %c0_i32, %c0_i32_0 : i32, i32
  }
  func.func @transform_3(%arg0: i32) -> (i32, i32, i32) {
    %c0_i32 = arith.constant 0 : i32
    %c0_i32_0 = arith.constant 0 : i32
    %c0_i32_1 = arith.constant 0 : i32
    return %arg0, %c0_i32, %c0_i32_0 : i32, i32, i32
  }
}

module attributes {stable_mosaic.version = 11 : i64} {
  func.func @kernel(%arg0: i32, %arg1: memref<2x2x80x192xbf16, #tpu.memory_space<vmem>>, %arg2: memref<5x192x64xbf16, #tpu.memory_space<vmem>>, %arg3: memref<1x32xf32, #tpu.memory_space<vmem>>, %arg4: memref<2x64x32xbf16, #tpu.memory_space<vmem>>) attributes {dimension_semantics = [#tpu.dimension_semantics<parallel>], iteration_bounds = array<i64: 1>, scalar_prefetch = 0 : i64, scratch_operands = 0 : i64, tpu.core_type = #tpu.core_type<tc>, window_params = [{transform_indices = @transform_0, window_bounds = array<i64: 2, 2, 80, 192>}, {pipeline_mode = #tpu.pipeline_mode<synchronous>, transform_indices = @transform_1, window_bounds = array<i64: 5, 192, 64>}, {pipeline_mode = #tpu.pipeline_mode<synchronous>, transform_indices = @transform_2, window_bounds = array<i64: 1, 32>}, {transform_indices = @transform_3, window_bounds = array<i64: 2, 64, 32>}]} {
    %c0 = arith.constant 0 : index
    %c0_0 = arith.constant 0 : index
    %c0_1 = arith.constant 0 : index
    %c0_2 = arith.constant 0 : index
    %0 = vector.load %arg1[%c0, %c0_0, %c0_1, %c0_2] : memref<2x2x80x192xbf16, #tpu.memory_space<vmem>>, vector<2x1x64x192xbf16>
    %1 = vector.shape_cast %0 : vector<2x1x64x192xbf16> to vector<2x64x192xbf16>
    %2 = vector.shape_cast %1 : vector<2x64x192xbf16> to vector<128x192xbf16>
    %c0_3 = arith.constant 0 : index
    %c0_4 = arith.constant 0 : index
    %c0_5 = arith.constant 0 : index
    %3 = vector.load %arg2[%c0_3, %c0_4, %c0_5] : memref<5x192x64xbf16, #tpu.memory_space<vmem>>, vector<1x192x64xbf16>
    %4 = vector.shape_cast %3 : vector<1x192x64xbf16> to vector<192x64xbf16>
    %cst = arith.constant dense<0.000000e+00> : vector<128x64xf32>
    %5 = tpu.matmul %2, %4, %cst {dimension_numbers = #tpu.dot_dimension_numbers<[1], [0], [0], [1], [0, 0, 1, 1], [], []>} : vector<128x192xbf16>, vector<192x64xbf16>, vector<128x64xf32> -> vector<128x64xf32>
    %c0_6 = arith.constant 0 : index
    %c1 = arith.constant 1 : index
    %c0_7 = arith.constant 0 : index
    %c0_8 = arith.constant 0 : index
    %6 = vector.load %arg1[%c0_6, %c1, %c0_7, %c0_8] : memref<2x2x80x192xbf16, #tpu.memory_space<vmem>>, vector<2x1x64x192xbf16>
    %7 = vector.shape_cast %6 : vector<2x1x64x192xbf16> to vector<2x64x192xbf16>
    %8 = vector.shape_cast %7 : vector<2x64x192xbf16> to vector<128x192xbf16>
    %c1_9 = arith.constant 1 : index
    %c0_10 = arith.constant 0 : index
    %c0_11 = arith.constant 0 : index
    %9 = vector.load %arg2[%c1_9, %c0_10, %c0_11] : memref<5x192x64xbf16, #tpu.memory_space<vmem>>, vector<1x192x64xbf16>
    %10 = vector.shape_cast %9 : vector<1x192x64xbf16> to vector<192x64xbf16>
    %cst_12 = arith.constant dense<0.000000e+00> : vector<128x64xf32>
    %11 = tpu.matmul %8, %10, %cst_12 {dimension_numbers = #tpu.dot_dimension_numbers<[1], [0], [0], [1], [0, 0, 1, 1], [], []>} : vector<128x192xbf16>, vector<192x64xbf16>, vector<128x64xf32> -> vector<128x64xf32>
    %12 = arith.addf %5, %11 : vector<128x64xf32>
    %c0_13 = arith.constant 0 : index
    %c0_14 = arith.constant 0 : index
    %c8 = arith.constant 8 : index
    %c0_15 = arith.constant 0 : index
    %13 = vector.load %arg1[%c0_13, %c0_14, %c8, %c0_15] : memref<2x2x80x192xbf16, #tpu.memory_space<vmem>>, vector<2x1x64x192xbf16>
    %14 = vector.shape_cast %13 : vector<2x1x64x192xbf16> to vector<2x64x192xbf16>
    %15 = vector.shape_cast %14 : vector<2x64x192xbf16> to vector<128x192xbf16>
    %c2 = arith.constant 2 : index
    %c0_16 = arith.constant 0 : index
    %c0_17 = arith.constant 0 : index
    %16 = vector.load %arg2[%c2, %c0_16, %c0_17] : memref<5x192x64xbf16, #tpu.memory_space<vmem>>, vector<1x192x64xbf16>
    %17 = vector.shape_cast %16 : vector<1x192x64xbf16> to vector<192x64xbf16>
    %cst_18 = arith.constant dense<0.000000e+00> : vector<128x64xf32>
    %18 = tpu.matmul %15, %17, %cst_18 {dimension_numbers = #tpu.dot_dimension_numbers<[1], [0], [0], [1], [0, 0, 1, 1], [], []>} : vector<128x192xbf16>, vector<192x64xbf16>, vector<128x64xf32> -> vector<128x64xf32>
    %19 = arith.addf %12, %18 : vector<128x64xf32>
    %c0_19 = arith.constant 0 : index
    %c1_20 = arith.constant 1 : index
    %c8_21 = arith.constant 8 : index
    %c0_22 = arith.constant 0 : index
    %20 = vector.load %arg1[%c0_19, %c1_20, %c8_21, %c0_22] : memref<2x2x80x192xbf16, #tpu.memory_space<vmem>>, vector<2x1x64x192xbf16>
    %21 = vector.shape_cast %20 : vector<2x1x64x192xbf16> to vector<2x64x192xbf16>
    %22 = vector.shape_cast %21 : vector<2x64x192xbf16> to vector<128x192xbf16>
    %c3 = arith.constant 3 : index
    %c0_23 = arith.constant 0 : index
    %c0_24 = arith.constant 0 : index
    %23 = vector.load %arg2[%c3, %c0_23, %c0_24] : memref<5x192x64xbf16, #tpu.memory_space<vmem>>, vector<1x192x64xbf16>
    %24 = vector.shape_cast %23 : vector<1x192x64xbf16> to vector<192x64xbf16>
    %cst_25 = arith.constant dense<0.000000e+00> : vector<128x64xf32>
    %25 = tpu.matmul %22, %24, %cst_25 {dimension_numbers = #tpu.dot_dimension_numbers<[1], [0], [0], [1], [0, 0, 1, 1], [], []>} : vector<128x192xbf16>, vector<192x64xbf16>, vector<128x64xf32> -> vector<128x64xf32>
    %26 = arith.addf %19, %25 : vector<128x64xf32>
    %c0_26 = arith.constant 0 : index
    %c0_27 = arith.constant 0 : index
    %c16 = arith.constant 16 : index
    %c0_28 = arith.constant 0 : index
    %27 = vector.load %arg1[%c0_26, %c0_27, %c16, %c0_28] : memref<2x2x80x192xbf16, #tpu.memory_space<vmem>>, vector<2x1x64x192xbf16>
    %28 = vector.shape_cast %27 : vector<2x1x64x192xbf16> to vector<2x64x192xbf16>
    %29 = vector.shape_cast %28 : vector<2x64x192xbf16> to vector<128x192xbf16>
    %c4 = arith.constant 4 : index
    %c0_29 = arith.constant 0 : index
    %c0_30 = arith.constant 0 : index
    %30 = vector.load %arg2[%c4, %c0_29, %c0_30] : memref<5x192x64xbf16, #tpu.memory_space<vmem>>, vector<1x192x64xbf16>
    %31 = vector.shape_cast %30 : vector<1x192x64xbf16> to vector<192x64xbf16>
    %cst_31 = arith.constant dense<0.000000e+00> : vector<128x64xf32>
    %32 = tpu.matmul %29, %31, %cst_31 {dimension_numbers = #tpu.dot_dimension_numbers<[1], [0], [0], [1], [0, 0, 1, 1], [], []>} : vector<128x192xbf16>, vector<192x64xbf16>, vector<128x64xf32> -> vector<128x64xf32>
    %33 = arith.addf %26, %32 : vector<128x64xf32>
    %c0_32 = arith.constant 0 : index
    %c1_33 = arith.constant 1 : index
    %c0_34 = arith.constant 0 : index
    %c0_35 = arith.constant 0 : index
    %34 = vector.load %arg1[%c0_32, %c1_33, %c0_34, %c0_35] : memref<2x2x80x192xbf16, #tpu.memory_space<vmem>>, vector<2x1x64x192xbf16>
    %35 = vector.shape_cast %34 : vector<2x1x64x192xbf16> to vector<2x64x192xbf16>
    %36 = vector.shape_cast %35 : vector<2x64x192xbf16> to vector<128x192xbf16>
    %c0_36 = arith.constant 0 : index
    %c0_37 = arith.constant 0 : index
    %c0_38 = arith.constant 0 : index
    %37 = vector.load %arg2[%c0_36, %c0_37, %c0_38] : memref<5x192x64xbf16, #tpu.memory_space<vmem>>, vector<1x192x64xbf16>
    %38 = vector.shape_cast %37 : vector<1x192x64xbf16> to vector<192x64xbf16>
    %cst_39 = arith.constant dense<0.000000e+00> : vector<128x64xf32>
    %39 = tpu.matmul %36, %38, %cst_39 {dimension_numbers = #tpu.dot_dimension_numbers<[1], [0], [0], [1], [0, 0, 1, 1], [], []>} : vector<128x192xbf16>, vector<192x64xbf16>, vector<128x64xf32> -> vector<128x64xf32>
    %c0_40 = arith.constant 0 : index
    %c0_41 = arith.constant 0 : index
    %c8_42 = arith.constant 8 : index
    %c0_43 = arith.constant 0 : index
    %40 = vector.load %arg1[%c0_40, %c0_41, %c8_42, %c0_43] : memref<2x2x80x192xbf16, #tpu.memory_space<vmem>>, vector<2x1x64x192xbf16>
    %41 = vector.shape_cast %40 : vector<2x1x64x192xbf16> to vector<2x64x192xbf16>
    %42 = vector.shape_cast %41 : vector<2x64x192xbf16> to vector<128x192xbf16>
    %c1_44 = arith.constant 1 : index
    %c0_45 = arith.constant 0 : index
    %c0_46 = arith.constant 0 : index
    %43 = vector.load %arg2[%c1_44, %c0_45, %c0_46] : memref<5x192x64xbf16, #tpu.memory_space<vmem>>, vector<1x192x64xbf16>
    %44 = vector.shape_cast %43 : vector<1x192x64xbf16> to vector<192x64xbf16>
    %cst_47 = arith.constant dense<0.000000e+00> : vector<128x64xf32>
    %45 = tpu.matmul %42, %44, %cst_47 {dimension_numbers = #tpu.dot_dimension_numbers<[1], [0], [0], [1], [0, 0, 1, 1], [], []>} : vector<128x192xbf16>, vector<192x64xbf16>, vector<128x64xf32> -> vector<128x64xf32>
    %46 = arith.addf %39, %45 : vector<128x64xf32>
    %c0_48 = arith.constant 0 : index
    %c1_49 = arith.constant 1 : index
    %c8_50 = arith.constant 8 : index
    %c0_51 = arith.constant 0 : index
    %47 = vector.load %arg1[%c0_48, %c1_49, %c8_50, %c0_51] : memref<2x2x80x192xbf16, #tpu.memory_space<vmem>>, vector<2x1x64x192xbf16>
    %48 = vector.shape_cast %47 : vector<2x1x64x192xbf16> to vector<2x64x192xbf16>
    %49 = vector.shape_cast %48 : vector<2x64x192xbf16> to vector<128x192xbf16>
    %c2_52 = arith.constant 2 : index
    %c0_53 = arith.constant 0 : index
    %c0_54 = arith.constant 0 : index
    %50 = vector.load %arg2[%c2_52, %c0_53, %c0_54] : memref<5x192x64xbf16, #tpu.memory_space<vmem>>, vector<1x192x64xbf16>
    %51 = vector.shape_cast %50 : vector<1x192x64xbf16> to vector<192x64xbf16>
    %cst_55 = arith.constant dense<0.000000e+00> : vector<128x64xf32>
    %52 = tpu.matmul %49, %51, %cst_55 {dimension_numbers = #tpu.dot_dimension_numbers<[1], [0], [0], [1], [0, 0, 1, 1], [], []>} : vector<128x192xbf16>, vector<192x64xbf16>, vector<128x64xf32> -> vector<128x64xf32>
    %53 = arith.addf %46, %52 : vector<128x64xf32>
    %c0_56 = arith.constant 0 : index
    %c0_57 = arith.constant 0 : index
    %c16_58 = arith.constant 16 : index
    %c0_59 = arith.constant 0 : index
    %54 = vector.load %arg1[%c0_56, %c0_57, %c16_58, %c0_59] : memref<2x2x80x192xbf16, #tpu.memory_space<vmem>>, vector<2x1x64x192xbf16>
    %55 = vector.shape_cast %54 : vector<2x1x64x192xbf16> to vector<2x64x192xbf16>
    %56 = vector.shape_cast %55 : vector<2x64x192xbf16> to vector<128x192xbf16>
    %c3_60 = arith.constant 3 : index
    %c0_61 = arith.constant 0 : index
    %c0_62 = arith.constant 0 : index
    %57 = vector.load %arg2[%c3_60, %c0_61, %c0_62] : memref<5x192x64xbf16, #tpu.memory_space<vmem>>, vector<1x192x64xbf16>
    %58 = vector.shape_cast %57 : vector<1x192x64xbf16> to vector<192x64xbf16>
    %cst_63 = arith.constant dense<0.000000e+00> : vector<128x64xf32>
    %59 = tpu.matmul %56, %58, %cst_63 {dimension_numbers = #tpu.dot_dimension_numbers<[1], [0], [0], [1], [0, 0, 1, 1], [], []>} : vector<128x192xbf16>, vector<192x64xbf16>, vector<128x64xf32> -> vector<128x64xf32>
    %60 = arith.addf %53, %59 : vector<128x64xf32>
    %c0_64 = arith.constant 0 : index
    %c1_65 = arith.constant 1 : index
    %c16_66 = arith.constant 16 : index
    %c0_67 = arith.constant 0 : index
    %61 = vector.load %arg1[%c0_64, %c1_65, %c16_66, %c0_67] : memref<2x2x80x192xbf16, #tpu.memory_space<vmem>>, vector<2x1x64x192xbf16>
    %62 = vector.shape_cast %61 : vector<2x1x64x192xbf16> to vector<2x64x192xbf16>
    %63 = vector.shape_cast %62 : vector<2x64x192xbf16> to vector<128x192xbf16>
    %c4_68 = arith.constant 4 : index
    %c0_69 = arith.constant 0 : index
    %c0_70 = arith.constant 0 : index
    %64 = vector.load %arg2[%c4_68, %c0_69, %c0_70] : memref<5x192x64xbf16, #tpu.memory_space<vmem>>, vector<1x192x64xbf16>
    %65 = vector.shape_cast %64 : vector<1x192x64xbf16> to vector<192x64xbf16>
    %cst_71 = arith.constant dense<0.000000e+00> : vector<128x64xf32>
    %66 = tpu.matmul %63, %65, %cst_71 {dimension_numbers = #tpu.dot_dimension_numbers<[1], [0], [0], [1], [0, 0, 1, 1], [], []>} : vector<128x192xbf16>, vector<192x64xbf16>, vector<128x64xf32> -> vector<128x64xf32>
    %67 = arith.addf %60, %66 : vector<128x64xf32>
    %68 = arith.maximumf %33, %67 : vector<128x64xf32>
    %69 = vector.extract_strided_slice %68 {offsets = [0, 0], sizes = [128, 32], strides = [1, 1]} : vector<128x64xf32> to vector<128x32xf32>
    %70 = vector.extract_strided_slice %68 {offsets = [0, 32], sizes = [128, 32], strides = [1, 1]} : vector<128x64xf32> to vector<128x32xf32>
    %71 = arith.maximumf %69, %70 : vector<128x32xf32>
    %c0_72 = arith.constant 0 : index
    %c0_73 = arith.constant 0 : index
    %72 = vector.load %arg3[%c0_72, %c0_73] : memref<1x32xf32, #tpu.memory_space<vmem>>, vector<1x32xf32>
    %73 = vector.broadcast %72 : vector<1x32xf32> to vector<128x32xf32>
    %74 = arith.addf %71, %73 : vector<128x32xf32>
    %75 = vector.shape_cast %74 : vector<128x32xf32> to vector<2x64x32xf32>
    %76 = arith.truncf %75 : vector<2x64x32xf32> to vector<2x64x32xbf16>
    %c0_74 = arith.constant 0 : index
    %c0_75 = arith.constant 0 : index
    %c0_76 = arith.constant 0 : index
    %77 = vector.load %arg4[%c0_74, %c0_75, %c0_76] : memref<2x64x32xbf16, #tpu.memory_space<vmem>>, vector<2x64x32xbf16>
    tpu.vector_store %arg4[%c0_74, %c0_75, %c0_76], %76 {strides = array<i32>} : memref<2x64x32xbf16, #tpu.memory_space<vmem>>, vector<2x64x32xbf16>,
    return
  }
  func.func @transform_0(%arg0: i32) -> (i32, i32, i32, i32) {
    %c0_i32 = arith.constant 0 : i32
    %c0_i32_0 = arith.constant 0 : i32
    %c0_i32_1 = arith.constant 0 : i32
    %c0_i32_2 = arith.constant 0 : i32
    return %arg0, %c0_i32, %c0_i32_0, %c0_i32_1 : i32, i32, i32, i32
  }
  func.func @transform_1(%arg0: i32) -> (i32, i32, i32) {
    %c0_i32 = arith.constant 0 : i32
    %c0_i32_0 = arith.constant 0 : i32
    %c0_i32_1 = arith.constant 0 : i32
    %c0_i32_2 = arith.constant 0 : i32
    return %c0_i32, %c0_i32_0, %c0_i32_1 : i32, i32, i32
  }
  func.func @transform_2(%arg0: i32) -> (i32, i32) {
    %c0_i32 = arith.constant 0 : i32
    %c0_i32_0 = arith.constant 0 : i32
    %c0_i32_1 = arith.constant 0 : i32
    return %c0_i32, %c0_i32_0 : i32, i32
  }
  func.func @transform_3(%arg0: i32) -> (i32, i32, i32) {
    %c0_i32 = arith.constant 0 : i32
    %c0_i32_0 = arith.constant 0 : i32
    %c0_i32_1 = arith.constant 0 : i32
    return %arg0, %c0_i32, %c0_i32_0 : i32, i32, i32
  }
}

module attributes {stable_mosaic.version = 11 : i64} {
  func.func @kernel(%arg0: i32, %arg1: memref<2x2x24x192xbf16, #tpu.memory_space<vmem>>, %arg2: memref<5x192x128xbf16, #tpu.memory_space<vmem>>, %arg3: memref<1x64xf32, #tpu.memory_space<vmem>>, %arg4: memref<16x64x64xbf16, #tpu.memory_space<vmem>>, %arg5: memref<1x64xf32, #tpu.memory_space<vmem>>, %arg6: memref<64x128xbf16, #tpu.memory_space<vmem>>, %arg7: memref<1x128xf32, #tpu.memory_space<vmem>>, %arg8: memref<1x2x128xf32, #tpu.memory_space<vmem>>) attributes {dimension_semantics = [#tpu.dimension_semantics<parallel>], iteration_bounds = array<i64: 1>, scalar_prefetch = 0 : i64, scratch_operands = 0 : i64, tpu.core_type = #tpu.core_type<tc>, window_params = [{transform_indices = @transform_0, window_bounds = array<i64: 2, 2, 24, 192>}, {pipeline_mode = #tpu.pipeline_mode<synchronous>, transform_indices = @transform_1, window_bounds = array<i64: 5, 192, 128>}, {pipeline_mode = #tpu.pipeline_mode<synchronous>, transform_indices = @transform_2, window_bounds = array<i64: 1, 64>}, {pipeline_mode = #tpu.pipeline_mode<synchronous>, transform_indices = @transform_3, window_bounds = array<i64: 16, 64, 64>}, {pipeline_mode = #tpu.pipeline_mode<synchronous>, transform_indices = @transform_4, window_bounds = array<i64: 1, 64>}, {pipeline_mode = #tpu.pipeline_mode<synchronous>, transform_indices = @transform_5, window_bounds = array<i64: 64, 128>}, {pipeline_mode = #tpu.pipeline_mode<synchronous>, transform_indices = @transform_6, window_bounds = array<i64: 1, 128>}, {transform_indices = @transform_7, window_bounds = array<i64: 1, 2, 128>}]} {
    %c0 = arith.constant 0 : index
    %c0_0 = arith.constant 0 : index
    %c0_1 = arith.constant 0 : index
    %c0_2 = arith.constant 0 : index
    %0 = vector.load %arg1[%c0, %c0_0, %c0_1, %c0_2] : memref<2x2x24x192xbf16, #tpu.memory_space<vmem>>, vector<2x1x16x192xbf16>
    %1 = vector.shape_cast %0 : vector<2x1x16x192xbf16> to vector<2x16x192xbf16>
    %2 = vector.shape_cast %1 : vector<2x16x192xbf16> to vector<32x192xbf16>
    %c0_3 = arith.constant 0 : index
    %c0_4 = arith.constant 0 : index
    %c0_5 = arith.constant 0 : index
    %3 = vector.load %arg2[%c0_3, %c0_4, %c0_5] : memref<5x192x128xbf16, #tpu.memory_space<vmem>>, vector<1x192x128xbf16>
    %4 = vector.shape_cast %3 : vector<1x192x128xbf16> to vector<192x128xbf16>
    %cst = arith.constant dense<0.000000e+00> : vector<32x128xf32>
    %5 = tpu.matmul %2, %4, %cst {dimension_numbers = #tpu.dot_dimension_numbers<[1], [0], [0], [1], [0, 0, 1, 1], [], []>} : vector<32x192xbf16>, vector<192x128xbf16>, vector<32x128xf32> -> vector<32x128xf32>
    %c0_6 = arith.constant 0 : index
    %c1 = arith.constant 1 : index
    %c0_7 = arith.constant 0 : index
    %c0_8 = arith.constant 0 : index
    %6 = vector.load %arg1[%c0_6, %c1, %c0_7, %c0_8] : memref<2x2x24x192xbf16, #tpu.memory_space<vmem>>, vector<2x1x16x192xbf16>
    %7 = vector.shape_cast %6 : vector<2x1x16x192xbf16> to vector<2x16x192xbf16>
    %8 = vector.shape_cast %7 : vector<2x16x192xbf16> to vector<32x192xbf16>
    %c1_9 = arith.constant 1 : index
    %c0_10 = arith.constant 0 : index
    %c0_11 = arith.constant 0 : index
    %9 = vector.load %arg2[%c1_9, %c0_10, %c0_11] : memref<5x192x128xbf16, #tpu.memory_space<vmem>>, vector<1x192x128xbf16>
    %10 = vector.shape_cast %9 : vector<1x192x128xbf16> to vector<192x128xbf16>
    %cst_12 = arith.constant dense<0.000000e+00> : vector<32x128xf32>
    %11 = tpu.matmul %8, %10, %cst_12 {dimension_numbers = #tpu.dot_dimension_numbers<[1], [0], [0], [1], [0, 0, 1, 1], [], []>} : vector<32x192xbf16>, vector<192x128xbf16>, vector<32x128xf32> -> vector<32x128xf32>
    %12 = arith.addf %5, %11 : vector<32x128xf32>
    %c0_13 = arith.constant 0 : index
    %c0_14 = arith.constant 0 : index
    %c4 = arith.constant 4 : index
    %c0_15 = arith.constant 0 : index
    %13 = vector.load %arg1[%c0_13, %c0_14, %c4, %c0_15] : memref<2x2x24x192xbf16, #tpu.memory_space<vmem>>, vector<2x1x16x192xbf16>
    %14 = vector.shape_cast %13 : vector<2x1x16x192xbf16> to vector<2x16x192xbf16>
    %15 = vector.shape_cast %14 : vector<2x16x192xbf16> to vector<32x192xbf16>
    %c2 = arith.constant 2 : index
    %c0_16 = arith.constant 0 : index
    %c0_17 = arith.constant 0 : index
    %16 = vector.load %arg2[%c2, %c0_16, %c0_17] : memref<5x192x128xbf16, #tpu.memory_space<vmem>>, vector<1x192x128xbf16>
    %17 = vector.shape_cast %16 : vector<1x192x128xbf16> to vector<192x128xbf16>
    %cst_18 = arith.constant dense<0.000000e+00> : vector<32x128xf32>
    %18 = tpu.matmul %15, %17, %cst_18 {dimension_numbers = #tpu.dot_dimension_numbers<[1], [0], [0], [1], [0, 0, 1, 1], [], []>} : vector<32x192xbf16>, vector<192x128xbf16>, vector<32x128xf32> -> vector<32x128xf32>
    %19 = arith.addf %12, %18 : vector<32x128xf32>
    %c0_19 = arith.constant 0 : index
    %c1_20 = arith.constant 1 : index
    %c4_21 = arith.constant 4 : index
    %c0_22 = arith.constant 0 : index
    %20 = vector.load %arg1[%c0_19, %c1_20, %c4_21, %c0_22] : memref<2x2x24x192xbf16, #tpu.memory_space<vmem>>, vector<2x1x16x192xbf16>
    %21 = vector.shape_cast %20 : vector<2x1x16x192xbf16> to vector<2x16x192xbf16>
    %22 = vector.shape_cast %21 : vector<2x16x192xbf16> to vector<32x192xbf16>
    %c3 = arith.constant 3 : index
    %c0_23 = arith.constant 0 : index
    %c0_24 = arith.constant 0 : index
    %23 = vector.load %arg2[%c3, %c0_23, %c0_24] : memref<5x192x128xbf16, #tpu.memory_space<vmem>>, vector<1x192x128xbf16>
    %24 = vector.shape_cast %23 : vector<1x192x128xbf16> to vector<192x128xbf16>
    %cst_25 = arith.constant dense<0.000000e+00> : vector<32x128xf32>
    %25 = tpu.matmul %22, %24, %cst_25 {dimension_numbers = #tpu.dot_dimension_numbers<[1], [0], [0], [1], [0, 0, 1, 1], [], []>} : vector<32x192xbf16>, vector<192x128xbf16>, vector<32x128xf32> -> vector<32x128xf32>
    %26 = arith.addf %19, %25 : vector<32x128xf32>
    %c0_26 = arith.constant 0 : index
    %c0_27 = arith.constant 0 : index
    %c8 = arith.constant 8 : index
    %c0_28 = arith.constant 0 : index
    %27 = vector.load %arg1[%c0_26, %c0_27, %c8, %c0_28] : memref<2x2x24x192xbf16, #tpu.memory_space<vmem>>, vector<2x1x16x192xbf16>
    %28 = vector.shape_cast %27 : vector<2x1x16x192xbf16> to vector<2x16x192xbf16>
    %29 = vector.shape_cast %28 : vector<2x16x192xbf16> to vector<32x192xbf16>
    %c4_29 = arith.constant 4 : index
    %c0_30 = arith.constant 0 : index
    %c0_31 = arith.constant 0 : index
    %30 = vector.load %arg2[%c4_29, %c0_30, %c0_31] : memref<5x192x128xbf16, #tpu.memory_space<vmem>>, vector<1x192x128xbf16>
    %31 = vector.shape_cast %30 : vector<1x192x128xbf16> to vector<192x128xbf16>
    %cst_32 = arith.constant dense<0.000000e+00> : vector<32x128xf32>
    %32 = tpu.matmul %29, %31, %cst_32 {dimension_numbers = #tpu.dot_dimension_numbers<[1], [0], [0], [1], [0, 0, 1, 1], [], []>} : vector<32x192xbf16>, vector<192x128xbf16>, vector<32x128xf32> -> vector<32x128xf32>
    %33 = arith.addf %26, %32 : vector<32x128xf32>
    %c0_33 = arith.constant 0 : index
    %c1_34 = arith.constant 1 : index
    %c0_35 = arith.constant 0 : index
    %c0_36 = arith.constant 0 : index
    %34 = vector.load %arg1[%c0_33, %c1_34, %c0_35, %c0_36] : memref<2x2x24x192xbf16, #tpu.memory_space<vmem>>, vector<2x1x16x192xbf16>
    %35 = vector.shape_cast %34 : vector<2x1x16x192xbf16> to vector<2x16x192xbf16>
    %36 = vector.shape_cast %35 : vector<2x16x192xbf16> to vector<32x192xbf16>
    %c0_37 = arith.constant 0 : index
    %c0_38 = arith.constant 0 : index
    %c0_39 = arith.constant 0 : index
    %37 = vector.load %arg2[%c0_37, %c0_38, %c0_39] : memref<5x192x128xbf16, #tpu.memory_space<vmem>>, vector<1x192x128xbf16>
    %38 = vector.shape_cast %37 : vector<1x192x128xbf16> to vector<192x128xbf16>
    %cst_40 = arith.constant dense<0.000000e+00> : vector<32x128xf32>
    %39 = tpu.matmul %36, %38, %cst_40 {dimension_numbers = #tpu.dot_dimension_numbers<[1], [0], [0], [1], [0, 0, 1, 1], [], []>} : vector<32x192xbf16>, vector<192x128xbf16>, vector<32x128xf32> -> vector<32x128xf32>
    %c0_41 = arith.constant 0 : index
    %c0_42 = arith.constant 0 : index
    %c4_43 = arith.constant 4 : index
    %c0_44 = arith.constant 0 : index
    %40 = vector.load %arg1[%c0_41, %c0_42, %c4_43, %c0_44] : memref<2x2x24x192xbf16, #tpu.memory_space<vmem>>, vector<2x1x16x192xbf16>
    %41 = vector.shape_cast %40 : vector<2x1x16x192xbf16> to vector<2x16x192xbf16>
    %42 = vector.shape_cast %41 : vector<2x16x192xbf16> to vector<32x192xbf16>
    %c1_45 = arith.constant 1 : index
    %c0_46 = arith.constant 0 : index
    %c0_47 = arith.constant 0 : index
    %43 = vector.load %arg2[%c1_45, %c0_46, %c0_47] : memref<5x192x128xbf16, #tpu.memory_space<vmem>>, vector<1x192x128xbf16>
    %44 = vector.shape_cast %43 : vector<1x192x128xbf16> to vector<192x128xbf16>
    %cst_48 = arith.constant dense<0.000000e+00> : vector<32x128xf32>
    %45 = tpu.matmul %42, %44, %cst_48 {dimension_numbers = #tpu.dot_dimension_numbers<[1], [0], [0], [1], [0, 0, 1, 1], [], []>} : vector<32x192xbf16>, vector<192x128xbf16>, vector<32x128xf32> -> vector<32x128xf32>
    %46 = arith.addf %39, %45 : vector<32x128xf32>
    %c0_49 = arith.constant 0 : index
    %c1_50 = arith.constant 1 : index
    %c4_51 = arith.constant 4 : index
    %c0_52 = arith.constant 0 : index
    %47 = vector.load %arg1[%c0_49, %c1_50, %c4_51, %c0_52] : memref<2x2x24x192xbf16, #tpu.memory_space<vmem>>, vector<2x1x16x192xbf16>
    %48 = vector.shape_cast %47 : vector<2x1x16x192xbf16> to vector<2x16x192xbf16>
    %49 = vector.shape_cast %48 : vector<2x16x192xbf16> to vector<32x192xbf16>
    %c2_53 = arith.constant 2 : index
    %c0_54 = arith.constant 0 : index
    %c0_55 = arith.constant 0 : index
    %50 = vector.load %arg2[%c2_53, %c0_54, %c0_55] : memref<5x192x128xbf16, #tpu.memory_space<vmem>>, vector<1x192x128xbf16>
    %51 = vector.shape_cast %50 : vector<1x192x128xbf16> to vector<192x128xbf16>
    %cst_56 = arith.constant dense<0.000000e+00> : vector<32x128xf32>
    %52 = tpu.matmul %49, %51, %cst_56 {dimension_numbers = #tpu.dot_dimension_numbers<[1], [0], [0], [1], [0, 0, 1, 1], [], []>} : vector<32x192xbf16>, vector<192x128xbf16>, vector<32x128xf32> -> vector<32x128xf32>
    %53 = arith.addf %46, %52 : vector<32x128xf32>
    %c0_57 = arith.constant 0 : index
    %c0_58 = arith.constant 0 : index
    %c8_59 = arith.constant 8 : index
    %c0_60 = arith.constant 0 : index
    %54 = vector.load %arg1[%c0_57, %c0_58, %c8_59, %c0_60] : memref<2x2x24x192xbf16, #tpu.memory_space<vmem>>, vector<2x1x16x192xbf16>
    %55 = vector.shape_cast %54 : vector<2x1x16x192xbf16> to vector<2x16x192xbf16>
    %56 = vector.shape_cast %55 : vector<2x16x192xbf16> to vector<32x192xbf16>
    %c3_61 = arith.constant 3 : index
    %c0_62 = arith.constant 0 : index
    %c0_63 = arith.constant 0 : index
    %57 = vector.load %arg2[%c3_61, %c0_62, %c0_63] : memref<5x192x128xbf16, #tpu.memory_space<vmem>>, vector<1x192x128xbf16>
    %58 = vector.shape_cast %57 : vector<1x192x128xbf16> to vector<192x128xbf16>
    %cst_64 = arith.constant dense<0.000000e+00> : vector<32x128xf32>
    %59 = tpu.matmul %56, %58, %cst_64 {dimension_numbers = #tpu.dot_dimension_numbers<[1], [0], [0], [1], [0, 0, 1, 1], [], []>} : vector<32x192xbf16>, vector<192x128xbf16>, vector<32x128xf32> -> vector<32x128xf32>
    %60 = arith.addf %53, %59 : vector<32x128xf32>
    %c0_65 = arith.constant 0 : index
    %c1_66 = arith.constant 1 : index
    %c8_67 = arith.constant 8 : index
    %c0_68 = arith.constant 0 : index
    %61 = vector.load %arg1[%c0_65, %c1_66, %c8_67, %c0_68] : memref<2x2x24x192xbf16, #tpu.memory_space<vmem>>, vector<2x1x16x192xbf16>
    %62 = vector.shape_cast %61 : vector<2x1x16x192xbf16> to vector<2x16x192xbf16>
    %63 = vector.shape_cast %62 : vector<2x16x192xbf16> to vector<32x192xbf16>
    %c4_69 = arith.constant 4 : index
    %c0_70 = arith.constant 0 : index
    %c0_71 = arith.constant 0 : index
    %64 = vector.load %arg2[%c4_69, %c0_70, %c0_71] : memref<5x192x128xbf16, #tpu.memory_space<vmem>>, vector<1x192x128xbf16>
    %65 = vector.shape_cast %64 : vector<1x192x128xbf16> to vector<192x128xbf16>
    %cst_72 = arith.constant dense<0.000000e+00> : vector<32x128xf32>
    %66 = tpu.matmul %63, %65, %cst_72 {dimension_numbers = #tpu.dot_dimension_numbers<[1], [0], [0], [1], [0, 0, 1, 1], [], []>} : vector<32x192xbf16>, vector<192x128xbf16>, vector<32x128xf32> -> vector<32x128xf32>
    %67 = arith.addf %60, %66 : vector<32x128xf32>
    %68 = arith.maximumf %33, %67 : vector<32x128xf32>
    %69 = vector.extract_strided_slice %68 {offsets = [0, 0], sizes = [32, 64], strides = [1, 1]} : vector<32x128xf32> to vector<32x64xf32>
    %70 = vector.extract_strided_slice %68 {offsets = [0, 64], sizes = [32, 64], strides = [1, 1]} : vector<32x128xf32> to vector<32x64xf32>
    %71 = arith.maximumf %69, %70 : vector<32x64xf32>
    %c0_73 = arith.constant 0 : index
    %c0_74 = arith.constant 0 : index
    %72 = vector.load %arg3[%c0_73, %c0_74] : memref<1x64xf32, #tpu.memory_space<vmem>>, vector<1x64xf32>
    %73 = vector.broadcast %72 : vector<1x64xf32> to vector<32x64xf32>
    %74 = arith.addf %71, %73 : vector<32x64xf32>
    %75 = vector.shape_cast %74 : vector<32x64xf32> to vector<2x16x64xf32>
    %76 = arith.truncf %75 : vector<2x16x64xf32> to vector<2x16x64xbf16>
    %cst_75 = arith.constant 0.000000e+00 : f32
    %77 = vector.broadcast %cst_75 : f32 to vector<2x64xf32>
    %78 = vector.extract_strided_slice %76 {offsets = [0, 0, 0], sizes = [2, 1, 64], strides = [1, 1, 1]} : vector<2x16x64xbf16> to vector<2x1x64xbf16>
    %79 = vector.shape_cast %78 : vector<2x1x64xbf16> to vector<2x64xbf16>
    %c0_76 = arith.constant 0 : index
    %c0_77 = arith.constant 0 : index
    %c0_78 = arith.constant 0 : index
    %80 = vector.load %arg4[%c0_76, %c0_77, %c0_78] : memref<16x64x64xbf16, #tpu.memory_space<vmem>>, vector<1x64x64xbf16>
    %81 = vector.shape_cast %80 : vector<1x64x64xbf16> to vector<64x64xbf16>
    %cst_79 = arith.constant dense<0.000000e+00> : vector<2x64xf32>
    %82 = tpu.matmul %79, %81, %cst_79 {dimension_numbers = #tpu.dot_dimension_numbers<[1], [0], [0], [1], [0, 0, 1, 1], [], []>} : vector<2x64xbf16>, vector<64x64xbf16>, vector<2x64xf32> -> vector<2x64xf32>
    %83 = arith.addf %77, %82 : vector<2x64xf32>
    %84 = vector.extract_strided_slice %76 {offsets = [0, 1, 0], sizes = [2, 1, 64], strides = [1, 1, 1]} : vector<2x16x64xbf16> to vector<2x1x64xbf16>
    %85 = vector.shape_cast %84 : vector<2x1x64xbf16> to vector<2x64xbf16>
    %c1_80 = arith.constant 1 : index
    %c0_81 = arith.constant 0 : index
    %c0_82 = arith.constant 0 : index
    %86 = vector.load %arg4[%c1_80, %c0_81, %c0_82] : memref<16x64x64xbf16, #tpu.memory_space<vmem>>, vector<1x64x64xbf16>
    %87 = vector.shape_cast %86 : vector<1x64x64xbf16> to vector<64x64xbf16>
    %cst_83 = arith.constant dense<0.000000e+00> : vector<2x64xf32>
    %88 = tpu.matmul %85, %87, %cst_83 {dimension_numbers = #tpu.dot_dimension_numbers<[1], [0], [0], [1], [0, 0, 1, 1], [], []>} : vector<2x64xbf16>, vector<64x64xbf16>, vector<2x64xf32> -> vector<2x64xf32>
    %89 = arith.addf %83, %88 : vector<2x64xf32>
    %90 = vector.extract_strided_slice %76 {offsets = [0, 2, 0], sizes = [2, 1, 64], strides = [1, 1, 1]} : vector<2x16x64xbf16> to vector<2x1x64xbf16>
    %91 = vector.shape_cast %90 : vector<2x1x64xbf16> to vector<2x64xbf16>
    %c2_84 = arith.constant 2 : index
    %c0_85 = arith.constant 0 : index
    %c0_86 = arith.constant 0 : index
    %92 = vector.load %arg4[%c2_84, %c0_85, %c0_86] : memref<16x64x64xbf16, #tpu.memory_space<vmem>>, vector<1x64x64xbf16>
    %93 = vector.shape_cast %92 : vector<1x64x64xbf16> to vector<64x64xbf16>
    %cst_87 = arith.constant dense<0.000000e+00> : vector<2x64xf32>
    %94 = tpu.matmul %91, %93, %cst_87 {dimension_numbers = #tpu.dot_dimension_numbers<[1], [0], [0], [1], [0, 0, 1, 1], [], []>} : vector<2x64xbf16>, vector<64x64xbf16>, vector<2x64xf32> -> vector<2x64xf32>
    %95 = arith.addf %89, %94 : vector<2x64xf32>
    %96 = vector.extract_strided_slice %76 {offsets = [0, 3, 0], sizes = [2, 1, 64], strides = [1, 1, 1]} : vector<2x16x64xbf16> to vector<2x1x64xbf16>
    %97 = vector.shape_cast %96 : vector<2x1x64xbf16> to vector<2x64xbf16>
    %c3_88 = arith.constant 3 : index
    %c0_89 = arith.constant 0 : index
    %c0_90 = arith.constant 0 : index
    %98 = vector.load %arg4[%c3_88, %c0_89, %c0_90] : memref<16x64x64xbf16, #tpu.memory_space<vmem>>, vector<1x64x64xbf16>
    %99 = vector.shape_cast %98 : vector<1x64x64xbf16> to vector<64x64xbf16>
    %cst_91 = arith.constant dense<0.000000e+00> : vector<2x64xf32>
    %100 = tpu.matmul %97, %99, %cst_91 {dimension_numbers = #tpu.dot_dimension_numbers<[1], [0], [0], [1], [0, 0, 1, 1], [], []>} : vector<2x64xbf16>, vector<64x64xbf16>, vector<2x64xf32> -> vector<2x64xf32>
    %101 = arith.addf %95, %100 : vector<2x64xf32>
    %102 = vector.extract_strided_slice %76 {offsets = [0, 4, 0], sizes = [2, 1, 64], strides = [1, 1, 1]} : vector<2x16x64xbf16> to vector<2x1x64xbf16>
    %103 = vector.shape_cast %102 : vector<2x1x64xbf16> to vector<2x64xbf16>
    %c4_92 = arith.constant 4 : index
    %c0_93 = arith.constant 0 : index
    %c0_94 = arith.constant 0 : index
    %104 = vector.load %arg4[%c4_92, %c0_93, %c0_94] : memref<16x64x64xbf16, #tpu.memory_space<vmem>>, vector<1x64x64xbf16>
    %105 = vector.shape_cast %104 : vector<1x64x64xbf16> to vector<64x64xbf16>
    %cst_95 = arith.constant dense<0.000000e+00> : vector<2x64xf32>
    %106 = tpu.matmul %103, %105, %cst_95 {dimension_numbers = #tpu.dot_dimension_numbers<[1], [0], [0], [1], [0, 0, 1, 1], [], []>} : vector<2x64xbf16>, vector<64x64xbf16>, vector<2x64xf32> -> vector<2x64xf32>
    %107 = arith.addf %101, %106 : vector<2x64xf32>
    %108 = vector.extract_strided_slice %76 {offsets = [0, 5, 0], sizes = [2, 1, 64], strides = [1, 1, 1]} : vector<2x16x64xbf16> to vector<2x1x64xbf16>
    %109 = vector.shape_cast %108 : vector<2x1x64xbf16> to vector<2x64xbf16>
    %c5 = arith.constant 5 : index
    %c0_96 = arith.constant 0 : index
    %c0_97 = arith.constant 0 : index
    %110 = vector.load %arg4[%c5, %c0_96, %c0_97] : memref<16x64x64xbf16, #tpu.memory_space<vmem>>, vector<1x64x64xbf16>
    %111 = vector.shape_cast %110 : vector<1x64x64xbf16> to vector<64x64xbf16>
    %cst_98 = arith.constant dense<0.000000e+00> : vector<2x64xf32>
    %112 = tpu.matmul %109, %111, %cst_98 {dimension_numbers = #tpu.dot_dimension_numbers<[1], [0], [0], [1], [0, 0, 1, 1], [], []>} : vector<2x64xbf16>, vector<64x64xbf16>, vector<2x64xf32> -> vector<2x64xf32>
    %113 = arith.addf %107, %112 : vector<2x64xf32>
    %114 = vector.extract_strided_slice %76 {offsets = [0, 6, 0], sizes = [2, 1, 64], strides = [1, 1, 1]} : vector<2x16x64xbf16> to vector<2x1x64xbf16>
    %115 = vector.shape_cast %114 : vector<2x1x64xbf16> to vector<2x64xbf16>
    %c6 = arith.constant 6 : index
    %c0_99 = arith.constant 0 : index
    %c0_100 = arith.constant 0 : index
    %116 = vector.load %arg4[%c6, %c0_99, %c0_100] : memref<16x64x64xbf16, #tpu.memory_space<vmem>>, vector<1x64x64xbf16>
    %117 = vector.shape_cast %116 : vector<1x64x64xbf16> to vector<64x64xbf16>
    %cst_101 = arith.constant dense<0.000000e+00> : vector<2x64xf32>
    %118 = tpu.matmul %115, %117, %cst_101 {dimension_numbers = #tpu.dot_dimension_numbers<[1], [0], [0], [1], [0, 0, 1, 1], [], []>} : vector<2x64xbf16>, vector<64x64xbf16>, vector<2x64xf32> -> vector<2x64xf32>
    %119 = arith.addf %113, %118 : vector<2x64xf32>
    %120 = vector.extract_strided_slice %76 {offsets = [0, 7, 0], sizes = [2, 1, 64], strides = [1, 1, 1]} : vector<2x16x64xbf16> to vector<2x1x64xbf16>
    %121 = vector.shape_cast %120 : vector<2x1x64xbf16> to vector<2x64xbf16>
    %c7 = arith.constant 7 : index
    %c0_102 = arith.constant 0 : index
    %c0_103 = arith.constant 0 : index
    %122 = vector.load %arg4[%c7, %c0_102, %c0_103] : memref<16x64x64xbf16, #tpu.memory_space<vmem>>, vector<1x64x64xbf16>
    %123 = vector.shape_cast %122 : vector<1x64x64xbf16> to vector<64x64xbf16>
    %cst_104 = arith.constant dense<0.000000e+00> : vector<2x64xf32>
    %124 = tpu.matmul %121, %123, %cst_104 {dimension_numbers = #tpu.dot_dimension_numbers<[1], [0], [0], [1], [0, 0, 1, 1], [], []>} : vector<2x64xbf16>, vector<64x64xbf16>, vector<2x64xf32> -> vector<2x64xf32>
    %125 = arith.addf %119, %124 : vector<2x64xf32>
    %126 = vector.extract_strided_slice %76 {offsets = [0, 8, 0], sizes = [2, 1, 64], strides = [1, 1, 1]} : vector<2x16x64xbf16> to vector<2x1x64xbf16>
    %127 = vector.shape_cast %126 : vector<2x1x64xbf16> to vector<2x64xbf16>
    %c8_105 = arith.constant 8 : index
    %c0_106 = arith.constant 0 : index
    %c0_107 = arith.constant 0 : index
    %128 = vector.load %arg4[%c8_105, %c0_106, %c0_107] : memref<16x64x64xbf16, #tpu.memory_space<vmem>>, vector<1x64x64xbf16>
    %129 = vector.shape_cast %128 : vector<1x64x64xbf16> to vector<64x64xbf16>
    %cst_108 = arith.constant dense<0.000000e+00> : vector<2x64xf32>
    %130 = tpu.matmul %127, %129, %cst_108 {dimension_numbers = #tpu.dot_dimension_numbers<[1], [0], [0], [1], [0, 0, 1, 1], [], []>} : vector<2x64xbf16>, vector<64x64xbf16>, vector<2x64xf32> -> vector<2x64xf32>
    %131 = arith.addf %125, %130 : vector<2x64xf32>
    %132 = vector.extract_strided_slice %76 {offsets = [0, 9, 0], sizes = [2, 1, 64], strides = [1, 1, 1]} : vector<2x16x64xbf16> to vector<2x1x64xbf16>
    %133 = vector.shape_cast %132 : vector<2x1x64xbf16> to vector<2x64xbf16>
    %c9 = arith.constant 9 : index
    %c0_109 = arith.constant 0 : index
    %c0_110 = arith.constant 0 : index
    %134 = vector.load %arg4[%c9, %c0_109, %c0_110] : memref<16x64x64xbf16, #tpu.memory_space<vmem>>, vector<1x64x64xbf16>
    %135 = vector.shape_cast %134 : vector<1x64x64xbf16> to vector<64x64xbf16>
    %cst_111 = arith.constant dense<0.000000e+00> : vector<2x64xf32>
    %136 = tpu.matmul %133, %135, %cst_111 {dimension_numbers = #tpu.dot_dimension_numbers<[1], [0], [0], [1], [0, 0, 1, 1], [], []>} : vector<2x64xbf16>, vector<64x64xbf16>, vector<2x64xf32> -> vector<2x64xf32>
    %137 = arith.addf %131, %136 : vector<2x64xf32>
    %138 = vector.extract_strided_slice %76 {offsets = [0, 10, 0], sizes = [2, 1, 64], strides = [1, 1, 1]} : vector<2x16x64xbf16> to vector<2x1x64xbf16>
    %139 = vector.shape_cast %138 : vector<2x1x64xbf16> to vector<2x64xbf16>
    %c10 = arith.constant 10 : index
    %c0_112 = arith.constant 0 : index
    %c0_113 = arith.constant 0 : index
    %140 = vector.load %arg4[%c10, %c0_112, %c0_113] : memref<16x64x64xbf16, #tpu.memory_space<vmem>>, vector<1x64x64xbf16>
    %141 = vector.shape_cast %140 : vector<1x64x64xbf16> to vector<64x64xbf16>
    %cst_114 = arith.constant dense<0.000000e+00> : vector<2x64xf32>
    %142 = tpu.matmul %139, %141, %cst_114 {dimension_numbers = #tpu.dot_dimension_numbers<[1], [0], [0], [1], [0, 0, 1, 1], [], []>} : vector<2x64xbf16>, vector<64x64xbf16>, vector<2x64xf32> -> vector<2x64xf32>
    %143 = arith.addf %137, %142 : vector<2x64xf32>
    %144 = vector.extract_strided_slice %76 {offsets = [0, 11, 0], sizes = [2, 1, 64], strides = [1, 1, 1]} : vector<2x16x64xbf16> to vector<2x1x64xbf16>
    %145 = vector.shape_cast %144 : vector<2x1x64xbf16> to vector<2x64xbf16>
    %c11 = arith.constant 11 : index
    %c0_115 = arith.constant 0 : index
    %c0_116 = arith.constant 0 : index
    %146 = vector.load %arg4[%c11, %c0_115, %c0_116] : memref<16x64x64xbf16, #tpu.memory_space<vmem>>, vector<1x64x64xbf16>
    %147 = vector.shape_cast %146 : vector<1x64x64xbf16> to vector<64x64xbf16>
    %cst_117 = arith.constant dense<0.000000e+00> : vector<2x64xf32>
    %148 = tpu.matmul %145, %147, %cst_117 {dimension_numbers = #tpu.dot_dimension_numbers<[1], [0], [0], [1], [0, 0, 1, 1], [], []>} : vector<2x64xbf16>, vector<64x64xbf16>, vector<2x64xf32> -> vector<2x64xf32>
    %149 = arith.addf %143, %148 : vector<2x64xf32>
    %150 = vector.extract_strided_slice %76 {offsets = [0, 12, 0], sizes = [2, 1, 64], strides = [1, 1, 1]} : vector<2x16x64xbf16> to vector<2x1x64xbf16>
    %151 = vector.shape_cast %150 : vector<2x1x64xbf16> to vector<2x64xbf16>
    %c12 = arith.constant 12 : index
    %c0_118 = arith.constant 0 : index
    %c0_119 = arith.constant 0 : index
    %152 = vector.load %arg4[%c12, %c0_118, %c0_119] : memref<16x64x64xbf16, #tpu.memory_space<vmem>>, vector<1x64x64xbf16>
    %153 = vector.shape_cast %152 : vector<1x64x64xbf16> to vector<64x64xbf16>
    %cst_120 = arith.constant dense<0.000000e+00> : vector<2x64xf32>
    %154 = tpu.matmul %151, %153, %cst_120 {dimension_numbers = #tpu.dot_dimension_numbers<[1], [0], [0], [1], [0, 0, 1, 1], [], []>} : vector<2x64xbf16>, vector<64x64xbf16>, vector<2x64xf32> -> vector<2x64xf32>
    %155 = arith.addf %149, %154 : vector<2x64xf32>
    %156 = vector.extract_strided_slice %76 {offsets = [0, 13, 0], sizes = [2, 1, 64], strides = [1, 1, 1]} : vector<2x16x64xbf16> to vector<2x1x64xbf16>
    %157 = vector.shape_cast %156 : vector<2x1x64xbf16> to vector<2x64xbf16>
    %c13 = arith.constant 13 : index
    %c0_121 = arith.constant 0 : index
    %c0_122 = arith.constant 0 : index
    %158 = vector.load %arg4[%c13, %c0_121, %c0_122] : memref<16x64x64xbf16, #tpu.memory_space<vmem>>, vector<1x64x64xbf16>
    %159 = vector.shape_cast %158 : vector<1x64x64xbf16> to vector<64x64xbf16>
    %cst_123 = arith.constant dense<0.000000e+00> : vector<2x64xf32>
    %160 = tpu.matmul %157, %159, %cst_123 {dimension_numbers = #tpu.dot_dimension_numbers<[1], [0], [0], [1], [0, 0, 1, 1], [], []>} : vector<2x64xbf16>, vector<64x64xbf16>, vector<2x64xf32> -> vector<2x64xf32>
    %161 = arith.addf %155, %160 : vector<2x64xf32>
    %162 = vector.extract_strided_slice %76 {offsets = [0, 14, 0], sizes = [2, 1, 64], strides = [1, 1, 1]} : vector<2x16x64xbf16> to vector<2x1x64xbf16>
    %163 = vector.shape_cast %162 : vector<2x1x64xbf16> to vector<2x64xbf16>
    %c14 = arith.constant 14 : index
    %c0_124 = arith.constant 0 : index
    %c0_125 = arith.constant 0 : index
    %164 = vector.load %arg4[%c14, %c0_124, %c0_125] : memref<16x64x64xbf16, #tpu.memory_space<vmem>>, vector<1x64x64xbf16>
    %165 = vector.shape_cast %164 : vector<1x64x64xbf16> to vector<64x64xbf16>
    %cst_126 = arith.constant dense<0.000000e+00> : vector<2x64xf32>
    %166 = tpu.matmul %163, %165, %cst_126 {dimension_numbers = #tpu.dot_dimension_numbers<[1], [0], [0], [1], [0, 0, 1, 1], [], []>} : vector<2x64xbf16>, vector<64x64xbf16>, vector<2x64xf32> -> vector<2x64xf32>
    %167 = arith.addf %161, %166 : vector<2x64xf32>
    %168 = vector.extract_strided_slice %76 {offsets = [0, 15, 0], sizes = [2, 1, 64], strides = [1, 1, 1]} : vector<2x16x64xbf16> to vector<2x1x64xbf16>
    %169 = vector.shape_cast %168 : vector<2x1x64xbf16> to vector<2x64xbf16>
    %c15 = arith.constant 15 : index
    %c0_127 = arith.constant 0 : index
    %c0_128 = arith.constant 0 : index
    %170 = vector.load %arg4[%c15, %c0_127, %c0_128] : memref<16x64x64xbf16, #tpu.memory_space<vmem>>, vector<1x64x64xbf16>
    %171 = vector.shape_cast %170 : vector<1x64x64xbf16> to vector<64x64xbf16>
    %cst_129 = arith.constant dense<0.000000e+00> : vector<2x64xf32>
    %172 = tpu.matmul %169, %171, %cst_129 {dimension_numbers = #tpu.dot_dimension_numbers<[1], [0], [0], [1], [0, 0, 1, 1], [], []>} : vector<2x64xbf16>, vector<64x64xbf16>, vector<2x64xf32> -> vector<2x64xf32>
    %173 = arith.addf %167, %172 : vector<2x64xf32>
    %c0_130 = arith.constant 0 : index
    %c0_131 = arith.constant 0 : index
    %174 = vector.load %arg5[%c0_130, %c0_131] : memref<1x64xf32, #tpu.memory_space<vmem>>, vector<1x64xf32>
    %175 = vector.broadcast %174 : vector<1x64xf32> to vector<2x64xf32>
    %176 = arith.addf %173, %175 : vector<2x64xf32>
    %177 = arith.truncf %176 : vector<2x64xf32> to vector<2x64xbf16>
    %c0_132 = arith.constant 0 : index
    %c0_133 = arith.constant 0 : index
    %178 = vector.load %arg6[%c0_132, %c0_133] : memref<64x128xbf16, #tpu.memory_space<vmem>>, vector<64x128xbf16>
    %cst_134 = arith.constant dense<0.000000e+00> : vector<2x128xf32>
    %179 = tpu.matmul %177, %178, %cst_134 {dimension_numbers = #tpu.dot_dimension_numbers<[1], [0], [0], [1], [0, 0, 1, 1], [], []>} : vector<2x64xbf16>, vector<64x128xbf16>, vector<2x128xf32> -> vector<2x128xf32>
    %c0_135 = arith.constant 0 : index
    %c0_136 = arith.constant 0 : index
    %180 = vector.load %arg7[%c0_135, %c0_136] : memref<1x128xf32, #tpu.memory_space<vmem>>, vector<1x128xf32>
    %181 = vector.broadcast %180 : vector<1x128xf32> to vector<2x128xf32>
    %182 = arith.addf %179, %181 : vector<2x128xf32>
    %c0_137 = arith.constant 0 : index
    %c0_138 = arith.constant 0 : index
    %c0_139 = arith.constant 0 : index
    %183 = vector.load %arg8[%c0_137, %c0_138, %c0_139] : memref<1x2x128xf32, #tpu.memory_space<vmem>>, vector<1x2x128xf32>
    %184 = vector.shape_cast %183 : vector<1x2x128xf32> to vector<2x128xf32>
    %185 = vector.shape_cast %182 : vector<2x128xf32> to vector<1x2x128xf32>
    tpu.vector_store %arg8[%c0_137, %c0_138, %c0_139], %185 {strides = array<i32>} : memref<1x2x128xf32, #tpu.memory_space<vmem>>, vector<1x2x128xf32>,
    return
  }
  func.func @transform_0(%arg0: i32) -> (i32, i32, i32, i32) {
    %c0_i32 = arith.constant 0 : i32
    %c0_i32_0 = arith.constant 0 : i32
    %c0_i32_1 = arith.constant 0 : i32
    %c0_i32_2 = arith.constant 0 : i32
    return %arg0, %c0_i32, %c0_i32_0, %c0_i32_1 : i32, i32, i32, i32
  }
  func.func @transform_1(%arg0: i32) -> (i32, i32, i32) {
    %c0_i32 = arith.constant 0 : i32
    %c0_i32_0 = arith.constant 0 : i32
    %c0_i32_1 = arith.constant 0 : i32
    %c0_i32_2 = arith.constant 0 : i32
    return %c0_i32, %c0_i32_0, %c0_i32_1 : i32, i32, i32
  }
  func.func @transform_2(%arg0: i32) -> (i32, i32) {
    %c0_i32 = arith.constant 0 : i32
    %c0_i32_0 = arith.constant 0 : i32
    %c0_i32_1 = arith.constant 0 : i32
    return %c0_i32, %c0_i32_0 : i32, i32
  }
  func.func @transform_3(%arg0: i32) -> (i32, i32, i32) {
    %c0_i32 = arith.constant 0 : i32
    %c0_i32_0 = arith.constant 0 : i32
    %c0_i32_1 = arith.constant 0 : i32
    %c0_i32_2 = arith.constant 0 : i32
    return %c0_i32, %c0_i32_0, %c0_i32_1 : i32, i32, i32
  }
  func.func @transform_4(%arg0: i32) -> (i32, i32) {
    %c0_i32 = arith.constant 0 : i32
    %c0_i32_0 = arith.constant 0 : i32
    %c0_i32_1 = arith.constant 0 : i32
    return %c0_i32, %c0_i32_0 : i32, i32
  }
  func.func @transform_5(%arg0: i32) -> (i32, i32) {
    %c0_i32 = arith.constant 0 : i32
    %c0_i32_0 = arith.constant 0 : i32
    %c0_i32_1 = arith.constant 0 : i32
    return %c0_i32, %c0_i32_0 : i32, i32
  }
  func.func @transform_6(%arg0: i32) -> (i32, i32) {
    %c0_i32 = arith.constant 0 : i32
    %c0_i32_0 = arith.constant 0 : i32
    %c0_i32_1 = arith.constant 0 : i32
    return %c0_i32, %c0_i32_0 : i32, i32
  }
  func.func @transform_7(%arg0: i32) -> (i32, i32, i32) {
    %c0_i32 = arith.constant 0 : i32
    %c0_i32_0 = arith.constant 0 : i32
    %c0_i32_1 = arith.constant 0 : i32
    return %arg0, %c0_i32, %c0_i32_0 : i32, i32, i32
  }
}

</mosaic_0001>

<llo_original>
// kernel: forward.3
$region0: #{forward.3}
  #allocation0 [shape = 'u32[]', space=smem, size = 0x4, offset = 0x4, fixed_abs, tag = 'smem constant byte address 0x4 - core index']
  #allocation1 [shape = 'u32[144,128]{1,0:T(1,128)}', space=vmem, size = 0x12000, scoped, tag = 'internal scratch']
  %s0 = inlined_call_operand.vmem [shape: bf16[2,2,288,18], index: 0, kind: input, shape index: {}]
  %s1 = inlined_call_operand.vmem [shape: bf16[5,18,64], index: 1, kind: input, shape index: {}]
  %s2 = inlined_call_operand.vmem [shape: f32[1,32], index: 2, kind: input, shape index: {}]
  %s3 = inlined_call_operand.vmem [shape: bf16[2,256,32], index: 3, kind: output, shape index: {}]
  %s4 = sld [smem:[#allocation0]]
  $region22: #{forward.3} parent=0
    _
  %s6 = ssub.s32 1, %s4
  %s7 = scalar_select 0, %s6, %s4
  // Predicated region
  $region2: #{forward.3} parent=0 // pred_check
    _
  $region3: #{forward.3} parent=0 // pred_check_branch
    %9 = sbr.rel (0) target = $region5
  $region4: #{forward.3} parent=0 // pred_region
    _
  $region5: #{forward.3} parent=0 // pred_fallthru
    _
  // Predicated region
  $region6: #{forward.3} parent=0 // pred_check
    _
  $region7: #{forward.3} parent=0 // pred_check_branch
    %11 = sbr.rel (0) target = $region9
  $region8: #{forward.3} parent=0 // pred_region
    _
  $region9: #{forward.3} parent=0 // pred_fallthru
    _
  // Predicated region
  $region10: #{forward.3} parent=0 // pred_check
    _
  $region11: #{forward.3} parent=0 // pred_check_branch
    %13 = sbr.rel (0) target = $region13
  $region12: #{forward.3} parent=0 // pred_region
    _
  $region13: #{forward.3} parent=0 // pred_fallthru
    _
  %v15 = vld [vmem:[%s0] sm:$0xf]
  %v16 = vld [vmem:[%s0 + $0x4] sm:$0xf]
  %v17 = vld [vmem:[%s0 + $0x8] sm:$0xf]
  %v18 = vld [vmem:[%s0 + $0xc] sm:$0xf]
  %v19 = vld [vmem:[%s0 + $0x10] sm:$0xf]
  %v20 = vld [vmem:[%s0 + $0x14] sm:$0xf]
  %v21 = vld [vmem:[%s0 + $0x18] sm:$0xf]
  %v22 = vld [vmem:[%s0 + $0x1c] sm:$0xf]
  %v23 = vld [vmem:[%s0 + $0x20] sm:$0xf]
  %v24 = vld [vmem:[%s0 + $0x24] sm:$0xf]
  %v25 = vld [vmem:[%s0 + $0x28] sm:$0xf]
  %v26 = vld [vmem:[%s0 + $0x2c] sm:$0xf]
  %v27 = vld [vmem:[%s0 + $0x30] sm:$0xf]
  %v28 = vld [vmem:[%s0 + $0x34] sm:$0xf]
  %v29 = vld [vmem:[%s0 + $0x38] sm:$0xf]
  %v30 = vld [vmem:[%s0 + $0x3c] sm:$0xf]
  %v31 = vld [vmem:[%s0 + $0x40] sm:$0xf]
  %v32 = vld [vmem:[%s0 + $0x44] sm:$0xf]
  %v33 = vld [vmem:[%s0 + $0x48] sm:$0xf]
  %v34 = vld [vmem:[%s0 + $0x4c] sm:$0xf]
  %v35 = vld [vmem:[%s0 + $0x50] sm:$0xf]
  %v36 = vld [vmem:[%s0 + $0x54] sm:$0xf]
  %v37 = vld [vmem:[%s0 + $0x58] sm:$0xf]
  %v38 = vld [vmem:[%s0 + $0x5c] sm:$0xf]
  %v39 = vld [vmem:[%s0 + $0x60] sm:$0xf]
  %v40 = vld [vmem:[%s0 + $0x64] sm:$0xf]
  %v41 = vld [vmem:[%s0 + $0x68] sm:$0xf]
  %v42 = vld [vmem:[%s0 + $0x6c] sm:$0xf]
  %v43 = vld [vmem:[%s0 + $0x70] sm:$0xf]
  %v44 = vld [vmem:[%s0 + $0x74] sm:$0xf]
  %v45 = vld [vmem:[%s0 + $0x78] sm:$0xf]
  %v46 = vld [vmem:[%s0 + $0x7c] sm:$0xf]
  %v47 = vld [vmem:[%s0 + $0x120] sm:$0xf]
  %v48 = vld [vmem:[%s0 + $0x124] sm:$0xf]
  %v49 = vld [vmem:[%s0 + $0x128] sm:$0xf]
  %v50 = vld [vmem:[%s0 + $0x12c] sm:$0xf]
  %v51 = vld [vmem:[%s0 + $0x130] sm:$0xf]
  %v52 = vld [vmem:[%s0 + $0x134] sm:$0xf]
  %v53 = vld [vmem:[%s0 + $0x138] sm:$0xf]
  %v54 = vld [vmem:[%s0 + $0x13c] sm:$0xf]
  %v55 = vld [vmem:[%s0 + $0x140] sm:$0xf]
  %v56 = vld [vmem:[%s0 + $0x144] sm:$0xf]
  %v57 = vld [vmem:[%s0 + $0x148] sm:$0xf]
  %v58 = vld [vmem:[%s0 + $0x14c] sm:$0xf]
  %v59 = vld [vmem:[%s0 + $0x150] sm:$0xf]
  %v60 = vld [vmem:[%s0 + $0x154] sm:$0xf]
  %v61 = vld [vmem:[%s0 + $0x158] sm:$0xf]
  %v62 = vld [vmem:[%s0 + $0x15c] sm:$0xf]
  %v63 = vld [vmem:[%s0 + $0x160] sm:$0xf]
  %v64 = vld [vmem:[%s0 + $0x164] sm:$0xf]
  %v65 = vld [vmem:[%s0 + $0x168] sm:$0xf]
  %v66 = vld [vmem:[%s0 + $0x16c] sm:$0xf]
  %v67 = vld [vmem:[%s0 + $0x170] sm:$0xf]
  %v68 = vld [vmem:[%s0 + $0x174] sm:$0xf]
  %v69 = vld [vmem:[%s0 + $0x178] sm:$0xf]
  %v70 = vld [vmem:[%s0 + $0x17c] sm:$0xf]
  %v71 = vld [vmem:[%s0 + $0x180] sm:$0xf]
  %v72 = vld [vmem:[%s0 + $0x184] sm:$0xf]
  %v73 = vld [vmem:[%s0 + $0x188] sm:$0xf]
  %v74 = vld [vmem:[%s0 + $0x18c] sm:$0xf]
  %v75 = vld [vmem:[%s0 + $0x190] sm:$0xf]
  %v76 = vld [vmem:[%s0 + $0x194] sm:$0xf]
  %v77 = vld [vmem:[%s0 + $0x198] sm:$0xf]
  %v78 = vld [vmem:[%s0 + $0x19c] sm:$0xf]
  %v79 = vld [vmem:[%s1] sm:$0xf]
  %v80 = vld [vmem:[%s1 + $0x4] sm:$0xf]
  %v81 = vld [vmem:[%s1 + $0x8] sm:$0x1]
  %s82 = scalar_lea.vmem %s0, 144
  %v83 = vld [vmem:[%s82] sm:$0xf]
  %v84 = vld [vmem:[%s82 + $0x4] sm:$0xf]
  %v85 = vld [vmem:[%s82 + $0x8] sm:$0xf]
  %v86 = vld [vmem:[%s82 + $0xc] sm:$0xf]
  %v87 = vld [vmem:[%s82 + $0x10] sm:$0xf]
  %v88 = vld [vmem:[%s82 + $0x14] sm:$0xf]
  %v89 = vld [vmem:[%s82 + $0x18] sm:$0xf]
  %v90 = vld [vmem:[%s82 + $0x1c] sm:$0xf]
  %v91 = vld [vmem:[%s82 + $0x20] sm:$0xf]
  %v92 = vld [vmem:[%s82 + $0x24] sm:$0xf]
  %v93 = vld [vmem:[%s82 + $0x28] sm:$0xf]
  %v94 = vld [vmem:[%s82 + $0x2c] sm:$0xf]
  %v95 = vld [vmem:[%s82 + $0x30] sm:$0xf]
  %v96 = vld [vmem:[%s82 + $0x34] sm:$0xf]
  %v97 = vld [vmem:[%s82 + $0x38] sm:$0xf]
  %v98 = vld [vmem:[%s82 + $0x3c] sm:$0xf]
  %v99 = vld [vmem:[%s82 + $0x40] sm:$0xf]
  %v100 = vld [vmem:[%s82 + $0x44] sm:$0xf]
  %v101 = vld [vmem:[%s82 + $0x48] sm:$0xf]
  %v102 = vld [vmem:[%s82 + $0x4c] sm:$0xf]
  %v103 = vld [vmem:[%s82 + $0x50] sm:$0xf]
  %v104 = vld [vmem:[%s82 + $0x54] sm:$0xf]
  %v105 = vld [vmem:[%s82 + $0x58] sm:$0xf]
  %v106 = vld [vmem:[%s82 + $0x5c] sm:$0xf]
  %v107 = vld [vmem:[%s82 + $0x60] sm:$0xf]
  %v108 = vld [vmem:[%s82 + $0x64] sm:$0xf]
  %v109 = vld [vmem:[%s82 + $0x68] sm:$0xf]
  %v110 = vld [vmem:[%s82 + $0x6c] sm:$0xf]
  %v111 = vld [vmem:[%s82 + $0x70] sm:$0xf]
  %v112 = vld [vmem:[%s82 + $0x74] sm:$0xf]
  %v113 = vld [vmem:[%s82 + $0x78] sm:$0xf]
  %v114 = vld [vmem:[%s82 + $0x7c] sm:$0xf]
  %v115 = vld [vmem:[%s82 + $0x120] sm:$0xf]
  %v116 = vld [vmem:[%s82 + $0x124] sm:$0xf]
  %v117 = vld [vmem:[%s82 + $0x128] sm:$0xf]
  %v118 = vld [vmem:[%s82 + $0x12c] sm:$0xf]
  %v119 = vld [vmem:[%s82 + $0x130] sm:$0xf]
  %v120 = vld [vmem:[%s82 + $0x134] sm:$0xf]
  %v121 = vld [vmem:[%s82 + $0x138] sm:$0xf]
  %v122 = vld [vmem:[%s82 + $0x13c] sm:$0xf]
  %v123 = vld [vmem:[%s82 + $0x140] sm:$0xf]
  %v124 = vld [vmem:[%s82 + $0x144] sm:$0xf]
  %v125 = vld [vmem:[%s82 + $0x148] sm:$0xf]
  %v126 = vld [vmem:[%s82 + $0x14c] sm:$0xf]
  %v127 = vld [vmem:[%s82 + $0x150] sm:$0xf]
  %v128 = vld [vmem:[%s82 + $0x154] sm:$0xf]
  %v129 = vld [vmem:[%s82 + $0x158] sm:$0xf]
  %v130 = vld [vmem:[%s82 + $0x15c] sm:$0xf]
  %v131 = vld [vmem:[%s82 + $0x160] sm:$0xf]
  %v132 = vld [vmem:[%s82 + $0x164] sm:$0xf]
  %v133 = vld [vmem:[%s82 + $0x168] sm:$0xf]
  %v134 = vld [vmem:[%s82 + $0x16c] sm:$0xf]
  %v135 = vld [vmem:[%s82 + $0x170] sm:$0xf]
  %v136 = vld [vmem:[%s82 + $0x174] sm:$0xf]
  %v137 = vld [vmem:[%s82 + $0x178] sm:$0xf]
  %v138 = vld [vmem:[%s82 + $0x17c] sm:$0xf]
  %v139 = vld [vmem:[%s82 + $0x180] sm:$0xf]
  %v140 = vld [vmem:[%s82 + $0x184] sm:$0xf]
  %v141 = vld [vmem:[%s82 + $0x188] sm:$0xf]
  %v142 = vld [vmem:[%s82 + $0x18c] sm:$0xf]
  %v143 = vld [vmem:[%s82 + $0x190] sm:$0xf]
  %v144 = vld [vmem:[%s82 + $0x194] sm:$0xf]
  %v145 = vld [vmem:[%s82 + $0x198] sm:$0xf]
  %v146 = vld [vmem:[%s82 + $0x19c] sm:$0xf]
  %s147 = scalar_lea.vmem %s1, 12
  %v148 = vld [vmem:[%s147] sm:$0xf]
  %v149 = vld [vmem:[%s147 + $0x4] sm:$0xf]
  %v150 = vld [vmem:[%s147 + $0x8] sm:$0x1]
  %v215 = vunpack.c.l.b16 %v83
  %v216 = vunpack.c.l.b16 %v84
  %v217 = vunpack.c.l.b16 %v85
  %v218 = vunpack.c.l.b16 %v86
  %v219 = vunpack.c.l.b16 %v87
  %v220 = vunpack.c.l.b16 %v88
  %v221 = vunpack.c.l.b16 %v89
  %v222 = vunpack.c.l.b16 %v90
  %v223 = vunpack.c.l.b16 %v91
  %v224 = vunpack.c.l.b16 %v92
  %v225 = vunpack.c.l.b16 %v93
  %v226 = vunpack.c.l.b16 %v94
  %v227 = vunpack.c.l.b16 %v95
  %v228 = vunpack.c.l.b16 %v96
  %v229 = vunpack.c.l.b16 %v97
  %v230 = vunpack.c.l.b16 %v98
  %v231 = vunpack.c.l.b16 %v99
  %v232 = vunpack.c.l.b16 %v100
  %v233 = vunpack.c.l.b16 %v101
  %v234 = vunpack.c.l.b16 %v102
  %v235 = vunpack.c.l.b16 %v103
  %v236 = vunpack.c.l.b16 %v104
  %v237 = vunpack.c.l.b16 %v105
  %v238 = vunpack.c.l.b16 %v106
  %v239 = vunpack.c.l.b16 %v107
  %v240 = vunpack.c.l.b16 %v108
  %v241 = vunpack.c.l.b16 %v109
  %v242 = vunpack.c.l.b16 %v110
  %v243 = vunpack.c.l.b16 %v111
  %v244 = vunpack.c.l.b16 %v112
  %v245 = vunpack.c.l.b16 %v113
  %v246 = vunpack.c.l.b16 %v114
  %v247 = vunpack.c.l.b16 %v115
  %v248 = vunpack.c.l.b16 %v116
  %v249 = vunpack.c.l.b16 %v117
  %v250 = vunpack.c.l.b16 %v118
  %v251 = vunpack.c.l.b16 %v119
  %v252 = vunpack.c.l.b16 %v120
  %v253 = vunpack.c.l.b16 %v121
  %v254 = vunpack.c.l.b16 %v122
  %v255 = vunpack.c.l.b16 %v123
  %v256 = vunpack.c.l.b16 %v124
  %v257 = vunpack.c.l.b16 %v125
  %v258 = vunpack.c.l.b16 %v126
  %v259 = vunpack.c.l.b16 %v127
  %v260 = vunpack.c.l.b16 %v128
  %v261 = vunpack.c.l.b16 %v129
  %v262 = vunpack.c.l.b16 %v130
  %v263 = vunpack.c.l.b16 %v131
  %v264 = vunpack.c.l.b16 %v132
  %v265 = vunpack.c.l.b16 %v133
  %v266 = vunpack.c.l.b16 %v134
  %v267 = vunpack.c.l.b16 %v135
  %v268 = vunpack.c.l.b16 %v136
  %v269 = vunpack.c.l.b16 %v137
  %v270 = vunpack.c.l.b16 %v138
  %v271 = vunpack.c.l.b16 %v139
  %v272 = vunpack.c.l.b16 %v140
  %v273 = vunpack.c.l.b16 %v141
  %v274 = vunpack.c.l.b16 %v142
  %v275 = vunpack.c.l.b16 %v143
  %v276 = vunpack.c.l.b16 %v144
  %v277 = vunpack.c.l.b16 %v145
  %v278 = vunpack.c.l.b16 %v146
  %v279 = vpack.c.b16 %v216, %v215
  %v280 = vpack.c.b16 %v218, %v217
  %v281 = vpack.c.b16 %v220, %v219
  %v282 = vpack.c.b16 %v222, %v221
  %v283 = vpack.c.b16 %v224, %v223
  %v284 = vpack.c.b16 %v226, %v225
  %v285 = vpack.c.b16 %v228, %v227
  %v286 = vpack.c.b16 %v230, %v229
  %v287 = vpack.c.b16 %v232, %v231
  %v288 = vpack.c.b16 %v234, %v233
  %v289 = vpack.c.b16 %v236, %v235
  %v290 = vpack.c.b16 %v238, %v237
  %v291 = vpack.c.b16 %v240, %v239
  %v292 = vpack.c.b16 %v242, %v241
  %v293 = vpack.c.b16 %v244, %v243
  %v294 = vpack.c.b16 %v246, %v245
  %v295 = vpack.c.b16 %v248, %v247
  %v296 = vpack.c.b16 %v250, %v249
  %v297 = vpack.c.b16 %v252, %v251
  %v298 = vpack.c.b16 %v254, %v253
  %v299 = vpack.c.b16 %v256, %v255
  %v300 = vpack.c.b16 %v258, %v257
  %v301 = vpack.c.b16 %v260, %v259
  %v302 = vpack.c.b16 %v262, %v261
  %v303 = vpack.c.b16 %v264, %v263
  %v304 = vpack.c.b16 %v266, %v265
  %v305 = vpack.c.b16 %v268, %v267
  %v306 = vpack.c.b16 %v270, %v269
  %v307 = vpack.c.b16 %v272, %v271
  %v308 = vpack.c.b16 %v274, %v273
  %v309 = vpack.c.b16 %v276, %v275
  %v310 = vpack.c.b16 %v278, %v277
  %v314 = vunpack.c.l.b16 %v148
  %v315 = vunpack.c.l.b16 %v149
  %v316 = vunpack.c.l.b16 %v150
  %v317 = vpack.c.b16 %v315, %v314
  %v318 = vpack.c.b16 %v316, %v316
  %vm320 = vcmask 146432
  %v322 = vsel %vm320, %v279, 0
  %v325 = vsel %vm320, %v280, 0
  %v328 = vsel %vm320, %v281, 0
  %v331 = vsel %vm320, %v282, 0
  %v334 = vsel %vm320, %v283, 0
  %v337 = vsel %vm320, %v284, 0
  %v340 = vsel %vm320, %v285, 0
  %v343 = vsel %vm320, %v286, 0
  %v346 = vsel %vm320, %v287, 0
  %v349 = vsel %vm320, %v288, 0
  %v352 = vsel %vm320, %v289, 0
  %v355 = vsel %vm320, %v290, 0
  %v358 = vsel %vm320, %v291, 0
  %v361 = vsel %vm320, %v292, 0
  %v364 = vsel %vm320, %v293, 0
  %v367 = vsel %vm320, %v294, 0
  %v370 = vsel %vm320, %v295, 0
  %v373 = vsel %vm320, %v296, 0
  %v376 = vsel %vm320, %v297, 0
  %v379 = vsel %vm320, %v298, 0
  %v382 = vsel %vm320, %v299, 0
  %v385 = vsel %vm320, %v300, 0
  %v388 = vsel %vm320, %v301, 0
  %v391 = vsel %vm320, %v302, 0
  %v394 = vsel %vm320, %v303, 0
  %v397 = vsel %vm320, %v304, 0
  %v400 = vsel %vm320, %v305, 0
  %v403 = vsel %vm320, %v306, 0
  %v406 = vsel %vm320, %v307, 0
  %v409 = vsel %vm320, %v308, 0
  %v412 = vsel %vm320, %v309, 0
  %v415 = vsel %vm320, %v310, 0
  %vm417 = vcmask 1040384
  %v419 = vsel %vm417, %v318, 0
  %421 = vmatprep.subr.bf16.mxu0 0
  %422 = vmatpush1.bf16.msra.mxu0 0
  %423 = vmatprep.subr.bf16.mxu0 0
  %424 = vmatpush1.bf16.msra.mxu0 0
  %425 = vmatprep.subr.bf16.mxu0 0
  %426 = vmatpush1.bf16.msra.mxu0 0
  %427 = vmatprep.subr.bf16.mxu0 0
  %428 = vmatpush1.bf16.msra.mxu0 0
  %429 = vmatprep.subr.bf16.mxu0 0
  %430 = vmatpush1.bf16.msra.mxu0 0
  %431 = vmatprep.subr.bf16.mxu0 0
  %432 = vmatpush1.bf16.msra.mxu0 0
  %433 = vmatprep.subr.bf16.mxu0 0
  %434 = vmatpush1.bf16.msra.mxu0 %v419
  %435 = vmatprep.subr.bf16.mxu0 0
  %436 = vmatpush1.bf16.msra.mxu0 %v317
  %437 = vmatprep.subr.bf16.mxu0 0
  %438 = vmatpush2.bf16.msra.mxu0 0
  %439 = vmatprep.subr.bf16.mxu0 0
  %440 = vmatpush2.bf16.msra.mxu0 0
  %441 = vmatprep.subr.bf16.mxu0 0
  %442 = vmatpush2.bf16.msra.mxu0 0
  %443 = vmatprep.subr.bf16.mxu0 0
  %444 = vmatpush2.bf16.msra.mxu0 0
  %445 = vmatprep.subr.bf16.mxu0 0
  %446 = vmatpush2.bf16.msra.mxu0 0
  %447 = vmatprep.subr.bf16.mxu0 0
  %448 = vmatpush2.bf16.msra.mxu0 0
  %449 = vmatprep.subr.bf16.mxu0 0
  %450 = vmatpush2.bf16.msra.mxu0 0
  %451 = vmatprep.subr.bf16.mxu0 0
  %452 = vmatpush2.bf16.msra.mxu0 0
  %453 = vmatprep.mubr.bf16.mxu0 0
  %454 = vmatmul.mubr.bf16.gmra.mxu0 %v322
  %v455 = vpop.f32.mrf.mxu0
  %v456 = vadd.f32 0.0, %v455
  %v457 = vpop.f32.mrf.mxu0
  %v458 = vpop.f32.mrf.mxu0
  %v459 = vadd.f32 0.0, %v458
  %v460 = vpop.f32.mrf.mxu0
  %461 = vmatprep.mubr.bf16.mxu0 0
  %462 = vmatmul.mubr.bf16.gmra.mxu0 %v325
  %v463 = vpop.f32.mrf.mxu0
  %v464 = vadd.f32 0.0, %v463
  %v465 = vpop.f32.mrf.mxu0
  %v466 = vpop.f32.mrf.mxu0
  %v467 = vadd.f32 0.0, %v466
  %v468 = vpop.f32.mrf.mxu0
  %469 = vmatprep.mubr.bf16.mxu0 0
  %470 = vmatmul.mubr.bf16.gmra.mxu0 %v328
  %v471 = vpop.f32.mrf.mxu0
  %v472 = vadd.f32 0.0, %v471
  %v473 = vpop.f32.mrf.mxu0
  %v474 = vpop.f32.mrf.mxu0
  %v475 = vadd.f32 0.0, %v474
  %v476 = vpop.f32.mrf.mxu0
  %477 = vmatprep.mubr.bf16.mxu0 0
  %478 = vmatmul.mubr.bf16.gmra.mxu0 %v331
  %v479 = vpop.f32.mrf.mxu0
  %v480 = vadd.f32 0.0, %v479
  %v481 = vpop.f32.mrf.mxu0
  %v482 = vpop.f32.mrf.mxu0
  %v483 = vadd.f32 0.0, %v482
  %v484 = vpop.f32.mrf.mxu0
  %485 = vmatprep.mubr.bf16.mxu0 0
  %486 = vmatmul.mubr.bf16.gmra.mxu0 %v334
  %v487 = vpop.f32.mrf.mxu0
  %v488 = vadd.f32 0.0, %v487
  %v489 = vpop.f32.mrf.mxu0
  %v490 = vpop.f32.mrf.mxu0
  %v491 = vadd.f32 0.0, %v490
  %v492 = vpop.f32.mrf.mxu0
  %493 = vmatprep.mubr.bf16.mxu0 0
  %494 = vmatmul.mubr.bf16.gmra.mxu0 %v337
  %v495 = vpop.f32.mrf.mxu0
  %v496 = vadd.f32 0.0, %v495
  %v497 = vpop.f32.mrf.mxu0
  %v498 = vpop.f32.mrf.mxu0
  %v499 = vadd.f32 0.0, %v498
  %v500 = vpop.f32.mrf.mxu0
  %501 = vmatprep.mubr.bf16.mxu0 0
  %502 = vmatmul.mubr.bf16.gmra.mxu0 %v340
  %v503 = vpop.f32.mrf.mxu0
  %v504 = vadd.f32 0.0, %v503
  %v505 = vpop.f32.mrf.mxu0
  %v506 = vpop.f32.mrf.mxu0
  %v507 = vadd.f32 0.0, %v506
  %v508 = vpop.f32.mrf.mxu0
  %509 = vmatprep.mubr.bf16.mxu0 0
  %510 = vmatmul.mubr.bf16.gmra.mxu0 %v343
  %v511 = vpop.f32.mrf.mxu0
  %v512 = vadd.f32 0.0, %v511
  %v513 = vpop.f32.mrf.mxu0
  %v514 = vpop.f32.mrf.mxu0
  %v515 = vadd.f32 0.0, %v514
  %v516 = vpop.f32.mrf.mxu0
  %517 = vmatprep.mubr.bf16.mxu0 0
  %518 = vmatmul.mubr.bf16.gmra.mxu0 %v346
  %v519 = vpop.f32.mrf.mxu0
  %v520 = vadd.f32 0.0, %v519
  %v521 = vpop.f32.mrf.mxu0
  %v522 = vpop.f32.mrf.mxu0
  %v523 = vadd.f32 0.0, %v522
  %v524 = vpop.f32.mrf.mxu0
  %525 = vmatprep.mubr.bf16.mxu0 0
  %526 = vmatmul.mubr.bf16.gmra.mxu0 %v349
  %v527 = vpop.f32.mrf.mxu0
  %v528 = vadd.f32 0.0, %v527
  %v529 = vpop.f32.mrf.mxu0
  %v530 = vpop.f32.mrf.mxu0
  %v531 = vadd.f32 0.0, %v530
  %v532 = vpop.f32.mrf.mxu0
  %533 = vmatprep.mubr.bf16.mxu0 0
  %534 = vmatmul.mubr.bf16.gmra.mxu0 %v352
  %v535 = vpop.f32.mrf.mxu0
  %v536 = vadd.f32 0.0, %v535
  %v537 = vpop.f32.mrf.mxu0
  %v538 = vpop.f32.mrf.mxu0
  %v539 = vadd.f32 0.0, %v538
  %v540 = vpop.f32.mrf.mxu0
  %541 = vmatprep.mubr.bf16.mxu0 0
  %542 = vmatmul.mubr.bf16.gmra.mxu0 %v355
  %v543 = vpop.f32.mrf.mxu0
  %v544 = vadd.f32 0.0, %v543
  %v545 = vpop.f32.mrf.mxu0
  %v546 = vpop.f32.mrf.mxu0
  %v547 = vadd.f32 0.0, %v546
  %v548 = vpop.f32.mrf.mxu0
  %549 = vmatprep.mubr.bf16.mxu0 0
  %550 = vmatmul.mubr.bf16.gmra.mxu0 %v358
  %v551 = vpop.f32.mrf.mxu0
  %v552 = vadd.f32 0.0, %v551
  %v553 = vpop.f32.mrf.mxu0
  %v554 = vpop.f32.mrf.mxu0
  %v555 = vadd.f32 0.0, %v554
  %v556 = vpop.f32.mrf.mxu0
  %557 = vmatprep.mubr.bf16.mxu0 0
  %558 = vmatmul.mubr.bf16.gmra.mxu0 %v361
  %v559 = vpop.f32.mrf.mxu0
  %v560 = vadd.f32 0.0, %v559
  %v561 = vpop.f32.mrf.mxu0
  %v562 = vpop.f32.mrf.mxu0
  %v563 = vadd.f32 0.0, %v562
  %v564 = vpop.f32.mrf.mxu0
  %565 = vmatprep.mubr.bf16.mxu0 0
  %566 = vmatmul.mubr.bf16.gmra.mxu0 %v364
  %v567 = vpop.f32.mrf.mxu0
  %v568 = vadd.f32 0.0, %v567
  %v569 = vpop.f32.mrf.mxu0
  %v570 = vpop.f32.mrf.mxu0
  %v571 = vadd.f32 0.0, %v570
  %v572 = vpop.f32.mrf.mxu0
  %573 = vmatprep.mubr.bf16.mxu0 0
  %574 = vmatmul.mubr.bf16.gmra.mxu0 %v367
  %v575 = vpop.f32.mrf.mxu0
  %v576 = vadd.f32 0.0, %v575
  %v577 = vpop.f32.mrf.mxu0
  %v578 = vpop.f32.mrf.mxu0
  %v579 = vadd.f32 0.0, %v578
  %v580 = vpop.f32.mrf.mxu0
  %581 = vmatprep.mubr.bf16.mxu0 0
  %582 = vmatmul.mubr.bf16.gmra.mxu0 %v370
  %v583 = vpop.f32.mrf.mxu0
  %v584 = vadd.f32 0.0, %v583
  %v585 = vpop.f32.mrf.mxu0
  %v586 = vpop.f32.mrf.mxu0
  %v587 = vadd.f32 0.0, %v586
  %v588 = vpop.f32.mrf.mxu0
  %589 = vmatprep.mubr.bf16.mxu0 0
  %590 = vmatmul.mubr.bf16.gmra.mxu0 %v373
  %v591 = vpop.f32.mrf.mxu0
  %v592 = vadd.f32 0.0, %v591
  %v593 = vpop.f32.mrf.mxu0
  %v594 = vpop.f32.mrf.mxu0
  %v595 = vadd.f32 0.0, %v594
  %v596 = vpop.f32.mrf.mxu0
  %597 = vmatprep.mubr.bf16.mxu0 0
  %598 = vmatmul.mubr.bf16.gmra.mxu0 %v376
  %v599 = vpop.f32.mrf.mxu0
  %v600 = vadd.f32 0.0, %v599
  %v601 = vpop.f32.mrf.mxu0
  %v602 = vpop.f32.mrf.mxu0
  %v603 = vadd.f32 0.0, %v602
  %v604 = vpop.f32.mrf.mxu0
  %605 = vmatprep.mubr.bf16.mxu0 0
  %606 = vmatmul.mubr.bf16.gmra.mxu0 %v379
  %v607 = vpop.f32.mrf.mxu0
  %v608 = vadd.f32 0.0, %v607
  %v609 = vpop.f32.mrf.mxu0
  %v610 = vpop.f32.mrf.mxu0
  %v611 = vadd.f32 0.0, %v610
  %v612 = vpop.f32.mrf.mxu0
  %613 = vmatprep.mubr.bf16.mxu0 0
  %614 = vmatmul.mubr.bf16.gmra.mxu0 %v382
  %v615 = vpop.f32.mrf.mxu0
  %v616 = vadd.f32 0.0, %v615
  %v617 = vpop.f32.mrf.mxu0
  %v618 = vpop.f32.mrf.mxu0
  %v619 = vadd.f32 0.0, %v618
  %v620 = vpop.f32.mrf.mxu0
  %621 = vmatprep.mubr.bf16.mxu0 0
  %622 = vmatmul.mubr.bf16.gmra.mxu0 %v385
  %v623 = vpop.f32.mrf.mxu0
  %v624 = vadd.f32 0.0, %v623
  %v625 = vpop.f32.mrf.mxu0
  %v626 = vpop.f32.mrf.mxu0
  %v627 = vadd.f32 0.0, %v626
  %v628 = vpop.f32.mrf.mxu0
  %629 = vmatprep.mubr.bf16.mxu0 0
  %630 = vmatmul.mubr.bf16.gmra.mxu0 %v388
  %v631 = vpop.f32.mrf.mxu0
  %v632 = vadd.f32 0.0, %v631
  %v633 = vpop.f32.mrf.mxu0
  %v634 = vpop.f32.mrf.mxu0
  %v635 = vadd.f32 0.0, %v634
  %v636 = vpop.f32.mrf.mxu0
  %637 = vmatprep.mubr.bf16.mxu0 0
  %638 = vmatmul.mubr.bf16.gmra.mxu0 %v391
  %v639 = vpop.f32.mrf.mxu0
  %v640 = vadd.f32 0.0, %v639
  %v641 = vpop.f32.mrf.mxu0
  %v642 = vpop.f32.mrf.mxu0
  %v643 = vadd.f32 0.0, %v642
  %v644 = vpop.f32.mrf.mxu0
  %645 = vmatprep.mubr.bf16.mxu0 0
  %646 = vmatmul.mubr.bf16.gmra.mxu0 %v394
  %v647 = vpop.f32.mrf.mxu0
  %v648 = vadd.f32 0.0, %v647
  %v649 = vpop.f32.mrf.mxu0
  %v650 = vpop.f32.mrf.mxu0
  %v651 = vadd.f32 0.0, %v650
  %v652 = vpop.f32.mrf.mxu0
  %653 = vmatprep.mubr.bf16.mxu0 0
  %654 = vmatmul.mubr.bf16.gmra.mxu0 %v397
  %v655 = vpop.f32.mrf.mxu0
  %v656 = vadd.f32 0.0, %v655
  %v657 = vpop.f32.mrf.mxu0
  %v658 = vpop.f32.mrf.mxu0
  %v659 = vadd.f32 0.0, %v658
  %v660 = vpop.f32.mrf.mxu0
  %661 = vmatprep.mubr.bf16.mxu0 0
  %662 = vmatmul.mubr.bf16.gmra.mxu0 %v400
  %v663 = vpop.f32.mrf.mxu0
  %v664 = vadd.f32 0.0, %v663
  %v665 = vpop.f32.mrf.mxu0
  %v666 = vpop.f32.mrf.mxu0
  %v667 = vadd.f32 0.0, %v666
  %v668 = vpop.f32.mrf.mxu0
  %669 = vmatprep.mubr.bf16.mxu0 0
  %670 = vmatmul.mubr.bf16.gmra.mxu0 %v403
  %v671 = vpop.f32.mrf.mxu0
  %v672 = vadd.f32 0.0, %v671
  %v673 = vpop.f32.mrf.mxu0
  %v674 = vpop.f32.mrf.mxu0
  %v675 = vadd.f32 0.0, %v674
  %v676 = vpop.f32.mrf.mxu0
  %677 = vmatprep.mubr.bf16.mxu0 0
  %678 = vmatmul.mubr.bf16.gmra.mxu0 %v406
  %v679 = vpop.f32.mrf.mxu0
  %v680 = vadd.f32 0.0, %v679
  %v681 = vpop.f32.mrf.mxu0
  %v682 = vpop.f32.mrf.mxu0
  %v683 = vadd.f32 0.0, %v682
  %v684 = vpop.f32.mrf.mxu0
  %685 = vmatprep.mubr.bf16.mxu0 0
  %686 = vmatmul.mubr.bf16.gmra.mxu0 %v409
  %v687 = vpop.f32.mrf.mxu0
  %v688 = vadd.f32 0.0, %v687
  %v689 = vpop.f32.mrf.mxu0
  %v690 = vpop.f32.mrf.mxu0
  %v691 = vadd.f32 0.0, %v690
  %v692 = vpop.f32.mrf.mxu0
  %693 = vmatprep.mubr.bf16.mxu0 0
  %694 = vmatmul.mubr.bf16.gmra.mxu0 %v412
  %v695 = vpop.f32.mrf.mxu0
  %v696 = vadd.f32 0.0, %v695
  %v697 = vpop.f32.mrf.mxu0
  %v698 = vpop.f32.mrf.mxu0
  %v699 = vadd.f32 0.0, %v698
  %v700 = vpop.f32.mrf.mxu0
  %701 = vmatprep.mubr.bf16.mxu0 0
  %702 = vmatmul.mubr.bf16.gmra.mxu0 %v415
  %v703 = vpop.f32.mrf.mxu0
  %v704 = vadd.f32 0.0, %v703
  %v705 = vpop.f32.mrf.mxu0
  %v706 = vpop.f32.mrf.mxu0
  %v707 = vadd.f32 0.0, %v706
  %v708 = vpop.f32.mrf.mxu0
  %709 = vdwg.mxu0
  %v774 = vunpack.c.l.b16 %v15
  %v775 = vunpack.c.l.b16 %v16
  %v776 = vunpack.c.l.b16 %v17
  %v777 = vunpack.c.l.b16 %v18
  %v778 = vunpack.c.l.b16 %v19
  %v779 = vunpack.c.l.b16 %v20
  %v780 = vunpack.c.l.b16 %v21
  %v781 = vunpack.c.l.b16 %v22
  %v782 = vunpack.c.l.b16 %v23
  %v783 = vunpack.c.l.b16 %v24
  %v784 = vunpack.c.l.b16 %v25
  %v785 = vunpack.c.l.b16 %v26
  %v786 = vunpack.c.l.b16 %v27
  %v787 = vunpack.c.l.b16 %v28
  %v788 = vunpack.c.l.b16 %v29
  %v789 = vunpack.c.l.b16 %v30
  %v790 = vunpack.c.l.b16 %v31
  %v791 = vunpack.c.l.b16 %v32
  %v792 = vunpack.c.l.b16 %v33
  %v793 = vunpack.c.l.b16 %v34
  %v794 = vunpack.c.l.b16 %v35
  %v795 = vunpack.c.l.b16 %v36
  %v796 = vunpack.c.l.b16 %v37
  %v797 = vunpack.c.l.b16 %v38
  %v798 = vunpack.c.l.b16 %v39
  %v799 = vunpack.c.l.b16 %v40
  %v800 = vunpack.c.l.b16 %v41
  %v801 = vunpack.c.l.b16 %v42
  %v802 = vunpack.c.l.b16 %v43
  %v803 = vunpack.c.l.b16 %v44
  %v804 = vunpack.c.l.b16 %v45
  %v805 = vunpack.c.l.b16 %v46
  %v806 = vunpack.c.l.b16 %v47
  %v807 = vunpack.c.l.b16 %v48
  %v808 = vunpack.c.l.b16 %v49
  %v809 = vunpack.c.l.b16 %v50
  %v810 = vunpack.c.l.b16 %v51
  %v811 = vunpack.c.l.b16 %v52
  %v812 = vunpack.c.l.b16 %v53
  %v813 = vunpack.c.l.b16 %v54
  %v814 = vunpack.c.l.b16 %v55
  %v815 = vunpack.c.l.b16 %v56
  %v816 = vunpack.c.l.b16 %v57
  %v817 = vunpack.c.l.b16 %v58
  %v818 = vunpack.c.l.b16 %v59
  %v819 = vunpack.c.l.b16 %v60
  %v820 = vunpack.c.l.b16 %v61
  %v821 = vunpack.c.l.b16 %v62
  %v822 = vunpack.c.l.b16 %v63
  %v823 = vunpack.c.l.b16 %v64
  %v824 = vunpack.c.l.b16 %v65
  %v825 = vunpack.c.l.b16 %v66
  %v826 = vunpack.c.l.b16 %v67
  %v827 = vunpack.c.l.b16 %v68
  %v828 = vunpack.c.l.b16 %v69
  %v829 = vunpack.c.l.b16 %v70
  %v830 = vunpack.c.l.b16 %v71
  %v831 = vunpack.c.l.b16 %v72
  %v832 = vunpack.c.l.b16 %v73
  %v833 = vunpack.c.l.b16 %v74
  %v834 = vunpack.c.l.b16 %v75
  %v835 = vunpack.c.l.b16 %v76
  %v836 = vunpack.c.l.b16 %v77
  %v837 = vunpack.c.l.b16 %v78
  %v838 = vpack.c.b16 %v775, %v774
  %v839 = vpack.c.b16 %v777, %v776
  %v840 = vpack.c.b16 %v779, %v778
  %v841 = vpack.c.b16 %v781, %v780
  %v842 = vpack.c.b16 %v783, %v782
  %v843 = vpack.c.b16 %v785, %v784
  %v844 = vpack.c.b16 %v787, %v786
  %v845 = vpack.c.b16 %v789, %v788
  %v846 = vpack.c.b16 %v791, %v790
  %v847 = vpack.c.b16 %v793, %v792
  %v848 = vpack.c.b16 %v795, %v794
  %v849 = vpack.c.b16 %v797, %v796
  %v850 = vpack.c.b16 %v799, %v798
  %v851 = vpack.c.b16 %v801, %v800
  %v852 = vpack.c.b16 %v803, %v802
  %v853 = vpack.c.b16 %v805, %v804
  %v854 = vpack.c.b16 %v807, %v806
  %v855 = vpack.c.b16 %v809, %v808
  %v856 = vpack.c.b16 %v811, %v810
  %v857 = vpack.c.b16 %v813, %v812
  %v858 = vpack.c.b16 %v815, %v814
  %v859 = vpack.c.b16 %v817, %v816
  %v860 = vpack.c.b16 %v819, %v818
  %v861 = vpack.c.b16 %v821, %v820
  %v862 = vpack.c.b16 %v823, %v822
  %v863 = vpack.c.b16 %v825, %v824
  %v864 = vpack.c.b16 %v827, %v826
  %v865 = vpack.c.b16 %v829, %v828
  %v866 = vpack.c.b16 %v831, %v830
  %v867 = vpack.c.b16 %v833, %v832
  %v868 = vpack.c.b16 %v835, %v834
  %v869 = vpack.c.b16 %v837, %v836
  %v873 = vunpack.c.l.b16 %v79
  %v874 = vunpack.c.l.b16 %v80
  %v875 = vunpack.c.l.b16 %v81
  %v876 = vpack.c.b16 %v874, %v873
  %v877 = vpack.c.b16 %v875, %v875
  %v880 = vsel %vm320, %v838, 0
  %v883 = vsel %vm320, %v839, 0
  %v886 = vsel %vm320, %v840, 0
  %v889 = vsel %vm320, %v841, 0
  %v892 = vsel %vm320, %v842, 0
  %v895 = vsel %vm320, %v843, 0
  %v898 = vsel %vm320, %v844, 0
  %v901 = vsel %vm320, %v845, 0
  %v904 = vsel %vm320, %v846, 0
  %v907 = vsel %vm320, %v847, 0
  %v910 = vsel %vm320, %v848, 0
  %v913 = vsel %vm320, %v849, 0
  %v916 = vsel %vm320, %v850, 0
  %v919 = vsel %vm320, %v851, 0
  %v922 = vsel %vm320, %v852, 0
  %v925 = vsel %vm320, %v853, 0
  %v928 = vsel %vm320, %v854, 0
  %v931 = vsel %vm320, %v855, 0
  %v934 = vsel %vm320, %v856, 0
  %v937 = vsel %vm320, %v857, 0
  %v940 = vsel %vm320, %v858, 0
  %v943 = vsel %vm320, %v859, 0
  %v946 = vsel %vm320, %v860, 0
  %v949 = vsel %vm320, %v861, 0
  %v952 = vsel %vm320, %v862, 0
  %v955 = vsel %vm320, %v863, 0
  %v958 = vsel %vm320, %v864, 0
  %v961 = vsel %vm320, %v865, 0
  %v964 = vsel %vm320, %v866, 0
  %v967 = vsel %vm320, %v867, 0
  %v970 = vsel %vm320, %v868, 0
  %v973 = vsel %vm320, %v869, 0
  %v976 = vsel %vm417, %v877, 0
  %978 = vmatprep.subr.bf16.mxu0 0
  %979 = vmatpush1.bf16.msra.mxu0 0
  %980 = vmatprep.subr.bf16.mxu0 0
  %981 = vmatpush1.bf16.msra.mxu0 0
  %982 = vmatprep.subr.bf16.mxu0 0
  %983 = vmatpush1.bf16.msra.mxu0 0
  %984 = vmatprep.subr.bf16.mxu0 0
  %985 = vmatpush1.bf16.msra.mxu0 0
  %986 = vmatprep.subr.bf16.mxu0 0
  %987 = vmatpush1.bf16.msra.mxu0 0
  %988 = vmatprep.subr.bf16.mxu0 0
  %989 = vmatpush1.bf16.msra.mxu0 0
  %990 = vmatprep.subr.bf16.mxu0 0
  %991 = vmatpush1.bf16.msra.mxu0 %v976
  %992 = vmatprep.subr.bf16.mxu0 0
  %993 = vmatpush1.bf16.msra.mxu0 %v876
  %994 = vmatprep.subr.bf16.mxu0 0
  %995 = vmatpush2.bf16.msra.mxu0 0
  %996 = vmatprep.subr.bf16.mxu0 0
  %997 = vmatpush2.bf16.msra.mxu0 0
  %998 = vmatprep.subr.bf16.mxu0 0
  %999 = vmatpush2.bf16.msra.mxu0 0
  %1000 = vmatprep.subr.bf16.mxu0 0
  %1001 = vmatpush2.bf16.msra.mxu0 0
  %1002 = vmatprep.subr.bf16.mxu0 0
  %1003 = vmatpush2.bf16.msra.mxu0 0
  %1004 = vmatprep.subr.bf16.mxu0 0
  %1005 = vmatpush2.bf16.msra.mxu0 0
  %1006 = vmatprep.subr.bf16.mxu0 0
  %1007 = vmatpush2.bf16.msra.mxu0 0
  %1008 = vmatprep.subr.bf16.mxu0 0
  %1009 = vmatpush2.bf16.msra.mxu0 0
  %1010 = vmatprep.mubr.bf16.mxu0 0
  %1011 = vmatmul.mubr.bf16.gmra.mxu0 %v880
  %v1012 = vpop.f32.mrf.mxu0
  %v1013 = vadd.f32 %v456, %v1012
  %v1014 = vpop.f32.mrf.mxu0
  %v1015 = vpop.f32.mrf.mxu0
  %v1016 = vadd.f32 %v459, %v1015
  %v1017 = vpop.f32.mrf.mxu0
  %1018 = vmatprep.mubr.bf16.mxu0 0
  %1019 = vmatmul.mubr.bf16.gmra.mxu0 %v883
  %v1020 = vpop.f32.mrf.mxu0
  %v1021 = vadd.f32 %v464, %v1020
  %v1022 = vpop.f32.mrf.mxu0
  %v1023 = vpop.f32.mrf.mxu0
  %v1024 = vadd.f32 %v467, %v1023
  %v1025 = vpop.f32.mrf.mxu0
  %1026 = vmatprep.mubr.bf16.mxu0 0
  %1027 = vmatmul.mubr.bf16.gmra.mxu0 %v886
  %v1028 = vpop.f32.mrf.mxu0
  %v1029 = vadd.f32 %v472, %v1028
  %v1030 = vpop.f32.mrf.mxu0
  %v1031 = vpop.f32.mrf.mxu0
  %v1032 = vadd.f32 %v475, %v1031
  %v1033 = vpop.f32.mrf.mxu0
  %1034 = vmatprep.mubr.bf16.mxu0 0
  %1035 = vmatmul.mubr.bf16.gmra.mxu0 %v889
  %v1036 = vpop.f32.mrf.mxu0
  %v1037 = vadd.f32 %v480, %v1036
  %v1038 = vpop.f32.mrf.mxu0
  %v1039 = vpop.f32.mrf.mxu0
  %v1040 = vadd.f32 %v483, %v1039
  %v1041 = vpop.f32.mrf.mxu0
  %1042 = vmatprep.mubr.bf16.mxu0 0
  %1043 = vmatmul.mubr.bf16.gmra.mxu0 %v892
  %v1044 = vpop.f32.mrf.mxu0
  %v1045 = vadd.f32 %v488, %v1044
  %v1046 = vpop.f32.mrf.mxu0
  %v1047 = vpop.f32.mrf.mxu0
  %v1048 = vadd.f32 %v491, %v1047
  %v1049 = vpop.f32.mrf.mxu0
  %1050 = vmatprep.mubr.bf16.mxu0 0
  %1051 = vmatmul.mubr.bf16.gmra.mxu0 %v895
  %v1052 = vpop.f32.mrf.mxu0
  %v1053 = vadd.f32 %v496, %v1052
  %v1054 = vpop.f32.mrf.mxu0
  %v1055 = vpop.f32.mrf.mxu0
  %v1056 = vadd.f32 %v499, %v1055
  %v1057 = vpop.f32.mrf.mxu0
  %1058 = vmatprep.mubr.bf16.mxu0 0
  %1059 = vmatmul.mubr.bf16.gmra.mxu0 %v898
  %v1060 = vpop.f32.mrf.mxu0
  %v1061 = vadd.f32 %v504, %v1060
  %v1062 = vpop.f32.mrf.mxu0
  %v1063 = vpop.f32.mrf.mxu0
  %v1064 = vadd.f32 %v507, %v1063
  %v1065 = vpop.f32.mrf.mxu0
  %1066 = vmatprep.mubr.bf16.mxu0 0
  %1067 = vmatmul.mubr.bf16.gmra.mxu0 %v901
  %v1068 = vpop.f32.mrf.mxu0
  %v1069 = vadd.f32 %v512, %v1068
  %v1070 = vpop.f32.mrf.mxu0
  %v1071 = vpop.f32.mrf.mxu0
  %v1072 = vadd.f32 %v515, %v1071
  %v1073 = vpop.f32.mrf.mxu0
  %1074 = vmatprep.mubr.bf16.mxu0 0
  %1075 = vmatmul.mubr.bf16.gmra.mxu0 %v904
  %v1076 = vpop.f32.mrf.mxu0
  %v1077 = vadd.f32 %v520, %v1076
  %v1078 = vpop.f32.mrf.mxu0
  %v1079 = vpop.f32.mrf.mxu0
  %v1080 = vadd.f32 %v523, %v1079
  %v1081 = vpop.f32.mrf.mxu0
  %1082 = vmatprep.mubr.bf16.mxu0 0
  %1083 = vmatmul.mubr.bf16.gmra.mxu0 %v907
  %v1084 = vpop.f32.mrf.mxu0
  %v1085 = vadd.f32 %v528, %v1084
  %v1086 = vpop.f32.mrf.mxu0
  %v1087 = vpop.f32.mrf.mxu0
  %v1088 = vadd.f32 %v531, %v1087
  %v1089 = vpop.f32.mrf.mxu0
  %1090 = vmatprep.mubr.bf16.mxu0 0
  %1091 = vmatmul.mubr.bf16.gmra.mxu0 %v910
  %v1092 = vpop.f32.mrf.mxu0
  %v1093 = vadd.f32 %v536, %v1092
  %v1094 = vpop.f32.mrf.mxu0
  %v1095 = vpop.f32.mrf.mxu0
  %v1096 = vadd.f32 %v539, %v1095
  %v1097 = vpop.f32.mrf.mxu0
  %1098 = vmatprep.mubr.bf16.mxu0 0
  %1099 = vmatmul.mubr.bf16.gmra.mxu0 %v913
  %v1100 = vpop.f32.mrf.mxu0
  %v1101 = vadd.f32 %v544, %v1100
  %v1102 = vpop.f32.mrf.mxu0
  %v1103 = vpop.f32.mrf.mxu0
  %v1104 = vadd.f32 %v547, %v1103
  %v1105 = vpop.f32.mrf.mxu0
  %1106 = vmatprep.mubr.bf16.mxu0 0
  %1107 = vmatmul.mubr.bf16.gmra.mxu0 %v916
  %v1108 = vpop.f32.mrf.mxu0
  %v1109 = vadd.f32 %v552, %v1108
  %v1110 = vpop.f32.mrf.mxu0
  %v1111 = vpop.f32.mrf.mxu0
  %v1112 = vadd.f32 %v555, %v1111
  %v1113 = vpop.f32.mrf.mxu0
  %1114 = vmatprep.mubr.bf16.mxu0 0
  %1115 = vmatmul.mubr.bf16.gmra.mxu0 %v919
  %v1116 = vpop.f32.mrf.mxu0
  %v1117 = vadd.f32 %v560, %v1116
  %v1118 = vpop.f32.mrf.mxu0
  %v1119 = vpop.f32.mrf.mxu0
  %v1120 = vadd.f32 %v563, %v1119
  %v1121 = vpop.f32.mrf.mxu0
  %1122 = vmatprep.mubr.bf16.mxu0 0
  %1123 = vmatmul.mubr.bf16.gmra.mxu0 %v922
  %v1124 = vpop.f32.mrf.mxu0
  %v1125 = vadd.f32 %v568, %v1124
  %v1126 = vpop.f32.mrf.mxu0
  %v1127 = vpop.f32.mrf.mxu0
  %v1128 = vadd.f32 %v571, %v1127
  %v1129 = vpop.f32.mrf.mxu0
  %1130 = vmatprep.mubr.bf16.mxu0 0
  %1131 = vmatmul.mubr.bf16.gmra.mxu0 %v925
  %v1132 = vpop.f32.mrf.mxu0
  %v1133 = vadd.f32 %v576, %v1132
  %v1134 = vpop.f32.mrf.mxu0
  %v1135 = vpop.f32.mrf.mxu0
  %v1136 = vadd.f32 %v579, %v1135
  %v1137 = vpop.f32.mrf.mxu0
  %1138 = vmatprep.mubr.bf16.mxu0 0
  %1139 = vmatmul.mubr.bf16.gmra.mxu0 %v928
  %v1140 = vpop.f32.mrf.mxu0
  %v1141 = vadd.f32 %v584, %v1140
  %v1142 = vpop.f32.mrf.mxu0
  %v1143 = vpop.f32.mrf.mxu0
  %v1144 = vadd.f32 %v587, %v1143
  %v1145 = vpop.f32.mrf.mxu0
  %1146 = vmatprep.mubr.bf16.mxu0 0
  %1147 = vmatmul.mubr.bf16.gmra.mxu0 %v931
  %v1148 = vpop.f32.mrf.mxu0
  %v1149 = vadd.f32 %v592, %v1148
  %v1150 = vpop.f32.mrf.mxu0
  %v1151 = vpop.f32.mrf.mxu0
  %v1152 = vadd.f32 %v595, %v1151
  %v1153 = vpop.f32.mrf.mxu0
  %1154 = vmatprep.mubr.bf16.mxu0 0
  %1155 = vmatmul.mubr.bf16.gmra.mxu0 %v934
  %v1156 = vpop.f32.mrf.mxu0
  %v1157 = vadd.f32 %v600, %v1156
  %v1158 = vpop.f32.mrf.mxu0
  %v1159 = vpop.f32.mrf.mxu0
  %v1160 = vadd.f32 %v603, %v1159
  %v1161 = vpop.f32.mrf.mxu0
  %1162 = vmatprep.mubr.bf16.mxu0 0
  %1163 = vmatmul.mubr.bf16.gmra.mxu0 %v937
  %v1164 = vpop.f32.mrf.mxu0
  %v1165 = vadd.f32 %v608, %v1164
  %v1166 = vpop.f32.mrf.mxu0
  %v1167 = vpop.f32.mrf.mxu0
  %v1168 = vadd.f32 %v611, %v1167
  %v1169 = vpop.f32.mrf.mxu0
  %1170 = vmatprep.mubr.bf16.mxu0 0
  %1171 = vmatmul.mubr.bf16.gmra.mxu0 %v940
  %v1172 = vpop.f32.mrf.mxu0
  %v1173 = vadd.f32 %v616, %v1172
  %v1174 = vpop.f32.mrf.mxu0
  %v1175 = vpop.f32.mrf.mxu0
  %v1176 = vadd.f32 %v619, %v1175
  %v1177 = vpop.f32.mrf.mxu0
  %1178 = vmatprep.mubr.bf16.mxu0 0
  %1179 = vmatmul.mubr.bf16.gmra.mxu0 %v943
  %v1180 = vpop.f32.mrf.mxu0
  %v1181 = vadd.f32 %v624, %v1180
  %v1182 = vpop.f32.mrf.mxu0
  %v1183 = vpop.f32.mrf.mxu0
  %v1184 = vadd.f32 %v627, %v1183
  %v1185 = vpop.f32.mrf.mxu0
  %1186 = vmatprep.mubr.bf16.mxu0 0
  %1187 = vmatmul.mubr.bf16.gmra.mxu0 %v946
  %v1188 = vpop.f32.mrf.mxu0
  %v1189 = vadd.f32 %v632, %v1188
  %v1190 = vpop.f32.mrf.mxu0
  %v1191 = vpop.f32.mrf.mxu0
  %v1192 = vadd.f32 %v635, %v1191
  %v1193 = vpop.f32.mrf.mxu0
  %1194 = vmatprep.mubr.bf16.mxu0 0
  %1195 = vmatmul.mubr.bf16.gmra.mxu0 %v949
  %v1196 = vpop.f32.mrf.mxu0
  %v1197 = vadd.f32 %v640, %v1196
  %v1198 = vpop.f32.mrf.mxu0
  %v1199 = vpop.f32.mrf.mxu0
  %v1200 = vadd.f32 %v643, %v1199
  %v1201 = vpop.f32.mrf.mxu0
  %1202 = vmatprep.mubr.bf16.mxu0 0
  %1203 = vmatmul.mubr.bf16.gmra.mxu0 %v952
  %v1204 = vpop.f32.mrf.mxu0
  %v1205 = vadd.f32 %v648, %v1204
  %v1206 = vpop.f32.mrf.mxu0
  %v1207 = vpop.f32.mrf.mxu0
  %v1208 = vadd.f32 %v651, %v1207
  %v1209 = vpop.f32.mrf.mxu0
  %1210 = vmatprep.mubr.bf16.mxu0 0
  %1211 = vmatmul.mubr.bf16.gmra.mxu0 %v955
  %v1212 = vpop.f32.mrf.mxu0
  %v1213 = vadd.f32 %v656, %v1212
  %v1214 = vpop.f32.mrf.mxu0
  %v1215 = vpop.f32.mrf.mxu0
  %v1216 = vadd.f32 %v659, %v1215
  %v1217 = vpop.f32.mrf.mxu0
  %1218 = vmatprep.mubr.bf16.mxu0 0
  %1219 = vmatmul.mubr.bf16.gmra.mxu0 %v958
  %v1220 = vpop.f32.mrf.mxu0
  %v1221 = vadd.f32 %v664, %v1220
  %v1222 = vpop.f32.mrf.mxu0
  %v1223 = vpop.f32.mrf.mxu0
  %v1224 = vadd.f32 %v667, %v1223
  %v1225 = vpop.f32.mrf.mxu0
  %1226 = vmatprep.mubr.bf16.mxu0 0
  %1227 = vmatmul.mubr.bf16.gmra.mxu0 %v961
  %v1228 = vpop.f32.mrf.mxu0
  %v1229 = vadd.f32 %v672, %v1228
  %v1230 = vpop.f32.mrf.mxu0
  %v1231 = vpop.f32.mrf.mxu0
  %v1232 = vadd.f32 %v675, %v1231
  %v1233 = vpop.f32.mrf.mxu0
  %1234 = vmatprep.mubr.bf16.mxu0 0
  %1235 = vmatmul.mubr.bf16.gmra.mxu0 %v964
  %v1236 = vpop.f32.mrf.mxu0
  %v1237 = vadd.f32 %v680, %v1236
  %v1238 = vpop.f32.mrf.mxu0
  %v1239 = vpop.f32.mrf.mxu0
  %v1240 = vadd.f32 %v683, %v1239
  %v1241 = vpop.f32.mrf.mxu0
  %1242 = vmatprep.mubr.bf16.mxu0 0
  %1243 = vmatmul.mubr.bf16.gmra.mxu0 %v967
  %v1244 = vpop.f32.mrf.mxu0
  %v1245 = vadd.f32 %v688, %v1244
  %v1246 = vpop.f32.mrf.mxu0
  %v1247 = vpop.f32.mrf.mxu0
  %v1248 = vadd.f32 %v691, %v1247
  %v1249 = vpop.f32.mrf.mxu0
  %1250 = vmatprep.mubr.bf16.mxu0 0
  %1251 = vmatmul.mubr.bf16.gmra.mxu0 %v970
  %v1252 = vpop.f32.mrf.mxu0
  %v1253 = vadd.f32 %v696, %v1252
  %v1254 = vpop.f32.mrf.mxu0
  %v1255 = vpop.f32.mrf.mxu0
  %v1256 = vadd.f32 %v699, %v1255
  %v1257 = vpop.f32.mrf.mxu0
  %1258 = vmatprep.mubr.bf16.mxu0 0
  %1259 = vmatmul.mubr.bf16.gmra.mxu0 %v973
  %v1260 = vpop.f32.mrf.mxu0
  %v1261 = vadd.f32 %v704, %v1260
  %v1262 = vpop.f32.mrf.mxu0
  %v1263 = vpop.f32.mrf.mxu0
  %v1264 = vadd.f32 %v707, %v1263
  %v1265 = vpop.f32.mrf.mxu0
  %1266 = vdwg.mxu0
  %v1267 = vld [vmem:[%s0 + $0x8] sm:$0xf]
  %v1268 = vld [vmem:[%s0 + $0xc] sm:$0xf]
  %v1269 = vld [vmem:[%s0 + $0x10] sm:$0xf]
  %v1270 = vld [vmem:[%s0 + $0x14] sm:$0xf]
  %v1271 = vld [vmem:[%s0 + $0x18] sm:$0xf]
  %v1272 = vld [vmem:[%s0 + $0x1c] sm:$0xf]
  %v1273 = vld [vmem:[%s0 + $0x20] sm:$0xf]
  %v1274 = vld [vmem:[%s0 + $0x24] sm:$0xf]
  %v1275 = vld [vmem:[%s0 + $0x28] sm:$0xf]
  %v1276 = vld [vmem:[%s0 + $0x2c] sm:$0xf]
  %v1277 = vld [vmem:[%s0 + $0x30] sm:$0xf]
  %v1278 = vld [vmem:[%s0 + $0x34] sm:$0xf]
  %v1279 = vld [vmem:[%s0 + $0x38] sm:$0xf]
  %v1280 = vld [vmem:[%s0 + $0x3c] sm:$0xf]
  %v1281 = vld [vmem:[%s0 + $0x40] sm:$0xf]
  %v1282 = vld [vmem:[%s0 + $0x44] sm:$0xf]
  %v1283 = vld [vmem:[%s0 + $0x48] sm:$0xf]
  %v1284 = vld [vmem:[%s0 + $0x4c] sm:$0xf]
  %v1285 = vld [vmem:[%s0 + $0x50] sm:$0xf]
  %v1286 = vld [vmem:[%s0 + $0x54] sm:$0xf]
  %v1287 = vld [vmem:[%s0 + $0x58] sm:$0xf]
  %v1288 = vld [vmem:[%s0 + $0x5c] sm:$0xf]
  %v1289 = vld [vmem:[%s0 + $0x60] sm:$0xf]
  %v1290 = vld [vmem:[%s0 + $0x64] sm:$0xf]
  %v1291 = vld [vmem:[%s0 + $0x68] sm:$0xf]
  %v1292 = vld [vmem:[%s0 + $0x6c] sm:$0xf]
  %v1293 = vld [vmem:[%s0 + $0x70] sm:$0xf]
  %v1294 = vld [vmem:[%s0 + $0x74] sm:$0xf]
  %v1295 = vld [vmem:[%s0 + $0x78] sm:$0xf]
  %v1296 = vld [vmem:[%s0 + $0x7c] sm:$0xf]
  %v1297 = vld [vmem:[%s0 + $0x80] sm:$0xf]
  %v1298 = vld [vmem:[%s0 + $0x84] sm:$0xf]
  %v1299 = vld [vmem:[%s0 + $0x128] sm:$0xf]
  %v1300 = vld [vmem:[%s0 + $0x12c] sm:$0xf]
  %v1301 = vld [vmem:[%s0 + $0x130] sm:$0xf]
  %v1302 = vld [vmem:[%s0 + $0x134] sm:$0xf]
  %v1303 = vld [vmem:[%s0 + $0x138] sm:$0xf]
  %v1304 = vld [vmem:[%s0 + $0x13c] sm:$0xf]
  %v1305 = vld [vmem:[%s0 + $0x140] sm:$0xf]
  %v1306 = vld [vmem:[%s0 + $0x144] sm:$0xf]
  %v1307 = vld [vmem:[%s0 + $0x148] sm:$0xf]
  %v1308 = vld [vmem:[%s0 + $0x14c] sm:$0xf]
  %v1309 = vld [vmem:[%s0 + $0x150] sm:$0xf]
  %v1310 = vld [vmem:[%s0 + $0x154] sm:$0xf]
  %v1311 = vld [vmem:[%s0 + $0x158] sm:$0xf]
  %v1312 = vld [vmem:[%s0 + $0x15c] sm:$0xf]
  %v1313 = vld [vmem:[%s0 + $0x160] sm:$0xf]
  %v1314 = vld [vmem:[%s0 + $0x164] sm:$0xf]
  %v1315 = vld [vmem:[%s0 + $0x168] sm:$0xf]
  %v1316 = vld [vmem:[%s0 + $0x16c] sm:$0xf]
  %v1317 = vld [vmem:[%s0 + $0x170] sm:$0xf]
  %v1318 = vld [vmem:[%s0 + $0x174] sm:$0xf]
  %v1319 = vld [vmem:[%s0 + $0x178] sm:$0xf]
  %v1320 = vld [vmem:[%s0 + $0x17c] sm:$0xf]
  %v1321 = vld [vmem:[%s0 + $0x180] sm:$0xf]
  %v1322 = vld [vmem:[%s0 + $0x184] sm:$0xf]
  %v1323 = vld [vmem:[%s0 + $0x188] sm:$0xf]
  %v1324 = vld [vmem:[%s0 + $0x18c] sm:$0xf]
  %v1325 = vld [vmem:[%s0 + $0x190] sm:$0xf]
  %v1326 = vld [vmem:[%s0 + $0x194] sm:$0xf]
  %v1327 = vld [vmem:[%s0 + $0x198] sm:$0xf]
  %v1328 = vld [vmem:[%s0 + $0x19c] sm:$0xf]
  %v1329 = vld [vmem:[%s0 + $0x1a0] sm:$0xf]
  %v1330 = vld [vmem:[%s0 + $0x1a4] sm:$0xf]
  %s1331 = scalar_lea.vmem %s1, 24
  %v1332 = vld [vmem:[%s1331] sm:$0xf]
  %v1333 = vld [vmem:[%s1331 + $0x4] sm:$0xf]
  %v1334 = vld [vmem:[%s1331 + $0x8] sm:$0x1]
  %v1399 = vunpack.c.l.b16 %v1267
  %v1400 = vunpack.c.l.b16 %v1268
  %v1401 = vunpack.c.l.b16 %v1269
  %v1402 = vunpack.c.l.b16 %v1270
  %v1403 = vunpack.c.l.b16 %v1271
  %v1404 = vunpack.c.l.b16 %v1272
  %v1405 = vunpack.c.l.b16 %v1273
  %v1406 = vunpack.c.l.b16 %v1274
  %v1407 = vunpack.c.l.b16 %v1275
  %v1408 = vunpack.c.l.b16 %v1276
  %v1409 = vunpack.c.l.b16 %v1277
  %v1410 = vunpack.c.l.b16 %v1278
  %v1411 = vunpack.c.l.b16 %v1279
  %v1412 = vunpack.c.l.b16 %v1280
  %v1413 = vunpack.c.l.b16 %v1281
  %v1414 = vunpack.c.l.b16 %v1282
  %v1415 = vunpack.c.l.b16 %v1283
  %v1416 = vunpack.c.l.b16 %v1284
  %v1417 = vunpack.c.l.b16 %v1285
  %v1418 = vunpack.c.l.b16 %v1286
  %v1419 = vunpack.c.l.b16 %v1287
  %v1420 = vunpack.c.l.b16 %v1288
  %v1421 = vunpack.c.l.b16 %v1289
  %v1422 = vunpack.c.l.b16 %v1290
  %v1423 = vunpack.c.l.b16 %v1291
  %v1424 = vunpack.c.l.b16 %v1292
  %v1425 = vunpack.c.l.b16 %v1293
  %v1426 = vunpack.c.l.b16 %v1294
  %v1427 = vunpack.c.l.b16 %v1295
  %v1428 = vunpack.c.l.b16 %v1296
  %v1429 = vunpack.c.l.b16 %v1297
  %v1430 = vunpack.c.l.b16 %v1298
  %v1431 = vunpack.c.l.b16 %v1299
  %v1432 = vunpack.c.l.b16 %v1300
  %v1433 = vunpack.c.l.b16 %v1301
  %v1434 = vunpack.c.l.b16 %v1302
  %v1435 = vunpack.c.l.b16 %v1303
  %v1436 = vunpack.c.l.b16 %v1304
  %v1437 = vunpack.c.l.b16 %v1305
  %v1438 = vunpack.c.l.b16 %v1306
  %v1439 = vunpack.c.l.b16 %v1307
  %v1440 = vunpack.c.l.b16 %v1308
  %v1441 = vunpack.c.l.b16 %v1309
  %v1442 = vunpack.c.l.b16 %v1310
  %v1443 = vunpack.c.l.b16 %v1311
  %v1444 = vunpack.c.l.b16 %v1312
  %v1445 = vunpack.c.l.b16 %v1313
  %v1446 = vunpack.c.l.b16 %v1314
  %v1447 = vunpack.c.l.b16 %v1315
  %v1448 = vunpack.c.l.b16 %v1316
  %v1449 = vunpack.c.l.b16 %v1317
  %v1450 = vunpack.c.l.b16 %v1318
  %v1451 = vunpack.c.l.b16 %v1319
  %v1452 = vunpack.c.l.b16 %v1320
  %v1453 = vunpack.c.l.b16 %v1321
  %v1454 = vunpack.c.l.b16 %v1322
  %v1455 = vunpack.c.l.b16 %v1323
  %v1456 = vunpack.c.l.b16 %v1324
  %v1457 = vunpack.c.l.b16 %v1325
  %v1458 = vunpack.c.l.b16 %v1326
  %v1459 = vunpack.c.l.b16 %v1327
  %v1460 = vunpack.c.l.b16 %v1328
  %v1461 = vunpack.c.l.b16 %v1329
  %v1462 = vunpack.c.l.b16 %v1330
  %v1463 = vpack.c.b16 %v1400, %v1399
  %v1464 = vpack.c.b16 %v1402, %v1401
  %v1465 = vpack.c.b16 %v1404, %v1403
  %v1466 = vpack.c.b16 %v1406, %v1405
  %v1467 = vpack.c.b16 %v1408, %v1407
  %v1468 = vpack.c.b16 %v1410, %v1409
  %v1469 = vpack.c.b16 %v1412, %v1411
  %v1470 = vpack.c.b16 %v1414, %v1413
  %v1471 = vpack.c.b16 %v1416, %v1415
  %v1472 = vpack.c.b16 %v1418, %v1417
  %v1473 = vpack.c.b16 %v1420, %v1419
  %v1474 = vpack.c.b16 %v1422, %v1421
  %v1475 = vpack.c.b16 %v1424, %v1423
  %v1476 = vpack.c.b16 %v1426, %v1425
  %v1477 = vpack.c.b16 %v1428, %v1427
  %v1478 = vpack.c.b16 %v1430, %v1429
  %v1479 = vpack.c.b16 %v1432, %v1431
  %v1480 = vpack.c.b16 %v1434, %v1433
  %v1481 = vpack.c.b16 %v1436, %v1435
  %v1482 = vpack.c.b16 %v1438, %v1437
  %v1483 = vpack.c.b16 %v1440, %v1439
  %v1484 = vpack.c.b16 %v1442, %v1441
  %v1485 = vpack.c.b16 %v1444, %v1443
  %v1486 = vpack.c.b16 %v1446, %v1445
  %v1487 = vpack.c.b16 %v1448, %v1447
  %v1488 = vpack.c.b16 %v1450, %v1449
  %v1489 = vpack.c.b16 %v1452, %v1451
  %v1490 = vpack.c.b16 %v1454, %v1453
  %v1491 = vpack.c.b16 %v1456, %v1455
  %v1492 = vpack.c.b16 %v1458, %v1457
  %v1493 = vpack.c.b16 %v1460, %v1459
  %v1494 = vpack.c.b16 %v1462, %v1461
  %v1498 = vunpack.c.l.b16 %v1332
  %v1499 = vunpack.c.l.b16 %v1333
  %v1500 = vunpack.c.l.b16 %v1334
  %v1501 = vpack.c.b16 %v1499, %v1498
  %v1502 = vpack.c.b16 %v1500, %v1500
  %v1505 = vsel %vm320, %v1463, 0
  %v1508 = vsel %vm320, %v1464, 0
  %v1511 = vsel %vm320, %v1465, 0
  %v1514 = vsel %vm320, %v1466, 0
  %v1517 = vsel %vm320, %v1467, 0
  %v1520 = vsel %vm320, %v1468, 0
  %v1523 = vsel %vm320, %v1469, 0
  %v1526 = vsel %vm320, %v1470, 0
  %v1529 = vsel %vm320, %v1471, 0
  %v1532 = vsel %vm320, %v1472, 0
  %v1535 = vsel %vm320, %v1473, 0
  %v1538 = vsel %vm320, %v1474, 0
  %v1541 = vsel %vm320, %v1475, 0
  %v1544 = vsel %vm320, %v1476, 0
  %v1547 = vsel %vm320, %v1477, 0
  %v1550 = vsel %vm320, %v1478, 0
  %v1553 = vsel %vm320, %v1479, 0
  %v1556 = vsel %vm320, %v1480, 0
  %v1559 = vsel %vm320, %v1481, 0
  %v1562 = vsel %vm320, %v1482, 0
  %v1565 = vsel %vm320, %v1483, 0
  %v1568 = vsel %vm320, %v1484, 0
  %v1571 = vsel %vm320, %v1485, 0
  %v1574 = vsel %vm320, %v1486, 0
  %v1577 = vsel %vm320, %v1487, 0
  %v1580 = vsel %vm320, %v1488, 0
  %v1583 = vsel %vm320, %v1489, 0
  %v1586 = vsel %vm320, %v1490, 0
  %v1589 = vsel %vm320, %v1491, 0
  %v1592 = vsel %vm320, %v1492, 0
  %v1595 = vsel %vm320, %v1493, 0
  %v1598 = vsel %vm320, %v1494, 0
  %v1601 = vsel %vm417, %v1502, 0
  %1603 = vmatprep.subr.bf16.mxu0 0
  %1604 = vmatpush1.bf16.msra.mxu0 0
  %1605 = vmatprep.subr.bf16.mxu0 0
  %1606 = vmatpush1.bf16.msra.mxu0 0
  %1607 = vmatprep.subr.bf16.mxu0 0
  %1608 = vmatpush1.bf16.msra.mxu0 0
  %1609 = vmatprep.subr.bf16.mxu0 0
  %1610 = vmatpush1.bf16.msra.mxu0 0
  %1611 = vmatprep.subr.bf16.mxu0 0
  %1612 = vmatpush1.bf16.msra.mxu0 0
  %1613 = vmatprep.subr.bf16.mxu0 0
  %1614 = vmatpush1.bf16.msra.mxu0 0
  %1615 = vmatprep.subr.bf16.mxu0 0
  %1616 = vmatpush1.bf16.msra.mxu0 %v1601
  %1617 = vmatprep.subr.bf16.mxu0 0
  %1618 = vmatpush1.bf16.msra.mxu0 %v1501
  %1619 = vmatprep.subr.bf16.mxu0 0
  %1620 = vmatpush2.bf16.msra.mxu0 0
  %1621 = vmatprep.subr.bf16.mxu0 0
  %1622 = vmatpush2.bf16.msra.mxu0 0
  %1623 = vmatprep.subr.bf16.mxu0 0
  %1624 = vmatpush2.bf16.msra.mxu0 0
  %1625 = vmatprep.subr.bf16.mxu0 0
  %1626 = vmatpush2.bf16.msra.mxu0 0
  %1627 = vmatprep.subr.bf16.mxu0 0
  %1628 = vmatpush2.bf16.msra.mxu0 0
  %1629 = vmatprep.subr.bf16.mxu0 0
  %1630 = vmatpush2.bf16.msra.mxu0 0
  %1631 = vmatprep.subr.bf16.mxu0 0
  %1632 = vmatpush2.bf16.msra.mxu0 0
  %1633 = vmatprep.subr.bf16.mxu0 0
  %1634 = vmatpush2.bf16.msra.mxu0 0
  %1635 = vmatprep.mubr.bf16.mxu0 0
  %1636 = vmatmul.mubr.bf16.gmra.mxu0 %v1505
  %v1637 = vpop.f32.mrf.mxu0
  %v1638 = vadd.f32 0.0, %v1637
  %v1639 = vpop.f32.mrf.mxu0
  %v1640 = vpop.f32.mrf.mxu0
  %v1641 = vadd.f32 0.0, %v1640
  %v1642 = vpop.f32.mrf.mxu0
  %1643 = vmatprep.mubr.bf16.mxu0 0
  %1644 = vmatmul.mubr.bf16.gmra.mxu0 %v1508
  %v1645 = vpop.f32.mrf.mxu0
  %v1646 = vadd.f32 0.0, %v1645
  %v1647 = vpop.f32.mrf.mxu0
  %v1648 = vpop.f32.mrf.mxu0
  %v1649 = vadd.f32 0.0, %v1648
  %v1650 = vpop.f32.mrf.mxu0
  %1651 = vmatprep.mubr.bf16.mxu0 0
  %1652 = vmatmul.mubr.bf16.gmra.mxu0 %v1511
  %v1653 = vpop.f32.mrf.mxu0
  %v1654 = vadd.f32 0.0, %v1653
  %v1655 = vpop.f32.mrf.mxu0
  %v1656 = vpop.f32.mrf.mxu0
  %v1657 = vadd.f32 0.0, %v1656
  %v1658 = vpop.f32.mrf.mxu0
  %1659 = vmatprep.mubr.bf16.mxu0 0
  %1660 = vmatmul.mubr.bf16.gmra.mxu0 %v1514
  %v1661 = vpop.f32.mrf.mxu0
  %v1662 = vadd.f32 0.0, %v1661
  %v1663 = vpop.f32.mrf.mxu0
  %v1664 = vpop.f32.mrf.mxu0
  %v1665 = vadd.f32 0.0, %v1664
  %v1666 = vpop.f32.mrf.mxu0
  %1667 = vmatprep.mubr.bf16.mxu0 0
  %1668 = vmatmul.mubr.bf16.gmra.mxu0 %v1517
  %v1669 = vpop.f32.mrf.mxu0
  %v1670 = vadd.f32 0.0, %v1669
  %v1671 = vpop.f32.mrf.mxu0
  %v1672 = vpop.f32.mrf.mxu0
  %v1673 = vadd.f32 0.0, %v1672
  %v1674 = vpop.f32.mrf.mxu0
  %1675 = vmatprep.mubr.bf16.mxu0 0
  %1676 = vmatmul.mubr.bf16.gmra.mxu0 %v1520
  %v1677 = vpop.f32.mrf.mxu0
  %v1678 = vadd.f32 0.0, %v1677
  %v1679 = vpop.f32.mrf.mxu0
  %v1680 = vpop.f32.mrf.mxu0
  %v1681 = vadd.f32 0.0, %v1680
  %v1682 = vpop.f32.mrf.mxu0
  %1683 = vmatprep.mubr.bf16.mxu0 0
  %1684 = vmatmul.mubr.bf16.gmra.mxu0 %v1523
  %v1685 = vpop.f32.mrf.mxu0
  %v1686 = vadd.f32 0.0, %v1685
  %v1687 = vpop.f32.mrf.mxu0
  %v1688 = vpop.f32.mrf.mxu0
  %v1689 = vadd.f32 0.0, %v1688
  %v1690 = vpop.f32.mrf.mxu0
  %1691 = vmatprep.mubr.bf16.mxu0 0
  %1692 = vmatmul.mubr.bf16.gmra.mxu0 %v1526
  %v1693 = vpop.f32.mrf.mxu0
  %v1694 = vadd.f32 0.0, %v1693
  %v1695 = vpop.f32.mrf.mxu0
  %v1696 = vpop.f32.mrf.mxu0
  %v1697 = vadd.f32 0.0, %v1696
  %v1698 = vpop.f32.mrf.mxu0
  %1699 = vmatprep.mubr.bf16.mxu0 0
  %1700 = vmatmul.mubr.bf16.gmra.mxu0 %v1529
  %v1701 = vpop.f32.mrf.mxu0
  %v1702 = vadd.f32 0.0, %v1701
  %v1703 = vpop.f32.mrf.mxu0
  %v1704 = vpop.f32.mrf.mxu0
  %v1705 = vadd.f32 0.0, %v1704
  %v1706 = vpop.f32.mrf.mxu0
  %1707 = vmatprep.mubr.bf16.mxu0 0
  %1708 = vmatmul.mubr.bf16.gmra.mxu0 %v1532
  %v1709 = vpop.f32.mrf.mxu0
  %v1710 = vadd.f32 0.0, %v1709
  %v1711 = vpop.f32.mrf.mxu0
  %v1712 = vpop.f32.mrf.mxu0
  %v1713 = vadd.f32 0.0, %v1712
  %v1714 = vpop.f32.mrf.mxu0
  %1715 = vmatprep.mubr.bf16.mxu0 0
  %1716 = vmatmul.mubr.bf16.gmra.mxu0 %v1535
  %v1717 = vpop.f32.mrf.mxu0
  %v1718 = vadd.f32 0.0, %v1717
  %v1719 = vpop.f32.mrf.mxu0
  %v1720 = vpop.f32.mrf.mxu0
  %v1721 = vadd.f32 0.0, %v1720
  %v1722 = vpop.f32.mrf.mxu0
  %1723 = vmatprep.mubr.bf16.mxu0 0
  %1724 = vmatmul.mubr.bf16.gmra.mxu0 %v1538
  %v1725 = vpop.f32.mrf.mxu0
  %v1726 = vadd.f32 0.0, %v1725
  %v1727 = vpop.f32.mrf.mxu0
  %v1728 = vpop.f32.mrf.mxu0
  %v1729 = vadd.f32 0.0, %v1728
  %v1730 = vpop.f32.mrf.mxu0
  %1731 = vmatprep.mubr.bf16.mxu0 0
  %1732 = vmatmul.mubr.bf16.gmra.mxu0 %v1541
  %v1733 = vpop.f32.mrf.mxu0
  %v1734 = vadd.f32 0.0, %v1733
  %v1735 = vpop.f32.mrf.mxu0
  %v1736 = vpop.f32.mrf.mxu0
  %v1737 = vadd.f32 0.0, %v1736
  %v1738 = vpop.f32.mrf.mxu0
  %1739 = vmatprep.mubr.bf16.mxu0 0
  %1740 = vmatmul.mubr.bf16.gmra.mxu0 %v1544
  %v1741 = vpop.f32.mrf.mxu0
  %v1742 = vadd.f32 0.0, %v1741
  %v1743 = vpop.f32.mrf.mxu0
  %v1744 = vpop.f32.mrf.mxu0
  %v1745 = vadd.f32 0.0, %v1744
  %v1746 = vpop.f32.mrf.mxu0
  %1747 = vmatprep.mubr.bf16.mxu0 0
  %1748 = vmatmul.mubr.bf16.gmra.mxu0 %v1547
  %v1749 = vpop.f32.mrf.mxu0
  %v1750 = vadd.f32 0.0, %v1749
  %v1751 = vpop.f32.mrf.mxu0
  %v1752 = vpop.f32.mrf.mxu0
  %v1753 = vadd.f32 0.0, %v1752
  %v1754 = vpop.f32.mrf.mxu0
  %1755 = vmatprep.mubr.bf16.mxu0 0
  %1756 = vmatmul.mubr.bf16.gmra.mxu0 %v1550
  %v1757 = vpop.f32.mrf.mxu0
  %v1758 = vadd.f32 0.0, %v1757
  %v1759 = vpop.f32.mrf.mxu0
  %v1760 = vpop.f32.mrf.mxu0
  %v1761 = vadd.f32 0.0, %v1760
  %v1762 = vpop.f32.mrf.mxu0
  %1763 = vmatprep.mubr.bf16.mxu0 0
  %1764 = vmatmul.mubr.bf16.gmra.mxu0 %v1553
  %v1765 = vpop.f32.mrf.mxu0
  %v1766 = vadd.f32 0.0, %v1765
  %v1767 = vpop.f32.mrf.mxu0
  %v1768 = vpop.f32.mrf.mxu0
  %v1769 = vadd.f32 0.0, %v1768
  %v1770 = vpop.f32.mrf.mxu0
  %1771 = vmatprep.mubr.bf16.mxu0 0
  %1772 = vmatmul.mubr.bf16.gmra.mxu0 %v1556
  %v1773 = vpop.f32.mrf.mxu0
  %v1774 = vadd.f32 0.0, %v1773
  %v1775 = vpop.f32.mrf.mxu0
  %v1776 = vpop.f32.mrf.mxu0
  %v1777 = vadd.f32 0.0, %v1776
  %v1778 = vpop.f32.mrf.mxu0
  %1779 = vmatprep.mubr.bf16.mxu0 0
  %1780 = vmatmul.mubr.bf16.gmra.mxu0 %v1559
  %v1781 = vpop.f32.mrf.mxu0
  %v1782 = vadd.f32 0.0, %v1781
  %v1783 = vpop.f32.mrf.mxu0
  %v1784 = vpop.f32.mrf.mxu0
  %v1785 = vadd.f32 0.0, %v1784
  %v1786 = vpop.f32.mrf.mxu0
  %1787 = vmatprep.mubr.bf16.mxu0 0
  %1788 = vmatmul.mubr.bf16.gmra.mxu0 %v1562
  %v1789 = vpop.f32.mrf.mxu0
  %v1790 = vadd.f32 0.0, %v1789
  %v1791 = vpop.f32.mrf.mxu0
  %v1792 = vpop.f32.mrf.mxu0
  %v1793 = vadd.f32 0.0, %v1792
  %v1794 = vpop.f32.mrf.mxu0
  %1795 = vmatprep.mubr.bf16.mxu0 0
  %1796 = vmatmul.mubr.bf16.gmra.mxu0 %v1565
  %v1797 = vpop.f32.mrf.mxu0
  %v1798 = vadd.f32 0.0, %v1797
  %v1799 = vpop.f32.mrf.mxu0
  %v1800 = vpop.f32.mrf.mxu0
  %v1801 = vadd.f32 0.0, %v1800
  %v1802 = vpop.f32.mrf.mxu0
  %1803 = vmatprep.mubr.bf16.mxu0 0
  %1804 = vmatmul.mubr.bf16.gmra.mxu0 %v1568
  %v1805 = vpop.f32.mrf.mxu0
  %v1806 = vadd.f32 0.0, %v1805
  %v1807 = vpop.f32.mrf.mxu0
  %v1808 = vpop.f32.mrf.mxu0
  %v1809 = vadd.f32 0.0, %v1808
  %v1810 = vpop.f32.mrf.mxu0
  %1811 = vmatprep.mubr.bf16.mxu0 0
  %1812 = vmatmul.mubr.bf16.gmra.mxu0 %v1571
  %v1813 = vpop.f32.mrf.mxu0
  %v1814 = vadd.f32 0.0, %v1813
  %v1815 = vpop.f32.mrf.mxu0
  %v1816 = vpop.f32.mrf.mxu0
  %v1817 = vadd.f32 0.0, %v1816
  %v1818 = vpop.f32.mrf.mxu0
  %1819 = vmatprep.mubr.bf16.mxu0 0
  %1820 = vmatmul.mubr.bf16.gmra.mxu0 %v1574
  %v1821 = vpop.f32.mrf.mxu0
  %v1822 = vadd.f32 0.0, %v1821
  %v1823 = vpop.f32.mrf.mxu0
  %v1824 = vpop.f32.mrf.mxu0
  %v1825 = vadd.f32 0.0, %v1824
  %v1826 = vpop.f32.mrf.mxu0
  %1827 = vmatprep.mubr.bf16.mxu0 0
  %1828 = vmatmul.mubr.bf16.gmra.mxu0 %v1577
  %v1829 = vpop.f32.mrf.mxu0
  %v1830 = vadd.f32 0.0, %v1829
  %v1831 = vpop.f32.mrf.mxu0
  %v1832 = vpop.f32.mrf.mxu0
  %v1833 = vadd.f32 0.0, %v1832
  %v1834 = vpop.f32.mrf.mxu0
  %1835 = vmatprep.mubr.bf16.mxu0 0
  %1836 = vmatmul.mubr.bf16.gmra.mxu0 %v1580
  %v1837 = vpop.f32.mrf.mxu0
  %v1838 = vadd.f32 0.0, %v1837
  %v1839 = vpop.f32.mrf.mxu0
  %v1840 = vpop.f32.mrf.mxu0
  %v1841 = vadd.f32 0.0, %v1840
  %v1842 = vpop.f32.mrf.mxu0
  %1843 = vmatprep.mubr.bf16.mxu0 0
  %1844 = vmatmul.mubr.bf16.gmra.mxu0 %v1583
  %v1845 = vpop.f32.mrf.mxu0
  %v1846 = vadd.f32 0.0, %v1845
  %v1847 = vpop.f32.mrf.mxu0
  %v1848 = vpop.f32.mrf.mxu0
  %v1849 = vadd.f32 0.0, %v1848
  %v1850 = vpop.f32.mrf.mxu0
  %1851 = vmatprep.mubr.bf16.mxu0 0
  %1852 = vmatmul.mubr.bf16.gmra.mxu0 %v1586
  %v1853 = vpop.f32.mrf.mxu0
  %v1854 = vadd.f32 0.0, %v1853
  %v1855 = vpop.f32.mrf.mxu0
  %v1856 = vpop.f32.mrf.mxu0
  %v1857 = vadd.f32 0.0, %v1856
  %v1858 = vpop.f32.mrf.mxu0
  %1859 = vmatprep.mubr.bf16.mxu0 0
  %1860 = vmatmul.mubr.bf16.gmra.mxu0 %v1589
  %v1861 = vpop.f32.mrf.mxu0
  %v1862 = vadd.f32 0.0, %v1861
  %v1863 = vpop.f32.mrf.mxu0
  %v1864 = vpop.f32.mrf.mxu0
  %v1865 = vadd.f32 0.0, %v1864
  %v1866 = vpop.f32.mrf.mxu0
  %1867 = vmatprep.mubr.bf16.mxu0 0
  %1868 = vmatmul.mubr.bf16.gmra.mxu0 %v1592
  %v1869 = vpop.f32.mrf.mxu0
  %v1870 = vadd.f32 0.0, %v1869
  %v1871 = vpop.f32.mrf.mxu0
  %v1872 = vpop.f32.mrf.mxu0
  %v1873 = vadd.f32 0.0, %v1872
  %v1874 = vpop.f32.mrf.mxu0
  %1875 = vmatprep.mubr.bf16.mxu0 0
  %1876 = vmatmul.mubr.bf16.gmra.mxu0 %v1595
  %v1877 = vpop.f32.mrf.mxu0
  %v1878 = vadd.f32 0.0, %v1877
  %v1879 = vpop.f32.mrf.mxu0
  %v1880 = vpop.f32.mrf.mxu0
  %v1881 = vadd.f32 0.0, %v1880
  %v1882 = vpop.f32.mrf.mxu0
  %1883 = vmatprep.mubr.bf16.mxu0 0
  %1884 = vmatmul.mubr.bf16.gmra.mxu0 %v1598
  %v1885 = vpop.f32.mrf.mxu0
  %v1886 = vadd.f32 0.0, %v1885
  %v1887 = vpop.f32.mrf.mxu0
  %v1888 = vpop.f32.mrf.mxu0
  %v1889 = vadd.f32 0.0, %v1888
  %v1890 = vpop.f32.mrf.mxu0
  %1891 = vdwg.mxu0
  %v1892 = vadd.f32 %v1013, %v1638
  %v1893 = vadd.f32 %v1016, %v1641
  %v1894 = vadd.f32 %v1021, %v1646
  %v1895 = vadd.f32 %v1024, %v1649
  %v1896 = vadd.f32 %v1029, %v1654
  %v1897 = vadd.f32 %v1032, %v1657
  %v1898 = vadd.f32 %v1037, %v1662
  %v1899 = vadd.f32 %v1040, %v1665
  %v1900 = vadd.f32 %v1045, %v1670
  %v1901 = vadd.f32 %v1048, %v1673
  %v1902 = vadd.f32 %v1053, %v1678
  %v1903 = vadd.f32 %v1056, %v1681
  %v1904 = vadd.f32 %v1061, %v1686
  %v1905 = vadd.f32 %v1064, %v1689
  %v1906 = vadd.f32 %v1069, %v1694
  %v1907 = vadd.f32 %v1072, %v1697
  %v1908 = vadd.f32 %v1077, %v1702
  %v1909 = vadd.f32 %v1080, %v1705
  %v1910 = vadd.f32 %v1085, %v1710
  %v1911 = vadd.f32 %v1088, %v1713
  %v1912 = vadd.f32 %v1093, %v1718
  %v1913 = vadd.f32 %v1096, %v1721
  %v1914 = vadd.f32 %v1101, %v1726
  %v1915 = vadd.f32 %v1104, %v1729
  %v1916 = vadd.f32 %v1109, %v1734
  %v1917 = vadd.f32 %v1112, %v1737
  %v1918 = vadd.f32 %v1117, %v1742
  %v1919 = vadd.f32 %v1120, %v1745
  %v1920 = vadd.f32 %v1125, %v1750
  %v1921 = vadd.f32 %v1128, %v1753
  %v1922 = vadd.f32 %v1133, %v1758
  %v1923 = vadd.f32 %v1136, %v1761
  %v1924 = vadd.f32 %v1141, %v1766
  %v1925 = vadd.f32 %v1144, %v1769
  %v1926 = vadd.f32 %v1149, %v1774
  %v1927 = vadd.f32 %v1152, %v1777
  %v1928 = vadd.f32 %v1157, %v1782
  %v1929 = vadd.f32 %v1160, %v1785
  %v1930 = vadd.f32 %v1165, %v1790
  %v1931 = vadd.f32 %v1168, %v1793
  %v1932 = vadd.f32 %v1173, %v1798
  %v1933 = vadd.f32 %v1176, %v1801
  %v1934 = vadd.f32 %v1181, %v1806
  %v1935 = vadd.f32 %v1184, %v1809
  %v1936 = vadd.f32 %v1189, %v1814
  %v1937 = vadd.f32 %v1192, %v1817
  %v1938 = vadd.f32 %v1197, %v1822
  %v1939 = vadd.f32 %v1200, %v1825
  %v1940 = vadd.f32 %v1205, %v1830
  %v1941 = vadd.f32 %v1208, %v1833
  %v1942 = vadd.f32 %v1213, %v1838
  %v1943 = vadd.f32 %v1216, %v1841
  %v1944 = vadd.f32 %v1221, %v1846
  %v1945 = vadd.f32 %v1224, %v1849
  %v1946 = vadd.f32 %v1229, %v1854
  %v1947 = vadd.f32 %v1232, %v1857
  %v1948 = vadd.f32 %v1237, %v1862
  %v1949 = vadd.f32 %v1240, %v1865
  %v1950 = vadd.f32 %v1245, %v1870
  %v1951 = vadd.f32 %v1248, %v1873
  %v1952 = vadd.f32 %v1253, %v1878
  %v1953 = vadd.f32 %v1256, %v1881
  %v1954 = vadd.f32 %v1261, %v1886
  %v1955 = vadd.f32 %v1264, %v1889
  %v1956 = vld [vmem:[%s82 + $0x8] sm:$0xf]
  %v1957 = vld [vmem:[%s82 + $0xc] sm:$0xf]
  %v1958 = vld [vmem:[%s82 + $0x10] sm:$0xf]
  %v1959 = vld [vmem:[%s82 + $0x14] sm:$0xf]
  %v1960 = vld [vmem:[%s82 + $0x18] sm:$0xf]
  %v1961 = vld [vmem:[%s82 + $0x1c] sm:$0xf]
  %v1962 = vld [vmem:[%s82 + $0x20] sm:$0xf]
  %v1963 = vld [vmem:[%s82 + $0x24] sm:$0xf]
  %v1964 = vld [vmem:[%s82 + $0x28] sm:$0xf]
  %v1965 = vld [vmem:[%s82 + $0x2c] sm:$0xf]
  %v1966 = vld [vmem:[%s82 + $0x30] sm:$0xf]
  %v1967 = vld [vmem:[%s82 + $0x34] sm:$0xf]
  %v1968 = vld [vmem:[%s82 + $0x38] sm:$0xf]
  %v1969 = vld [vmem:[%s82 + $0x3c] sm:$0xf]
  %v1970 = vld [vmem:[%s82 + $0x40] sm:$0xf]
  %v1971 = vld [vmem:[%s82 + $0x44] sm:$0xf]
  %v1972 = vld [vmem:[%s82 + $0x48] sm:$0xf]
  %v1973 = vld [vmem:[%s82 + $0x4c] sm:$0xf]
  %v1974 = vld [vmem:[%s82 + $0x50] sm:$0xf]
  %v1975 = vld [vmem:[%s82 + $0x54] sm:$0xf]
  %v1976 = vld [vmem:[%s82 + $0x58] sm:$0xf]
  %v1977 = vld [vmem:[%s82 + $0x5c] sm:$0xf]
  %v1978 = vld [vmem:[%s82 + $0x60] sm:$0xf]
  %v1979 = vld [vmem:[%s82 + $0x64] sm:$0xf]
  %v1980 = vld [vmem:[%s82 + $0x68] sm:$0xf]
  %v1981 = vld [vmem:[%s82 + $0x6c] sm:$0xf]
  %v1982 = vld [vmem:[%s82 + $0x70] sm:$0xf]
  %v1983 = vld [vmem:[%s82 + $0x74] sm:$0xf]
  %v1984 = vld [vmem:[%s82 + $0x78] sm:$0xf]
  %v1985 = vld [vmem:[%s82 + $0x7c] sm:$0xf]
  %v1986 = vld [vmem:[%s82 + $0x80] sm:$0xf]
  %v1987 = vld [vmem:[%s82 + $0x84] sm:$0xf]
  %v1988 = vld [vmem:[%s82 + $0x128] sm:$0xf]
  %v1989 = vld [vmem:[%s82 + $0x12c] sm:$0xf]
  %v1990 = vld [vmem:[%s82 + $0x130] sm:$0xf]
  %v1991 = vld [vmem:[%s82 + $0x134] sm:$0xf]
  %v1992 = vld [vmem:[%s82 + $0x138] sm:$0xf]
  %v1993 = vld [vmem:[%s82 + $0x13c] sm:$0xf]
  %v1994 = vld [vmem:[%s82 + $0x140] sm:$0xf]
  %v1995 = vld [vmem:[%s82 + $0x144] sm:$0xf]
  %v1996 = vld [vmem:[%s82 + $0x148] sm:$0xf]
  %v1997 = vld [vmem:[%s82 + $0x14c] sm:$0xf]
  %v1998 = vld [vmem:[%s82 + $0x150] sm:$0xf]
  %v1999 = vld [vmem:[%s82 + $0x154] sm:$0xf]
  %v2000 = vld [vmem:[%s82 + $0x158] sm:$0xf]
  %v2001 = vld [vmem:[%s82 + $0x15c] sm:$0xf]
  %v2002 = vld [vmem:[%s82 + $0x160] sm:$0xf]
  %v2003 = vld [vmem:[%s82 + $0x164] sm:$0xf]
  %v2004 = vld [vmem:[%s82 + $0x168] sm:$0xf]
  %v2005 = vld [vmem:[%s82 + $0x16c] sm:$0xf]
  %v2006 = vld [vmem:[%s82 + $0x170] sm:$0xf]
  %v2007 = vld [vmem:[%s82 + $0x174] sm:$0xf]
  %v2008 = vld [vmem:[%s82 + $0x178] sm:$0xf]
  %v2009 = vld [vmem:[%s82 + $0x17c] sm:$0xf]
  %v2010 = vld [vmem:[%s82 + $0x180] sm:$0xf]
  %v2011 = vld [vmem:[%s82 + $0x184] sm:$0xf]
  %v2012 = vld [vmem:[%s82 + $0x188] sm:$0xf]
  %v2013 = vld [vmem:[%s82 + $0x18c] sm:$0xf]
  %v2014 = vld [vmem:[%s82 + $0x190] sm:$0xf]
  %v2015 = vld [vmem:[%s82 + $0x194] sm:$0xf]
  %v2016 = vld [vmem:[%s82 + $0x198] sm:$0xf]
  %v2017 = vld [vmem:[%s82 + $0x19c] sm:$0xf]
  %v2018 = vld [vmem:[%s82 + $0x1a0] sm:$0xf]
  %v2019 = vld [vmem:[%s82 + $0x1a4] sm:$0xf]
  %s2020 = scalar_lea.vmem %s1, 36
  %v2021 = vld [vmem:[%s2020] sm:$0xf]
  %v2022 = vld [vmem:[%s2020 + $0x4] sm:$0xf]
  %v2023 = vld [vmem:[%s2020 + $0x8] sm:$0x1]
  %v2088 = vunpack.c.l.b16 %v1956
  %v2089 = vunpack.c.l.b16 %v1957
  %v2090 = vunpack.c.l.b16 %v1958
  %v2091 = vunpack.c.l.b16 %v1959
  %v2092 = vunpack.c.l.b16 %v1960
  %v2093 = vunpack.c.l.b16 %v1961
  %v2094 = vunpack.c.l.b16 %v1962
  %v2095 = vunpack.c.l.b16 %v1963
  %v2096 = vunpack.c.l.b16 %v1964
  %v2097 = vunpack.c.l.b16 %v1965
  %v2098 = vunpack.c.l.b16 %v1966
  %v2099 = vunpack.c.l.b16 %v1967
  %v2100 = vunpack.c.l.b16 %v1968
  %v2101 = vunpack.c.l.b16 %v1969
  %v2102 = vunpack.c.l.b16 %v1970
  %v2103 = vunpack.c.l.b16 %v1971
  %v2104 = vunpack.c.l.b16 %v1972
  %v2105 = vunpack.c.l.b16 %v1973
  %v2106 = vunpack.c.l.b16 %v1974
  %v2107 = vunpack.c.l.b16 %v1975
  %v2108 = vunpack.c.l.b16 %v1976
  %v2109 = vunpack.c.l.b16 %v1977
  %v2110 = vunpack.c.l.b16 %v1978
  %v2111 = vunpack.c.l.b16 %v1979
  %v2112 = vunpack.c.l.b16 %v1980
  %v2113 = vunpack.c.l.b16 %v1981
  %v2114 = vunpack.c.l.b16 %v1982
  %v2115 = vunpack.c.l.b16 %v1983
  %v2116 = vunpack.c.l.b16 %v1984
  %v2117 = vunpack.c.l.b16 %v1985
  %v2118 = vunpack.c.l.b16 %v1986
  %v2119 = vunpack.c.l.b16 %v1987
  %v2120 = vunpack.c.l.b16 %v1988
  %v2121 = vunpack.c.l.b16 %v1989
  %v2122 = vunpack.c.l.b16 %v1990
  %v2123 = vunpack.c.l.b16 %v1991
  %v2124 = vunpack.c.l.b16 %v1992
  %v2125 = vunpack.c.l.b16 %v1993
  %v2126 = vunpack.c.l.b16 %v1994
  %v2127 = vunpack.c.l.b16 %v1995
  %v2128 = vunpack.c.l.b16 %v1996
  %v2129 = vunpack.c.l.b16 %v1997
  %v2130 = vunpack.c.l.b16 %v1998
  %v2131 = vunpack.c.l.b16 %v1999
  %v2132 = vunpack.c.l.b16 %v2000
  %v2133 = vunpack.c.l.b16 %v2001
  %v2134 = vunpack.c.l.b16 %v2002
  %v2135 = vunpack.c.l.b16 %v2003
  %v2136 = vunpack.c.l.b16 %v2004
  %v2137 = vunpack.c.l.b16 %v2005
  %v2138 = vunpack.c.l.b16 %v2006
  %v2139 = vunpack.c.l.b16 %v2007
  %v2140 = vunpack.c.l.b16 %v2008
  %v2141 = vunpack.c.l.b16 %v2009
  %v2142 = vunpack.c.l.b16 %v2010
  %v2143 = vunpack.c.l.b16 %v2011
  %v2144 = vunpack.c.l.b16 %v2012
  %v2145 = vunpack.c.l.b16 %v2013
  %v2146 = vunpack.c.l.b16 %v2014
  %v2147 = vunpack.c.l.b16 %v2015
  %v2148 = vunpack.c.l.b16 %v2016
  %v2149 = vunpack.c.l.b16 %v2017
  %v2150 = vunpack.c.l.b16 %v2018
  %v2151 = vunpack.c.l.b16 %v2019
  %v2152 = vpack.c.b16 %v2089, %v2088
  %v2153 = vpack.c.b16 %v2091, %v2090
  %v2154 = vpack.c.b16 %v2093, %v2092
  %v2155 = vpack.c.b16 %v2095, %v2094
  %v2156 = vpack.c.b16 %v2097, %v2096
  %v2157 = vpack.c.b16 %v2099, %v2098
  %v2158 = vpack.c.b16 %v2101, %v2100
  %v2159 = vpack.c.b16 %v2103, %v2102
  %v2160 = vpack.c.b16 %v2105, %v2104
  %v2161 = vpack.c.b16 %v2107, %v2106
  %v2162 = vpack.c.b16 %v2109, %v2108
  %v2163 = vpack.c.b16 %v2111, %v2110
  %v2164 = vpack.c.b16 %v2113, %v2112
  %v2165 = vpack.c.b16 %v2115, %v2114
  %v2166 = vpack.c.b16 %v2117, %v2116
  %v2167 = vpack.c.b16 %v2119, %v2118
  %v2168 = vpack.c.b16 %v2121, %v2120
  %v2169 = vpack.c.b16 %v2123, %v2122
  %v2170 = vpack.c.b16 %v2125, %v2124
  %v2171 = vpack.c.b16 %v2127, %v2126
  %v2172 = vpack.c.b16 %v2129, %v2128
  %v2173 = vpack.c.b16 %v2131, %v2130
  %v2174 = vpack.c.b16 %v2133, %v2132
  %v2175 = vpack.c.b16 %v2135, %v2134
  %v2176 = vpack.c.b16 %v2137, %v2136
  %v2177 = vpack.c.b16 %v2139, %v2138
  %v2178 = vpack.c.b16 %v2141, %v2140
  %v2179 = vpack.c.b16 %v2143, %v2142
  %v2180 = vpack.c.b16 %v2145, %v2144
  %v2181 = vpack.c.b16 %v2147, %v2146
  %v2182 = vpack.c.b16 %v2149, %v2148
  %v2183 = vpack.c.b16 %v2151, %v2150
  %v2187 = vunpack.c.l.b16 %v2021
  %v2188 = vunpack.c.l.b16 %v2022
  %v2189 = vunpack.c.l.b16 %v2023
  %v2190 = vpack.c.b16 %v2188, %v2187
  %v2191 = vpack.c.b16 %v2189, %v2189
  %v2194 = vsel %vm320, %v2152, 0
  %v2197 = vsel %vm320, %v2153, 0
  %v2200 = vsel %vm320, %v2154, 0
  %v2203 = vsel %vm320, %v2155, 0
  %v2206 = vsel %vm320, %v2156, 0
  %v2209 = vsel %vm320, %v2157, 0
  %v2212 = vsel %vm320, %v2158, 0
  %v2215 = vsel %vm320, %v2159, 0
  %v2218 = vsel %vm320, %v2160, 0
  %v2221 = vsel %vm320, %v2161, 0
  %v2224 = vsel %vm320, %v2162, 0
  %v2227 = vsel %vm320, %v2163, 0
  %v2230 = vsel %vm320, %v2164, 0
  %v2233 = vsel %vm320, %v2165, 0
  %v2236 = vsel %vm320, %v2166, 0
  %v2239 = vsel %vm320, %v2167, 0
  %v2242 = vsel %vm320, %v2168, 0
  %v2245 = vsel %vm320, %v2169, 0
  %v2248 = vsel %vm320, %v2170, 0
  %v2251 = vsel %vm320, %v2171, 0
  %v2254 = vsel %vm320, %v2172, 0
  %v2257 = vsel %vm320, %v2173, 0
  %v2260 = vsel %vm320, %v2174, 0
  %v2263 = vsel %vm320, %v2175, 0
  %v2266 = vsel %vm320, %v2176, 0
  %v2269 = vsel %vm320, %v2177, 0
  %v2272 = vsel %vm320, %v2178, 0
  %v2275 = vsel %vm320, %v2179, 0
  %v2278 = vsel %vm320, %v2180, 0
  %v2281 = vsel %vm320, %v2181, 0
  %v2284 = vsel %vm320, %v2182, 0
  %v2287 = vsel %vm320, %v2183, 0
  %v2290 = vsel %vm417, %v2191, 0
  %2292 = vmatprep.subr.bf16.mxu0 0
  %2293 = vmatpush1.bf16.msra.mxu0 0
  %2294 = vmatprep.subr.bf16.mxu0 0
  %2295 = vmatpush1.bf16.msra.mxu0 0
  %2296 = vmatprep.subr.bf16.mxu0 0
  %2297 = vmatpush1.bf16.msra.mxu0 0
  %2298 = vmatprep.subr.bf16.mxu0 0
  %2299 = vmatpush1.bf16.msra.mxu0 0
  %2300 = vmatprep.subr.bf16.mxu0 0
  %2301 = vmatpush1.bf16.msra.mxu0 0
  %2302 = vmatprep.subr.bf16.mxu0 0
  %2303 = vmatpush1.bf16.msra.mxu0 0
  %2304 = vmatprep.subr.bf16.mxu0 0
  %2305 = vmatpush1.bf16.msra.mxu0 %v2290
  %2306 = vmatprep.subr.bf16.mxu0 0
  %2307 = vmatpush1.bf16.msra.mxu0 %v2190
  %2308 = vmatprep.subr.bf16.mxu0 0
  %2309 = vmatpush2.bf16.msra.mxu0 0
  %2310 = vmatprep.subr.bf16.mxu0 0
  %2311 = vmatpush2.bf16.msra.mxu0 0
  %2312 = vmatprep.subr.bf16.mxu0 0
  %2313 = vmatpush2.bf16.msra.mxu0 0
  %2314 = vmatprep.subr.bf16.mxu0 0
  %2315 = vmatpush2.bf16.msra.mxu0 0
  %2316 = vmatprep.subr.bf16.mxu0 0
  %2317 = vmatpush2.bf16.msra.mxu0 0
  %2318 = vmatprep.subr.bf16.mxu0 0
  %2319 = vmatpush2.bf16.msra.mxu0 0
  %2320 = vmatprep.subr.bf16.mxu0 0
  %2321 = vmatpush2.bf16.msra.mxu0 0
  %2322 = vmatprep.subr.bf16.mxu0 0
  %2323 = vmatpush2.bf16.msra.mxu0 0
  %2324 = vmatprep.mubr.bf16.mxu0 0
  %2325 = vmatmul.mubr.bf16.gmra.mxu0 %v2194
  %v2326 = vpop.f32.mrf.mxu0
  %v2327 = vadd.f32 0.0, %v2326
  %v2328 = vpop.f32.mrf.mxu0
  %v2329 = vpop.f32.mrf.mxu0
  %v2330 = vadd.f32 0.0, %v2329
  %v2331 = vpop.f32.mrf.mxu0
  %2332 = vmatprep.mubr.bf16.mxu0 0
  %2333 = vmatmul.mubr.bf16.gmra.mxu0 %v2197
  %v2334 = vpop.f32.mrf.mxu0
  %v2335 = vadd.f32 0.0, %v2334
  %v2336 = vpop.f32.mrf.mxu0
  %v2337 = vpop.f32.mrf.mxu0
  %v2338 = vadd.f32 0.0, %v2337
  %v2339 = vpop.f32.mrf.mxu0
  %2340 = vmatprep.mubr.bf16.mxu0 0
  %2341 = vmatmul.mubr.bf16.gmra.mxu0 %v2200
  %v2342 = vpop.f32.mrf.mxu0
  %v2343 = vadd.f32 0.0, %v2342
  %v2344 = vpop.f32.mrf.mxu0
  %v2345 = vpop.f32.mrf.mxu0
  %v2346 = vadd.f32 0.0, %v2345
  %v2347 = vpop.f32.mrf.mxu0
  %2348 = vmatprep.mubr.bf16.mxu0 0
  %2349 = vmatmul.mubr.bf16.gmra.mxu0 %v2203
  %v2350 = vpop.f32.mrf.mxu0
  %v2351 = vadd.f32 0.0, %v2350
  %v2352 = vpop.f32.mrf.mxu0
  %v2353 = vpop.f32.mrf.mxu0
  %v2354 = vadd.f32 0.0, %v2353
  %v2355 = vpop.f32.mrf.mxu0
  %2356 = vmatprep.mubr.bf16.mxu0 0
  %2357 = vmatmul.mubr.bf16.gmra.mxu0 %v2206
  %v2358 = vpop.f32.mrf.mxu0
  %v2359 = vadd.f32 0.0, %v2358
  %v2360 = vpop.f32.mrf.mxu0
  %v2361 = vpop.f32.mrf.mxu0
  %v2362 = vadd.f32 0.0, %v2361
  %v2363 = vpop.f32.mrf.mxu0
  %2364 = vmatprep.mubr.bf16.mxu0 0
  %2365 = vmatmul.mubr.bf16.gmra.mxu0 %v2209
  %v2366 = vpop.f32.mrf.mxu0
  %v2367 = vadd.f32 0.0, %v2366
  %v2368 = vpop.f32.mrf.mxu0
  %v2369 = vpop.f32.mrf.mxu0
  %v2370 = vadd.f32 0.0, %v2369
  %v2371 = vpop.f32.mrf.mxu0
  %2372 = vmatprep.mubr.bf16.mxu0 0
  %2373 = vmatmul.mubr.bf16.gmra.mxu0 %v2212
  %v2374 = vpop.f32.mrf.mxu0
  %v2375 = vadd.f32 0.0, %v2374
  %v2376 = vpop.f32.mrf.mxu0
  %v2377 = vpop.f32.mrf.mxu0
  %v2378 = vadd.f32 0.0, %v2377
  %v2379 = vpop.f32.mrf.mxu0
  %2380 = vmatprep.mubr.bf16.mxu0 0
  %2381 = vmatmul.mubr.bf16.gmra.mxu0 %v2215
  %v2382 = vpop.f32.mrf.mxu0
  %v2383 = vadd.f32 0.0, %v2382
  %v2384 = vpop.f32.mrf.mxu0
  %v2385 = vpop.f32.mrf.mxu0
  %v2386 = vadd.f32 0.0, %v2385
  %v2387 = vpop.f32.mrf.mxu0
  %2388 = vmatprep.mubr.bf16.mxu0 0
  %2389 = vmatmul.mubr.bf16.gmra.mxu0 %v2218
  %v2390 = vpop.f32.mrf.mxu0
  %v2391 = vadd.f32 0.0, %v2390
  %v2392 = vpop.f32.mrf.mxu0
  %v2393 = vpop.f32.mrf.mxu0
  %v2394 = vadd.f32 0.0, %v2393
  %v2395 = vpop.f32.mrf.mxu0
  %2396 = vmatprep.mubr.bf16.mxu0 0
  %2397 = vmatmul.mubr.bf16.gmra.mxu0 %v2221
  %v2398 = vpop.f32.mrf.mxu0
  %v2399 = vadd.f32 0.0, %v2398
  %v2400 = vpop.f32.mrf.mxu0
  %v2401 = vpop.f32.mrf.mxu0
  %v2402 = vadd.f32 0.0, %v2401
  %v2403 = vpop.f32.mrf.mxu0
  %2404 = vmatprep.mubr.bf16.mxu0 0
  %2405 = vmatmul.mubr.bf16.gmra.mxu0 %v2224
  %v2406 = vpop.f32.mrf.mxu0
  %v2407 = vadd.f32 0.0, %v2406
  %v2408 = vpop.f32.mrf.mxu0
  %v2409 = vpop.f32.mrf.mxu0
  %v2410 = vadd.f32 0.0, %v2409
  %v2411 = vpop.f32.mrf.mxu0
  %2412 = vmatprep.mubr.bf16.mxu0 0
  %2413 = vmatmul.mubr.bf16.gmra.mxu0 %v2227
  %v2414 = vpop.f32.mrf.mxu0
  %v2415 = vadd.f32 0.0, %v2414
  %v2416 = vpop.f32.mrf.mxu0
  %v2417 = vpop.f32.mrf.mxu0
  %v2418 = vadd.f32 0.0, %v2417
  %v2419 = vpop.f32.mrf.mxu0
  %2420 = vmatprep.mubr.bf16.mxu0 0
  %2421 = vmatmul.mubr.bf16.gmra.mxu0 %v2230
  %v2422 = vpop.f32.mrf.mxu0
  %v2423 = vadd.f32 0.0, %v2422
  %v2424 = vpop.f32.mrf.mxu0
  %v2425 = vpop.f32.mrf.mxu0
  %v2426 = vadd.f32 0.0, %v2425
  %v2427 = vpop.f32.mrf.mxu0
  %2428 = vmatprep.mubr.bf16.mxu0 0
  %2429 = vmatmul.mubr.bf16.gmra.mxu0 %v2233
  %v2430 = vpop.f32.mrf.mxu0
  %v2431 = vadd.f32 0.0, %v2430
  %v2432 = vpop.f32.mrf.mxu0
  %v2433 = vpop.f32.mrf.mxu0
  %v2434 = vadd.f32 0.0, %v2433
  %v2435 = vpop.f32.mrf.mxu0
  %2436 = vmatprep.mubr.bf16.mxu0 0
  %2437 = vmatmul.mubr.bf16.gmra.mxu0 %v2236
  %v2438 = vpop.f32.mrf.mxu0
  %v2439 = vadd.f32 0.0, %v2438
  %v2440 = vpop.f32.mrf.mxu0
  %v2441 = vpop.f32.mrf.mxu0
  %v2442 = vadd.f32 0.0, %v2441
  %v2443 = vpop.f32.mrf.mxu0
  %2444 = vmatprep.mubr.bf16.mxu0 0
  %2445 = vmatmul.mubr.bf16.gmra.mxu0 %v2239
  %v2446 = vpop.f32.mrf.mxu0
  %v2447 = vadd.f32 0.0, %v2446
  %v2448 = vpop.f32.mrf.mxu0
  %v2449 = vpop.f32.mrf.mxu0
  %v2450 = vadd.f32 0.0, %v2449
  %v2451 = vpop.f32.mrf.mxu0
  %2452 = vmatprep.mubr.bf16.mxu0 0
  %2453 = vmatmul.mubr.bf16.gmra.mxu0 %v2242
  %v2454 = vpop.f32.mrf.mxu0
  %v2455 = vadd.f32 0.0, %v2454
  %v2456 = vpop.f32.mrf.mxu0
  %v2457 = vpop.f32.mrf.mxu0
  %v2458 = vadd.f32 0.0, %v2457
  %v2459 = vpop.f32.mrf.mxu0
  %2460 = vmatprep.mubr.bf16.mxu0 0
  %2461 = vmatmul.mubr.bf16.gmra.mxu0 %v2245
  %v2462 = vpop.f32.mrf.mxu0
  %v2463 = vadd.f32 0.0, %v2462
  %v2464 = vpop.f32.mrf.mxu0
  %v2465 = vpop.f32.mrf.mxu0
  %v2466 = vadd.f32 0.0, %v2465
  %v2467 = vpop.f32.mrf.mxu0
  %2468 = vmatprep.mubr.bf16.mxu0 0
  %2469 = vmatmul.mubr.bf16.gmra.mxu0 %v2248
  %v2470 = vpop.f32.mrf.mxu0
  %v2471 = vadd.f32 0.0, %v2470
  %v2472 = vpop.f32.mrf.mxu0
  %v2473 = vpop.f32.mrf.mxu0
  %v2474 = vadd.f32 0.0, %v2473
  %v2475 = vpop.f32.mrf.mxu0
  %2476 = vmatprep.mubr.bf16.mxu0 0
  %2477 = vmatmul.mubr.bf16.gmra.mxu0 %v2251
  %v2478 = vpop.f32.mrf.mxu0
  %v2479 = vadd.f32 0.0, %v2478
  %v2480 = vpop.f32.mrf.mxu0
  %v2481 = vpop.f32.mrf.mxu0
  %v2482 = vadd.f32 0.0, %v2481
  %v2483 = vpop.f32.mrf.mxu0
  %2484 = vmatprep.mubr.bf16.mxu0 0
  %2485 = vmatmul.mubr.bf16.gmra.mxu0 %v2254
  %v2486 = vpop.f32.mrf.mxu0
  %v2487 = vadd.f32 0.0, %v2486
  %v2488 = vpop.f32.mrf.mxu0
  %v2489 = vpop.f32.mrf.mxu0
  %v2490 = vadd.f32 0.0, %v2489
  %v2491 = vpop.f32.mrf.mxu0
  %2492 = vmatprep.mubr.bf16.mxu0 0
  %2493 = vmatmul.mubr.bf16.gmra.mxu0 %v2257
  %v2494 = vpop.f32.mrf.mxu0
  %v2495 = vadd.f32 0.0, %v2494
  %v2496 = vpop.f32.mrf.mxu0
  %v2497 = vpop.f32.mrf.mxu0
  %v2498 = vadd.f32 0.0, %v2497
  %v2499 = vpop.f32.mrf.mxu0
  %2500 = vmatprep.mubr.bf16.mxu0 0
  %2501 = vmatmul.mubr.bf16.gmra.mxu0 %v2260
  %v2502 = vpop.f32.mrf.mxu0
  %v2503 = vadd.f32 0.0, %v2502
  %v2504 = vpop.f32.mrf.mxu0
  %v2505 = vpop.f32.mrf.mxu0
  %v2506 = vadd.f32 0.0, %v2505
  %v2507 = vpop.f32.mrf.mxu0
  %2508 = vmatprep.mubr.bf16.mxu0 0
  %2509 = vmatmul.mubr.bf16.gmra.mxu0 %v2263
  %v2510 = vpop.f32.mrf.mxu0
  %v2511 = vadd.f32 0.0, %v2510
  %v2512 = vpop.f32.mrf.mxu0
  %v2513 = vpop.f32.mrf.mxu0
  %v2514 = vadd.f32 0.0, %v2513
  %v2515 = vpop.f32.mrf.mxu0
  %2516 = vmatprep.mubr.bf16.mxu0 0
  %2517 = vmatmul.mubr.bf16.gmra.mxu0 %v2266
  %v2518 = vpop.f32.mrf.mxu0
  %v2519 = vadd.f32 0.0, %v2518
  %v2520 = vpop.f32.mrf.mxu0
  %v2521 = vpop.f32.mrf.mxu0
  %v2522 = vadd.f32 0.0, %v2521
  %v2523 = vpop.f32.mrf.mxu0
  %2524 = vmatprep.mubr.bf16.mxu0 0
  %2525 = vmatmul.mubr.bf16.gmra.mxu0 %v2269
  %v2526 = vpop.f32.mrf.mxu0
  %v2527 = vadd.f32 0.0, %v2526
  %v2528 = vpop.f32.mrf.mxu0
  %v2529 = vpop.f32.mrf.mxu0
  %v2530 = vadd.f32 0.0, %v2529
  %v2531 = vpop.f32.mrf.mxu0
  %2532 = vmatprep.mubr.bf16.mxu0 0
  %2533 = vmatmul.mubr.bf16.gmra.mxu0 %v2272
  %v2534 = vpop.f32.mrf.mxu0
  %v2535 = vadd.f32 0.0, %v2534
  %v2536 = vpop.f32.mrf.mxu0
  %v2537 = vpop.f32.mrf.mxu0
  %v2538 = vadd.f32 0.0, %v2537
  %v2539 = vpop.f32.mrf.mxu0
  %2540 = vmatprep.mubr.bf16.mxu0 0
  %2541 = vmatmul.mubr.bf16.gmra.mxu0 %v2275
  %v2542 = vpop.f32.mrf.mxu0
  %v2543 = vadd.f32 0.0, %v2542
  %v2544 = vpop.f32.mrf.mxu0
  %v2545 = vpop.f32.mrf.mxu0
  %v2546 = vadd.f32 0.0, %v2545
  %v2547 = vpop.f32.mrf.mxu0
  %2548 = vmatprep.mubr.bf16.mxu0 0
  %2549 = vmatmul.mubr.bf16.gmra.mxu0 %v2278
  %v2550 = vpop.f32.mrf.mxu0
  %v2551 = vadd.f32 0.0, %v2550
  %v2552 = vpop.f32.mrf.mxu0
  %v2553 = vpop.f32.mrf.mxu0
  %v2554 = vadd.f32 0.0, %v2553
  %v2555 = vpop.f32.mrf.mxu0
  %2556 = vmatprep.mubr.bf16.mxu0 0
  %2557 = vmatmul.mubr.bf16.gmra.mxu0 %v2281
  %v2558 = vpop.f32.mrf.mxu0
  %v2559 = vadd.f32 0.0, %v2558
  %v2560 = vpop.f32.mrf.mxu0
  %v2561 = vpop.f32.mrf.mxu0
  %v2562 = vadd.f32 0.0, %v2561
  %v2563 = vpop.f32.mrf.mxu0
  %2564 = vmatprep.mubr.bf16.mxu0 0
  %2565 = vmatmul.mubr.bf16.gmra.mxu0 %v2284
  %v2566 = vpop.f32.mrf.mxu0
  %v2567 = vadd.f32 0.0, %v2566
  %v2568 = vpop.f32.mrf.mxu0
  %v2569 = vpop.f32.mrf.mxu0
  %v2570 = vadd.f32 0.0, %v2569
  %v2571 = vpop.f32.mrf.mxu0
  %2572 = vmatprep.mubr.bf16.mxu0 0
  %2573 = vmatmul.mubr.bf16.gmra.mxu0 %v2287
  %v2574 = vpop.f32.mrf.mxu0
  %v2575 = vadd.f32 0.0, %v2574
  %v2576 = vpop.f32.mrf.mxu0
  %v2577 = vpop.f32.mrf.mxu0
  %v2578 = vadd.f32 0.0, %v2577
  %v2579 = vpop.f32.mrf.mxu0
  %2580 = vdwg.mxu0
  %v2581 = vadd.f32 %v1892, %v2327
  %v2582 = vadd.f32 %v1893, %v2330
  %v2583 = vadd.f32 %v1894, %v2335
  %v2584 = vadd.f32 %v1895, %v2338
  %v2585 = vadd.f32 %v1896, %v2343
  %v2586 = vadd.f32 %v1897, %v2346
  %v2587 = vadd.f32 %v1898, %v2351
  %v2588 = vadd.f32 %v1899, %v2354
  %v2589 = vadd.f32 %v1900, %v2359
  %v2590 = vadd.f32 %v1901, %v2362
  %v2591 = vadd.f32 %v1902, %v2367
  %v2592 = vadd.f32 %v1903, %v2370
  %v2593 = vadd.f32 %v1904, %v2375
  %v2594 = vadd.f32 %v1905, %v2378
  %v2595 = vadd.f32 %v1906, %v2383
  %v2596 = vadd.f32 %v1907, %v2386
  %v2597 = vadd.f32 %v1908, %v2391
  %v2598 = vadd.f32 %v1909, %v2394
  %v2599 = vadd.f32 %v1910, %v2399
  %v2600 = vadd.f32 %v1911, %v2402
  %v2601 = vadd.f32 %v1912, %v2407
  %v2602 = vadd.f32 %v1913, %v2410
  %v2603 = vadd.f32 %v1914, %v2415
  %v2604 = vadd.f32 %v1915, %v2418
  %v2605 = vadd.f32 %v1916, %v2423
  %v2606 = vadd.f32 %v1917, %v2426
  %v2607 = vadd.f32 %v1918, %v2431
  %v2608 = vadd.f32 %v1919, %v2434
  %v2609 = vadd.f32 %v1920, %v2439
  %v2610 = vadd.f32 %v1921, %v2442
  %v2611 = vadd.f32 %v1922, %v2447
  %v2612 = vadd.f32 %v1923, %v2450
  %v2613 = vadd.f32 %v1924, %v2455
  %v2614 = vadd.f32 %v1925, %v2458
  %v2615 = vadd.f32 %v1926, %v2463
  %v2616 = vadd.f32 %v1927, %v2466
  %v2617 = vadd.f32 %v1928, %v2471
  %v2618 = vadd.f32 %v1929, %v2474
  %v2619 = vadd.f32 %v1930, %v2479
  %v2620 = vadd.f32 %v1931, %v2482
  %v2621 = vadd.f32 %v1932, %v2487
  %v2622 = vadd.f32 %v1933, %v2490
  %v2623 = vadd.f32 %v1934, %v2495
  %v2624 = vadd.f32 %v1935, %v2498
  %v2625 = vadd.f32 %v1936, %v2503
  %v2626 = vadd.f32 %v1937, %v2506
  %v2627 = vadd.f32 %v1938, %v2511
  %v2628 = vadd.f32 %v1939, %v2514
  %v2629 = vadd.f32 %v1940, %v2519
  %v2630 = vadd.f32 %v1941, %v2522
  %v2631 = vadd.f32 %v1942, %v2527
  %v2632 = vadd.f32 %v1943, %v2530
  %v2633 = vadd.f32 %v1944, %v2535
  %v2634 = vadd.f32 %v1945, %v2538
  %v2635 = vadd.f32 %v1946, %v2543
  %v2636 = vadd.f32 %v1947, %v2546
  %v2637 = vadd.f32 %v1948, %v2551
  %v2638 = vadd.f32 %v1949, %v2554
  %v2639 = vadd.f32 %v1950, %v2559
  %v2640 = vadd.f32 %v1951, %v2562
  %v2641 = vadd.f32 %v1952, %v2567
  %v2642 = vadd.f32 %v1953, %v2570
  %v2643 = vadd.f32 %v1954, %v2575
  %v2644 = vadd.f32 %v1955, %v2578
  %v2645 = vld [vmem:[%s0 + $0x10] sm:$0xf]
  %v2646 = vld [vmem:[%s0 + $0x14] sm:$0xf]
  %v2647 = vld [vmem:[%s0 + $0x18] sm:$0xf]
  %v2648 = vld [vmem:[%s0 + $0x1c] sm:$0xf]
  %v2649 = vld [vmem:[%s0 + $0x20] sm:$0xf]
  %v2650 = vld [vmem:[%s0 + $0x24] sm:$0xf]
  %v2651 = vld [vmem:[%s0 + $0x28] sm:$0xf]
  %v2652 = vld [vmem:[%s0 + $0x2c] sm:$0xf]
  %v2653 = vld [vmem:[%s0 + $0x30] sm:$0xf]
  %v2654 = vld [vmem:[%s0 + $0x34] sm:$0xf]
  %v2655 = vld [vmem:[%s0 + $0x38] sm:$0xf]
  %v2656 = vld [vmem:[%s0 + $0x3c] sm:$0xf]
  %v2657 = vld [vmem:[%s0 + $0x40] sm:$0xf]
  %v2658 = vld [vmem:[%s0 + $0x44] sm:$0xf]
  %v2659 = vld [vmem:[%s0 + $0x48] sm:$0xf]
  %v2660 = vld [vmem:[%s0 + $0x4c] sm:$0xf]
  %v2661 = vld [vmem:[%s0 + $0x50] sm:$0xf]
  %v2662 = vld [vmem:[%s0 + $0x54] sm:$0xf]
  %v2663 = vld [vmem:[%s0 + $0x58] sm:$0xf]
  %v2664 = vld [vmem:[%s0 + $0x5c] sm:$0xf]
  %v2665 = vld [vmem:[%s0 + $0x60] sm:$0xf]
  %v2666 = vld [vmem:[%s0 + $0x64] sm:$0xf]
  %v2667 = vld [vmem:[%s0 + $0x68] sm:$0xf]
  %v2668 = vld [vmem:[%s0 + $0x6c] sm:$0xf]
  %v2669 = vld [vmem:[%s0 + $0x70] sm:$0xf]
  %v2670 = vld [vmem:[%s0 + $0x74] sm:$0xf]
  %v2671 = vld [vmem:[%s0 + $0x78] sm:$0xf]
  %v2672 = vld [vmem:[%s0 + $0x7c] sm:$0xf]
  %v2673 = vld [vmem:[%s0 + $0x80] sm:$0xf]
  %v2674 = vld [vmem:[%s0 + $0x84] sm:$0xf]
  %v2675 = vld [vmem:[%s0 + $0x88] sm:$0xf]
  %v2676 = vld [vmem:[%s0 + $0x8c] sm:$0xf]
  %v2677 = vld [vmem:[%s0 + $0x130] sm:$0xf]
  %v2678 = vld [vmem:[%s0 + $0x134] sm:$0xf]
  %v2679 = vld [vmem:[%s0 + $0x138] sm:$0xf]
  %v2680 = vld [vmem:[%s0 + $0x13c] sm:$0xf]
  %v2681 = vld [vmem:[%s0 + $0x140] sm:$0xf]
  %v2682 = vld [vmem:[%s0 + $0x144] sm:$0xf]
  %v2683 = vld [vmem:[%s0 + $0x148] sm:$0xf]
  %v2684 = vld [vmem:[%s0 + $0x14c] sm:$0xf]
  %v2685 = vld [vmem:[%s0 + $0x150] sm:$0xf]
  %v2686 = vld [vmem:[%s0 + $0x154] sm:$0xf]
  %v2687 = vld [vmem:[%s0 + $0x158] sm:$0xf]
  %v2688 = vld [vmem:[%s0 + $0x15c] sm:$0xf]
  %v2689 = vld [vmem:[%s0 + $0x160] sm:$0xf]
  %v2690 = vld [vmem:[%s0 + $0x164] sm:$0xf]
  %v2691 = vld [vmem:[%s0 + $0x168] sm:$0xf]
  %v2692 = vld [vmem:[%s0 + $0x16c] sm:$0xf]
  %v2693 = vld [vmem:[%s0 + $0x170] sm:$0xf]
  %v2694 = vld [vmem:[%s0 + $0x174] sm:$0xf]
  %v2695 = vld [vmem:[%s0 + $0x178] sm:$0xf]
  %v2696 = vld [vmem:[%s0 + $0x17c] sm:$0xf]
  %v2697 = vld [vmem:[%s0 + $0x180] sm:$0xf]
  %v2698 = vld [vmem:[%s0 + $0x184] sm:$0xf]
  %v2699 = vld [vmem:[%s0 + $0x188] sm:$0xf]
  %v2700 = vld [vmem:[%s0 + $0x18c] sm:$0xf]
  %v2701 = vld [vmem:[%s0 + $0x190] sm:$0xf]
  %v2702 = vld [vmem:[%s0 + $0x194] sm:$0xf]
  %v2703 = vld [vmem:[%s0 + $0x198] sm:$0xf]
  %v2704 = vld [vmem:[%s0 + $0x19c] sm:$0xf]
  %v2705 = vld [vmem:[%s0 + $0x1a0] sm:$0xf]
  %v2706 = vld [vmem:[%s0 + $0x1a4] sm:$0xf]
  %v2707 = vld [vmem:[%s0 + $0x1a8] sm:$0xf]
  %v2708 = vld [vmem:[%s0 + $0x1ac] sm:$0xf]
  %s2709 = scalar_lea.vmem %s1, 48
  %v2710 = vld [vmem:[%s2709] sm:$0xf]
  %v2711 = vld [vmem:[%s2709 + $0x4] sm:$0xf]
  %v2712 = vld [vmem:[%s2709 + $0x8] sm:$0x1]
  %v2777 = vunpack.c.l.b16 %v2645
  %v2778 = vunpack.c.l.b16 %v2646
  %v2779 = vunpack.c.l.b16 %v2647
  %v2780 = vunpack.c.l.b16 %v2648
  %v2781 = vunpack.c.l.b16 %v2649
  %v2782 = vunpack.c.l.b16 %v2650
  %v2783 = vunpack.c.l.b16 %v2651
  %v2784 = vunpack.c.l.b16 %v2652
  %v2785 = vunpack.c.l.b16 %v2653
  %v2786 = vunpack.c.l.b16 %v2654
  %v2787 = vunpack.c.l.b16 %v2655
  %v2788 = vunpack.c.l.b16 %v2656
  %v2789 = vunpack.c.l.b16 %v2657
  %v2790 = vunpack.c.l.b16 %v2658
  %v2791 = vunpack.c.l.b16 %v2659
  %v2792 = vunpack.c.l.b16 %v2660
  %v2793 = vunpack.c.l.b16 %v2661
  %v2794 = vunpack.c.l.b16 %v2662
  %v2795 = vunpack.c.l.b16 %v2663
  %v2796 = vunpack.c.l.b16 %v2664
  %v2797 = vunpack.c.l.b16 %v2665
  %v2798 = vunpack.c.l.b16 %v2666
  %v2799 = vunpack.c.l.b16 %v2667
  %v2800 = vunpack.c.l.b16 %v2668
  %v2801 = vunpack.c.l.b16 %v2669
  %v2802 = vunpack.c.l.b16 %v2670
  %v2803 = vunpack.c.l.b16 %v2671
  %v2804 = vunpack.c.l.b16 %v2672
  %v2805 = vunpack.c.l.b16 %v2673
  %v2806 = vunpack.c.l.b16 %v2674
  %v2807 = vunpack.c.l.b16 %v2675
  %v2808 = vunpack.c.l.b16 %v2676
  %v2809 = vunpack.c.l.b16 %v2677
  %v2810 = vunpack.c.l.b16 %v2678
  %v2811 = vunpack.c.l.b16 %v2679
  %v2812 = vunpack.c.l.b16 %v2680
  %v2813 = vunpack.c.l.b16 %v2681
  %v2814 = vunpack.c.l.b16 %v2682
  %v2815 = vunpack.c.l.b16 %v2683
  %v2816 = vunpack.c.l.b16 %v2684
  %v2817 = vunpack.c.l.b16 %v2685
  %v2818 = vunpack.c.l.b16 %v2686
  %v2819 = vunpack.c.l.b16 %v2687
  %v2820 = vunpack.c.l.b16 %v2688
  %v2821 = vunpack.c.l.b16 %v2689
  %v2822 = vunpack.c.l.b16 %v2690
  %v2823 = vunpack.c.l.b16 %v2691
  %v2824 = vunpack.c.l.b16 %v2692
  %v2825 = vunpack.c.l.b16 %v2693
  %v2826 = vunpack.c.l.b16 %v2694
  %v2827 = vunpack.c.l.b16 %v2695
  %v2828 = vunpack.c.l.b16 %v2696
  %v2829 = vunpack.c.l.b16 %v2697
  %v2830 = vunpack.c.l.b16 %v2698
  %v2831 = vunpack.c.l.b16 %v2699
  %v2832 = vunpack.c.l.b16 %v2700
  %v2833 = vunpack.c.l.b16 %v2701
  %v2834 = vunpack.c.l.b16 %v2702
  %v2835 = vunpack.c.l.b16 %v2703
  %v2836 = vunpack.c.l.b16 %v2704
  %v2837 = vunpack.c.l.b16 %v2705
  %v2838 = vunpack.c.l.b16 %v2706
  %v2839 = vunpack.c.l.b16 %v2707
  %v2840 = vunpack.c.l.b16 %v2708
  %v2841 = vpack.c.b16 %v2778, %v2777
  %v2842 = vpack.c.b16 %v2780, %v2779
  %v2843 = vpack.c.b16 %v2782, %v2781
  %v2844 = vpack.c.b16 %v2784, %v2783
  %v2845 = vpack.c.b16 %v2786, %v2785
  %v2846 = vpack.c.b16 %v2788, %v2787
  %v2847 = vpack.c.b16 %v2790, %v2789
  %v2848 = vpack.c.b16 %v2792, %v2791
  %v2849 = vpack.c.b16 %v2794, %v2793
  %v2850 = vpack.c.b16 %v2796, %v2795
  %v2851 = vpack.c.b16 %v2798, %v2797
  %v2852 = vpack.c.b16 %v2800, %v2799
  %v2853 = vpack.c.b16 %v2802, %v2801
  %v2854 = vpack.c.b16 %v2804, %v2803
  %v2855 = vpack.c.b16 %v2806, %v2805
  %v2856 = vpack.c.b16 %v2808, %v2807
  %v2857 = vpack.c.b16 %v2810, %v2809
  %v2858 = vpack.c.b16 %v2812, %v2811
  %v2859 = vpack.c.b16 %v2814, %v2813
  %v2860 = vpack.c.b16 %v2816, %v2815
  %v2861 = vpack.c.b16 %v2818, %v2817
  %v2862 = vpack.c.b16 %v2820, %v2819
  %v2863 = vpack.c.b16 %v2822, %v2821
  %v2864 = vpack.c.b16 %v2824, %v2823
  %v2865 = vpack.c.b16 %v2826, %v2825
  %v2866 = vpack.c.b16 %v2828, %v2827
  %v2867 = vpack.c.b16 %v2830, %v2829
  %v2868 = vpack.c.b16 %v2832, %v2831
  %v2869 = vpack.c.b16 %v2834, %v2833
  %v2870 = vpack.c.b16 %v2836, %v2835
  %v2871 = vpack.c.b16 %v2838, %v2837
  %v2872 = vpack.c.b16 %v2840, %v2839
  %v2876 = vunpack.c.l.b16 %v2710
  %v2877 = vunpack.c.l.b16 %v2711
  %v2878 = vunpack.c.l.b16 %v2712
  %v2879 = vpack.c.b16 %v2877, %v2876
  %v2880 = vpack.c.b16 %v2878, %v2878
  %v2883 = vsel %vm320, %v2841, 0
  %v2886 = vsel %vm320, %v2842, 0
  %v2889 = vsel %vm320, %v2843, 0
  %v2892 = vsel %vm320, %v2844, 0
  %v2895 = vsel %vm320, %v2845, 0
  %v2898 = vsel %vm320, %v2846, 0
  %v2901 = vsel %vm320, %v2847, 0
  %v2904 = vsel %vm320, %v2848, 0
  %v2907 = vsel %vm320, %v2849, 0
  %v2910 = vsel %vm320, %v2850, 0
  %v2913 = vsel %vm320, %v2851, 0
  %v2916 = vsel %vm320, %v2852, 0
  %v2919 = vsel %vm320, %v2853, 0
  %v2922 = vsel %vm320, %v2854, 0
  %v2925 = vsel %vm320, %v2855, 0
  %v2928 = vsel %vm320, %v2856, 0
  %v2931 = vsel %vm320, %v2857, 0
  %v2934 = vsel %vm320, %v2858, 0
  %v2937 = vsel %vm320, %v2859, 0
  %v2940 = vsel %vm320, %v2860, 0
  %v2943 = vsel %vm320, %v2861, 0
  %v2946 = vsel %vm320, %v2862, 0
  %v2949 = vsel %vm320, %v2863, 0
  %v2952 = vsel %vm320, %v2864, 0
  %v2955 = vsel %vm320, %v2865, 0
  %v2958 = vsel %vm320, %v2866, 0
  %v2961 = vsel %vm320, %v2867, 0
  %v2964 = vsel %vm320, %v2868, 0
  %v2967 = vsel %vm320, %v2869, 0
  %v2970 = vsel %vm320, %v2870, 0
  %v2973 = vsel %vm320, %v2871, 0
  %v2976 = vsel %vm320, %v2872, 0
  %v2979 = vsel %vm417, %v2880, 0
  %2981 = vmatprep.subr.bf16.mxu0 0
  %2982 = vmatpush1.bf16.msra.mxu0 0
  %2983 = vmatprep.subr.bf16.mxu0 0
  %2984 = vmatpush1.bf16.msra.mxu0 0
  %2985 = vmatprep.subr.bf16.mxu0 0
  %2986 = vmatpush1.bf16.msra.mxu0 0
  %2987 = vmatprep.subr.bf16.mxu0 0
  %2988 = vmatpush1.bf16.msra.mxu0 0
  %2989 = vmatprep.subr.bf16.mxu0 0
  %2990 = vmatpush1.bf16.msra.mxu0 0
  %2991 = vmatprep.subr.bf16.mxu0 0
  %2992 = vmatpush1.bf16.msra.mxu0 0
  %2993 = vmatprep.subr.bf16.mxu0 0
  %2994 = vmatpush1.bf16.msra.mxu0 %v2979
  %2995 = vmatprep.subr.bf16.mxu0 0
  %2996 = vmatpush1.bf16.msra.mxu0 %v2879
  %2997 = vmatprep.subr.bf16.mxu0 0
  %2998 = vmatpush2.bf16.msra.mxu0 0
  %2999 = vmatprep.subr.bf16.mxu0 0
  %3000 = vmatpush2.bf16.msra.mxu0 0
  %3001 = vmatprep.subr.bf16.mxu0 0
  %3002 = vmatpush2.bf16.msra.mxu0 0
  %3003 = vmatprep.subr.bf16.mxu0 0
  %3004 = vmatpush2.bf16.msra.mxu0 0
  %3005 = vmatprep.subr.bf16.mxu0 0
  %3006 = vmatpush2.bf16.msra.mxu0 0
  %3007 = vmatprep.subr.bf16.mxu0 0
  %3008 = vmatpush2.bf16.msra.mxu0 0
  %3009 = vmatprep.subr.bf16.mxu0 0
  %3010 = vmatpush2.bf16.msra.mxu0 0
  %3011 = vmatprep.subr.bf16.mxu0 0
  %3012 = vmatpush2.bf16.msra.mxu0 0
  %3013 = vmatprep.mubr.bf16.mxu0 0
  %3014 = vmatmul.mubr.bf16.gmra.mxu0 %v2883
  %v3015 = vpop.f32.mrf.mxu0
  %v3016 = vadd.f32 0.0, %v3015
  %v3017 = vpop.f32.mrf.mxu0
  %v3018 = vpop.f32.mrf.mxu0
  %v3019 = vadd.f32 0.0, %v3018
  %v3020 = vpop.f32.mrf.mxu0
  %3021 = vmatprep.mubr.bf16.mxu0 0
  %3022 = vmatmul.mubr.bf16.gmra.mxu0 %v2886
  %v3023 = vpop.f32.mrf.mxu0
  %v3024 = vadd.f32 0.0, %v3023
  %v3025 = vpop.f32.mrf.mxu0
  %v3026 = vpop.f32.mrf.mxu0
  %v3027 = vadd.f32 0.0, %v3026
  %v3028 = vpop.f32.mrf.mxu0
  %3029 = vmatprep.mubr.bf16.mxu0 0
  %3030 = vmatmul.mubr.bf16.gmra.mxu0 %v2889
  %v3031 = vpop.f32.mrf.mxu0
  %v3032 = vadd.f32 0.0, %v3031
  %v3033 = vpop.f32.mrf.mxu0
  %v3034 = vpop.f32.mrf.mxu0
  %v3035 = vadd.f32 0.0, %v3034
  %v3036 = vpop.f32.mrf.mxu0
  %3037 = vmatprep.mubr.bf16.mxu0 0
  %3038 = vmatmul.mubr.bf16.gmra.mxu0 %v2892
  %v3039 = vpop.f32.mrf.mxu0
  %v3040 = vadd.f32 0.0, %v3039
  %v3041 = vpop.f32.mrf.mxu0
  %v3042 = vpop.f32.mrf.mxu0
  %v3043 = vadd.f32 0.0, %v3042
  %v3044 = vpop.f32.mrf.mxu0
  %3045 = vmatprep.mubr.bf16.mxu0 0
  %3046 = vmatmul.mubr.bf16.gmra.mxu0 %v2895
  %v3047 = vpop.f32.mrf.mxu0
  %v3048 = vadd.f32 0.0, %v3047
  %v3049 = vpop.f32.mrf.mxu0
  %v3050 = vpop.f32.mrf.mxu0
  %v3051 = vadd.f32 0.0, %v3050
  %v3052 = vpop.f32.mrf.mxu0
  %3053 = vmatprep.mubr.bf16.mxu0 0
  %3054 = vmatmul.mubr.bf16.gmra.mxu0 %v2898
  %v3055 = vpop.f32.mrf.mxu0
  %v3056 = vadd.f32 0.0, %v3055
  %v3057 = vpop.f32.mrf.mxu0
  %v3058 = vpop.f32.mrf.mxu0
  %v3059 = vadd.f32 0.0, %v3058
  %v3060 = vpop.f32.mrf.mxu0
  %3061 = vmatprep.mubr.bf16.mxu0 0
  %3062 = vmatmul.mubr.bf16.gmra.mxu0 %v2901
  %v3063 = vpop.f32.mrf.mxu0
  %v3064 = vadd.f32 0.0, %v3063
  %v3065 = vpop.f32.mrf.mxu0
  %v3066 = vpop.f32.mrf.mxu0
  %v3067 = vadd.f32 0.0, %v3066
  %v3068 = vpop.f32.mrf.mxu0
  %3069 = vmatprep.mubr.bf16.mxu0 0
  %3070 = vmatmul.mubr.bf16.gmra.mxu0 %v2904
  %v3071 = vpop.f32.mrf.mxu0
  %v3072 = vadd.f32 0.0, %v3071
  %v3073 = vpop.f32.mrf.mxu0
  %v3074 = vpop.f32.mrf.mxu0
  %v3075 = vadd.f32 0.0, %v3074
  %v3076 = vpop.f32.mrf.mxu0
  %3077 = vmatprep.mubr.bf16.mxu0 0
  %3078 = vmatmul.mubr.bf16.gmra.mxu0 %v2907
  %v3079 = vpop.f32.mrf.mxu0
  %v3080 = vadd.f32 0.0, %v3079
  %v3081 = vpop.f32.mrf.mxu0
  %v3082 = vpop.f32.mrf.mxu0
  %v3083 = vadd.f32 0.0, %v3082
  %v3084 = vpop.f32.mrf.mxu0
  %3085 = vmatprep.mubr.bf16.mxu0 0
  %3086 = vmatmul.mubr.bf16.gmra.mxu0 %v2910
  %v3087 = vpop.f32.mrf.mxu0
  %v3088 = vadd.f32 0.0, %v3087
  %v3089 = vpop.f32.mrf.mxu0
  %v3090 = vpop.f32.mrf.mxu0
  %v3091 = vadd.f32 0.0, %v3090
  %v3092 = vpop.f32.mrf.mxu0
  %3093 = vmatprep.mubr.bf16.mxu0 0
  %3094 = vmatmul.mubr.bf16.gmra.mxu0 %v2913
  %v3095 = vpop.f32.mrf.mxu0
  %v3096 = vadd.f32 0.0, %v3095
  %v3097 = vpop.f32.mrf.mxu0
  %v3098 = vpop.f32.mrf.mxu0
  %v3099 = vadd.f32 0.0, %v3098
  %v3100 = vpop.f32.mrf.mxu0
  %3101 = vmatprep.mubr.bf16.mxu0 0
  %3102 = vmatmul.mubr.bf16.gmra.mxu0 %v2916
  %v3103 = vpop.f32.mrf.mxu0
  %v3104 = vadd.f32 0.0, %v3103
  %v3105 = vpop.f32.mrf.mxu0
  %v3106 = vpop.f32.mrf.mxu0
  %v3107 = vadd.f32 0.0, %v3106
  %v3108 = vpop.f32.mrf.mxu0
  %3109 = vmatprep.mubr.bf16.mxu0 0
  %3110 = vmatmul.mubr.bf16.gmra.mxu0 %v2919
  %v3111 = vpop.f32.mrf.mxu0
  %v3112 = vadd.f32 0.0, %v3111
  %v3113 = vpop.f32.mrf.mxu0
  %v3114 = vpop.f32.mrf.mxu0
  %v3115 = vadd.f32 0.0, %v3114
  %v3116 = vpop.f32.mrf.mxu0
  %3117 = vmatprep.mubr.bf16.mxu0 0
  %3118 = vmatmul.mubr.bf16.gmra.mxu0 %v2922
  %v3119 = vpop.f32.mrf.mxu0
  %v3120 = vadd.f32 0.0, %v3119
  %v3121 = vpop.f32.mrf.mxu0
  %v3122 = vpop.f32.mrf.mxu0
  %v3123 = vadd.f32 0.0, %v3122
  %v3124 = vpop.f32.mrf.mxu0
  %3125 = vmatprep.mubr.bf16.mxu0 0
  %3126 = vmatmul.mubr.bf16.gmra.mxu0 %v2925
  %v3127 = vpop.f32.mrf.mxu0
  %v3128 = vadd.f32 0.0, %v3127
  %v3129 = vpop.f32.mrf.mxu0
  %v3130 = vpop.f32.mrf.mxu0
  %v3131 = vadd.f32 0.0, %v3130
  %v3132 = vpop.f32.mrf.mxu0
  %3133 = vmatprep.mubr.bf16.mxu0 0
  %3134 = vmatmul.mubr.bf16.gmra.mxu0 %v2928
  %v3135 = vpop.f32.mrf.mxu0
  %v3136 = vadd.f32 0.0, %v3135
  %v3137 = vpop.f32.mrf.mxu0
  %v3138 = vpop.f32.mrf.mxu0
  %v3139 = vadd.f32 0.0, %v3138
  %v3140 = vpop.f32.mrf.mxu0
  %3141 = vmatprep.mubr.bf16.mxu0 0
  %3142 = vmatmul.mubr.bf16.gmra.mxu0 %v2931
  %v3143 = vpop.f32.mrf.mxu0
  %v3144 = vadd.f32 0.0, %v3143
  %v3145 = vpop.f32.mrf.mxu0
  %v3146 = vpop.f32.mrf.mxu0
  %v3147 = vadd.f32 0.0, %v3146
  %v3148 = vpop.f32.mrf.mxu0
  %3149 = vmatprep.mubr.bf16.mxu0 0
  %3150 = vmatmul.mubr.bf16.gmra.mxu0 %v2934
  %v3151 = vpop.f32.mrf.mxu0
  %v3152 = vadd.f32 0.0, %v3151
  %v3153 = vpop.f32.mrf.mxu0
  %v3154 = vpop.f32.mrf.mxu0
  %v3155 = vadd.f32 0.0, %v3154
  %v3156 = vpop.f32.mrf.mxu0
  %3157 = vmatprep.mubr.bf16.mxu0 0
  %3158 = vmatmul.mubr.bf16.gmra.mxu0 %v2937
  %v3159 = vpop.f32.mrf.mxu0
  %v3160 = vadd.f32 0.0, %v3159
  %v3161 = vpop.f32.mrf.mxu0
  %v3162 = vpop.f32.mrf.mxu0
  %v3163 = vadd.f32 0.0, %v3162
  %v3164 = vpop.f32.mrf.mxu0
  %3165 = vmatprep.mubr.bf16.mxu0 0
  %3166 = vmatmul.mubr.bf16.gmra.mxu0 %v2940
  %v3167 = vpop.f32.mrf.mxu0
  %v3168 = vadd.f32 0.0, %v3167
  %v3169 = vpop.f32.mrf.mxu0
  %v3170 = vpop.f32.mrf.mxu0
  %v3171 = vadd.f32 0.0, %v3170
  %v3172 = vpop.f32.mrf.mxu0
  %3173 = vmatprep.mubr.bf16.mxu0 0
  %3174 = vmatmul.mubr.bf16.gmra.mxu0 %v2943
  %v3175 = vpop.f32.mrf.mxu0
  %v3176 = vadd.f32 0.0, %v3175
  %v3177 = vpop.f32.mrf.mxu0
  %v3178 = vpop.f32.mrf.mxu0
  %v3179 = vadd.f32 0.0, %v3178
  %v3180 = vpop.f32.mrf.mxu0
  %3181 = vmatprep.mubr.bf16.mxu0 0
  %3182 = vmatmul.mubr.bf16.gmra.mxu0 %v2946
  %v3183 = vpop.f32.mrf.mxu0
  %v3184 = vadd.f32 0.0, %v3183
  %v3185 = vpop.f32.mrf.mxu0
  %v3186 = vpop.f32.mrf.mxu0
  %v3187 = vadd.f32 0.0, %v3186
  %v3188 = vpop.f32.mrf.mxu0
  %3189 = vmatprep.mubr.bf16.mxu0 0
  %3190 = vmatmul.mubr.bf16.gmra.mxu0 %v2949
  %v3191 = vpop.f32.mrf.mxu0
  %v3192 = vadd.f32 0.0, %v3191
  %v3193 = vpop.f32.mrf.mxu0
  %v3194 = vpop.f32.mrf.mxu0
  %v3195 = vadd.f32 0.0, %v3194
  %v3196 = vpop.f32.mrf.mxu0
  %3197 = vmatprep.mubr.bf16.mxu0 0
  %3198 = vmatmul.mubr.bf16.gmra.mxu0 %v2952
  %v3199 = vpop.f32.mrf.mxu0
  %v3200 = vadd.f32 0.0, %v3199
  %v3201 = vpop.f32.mrf.mxu0
  %v3202 = vpop.f32.mrf.mxu0
  %v3203 = vadd.f32 0.0, %v3202
  %v3204 = vpop.f32.mrf.mxu0
  %3205 = vmatprep.mubr.bf16.mxu0 0
  %3206 = vmatmul.mubr.bf16.gmra.mxu0 %v2955
  %v3207 = vpop.f32.mrf.mxu0
  %v3208 = vadd.f32 0.0, %v3207
  %v3209 = vpop.f32.mrf.mxu0
  %v3210 = vpop.f32.mrf.mxu0
  %v3211 = vadd.f32 0.0, %v3210
  %v3212 = vpop.f32.mrf.mxu0
  %3213 = vmatprep.mubr.bf16.mxu0 0
  %3214 = vmatmul.mubr.bf16.gmra.mxu0 %v2958
  %v3215 = vpop.f32.mrf.mxu0
  %v3216 = vadd.f32 0.0, %v3215
  %v3217 = vpop.f32.mrf.mxu0
  %v3218 = vpop.f32.mrf.mxu0
  %v3219 = vadd.f32 0.0, %v3218
  %v3220 = vpop.f32.mrf.mxu0
  %3221 = vmatprep.mubr.bf16.mxu0 0
  %3222 = vmatmul.mubr.bf16.gmra.mxu0 %v2961
  %v3223 = vpop.f32.mrf.mxu0
  %v3224 = vadd.f32 0.0, %v3223
  %v3225 = vpop.f32.mrf.mxu0
  %v3226 = vpop.f32.mrf.mxu0
  %v3227 = vadd.f32 0.0, %v3226
  %v3228 = vpop.f32.mrf.mxu0
  %3229 = vmatprep.mubr.bf16.mxu0 0
  %3230 = vmatmul.mubr.bf16.gmra.mxu0 %v2964
  %v3231 = vpop.f32.mrf.mxu0
  %v3232 = vadd.f32 0.0, %v3231
  %v3233 = vpop.f32.mrf.mxu0
  %v3234 = vpop.f32.mrf.mxu0
  %v3235 = vadd.f32 0.0, %v3234
  %v3236 = vpop.f32.mrf.mxu0
  %3237 = vmatprep.mubr.bf16.mxu0 0
  %3238 = vmatmul.mubr.bf16.gmra.mxu0 %v2967
  %v3239 = vpop.f32.mrf.mxu0
  %v3240 = vadd.f32 0.0, %v3239
  %v3241 = vpop.f32.mrf.mxu0
  %v3242 = vpop.f32.mrf.mxu0
  %v3243 = vadd.f32 0.0, %v3242
  %v3244 = vpop.f32.mrf.mxu0
  %3245 = vmatprep.mubr.bf16.mxu0 0
  %3246 = vmatmul.mubr.bf16.gmra.mxu0 %v2970
  %v3247 = vpop.f32.mrf.mxu0
  %v3248 = vadd.f32 0.0, %v3247
  %v3249 = vpop.f32.mrf.mxu0
  %v3250 = vpop.f32.mrf.mxu0
  %v3251 = vadd.f32 0.0, %v3250
  %v3252 = vpop.f32.mrf.mxu0
  %3253 = vmatprep.mubr.bf16.mxu0 0
  %3254 = vmatmul.mubr.bf16.gmra.mxu0 %v2973
  %v3255 = vpop.f32.mrf.mxu0
  %v3256 = vadd.f32 0.0, %v3255
  %v3257 = vpop.f32.mrf.mxu0
  %v3258 = vpop.f32.mrf.mxu0
  %v3259 = vadd.f32 0.0, %v3258
  %v3260 = vpop.f32.mrf.mxu0
  %3261 = vmatprep.mubr.bf16.mxu0 0
  %3262 = vmatmul.mubr.bf16.gmra.mxu0 %v2976
  %v3263 = vpop.f32.mrf.mxu0
  %v3264 = vadd.f32 0.0, %v3263
  %v3265 = vpop.f32.mrf.mxu0
  %v3266 = vpop.f32.mrf.mxu0
  %v3267 = vadd.f32 0.0, %v3266
  %v3268 = vpop.f32.mrf.mxu0
  %3269 = vdwg.mxu0
  %v3270 = vadd.f32 %v2581, %v3016
  %v3271 = vadd.f32 %v2582, %v3019
  %v3272 = vadd.f32 %v2583, %v3024
  %v3273 = vadd.f32 %v2584, %v3027
  %v3274 = vadd.f32 %v2585, %v3032
  %v3275 = vadd.f32 %v2586, %v3035
  %v3276 = vadd.f32 %v2587, %v3040
  %v3277 = vadd.f32 %v2588, %v3043
  %v3278 = vadd.f32 %v2589, %v3048
  %v3279 = vadd.f32 %v2590, %v3051
  %v3280 = vadd.f32 %v2591, %v3056
  %v3281 = vadd.f32 %v2592, %v3059
  %v3282 = vadd.f32 %v2593, %v3064
  %v3283 = vadd.f32 %v2594, %v3067
  %v3284 = vadd.f32 %v2595, %v3072
  %v3285 = vadd.f32 %v2596, %v3075
  %v3286 = vadd.f32 %v2597, %v3080
  %v3287 = vadd.f32 %v2598, %v3083
  %v3288 = vadd.f32 %v2599, %v3088
  %v3289 = vadd.f32 %v2600, %v3091
  %v3290 = vadd.f32 %v2601, %v3096
  %v3291 = vadd.f32 %v2602, %v3099
  %v3292 = vadd.f32 %v2603, %v3104
  %v3293 = vadd.f32 %v2604, %v3107
  %v3294 = vadd.f32 %v2605, %v3112
  %v3295 = vadd.f32 %v2606, %v3115
  %v3296 = vadd.f32 %v2607, %v3120
  %v3297 = vadd.f32 %v2608, %v3123
  %v3298 = vadd.f32 %v2609, %v3128
  %v3299 = vadd.f32 %v2610, %v3131
  %v3300 = vadd.f32 %v2611, %v3136
  %v3301 = vadd.f32 %v2612, %v3139
  %v3302 = vadd.f32 %v2613, %v3144
  %v3303 = vadd.f32 %v2614, %v3147
  %v3304 = vadd.f32 %v2615, %v3152
  %v3305 = vadd.f32 %v2616, %v3155
  %v3306 = vadd.f32 %v2617, %v3160
  %v3307 = vadd.f32 %v2618, %v3163
  %v3308 = vadd.f32 %v2619, %v3168
  %v3309 = vadd.f32 %v2620, %v3171
  %v3310 = vadd.f32 %v2621, %v3176
  %v3311 = vadd.f32 %v2622, %v3179
  %v3312 = vadd.f32 %v2623, %v3184
  %v3313 = vadd.f32 %v2624, %v3187
  %v3314 = vadd.f32 %v2625, %v3192
  %v3315 = vadd.f32 %v2626, %v3195
  %v3316 = vadd.f32 %v2627, %v3200
  %v3317 = vadd.f32 %v2628, %v3203
  %v3318 = vadd.f32 %v2629, %v3208
  %v3319 = vadd.f32 %v2630, %v3211
  %v3320 = vadd.f32 %v2631, %v3216
  %v3321 = vadd.f32 %v2632, %v3219
  %v3322 = vadd.f32 %v2633, %v3224
  %v3323 = vadd.f32 %v2634, %v3227
  %v3324 = vadd.f32 %v2635, %v3232
  %v3325 = vadd.f32 %v2636, %v3235
  %v3326 = vadd.f32 %v2637, %v3240
  %v3327 = vadd.f32 %v2638, %v3243
  %v3328 = vadd.f32 %v2639, %v3248
  %v3329 = vadd.f32 %v2640, %v3251
  %v3330 = vadd.f32 %v2641, %v3256
  %v3331 = vadd.f32 %v2642, %v3259
  %v3332 = vadd.f32 %v2643, %v3264
  %v3333 = vadd.f32 %v2644, %v3267
  %3334 = vmatprep.subr.bf16.mxu0 0
  %3335 = vmatpush1.bf16.msra.mxu0 0
  %3336 = vmatprep.subr.bf16.mxu0 0
  %3337 = vmatpush1.bf16.msra.mxu0 0
  %3338 = vmatprep.subr.bf16.mxu0 0
  %3339 = vmatpush1.bf16.msra.mxu0 0
  %3340 = vmatprep.subr.bf16.mxu0 0
  %3341 = vmatpush1.bf16.msra.mxu0 0
  %3342 = vmatprep.subr.bf16.mxu0 0
  %3343 = vmatpush1.bf16.msra.mxu0 0
  %3344 = vmatprep.subr.bf16.mxu0 0
  %3345 = vmatpush1.bf16.msra.mxu0 0
  %3346 = vmatprep.subr.bf16.mxu0 0
  %3347 = vmatpush1.bf16.msra.mxu0 %v419
  %3348 = vmatprep.subr.bf16.mxu0 0
  %3349 = vmatpush1.bf16.msra.mxu0 %v317
  %3350 = vmatprep.subr.bf16.mxu0 0
  %3351 = vmatpush2.bf16.msra.mxu0 0
  %3352 = vmatprep.subr.bf16.mxu0 0
  %3353 = vmatpush2.bf16.msra.mxu0 0
  %3354 = vmatprep.subr.bf16.mxu0 0
  %3355 = vmatpush2.bf16.msra.mxu0 0
  %3356 = vmatprep.subr.bf16.mxu0 0
  %3357 = vmatpush2.bf16.msra.mxu0 0
  %3358 = vmatprep.subr.bf16.mxu0 0
  %3359 = vmatpush2.bf16.msra.mxu0 0
  %3360 = vmatprep.subr.bf16.mxu0 0
  %3361 = vmatpush2.bf16.msra.mxu0 0
  %3362 = vmatprep.subr.bf16.mxu0 0
  %3363 = vmatpush2.bf16.msra.mxu0 0
  %3364 = vmatprep.subr.bf16.mxu0 0
  %3365 = vmatpush2.bf16.msra.mxu0 0
  %3366 = vmatprep.mubr.bf16.mxu0 0
  %3367 = vmatmul.mubr.bf16.gmra.mxu0 %v1505
  %v3368 = vpop.f32.mrf.mxu0
  %v3369 = vadd.f32 0.0, %v3368
  %v3370 = vpop.f32.mrf.mxu0
  %v3371 = vpop.f32.mrf.mxu0
  %v3372 = vadd.f32 0.0, %v3371
  %v3373 = vpop.f32.mrf.mxu0
  %3374 = vmatprep.mubr.bf16.mxu0 0
  %3375 = vmatmul.mubr.bf16.gmra.mxu0 %v1508
  %v3376 = vpop.f32.mrf.mxu0
  %v3377 = vadd.f32 0.0, %v3376
  %v3378 = vpop.f32.mrf.mxu0
  %v3379 = vpop.f32.mrf.mxu0
  %v3380 = vadd.f32 0.0, %v3379
  %v3381 = vpop.f32.mrf.mxu0
  %3382 = vmatprep.mubr.bf16.mxu0 0
  %3383 = vmatmul.mubr.bf16.gmra.mxu0 %v1511
  %v3384 = vpop.f32.mrf.mxu0
  %v3385 = vadd.f32 0.0, %v3384
  %v3386 = vpop.f32.mrf.mxu0
  %v3387 = vpop.f32.mrf.mxu0
  %v3388 = vadd.f32 0.0, %v3387
  %v3389 = vpop.f32.mrf.mxu0
  %3390 = vmatprep.mubr.bf16.mxu0 0
  %3391 = vmatmul.mubr.bf16.gmra.mxu0 %v1514
  %v3392 = vpop.f32.mrf.mxu0
  %v3393 = vadd.f32 0.0, %v3392
  %v3394 = vpop.f32.mrf.mxu0
  %v3395 = vpop.f32.mrf.mxu0
  %v3396 = vadd.f32 0.0, %v3395
  %v3397 = vpop.f32.mrf.mxu0
  %3398 = vmatprep.mubr.bf16.mxu0 0
  %3399 = vmatmul.mubr.bf16.gmra.mxu0 %v1517
  %v3400 = vpop.f32.mrf.mxu0
  %v3401 = vadd.f32 0.0, %v3400
  %v3402 = vpop.f32.mrf.mxu0
  %v3403 = vpop.f32.mrf.mxu0
  %v3404 = vadd.f32 0.0, %v3403
  %v3405 = vpop.f32.mrf.mxu0
  %3406 = vmatprep.mubr.bf16.mxu0 0
  %3407 = vmatmul.mubr.bf16.gmra.mxu0 %v1520
  %v3408 = vpop.f32.mrf.mxu0
  %v3409 = vadd.f32 0.0, %v3408
  %v3410 = vpop.f32.mrf.mxu0
  %v3411 = vpop.f32.mrf.mxu0
  %v3412 = vadd.f32 0.0, %v3411
  %v3413 = vpop.f32.mrf.mxu0
  %3414 = vmatprep.mubr.bf16.mxu0 0
  %3415 = vmatmul.mubr.bf16.gmra.mxu0 %v1523
  %v3416 = vpop.f32.mrf.mxu0
  %v3417 = vadd.f32 0.0, %v3416
  %v3418 = vpop.f32.mrf.mxu0
  %v3419 = vpop.f32.mrf.mxu0
  %v3420 = vadd.f32 0.0, %v3419
  %v3421 = vpop.f32.mrf.mxu0
  %3422 = vmatprep.mubr.bf16.mxu0 0
  %3423 = vmatmul.mubr.bf16.gmra.mxu0 %v1526
  %v3424 = vpop.f32.mrf.mxu0
  %v3425 = vadd.f32 0.0, %v3424
  %v3426 = vpop.f32.mrf.mxu0
  %v3427 = vpop.f32.mrf.mxu0
  %v3428 = vadd.f32 0.0, %v3427
  %v3429 = vpop.f32.mrf.mxu0
  %3430 = vmatprep.mubr.bf16.mxu0 0
  %3431 = vmatmul.mubr.bf16.gmra.mxu0 %v1529
  %v3432 = vpop.f32.mrf.mxu0
  %v3433 = vadd.f32 0.0, %v3432
  %v3434 = vpop.f32.mrf.mxu0
  %v3435 = vpop.f32.mrf.mxu0
  %v3436 = vadd.f32 0.0, %v3435
  %v3437 = vpop.f32.mrf.mxu0
  %3438 = vmatprep.mubr.bf16.mxu0 0
  %3439 = vmatmul.mubr.bf16.gmra.mxu0 %v1532
  %v3440 = vpop.f32.mrf.mxu0
  %v3441 = vadd.f32 0.0, %v3440
  %v3442 = vpop.f32.mrf.mxu0
  %v3443 = vpop.f32.mrf.mxu0
  %v3444 = vadd.f32 0.0, %v3443
  %v3445 = vpop.f32.mrf.mxu0
  %3446 = vmatprep.mubr.bf16.mxu0 0
  %3447 = vmatmul.mubr.bf16.gmra.mxu0 %v1535
  %v3448 = vpop.f32.mrf.mxu0
  %v3449 = vadd.f32 0.0, %v3448
  %v3450 = vpop.f32.mrf.mxu0
  %v3451 = vpop.f32.mrf.mxu0
  %v3452 = vadd.f32 0.0, %v3451
  %v3453 = vpop.f32.mrf.mxu0
  %3454 = vmatprep.mubr.bf16.mxu0 0
  %3455 = vmatmul.mubr.bf16.gmra.mxu0 %v1538
  %v3456 = vpop.f32.mrf.mxu0
  %v3457 = vadd.f32 0.0, %v3456
  %v3458 = vpop.f32.mrf.mxu0
  %v3459 = vpop.f32.mrf.mxu0
  %v3460 = vadd.f32 0.0, %v3459
  %v3461 = vpop.f32.mrf.mxu0
  %3462 = vmatprep.mubr.bf16.mxu0 0
  %3463 = vmatmul.mubr.bf16.gmra.mxu0 %v1541
  %v3464 = vpop.f32.mrf.mxu0
  %v3465 = vadd.f32 0.0, %v3464
  %v3466 = vpop.f32.mrf.mxu0
  %v3467 = vpop.f32.mrf.mxu0
  %v3468 = vadd.f32 0.0, %v3467
  %v3469 = vpop.f32.mrf.mxu0
  %3470 = vmatprep.mubr.bf16.mxu0 0
  %3471 = vmatmul.mubr.bf16.gmra.mxu0 %v1544
  %v3472 = vpop.f32.mrf.mxu0
  %v3473 = vadd.f32 0.0, %v3472
  %v3474 = vpop.f32.mrf.mxu0
  %v3475 = vpop.f32.mrf.mxu0
  %v3476 = vadd.f32 0.0, %v3475
  %v3477 = vpop.f32.mrf.mxu0
  %3478 = vmatprep.mubr.bf16.mxu0 0
  %3479 = vmatmul.mubr.bf16.gmra.mxu0 %v1547
  %v3480 = vpop.f32.mrf.mxu0
  %v3481 = vadd.f32 0.0, %v3480
  %v3482 = vpop.f32.mrf.mxu0
  %v3483 = vpop.f32.mrf.mxu0
  %v3484 = vadd.f32 0.0, %v3483
  %v3485 = vpop.f32.mrf.mxu0
  %3486 = vmatprep.mubr.bf16.mxu0 0
  %3487 = vmatmul.mubr.bf16.gmra.mxu0 %v1550
  %v3488 = vpop.f32.mrf.mxu0
  %v3489 = vadd.f32 0.0, %v3488
  %v3490 = vpop.f32.mrf.mxu0
  %v3491 = vpop.f32.mrf.mxu0
  %v3492 = vadd.f32 0.0, %v3491
  %v3493 = vpop.f32.mrf.mxu0
  %3494 = vmatprep.mubr.bf16.mxu0 0
  %3495 = vmatmul.mubr.bf16.gmra.mxu0 %v1553
  %v3496 = vpop.f32.mrf.mxu0
  %v3497 = vadd.f32 0.0, %v3496
  %v3498 = vpop.f32.mrf.mxu0
  %v3499 = vpop.f32.mrf.mxu0
  %v3500 = vadd.f32 0.0, %v3499
  %v3501 = vpop.f32.mrf.mxu0
  %3502 = vmatprep.mubr.bf16.mxu0 0
  %3503 = vmatmul.mubr.bf16.gmra.mxu0 %v1556
  %v3504 = vpop.f32.mrf.mxu0
  %v3505 = vadd.f32 0.0, %v3504
  %v3506 = vpop.f32.mrf.mxu0
  %v3507 = vpop.f32.mrf.mxu0
  %v3508 = vadd.f32 0.0, %v3507
  %v3509 = vpop.f32.mrf.mxu0
  %3510 = vmatprep.mubr.bf16.mxu0 0
  %3511 = vmatmul.mubr.bf16.gmra.mxu0 %v1559
  %v3512 = vpop.f32.mrf.mxu0
  %v3513 = vadd.f32 0.0, %v3512
  %v3514 = vpop.f32.mrf.mxu0
  %v3515 = vpop.f32.mrf.mxu0
  %v3516 = vadd.f32 0.0, %v3515
  %v3517 = vpop.f32.mrf.mxu0
  %3518 = vmatprep.mubr.bf16.mxu0 0
  %3519 = vmatmul.mubr.bf16.gmra.mxu0 %v1562
  %v3520 = vpop.f32.mrf.mxu0
  %v3521 = vadd.f32 0.0, %v3520
  %v3522 = vpop.f32.mrf.mxu0
  %v3523 = vpop.f32.mrf.mxu0
  %v3524 = vadd.f32 0.0, %v3523
  %v3525 = vpop.f32.mrf.mxu0
  %3526 = vmatprep.mubr.bf16.mxu0 0
  %3527 = vmatmul.mubr.bf16.gmra.mxu0 %v1565
  %v3528 = vpop.f32.mrf.mxu0
  %v3529 = vadd.f32 0.0, %v3528
  %v3530 = vpop.f32.mrf.mxu0
  %v3531 = vpop.f32.mrf.mxu0
  %v3532 = vadd.f32 0.0, %v3531
  %v3533 = vpop.f32.mrf.mxu0
  %3534 = vmatprep.mubr.bf16.mxu0 0
  %3535 = vmatmul.mubr.bf16.gmra.mxu0 %v1568
  %v3536 = vpop.f32.mrf.mxu0
  %v3537 = vadd.f32 0.0, %v3536
  %v3538 = vpop.f32.mrf.mxu0
  %v3539 = vpop.f32.mrf.mxu0
  %v3540 = vadd.f32 0.0, %v3539
  %v3541 = vpop.f32.mrf.mxu0
  %3542 = vmatprep.mubr.bf16.mxu0 0
  %3543 = vmatmul.mubr.bf16.gmra.mxu0 %v1571
  %v3544 = vpop.f32.mrf.mxu0
  %v3545 = vadd.f32 0.0, %v3544
  %v3546 = vpop.f32.mrf.mxu0
  %v3547 = vpop.f32.mrf.mxu0
  %v3548 = vadd.f32 0.0, %v3547
  %v3549 = vpop.f32.mrf.mxu0
  %3550 = vmatprep.mubr.bf16.mxu0 0
  %3551 = vmatmul.mubr.bf16.gmra.mxu0 %v1574
  %v3552 = vpop.f32.mrf.mxu0
  %v3553 = vadd.f32 0.0, %v3552
  %v3554 = vpop.f32.mrf.mxu0
  %v3555 = vpop.f32.mrf.mxu0
  %v3556 = vadd.f32 0.0, %v3555
  %v3557 = vpop.f32.mrf.mxu0
  %3558 = vmatprep.mubr.bf16.mxu0 0
  %3559 = vmatmul.mubr.bf16.gmra.mxu0 %v1577
  %v3560 = vpop.f32.mrf.mxu0
  %v3561 = vadd.f32 0.0, %v3560
  %v3562 = vpop.f32.mrf.mxu0
  %v3563 = vpop.f32.mrf.mxu0
  %v3564 = vadd.f32 0.0, %v3563
  %v3565 = vpop.f32.mrf.mxu0
  %3566 = vmatprep.mubr.bf16.mxu0 0
  %3567 = vmatmul.mubr.bf16.gmra.mxu0 %v1580
  %v3568 = vpop.f32.mrf.mxu0
  %v3569 = vadd.f32 0.0, %v3568
  %v3570 = vpop.f32.mrf.mxu0
  %v3571 = vpop.f32.mrf.mxu0
  %v3572 = vadd.f32 0.0, %v3571
  %v3573 = vpop.f32.mrf.mxu0
  %3574 = vmatprep.mubr.bf16.mxu0 0
  %3575 = vmatmul.mubr.bf16.gmra.mxu0 %v1583
  %v3576 = vpop.f32.mrf.mxu0
  %v3577 = vadd.f32 0.0, %v3576
  %v3578 = vpop.f32.mrf.mxu0
  %v3579 = vpop.f32.mrf.mxu0
  %v3580 = vadd.f32 0.0, %v3579
  %v3581 = vpop.f32.mrf.mxu0
  %3582 = vmatprep.mubr.bf16.mxu0 0
  %3583 = vmatmul.mubr.bf16.gmra.mxu0 %v1586
  %v3584 = vpop.f32.mrf.mxu0
  %v3585 = vadd.f32 0.0, %v3584
  %v3586 = vpop.f32.mrf.mxu0
  %v3587 = vpop.f32.mrf.mxu0
  %v3588 = vadd.f32 0.0, %v3587
  %v3589 = vpop.f32.mrf.mxu0
  %3590 = vmatprep.mubr.bf16.mxu0 0
  %3591 = vmatmul.mubr.bf16.gmra.mxu0 %v1589
  %v3592 = vpop.f32.mrf.mxu0
  %v3593 = vadd.f32 0.0, %v3592
  %v3594 = vpop.f32.mrf.mxu0
  %v3595 = vpop.f32.mrf.mxu0
  %v3596 = vadd.f32 0.0, %v3595
  %v3597 = vpop.f32.mrf.mxu0
  %3598 = vmatprep.mubr.bf16.mxu0 0
  %3599 = vmatmul.mubr.bf16.gmra.mxu0 %v1592
  %v3600 = vpop.f32.mrf.mxu0
  %v3601 = vadd.f32 0.0, %v3600
  %v3602 = vpop.f32.mrf.mxu0
  %v3603 = vpop.f32.mrf.mxu0
  %v3604 = vadd.f32 0.0, %v3603
  %v3605 = vpop.f32.mrf.mxu0
  %3606 = vmatprep.mubr.bf16.mxu0 0
  %3607 = vmatmul.mubr.bf16.gmra.mxu0 %v1595
  %v3608 = vpop.f32.mrf.mxu0
  %v3609 = vadd.f32 0.0, %v3608
  %v3610 = vpop.f32.mrf.mxu0
  %v3611 = vpop.f32.mrf.mxu0
  %v3612 = vadd.f32 0.0, %v3611
  %v3613 = vpop.f32.mrf.mxu0
  %3614 = vmatprep.mubr.bf16.mxu0 0
  %3615 = vmatmul.mubr.bf16.gmra.mxu0 %v1598
  %v3616 = vpop.f32.mrf.mxu0
  %v3617 = vadd.f32 0.0, %v3616
  %v3618 = vpop.f32.mrf.mxu0
  %v3619 = vpop.f32.mrf.mxu0
  %v3620 = vadd.f32 0.0, %v3619
  %v3621 = vpop.f32.mrf.mxu0
  %3622 = vdwg.mxu0
  %3623 = vmatprep.subr.bf16.mxu0 0
  %3624 = vmatpush1.bf16.msra.mxu0 0
  %3625 = vmatprep.subr.bf16.mxu0 0
  %3626 = vmatpush1.bf16.msra.mxu0 0
  %3627 = vmatprep.subr.bf16.mxu0 0
  %3628 = vmatpush1.bf16.msra.mxu0 0
  %3629 = vmatprep.subr.bf16.mxu0 0
  %3630 = vmatpush1.bf16.msra.mxu0 0
  %3631 = vmatprep.subr.bf16.mxu0 0
  %3632 = vmatpush1.bf16.msra.mxu0 0
  %3633 = vmatprep.subr.bf16.mxu0 0
  %3634 = vmatpush1.bf16.msra.mxu0 0
  %3635 = vmatprep.subr.bf16.mxu0 0
  %3636 = vmatpush1.bf16.msra.mxu0 %v976
  %3637 = vmatprep.subr.bf16.mxu0 0
  %3638 = vmatpush1.bf16.msra.mxu0 %v876
  %3639 = vmatprep.subr.bf16.mxu0 0
  %3640 = vmatpush2.bf16.msra.mxu0 0
  %3641 = vmatprep.subr.bf16.mxu0 0
  %3642 = vmatpush2.bf16.msra.mxu0 0
  %3643 = vmatprep.subr.bf16.mxu0 0
  %3644 = vmatpush2.bf16.msra.mxu0 0
  %3645 = vmatprep.subr.bf16.mxu0 0
  %3646 = vmatpush2.bf16.msra.mxu0 0
  %3647 = vmatprep.subr.bf16.mxu0 0
  %3648 = vmatpush2.bf16.msra.mxu0 0
  %3649 = vmatprep.subr.bf16.mxu0 0
  %3650 = vmatpush2.bf16.msra.mxu0 0
  %3651 = vmatprep.subr.bf16.mxu0 0
  %3652 = vmatpush2.bf16.msra.mxu0 0
  %3653 = vmatprep.subr.bf16.mxu0 0
  %3654 = vmatpush2.bf16.msra.mxu0 0
  %3655 = vmatprep.mubr.bf16.mxu0 0
  %3656 = vmatmul.mubr.bf16.gmra.mxu0 %v322
  %v3657 = vpop.f32.mrf.mxu0
  %v3658 = vadd.f32 %v3369, %v3657
  %v3659 = vpop.f32.mrf.mxu0
  %v3660 = vpop.f32.mrf.mxu0
  %v3661 = vadd.f32 %v3372, %v3660
  %v3662 = vpop.f32.mrf.mxu0
  %3663 = vmatprep.mubr.bf16.mxu0 0
  %3664 = vmatmul.mubr.bf16.gmra.mxu0 %v325
  %v3665 = vpop.f32.mrf.mxu0
  %v3666 = vadd.f32 %v3377, %v3665
  %v3667 = vpop.f32.mrf.mxu0
  %v3668 = vpop.f32.mrf.mxu0
  %v3669 = vadd.f32 %v3380, %v3668
  %v3670 = vpop.f32.mrf.mxu0
  %3671 = vmatprep.mubr.bf16.mxu0 0
  %3672 = vmatmul.mubr.bf16.gmra.mxu0 %v328
  %v3673 = vpop.f32.mrf.mxu0
  %v3674 = vadd.f32 %v3385, %v3673
  %v3675 = vpop.f32.mrf.mxu0
  %v3676 = vpop.f32.mrf.mxu0
  %v3677 = vadd.f32 %v3388, %v3676
  %v3678 = vpop.f32.mrf.mxu0
  %3679 = vmatprep.mubr.bf16.mxu0 0
  %3680 = vmatmul.mubr.bf16.gmra.mxu0 %v331
  %v3681 = vpop.f32.mrf.mxu0
  %v3682 = vadd.f32 %v3393, %v3681
  %v3683 = vpop.f32.mrf.mxu0
  %v3684 = vpop.f32.mrf.mxu0
  %v3685 = vadd.f32 %v3396, %v3684
  %v3686 = vpop.f32.mrf.mxu0
  %3687 = vmatprep.mubr.bf16.mxu0 0
  %3688 = vmatmul.mubr.bf16.gmra.mxu0 %v334
  %v3689 = vpop.f32.mrf.mxu0
  %v3690 = vadd.f32 %v3401, %v3689
  %v3691 = vpop.f32.mrf.mxu0
  %v3692 = vpop.f32.mrf.mxu0
  %v3693 = vadd.f32 %v3404, %v3692
  %v3694 = vpop.f32.mrf.mxu0
  %3695 = vmatprep.mubr.bf16.mxu0 0
  %3696 = vmatmul.mubr.bf16.gmra.mxu0 %v337
  %v3697 = vpop.f32.mrf.mxu0
  %v3698 = vadd.f32 %v3409, %v3697
  %v3699 = vpop.f32.mrf.mxu0
  %v3700 = vpop.f32.mrf.mxu0
  %v3701 = vadd.f32 %v3412, %v3700
  %v3702 = vpop.f32.mrf.mxu0
  %3703 = vmatprep.mubr.bf16.mxu0 0
  %3704 = vmatmul.mubr.bf16.gmra.mxu0 %v340
  %v3705 = vpop.f32.mrf.mxu0
  %v3706 = vadd.f32 %v3417, %v3705
  %v3707 = vpop.f32.mrf.mxu0
  %v3708 = vpop.f32.mrf.mxu0
  %v3709 = vadd.f32 %v3420, %v3708
  %v3710 = vpop.f32.mrf.mxu0
  %3711 = vmatprep.mubr.bf16.mxu0 0
  %3712 = vmatmul.mubr.bf16.gmra.mxu0 %v343
  %v3713 = vpop.f32.mrf.mxu0
  %v3714 = vadd.f32 %v3425, %v3713
  %v3715 = vpop.f32.mrf.mxu0
  %v3716 = vpop.f32.mrf.mxu0
  %v3717 = vadd.f32 %v3428, %v3716
  %v3718 = vpop.f32.mrf.mxu0
  %3719 = vmatprep.mubr.bf16.mxu0 0
  %3720 = vmatmul.mubr.bf16.gmra.mxu0 %v346
  %v3721 = vpop.f32.mrf.mxu0
  %v3722 = vadd.f32 %v3433, %v3721
  %v3723 = vpop.f32.mrf.mxu0
  %v3724 = vpop.f32.mrf.mxu0
  %v3725 = vadd.f32 %v3436, %v3724
  %v3726 = vpop.f32.mrf.mxu0
  %3727 = vmatprep.mubr.bf16.mxu0 0
  %3728 = vmatmul.mubr.bf16.gmra.mxu0 %v349
  %v3729 = vpop.f32.mrf.mxu0
  %v3730 = vadd.f32 %v3441, %v3729
  %v3731 = vpop.f32.mrf.mxu0
  %v3732 = vpop.f32.mrf.mxu0
  %v3733 = vadd.f32 %v3444, %v3732
  %v3734 = vpop.f32.mrf.mxu0
  %3735 = vmatprep.mubr.bf16.mxu0 0
  %3736 = vmatmul.mubr.bf16.gmra.mxu0 %v352
  %v3737 = vpop.f32.mrf.mxu0
  %v3738 = vadd.f32 %v3449, %v3737
  %v3739 = vpop.f32.mrf.mxu0
  %v3740 = vpop.f32.mrf.mxu0
  %v3741 = vadd.f32 %v3452, %v3740
  %v3742 = vpop.f32.mrf.mxu0
  %3743 = vmatprep.mubr.bf16.mxu0 0
  %3744 = vmatmul.mubr.bf16.gmra.mxu0 %v355
  %v3745 = vpop.f32.mrf.mxu0
  %v3746 = vadd.f32 %v3457, %v3745
  %v3747 = vpop.f32.mrf.mxu0
  %v3748 = vpop.f32.mrf.mxu0
  %v3749 = vadd.f32 %v3460, %v3748
  %v3750 = vpop.f32.mrf.mxu0
  %3751 = vmatprep.mubr.bf16.mxu0 0
  %3752 = vmatmul.mubr.bf16.gmra.mxu0 %v358
  %v3753 = vpop.f32.mrf.mxu0
  %v3754 = vadd.f32 %v3465, %v3753
  %v3755 = vpop.f32.mrf.mxu0
  %v3756 = vpop.f32.mrf.mxu0
  %v3757 = vadd.f32 %v3468, %v3756
  %v3758 = vpop.f32.mrf.mxu0
  %3759 = vmatprep.mubr.bf16.mxu0 0
  %3760 = vmatmul.mubr.bf16.gmra.mxu0 %v361
  %v3761 = vpop.f32.mrf.mxu0
  %v3762 = vadd.f32 %v3473, %v3761
  %v3763 = vpop.f32.mrf.mxu0
  %v3764 = vpop.f32.mrf.mxu0
  %v3765 = vadd.f32 %v3476, %v3764
  %v3766 = vpop.f32.mrf.mxu0
  %3767 = vmatprep.mubr.bf16.mxu0 0
  %3768 = vmatmul.mubr.bf16.gmra.mxu0 %v364
  %v3769 = vpop.f32.mrf.mxu0
  %v3770 = vadd.f32 %v3481, %v3769
  %v3771 = vpop.f32.mrf.mxu0
  %v3772 = vpop.f32.mrf.mxu0
  %v3773 = vadd.f32 %v3484, %v3772
  %v3774 = vpop.f32.mrf.mxu0
  %3775 = vmatprep.mubr.bf16.mxu0 0
  %3776 = vmatmul.mubr.bf16.gmra.mxu0 %v367
  %v3777 = vpop.f32.mrf.mxu0
  %v3778 = vadd.f32 %v3489, %v3777
  %v3779 = vpop.f32.mrf.mxu0
  %v3780 = vpop.f32.mrf.mxu0
  %v3781 = vadd.f32 %v3492, %v3780
  %v3782 = vpop.f32.mrf.mxu0
  %3783 = vmatprep.mubr.bf16.mxu0 0
  %3784 = vmatmul.mubr.bf16.gmra.mxu0 %v370
  %v3785 = vpop.f32.mrf.mxu0
  %v3786 = vadd.f32 %v3497, %v3785
  %v3787 = vpop.f32.mrf.mxu0
  %v3788 = vpop.f32.mrf.mxu0
  %v3789 = vadd.f32 %v3500, %v3788
  %v3790 = vpop.f32.mrf.mxu0
  %3791 = vmatprep.mubr.bf16.mxu0 0
  %3792 = vmatmul.mubr.bf16.gmra.mxu0 %v373
  %v3793 = vpop.f32.mrf.mxu0
  %v3794 = vadd.f32 %v3505, %v3793
  %v3795 = vpop.f32.mrf.mxu0
  %v3796 = vpop.f32.mrf.mxu0
  %v3797 = vadd.f32 %v3508, %v3796
  %v3798 = vpop.f32.mrf.mxu0
  %3799 = vmatprep.mubr.bf16.mxu0 0
  %3800 = vmatmul.mubr.bf16.gmra.mxu0 %v376
  %v3801 = vpop.f32.mrf.mxu0
  %v3802 = vadd.f32 %v3513, %v3801
  %v3803 = vpop.f32.mrf.mxu0
  %v3804 = vpop.f32.mrf.mxu0
  %v3805 = vadd.f32 %v3516, %v3804
  %v3806 = vpop.f32.mrf.mxu0
  %3807 = vmatprep.mubr.bf16.mxu0 0
  %3808 = vmatmul.mubr.bf16.gmra.mxu0 %v379
  %v3809 = vpop.f32.mrf.mxu0
  %v3810 = vadd.f32 %v3521, %v3809
  %v3811 = vpop.f32.mrf.mxu0
  %v3812 = vpop.f32.mrf.mxu0
  %v3813 = vadd.f32 %v3524, %v3812
  %v3814 = vpop.f32.mrf.mxu0
  %3815 = vmatprep.mubr.bf16.mxu0 0
  %3816 = vmatmul.mubr.bf16.gmra.mxu0 %v382
  %v3817 = vpop.f32.mrf.mxu0
  %v3818 = vadd.f32 %v3529, %v3817
  %v3819 = vpop.f32.mrf.mxu0
  %v3820 = vpop.f32.mrf.mxu0
  %v3821 = vadd.f32 %v3532, %v3820
  %v3822 = vpop.f32.mrf.mxu0
  %3823 = vmatprep.mubr.bf16.mxu0 0
  %3824 = vmatmul.mubr.bf16.gmra.mxu0 %v385
  %v3825 = vpop.f32.mrf.mxu0
  %v3826 = vadd.f32 %v3537, %v3825
  %v3827 = vpop.f32.mrf.mxu0
  %v3828 = vpop.f32.mrf.mxu0
  %v3829 = vadd.f32 %v3540, %v3828
  %v3830 = vpop.f32.mrf.mxu0
  %3831 = vmatprep.mubr.bf16.mxu0 0
  %3832 = vmatmul.mubr.bf16.gmra.mxu0 %v388
  %v3833 = vpop.f32.mrf.mxu0
  %v3834 = vadd.f32 %v3545, %v3833
  %v3835 = vpop.f32.mrf.mxu0
  %v3836 = vpop.f32.mrf.mxu0
  %v3837 = vadd.f32 %v3548, %v3836
  %v3838 = vpop.f32.mrf.mxu0
  %3839 = vmatprep.mubr.bf16.mxu0 0
  %3840 = vmatmul.mubr.bf16.gmra.mxu0 %v391
  %v3841 = vpop.f32.mrf.mxu0
  %v3842 = vadd.f32 %v3553, %v3841
  %v3843 = vpop.f32.mrf.mxu0
  %v3844 = vpop.f32.mrf.mxu0
  %v3845 = vadd.f32 %v3556, %v3844
  %v3846 = vpop.f32.mrf.mxu0
  %3847 = vmatprep.mubr.bf16.mxu0 0
  %3848 = vmatmul.mubr.bf16.gmra.mxu0 %v394
  %v3849 = vpop.f32.mrf.mxu0
  %v3850 = vadd.f32 %v3561, %v3849
  %v3851 = vpop.f32.mrf.mxu0
  %v3852 = vpop.f32.mrf.mxu0
  %v3853 = vadd.f32 %v3564, %v3852
  %v3854 = vpop.f32.mrf.mxu0
  %3855 = vmatprep.mubr.bf16.mxu0 0
  %3856 = vmatmul.mubr.bf16.gmra.mxu0 %v397
  %v3857 = vpop.f32.mrf.mxu0
  %v3858 = vadd.f32 %v3569, %v3857
  %v3859 = vpop.f32.mrf.mxu0
  %v3860 = vpop.f32.mrf.mxu0
  %v3861 = vadd.f32 %v3572, %v3860
  %v3862 = vpop.f32.mrf.mxu0
  %3863 = vmatprep.mubr.bf16.mxu0 0
  %3864 = vmatmul.mubr.bf16.gmra.mxu0 %v400
  %v3865 = vpop.f32.mrf.mxu0
  %v3866 = vadd.f32 %v3577, %v3865
  %v3867 = vpop.f32.mrf.mxu0
  %v3868 = vpop.f32.mrf.mxu0
  %v3869 = vadd.f32 %v3580, %v3868
  %v3870 = vpop.f32.mrf.mxu0
  %3871 = vmatprep.mubr.bf16.mxu0 0
  %3872 = vmatmul.mubr.bf16.gmra.mxu0 %v403
  %v3873 = vpop.f32.mrf.mxu0
  %v3874 = vadd.f32 %v3585, %v3873
  %v3875 = vpop.f32.mrf.mxu0
  %v3876 = vpop.f32.mrf.mxu0
  %v3877 = vadd.f32 %v3588, %v3876
  %v3878 = vpop.f32.mrf.mxu0
  %3879 = vmatprep.mubr.bf16.mxu0 0
  %3880 = vmatmul.mubr.bf16.gmra.mxu0 %v406
  %v3881 = vpop.f32.mrf.mxu0
  %v3882 = vadd.f32 %v3593, %v3881
  %v3883 = vpop.f32.mrf.mxu0
  %v3884 = vpop.f32.mrf.mxu0
  %v3885 = vadd.f32 %v3596, %v3884
  %v3886 = vpop.f32.mrf.mxu0
  %3887 = vmatprep.mubr.bf16.mxu0 0
  %3888 = vmatmul.mubr.bf16.gmra.mxu0 %v409
  %v3889 = vpop.f32.mrf.mxu0
  %v3890 = vadd.f32 %v3601, %v3889
  %v3891 = vpop.f32.mrf.mxu0
  %v3892 = vpop.f32.mrf.mxu0
  %v3893 = vadd.f32 %v3604, %v3892
  %v3894 = vpop.f32.mrf.mxu0
  %3895 = vmatprep.mubr.bf16.mxu0 0
  %3896 = vmatmul.mubr.bf16.gmra.mxu0 %v412
  %v3897 = vpop.f32.mrf.mxu0
  %v3898 = vadd.f32 %v3609, %v3897
  %v3899 = vpop.f32.mrf.mxu0
  %v3900 = vpop.f32.mrf.mxu0
  %v3901 = vadd.f32 %v3612, %v3900
  %v3902 = vpop.f32.mrf.mxu0
  %3903 = vmatprep.mubr.bf16.mxu0 0
  %3904 = vmatmul.mubr.bf16.gmra.mxu0 %v415
  %v3905 = vpop.f32.mrf.mxu0
  %v3906 = vadd.f32 %v3617, %v3905
  %v3907 = vpop.f32.mrf.mxu0
  %v3908 = vpop.f32.mrf.mxu0
  %v3909 = vadd.f32 %v3620, %v3908
  %v3910 = vpop.f32.mrf.mxu0
  %3911 = vdwg.mxu0
  %3912 = vmatprep.subr.bf16.mxu0 0
  %3913 = vmatpush1.bf16.msra.mxu0 0
  %3914 = vmatprep.subr.bf16.mxu0 0
  %3915 = vmatpush1.bf16.msra.mxu0 0
  %3916 = vmatprep.subr.bf16.mxu0 0
  %3917 = vmatpush1.bf16.msra.mxu0 0
  %3918 = vmatprep.subr.bf16.mxu0 0
  %3919 = vmatpush1.bf16.msra.mxu0 0
  %3920 = vmatprep.subr.bf16.mxu0 0
  %3921 = vmatpush1.bf16.msra.mxu0 0
  %3922 = vmatprep.subr.bf16.mxu0 0
  %3923 = vmatpush1.bf16.msra.mxu0 0
  %3924 = vmatprep.subr.bf16.mxu0 0
  %3925 = vmatpush1.bf16.msra.mxu0 %v1601
  %3926 = vmatprep.subr.bf16.mxu0 0
  %3927 = vmatpush1.bf16.msra.mxu0 %v1501
  %3928 = vmatprep.subr.bf16.mxu0 0
  %3929 = vmatpush2.bf16.msra.mxu0 0
  %3930 = vmatprep.subr.bf16.mxu0 0
  %3931 = vmatpush2.bf16.msra.mxu0 0
  %3932 = vmatprep.subr.bf16.mxu0 0
  %3933 = vmatpush2.bf16.msra.mxu0 0
  %3934 = vmatprep.subr.bf16.mxu0 0
  %3935 = vmatpush2.bf16.msra.mxu0 0
  %3936 = vmatprep.subr.bf16.mxu0 0
  %3937 = vmatpush2.bf16.msra.mxu0 0
  %3938 = vmatprep.subr.bf16.mxu0 0
  %3939 = vmatpush2.bf16.msra.mxu0 0
  %3940 = vmatprep.subr.bf16.mxu0 0
  %3941 = vmatpush2.bf16.msra.mxu0 0
  %3942 = vmatprep.subr.bf16.mxu0 0
  %3943 = vmatpush2.bf16.msra.mxu0 0
  %3944 = vmatprep.mubr.bf16.mxu0 0
  %3945 = vmatmul.mubr.bf16.gmra.mxu0 %v2194
  %v3946 = vpop.f32.mrf.mxu0
  %v3947 = vadd.f32 0.0, %v3946
  %v3948 = vpop.f32.mrf.mxu0
  %v3949 = vpop.f32.mrf.mxu0
  %v3950 = vadd.f32 0.0, %v3949
  %v3951 = vpop.f32.mrf.mxu0
  %3952 = vmatprep.mubr.bf16.mxu0 0
  %3953 = vmatmul.mubr.bf16.gmra.mxu0 %v2197
  %v3954 = vpop.f32.mrf.mxu0
  %v3955 = vadd.f32 0.0, %v3954
  %v3956 = vpop.f32.mrf.mxu0
  %v3957 = vpop.f32.mrf.mxu0
  %v3958 = vadd.f32 0.0, %v3957
  %v3959 = vpop.f32.mrf.mxu0
  %3960 = vmatprep.mubr.bf16.mxu0 0
  %3961 = vmatmul.mubr.bf16.gmra.mxu0 %v2200
  %v3962 = vpop.f32.mrf.mxu0
  %v3963 = vadd.f32 0.0, %v3962
  %v3964 = vpop.f32.mrf.mxu0
  %v3965 = vpop.f32.mrf.mxu0
  %v3966 = vadd.f32 0.0, %v3965
  %v3967 = vpop.f32.mrf.mxu0
  %3968 = vmatprep.mubr.bf16.mxu0 0
  %3969 = vmatmul.mubr.bf16.gmra.mxu0 %v2203
  %v3970 = vpop.f32.mrf.mxu0
  %v3971 = vadd.f32 0.0, %v3970
  %v3972 = vpop.f32.mrf.mxu0
  %v3973 = vpop.f32.mrf.mxu0
  %v3974 = vadd.f32 0.0, %v3973
  %v3975 = vpop.f32.mrf.mxu0
  %3976 = vmatprep.mubr.bf16.mxu0 0
  %3977 = vmatmul.mubr.bf16.gmra.mxu0 %v2206
  %v3978 = vpop.f32.mrf.mxu0
  %v3979 = vadd.f32 0.0, %v3978
  %v3980 = vpop.f32.mrf.mxu0
  %v3981 = vpop.f32.mrf.mxu0
  %v3982 = vadd.f32 0.0, %v3981
  %v3983 = vpop.f32.mrf.mxu0
  %3984 = vmatprep.mubr.bf16.mxu0 0
  %3985 = vmatmul.mubr.bf16.gmra.mxu0 %v2209
  %v3986 = vpop.f32.mrf.mxu0
  %v3987 = vadd.f32 0.0, %v3986
  %v3988 = vpop.f32.mrf.mxu0
  %v3989 = vpop.f32.mrf.mxu0
  %v3990 = vadd.f32 0.0, %v3989
  %v3991 = vpop.f32.mrf.mxu0
  %3992 = vmatprep.mubr.bf16.mxu0 0
  %3993 = vmatmul.mubr.bf16.gmra.mxu0 %v2212
  %v3994 = vpop.f32.mrf.mxu0
  %v3995 = vadd.f32 0.0, %v3994
  %v3996 = vpop.f32.mrf.mxu0
  %v3997 = vpop.f32.mrf.mxu0
  %v3998 = vadd.f32 0.0, %v3997
  %v3999 = vpop.f32.mrf.mxu0
  %4000 = vmatprep.mubr.bf16.mxu0 0
  %4001 = vmatmul.mubr.bf16.gmra.mxu0 %v2215
  %v4002 = vpop.f32.mrf.mxu0
  %v4003 = vadd.f32 0.0, %v4002
  %v4004 = vpop.f32.mrf.mxu0
  %v4005 = vpop.f32.mrf.mxu0
  %v4006 = vadd.f32 0.0, %v4005
  %v4007 = vpop.f32.mrf.mxu0
  %4008 = vmatprep.mubr.bf16.mxu0 0
  %4009 = vmatmul.mubr.bf16.gmra.mxu0 %v2218
  %v4010 = vpop.f32.mrf.mxu0
  %v4011 = vadd.f32 0.0, %v4010
  %v4012 = vpop.f32.mrf.mxu0
  %v4013 = vpop.f32.mrf.mxu0
  %v4014 = vadd.f32 0.0, %v4013
  %v4015 = vpop.f32.mrf.mxu0
  %4016 = vmatprep.mubr.bf16.mxu0 0
  %4017 = vmatmul.mubr.bf16.gmra.mxu0 %v2221
  %v4018 = vpop.f32.mrf.mxu0
  %v4019 = vadd.f32 0.0, %v4018
  %v4020 = vpop.f32.mrf.mxu0
  %v4021 = vpop.f32.mrf.mxu0
  %v4022 = vadd.f32 0.0, %v4021
  %v4023 = vpop.f32.mrf.mxu0
  %4024 = vmatprep.mubr.bf16.mxu0 0
  %4025 = vmatmul.mubr.bf16.gmra.mxu0 %v2224
  %v4026 = vpop.f32.mrf.mxu0
  %v4027 = vadd.f32 0.0, %v4026
  %v4028 = vpop.f32.mrf.mxu0
  %v4029 = vpop.f32.mrf.mxu0
  %v4030 = vadd.f32 0.0, %v4029
  %v4031 = vpop.f32.mrf.mxu0
  %4032 = vmatprep.mubr.bf16.mxu0 0
  %4033 = vmatmul.mubr.bf16.gmra.mxu0 %v2227
  %v4034 = vpop.f32.mrf.mxu0
  %v4035 = vadd.f32 0.0, %v4034
  %v4036 = vpop.f32.mrf.mxu0
  %v4037 = vpop.f32.mrf.mxu0
  %v4038 = vadd.f32 0.0, %v4037
  %v4039 = vpop.f32.mrf.mxu0
  %4040 = vmatprep.mubr.bf16.mxu0 0
  %4041 = vmatmul.mubr.bf16.gmra.mxu0 %v2230
  %v4042 = vpop.f32.mrf.mxu0
  %v4043 = vadd.f32 0.0, %v4042
  %v4044 = vpop.f32.mrf.mxu0
  %v4045 = vpop.f32.mrf.mxu0
  %v4046 = vadd.f32 0.0, %v4045
  %v4047 = vpop.f32.mrf.mxu0
  %4048 = vmatprep.mubr.bf16.mxu0 0
  %4049 = vmatmul.mubr.bf16.gmra.mxu0 %v2233
  %v4050 = vpop.f32.mrf.mxu0
  %v4051 = vadd.f32 0.0, %v4050
  %v4052 = vpop.f32.mrf.mxu0
  %v4053 = vpop.f32.mrf.mxu0
  %v4054 = vadd.f32 0.0, %v4053
  %v4055 = vpop.f32.mrf.mxu0
  %4056 = vmatprep.mubr.bf16.mxu0 0
  %4057 = vmatmul.mubr.bf16.gmra.mxu0 %v2236
  %v4058 = vpop.f32.mrf.mxu0
  %v4059 = vadd.f32 0.0, %v4058
  %v4060 = vpop.f32.mrf.mxu0
  %v4061 = vpop.f32.mrf.mxu0
  %v4062 = vadd.f32 0.0, %v4061
  %v4063 = vpop.f32.mrf.mxu0
  %4064 = vmatprep.mubr.bf16.mxu0 0
  %4065 = vmatmul.mubr.bf16.gmra.mxu0 %v2239
  %v4066 = vpop.f32.mrf.mxu0
  %v4067 = vadd.f32 0.0, %v4066
  %v4068 = vpop.f32.mrf.mxu0
  %v4069 = vpop.f32.mrf.mxu0
  %v4070 = vadd.f32 0.0, %v4069
  %v4071 = vpop.f32.mrf.mxu0
  %4072 = vmatprep.mubr.bf16.mxu0 0
  %4073 = vmatmul.mubr.bf16.gmra.mxu0 %v2242
  %v4074 = vpop.f32.mrf.mxu0
  %v4075 = vadd.f32 0.0, %v4074
  %v4076 = vpop.f32.mrf.mxu0
  %v4077 = vpop.f32.mrf.mxu0
  %v4078 = vadd.f32 0.0, %v4077
  %v4079 = vpop.f32.mrf.mxu0
  %4080 = vmatprep.mubr.bf16.mxu0 0
  %4081 = vmatmul.mubr.bf16.gmra.mxu0 %v2245
  %v4082 = vpop.f32.mrf.mxu0
  %v4083 = vadd.f32 0.0, %v4082
  %v4084 = vpop.f32.mrf.mxu0
  %v4085 = vpop.f32.mrf.mxu0
  %v4086 = vadd.f32 0.0, %v4085
  %v4087 = vpop.f32.mrf.mxu0
  %4088 = vmatprep.mubr.bf16.mxu0 0
  %4089 = vmatmul.mubr.bf16.gmra.mxu0 %v2248
  %v4090 = vpop.f32.mrf.mxu0
  %v4091 = vadd.f32 0.0, %v4090
  %v4092 = vpop.f32.mrf.mxu0
  %v4093 = vpop.f32.mrf.mxu0
  %v4094 = vadd.f32 0.0, %v4093
  %v4095 = vpop.f32.mrf.mxu0
  %4096 = vmatprep.mubr.bf16.mxu0 0
  %4097 = vmatmul.mubr.bf16.gmra.mxu0 %v2251
  %v4098 = vpop.f32.mrf.mxu0
  %v4099 = vadd.f32 0.0, %v4098
  %v4100 = vpop.f32.mrf.mxu0
  %v4101 = vpop.f32.mrf.mxu0
  %v4102 = vadd.f32 0.0, %v4101
  %v4103 = vpop.f32.mrf.mxu0
  %4104 = vmatprep.mubr.bf16.mxu0 0
  %4105 = vmatmul.mubr.bf16.gmra.mxu0 %v2254
  %v4106 = vpop.f32.mrf.mxu0
  %v4107 = vadd.f32 0.0, %v4106
  %v4108 = vpop.f32.mrf.mxu0
  %v4109 = vpop.f32.mrf.mxu0
  %v4110 = vadd.f32 0.0, %v4109
  %v4111 = vpop.f32.mrf.mxu0
  %4112 = vmatprep.mubr.bf16.mxu0 0
  %4113 = vmatmul.mubr.bf16.gmra.mxu0 %v2257
  %v4114 = vpop.f32.mrf.mxu0
  %v4115 = vadd.f32 0.0, %v4114
  %v4116 = vpop.f32.mrf.mxu0
  %v4117 = vpop.f32.mrf.mxu0
  %v4118 = vadd.f32 0.0, %v4117
  %v4119 = vpop.f32.mrf.mxu0
  %4120 = vmatprep.mubr.bf16.mxu0 0
  %4121 = vmatmul.mubr.bf16.gmra.mxu0 %v2260
  %v4122 = vpop.f32.mrf.mxu0
  %v4123 = vadd.f32 0.0, %v4122
  %v4124 = vpop.f32.mrf.mxu0
  %v4125 = vpop.f32.mrf.mxu0
  %v4126 = vadd.f32 0.0, %v4125
  %v4127 = vpop.f32.mrf.mxu0
  %4128 = vmatprep.mubr.bf16.mxu0 0
  %4129 = vmatmul.mubr.bf16.gmra.mxu0 %v2263
  %v4130 = vpop.f32.mrf.mxu0
  %v4131 = vadd.f32 0.0, %v4130
  %v4132 = vpop.f32.mrf.mxu0
  %v4133 = vpop.f32.mrf.mxu0
  %v4134 = vadd.f32 0.0, %v4133
  %v4135 = vpop.f32.mrf.mxu0
  %4136 = vmatprep.mubr.bf16.mxu0 0
  %4137 = vmatmul.mubr.bf16.gmra.mxu0 %v2266
  %v4138 = vpop.f32.mrf.mxu0
  %v4139 = vadd.f32 0.0, %v4138
  %v4140 = vpop.f32.mrf.mxu0
  %v4141 = vpop.f32.mrf.mxu0
  %v4142 = vadd.f32 0.0, %v4141
  %v4143 = vpop.f32.mrf.mxu0
  %4144 = vmatprep.mubr.bf16.mxu0 0
  %4145 = vmatmul.mubr.bf16.gmra.mxu0 %v2269
  %v4146 = vpop.f32.mrf.mxu0
  %v4147 = vadd.f32 0.0, %v4146
  %v4148 = vpop.f32.mrf.mxu0
  %v4149 = vpop.f32.mrf.mxu0
  %v4150 = vadd.f32 0.0, %v4149
  %v4151 = vpop.f32.mrf.mxu0
  %4152 = vmatprep.mubr.bf16.mxu0 0
  %4153 = vmatmul.mubr.bf16.gmra.mxu0 %v2272
  %v4154 = vpop.f32.mrf.mxu0
  %v4155 = vadd.f32 0.0, %v4154
  %v4156 = vpop.f32.mrf.mxu0
  %v4157 = vpop.f32.mrf.mxu0
  %v4158 = vadd.f32 0.0, %v4157
  %v4159 = vpop.f32.mrf.mxu0
  %4160 = vmatprep.mubr.bf16.mxu0 0
  %4161 = vmatmul.mubr.bf16.gmra.mxu0 %v2275
  %v4162 = vpop.f32.mrf.mxu0
  %v4163 = vadd.f32 0.0, %v4162
  %v4164 = vpop.f32.mrf.mxu0
  %v4165 = vpop.f32.mrf.mxu0
  %v4166 = vadd.f32 0.0, %v4165
  %v4167 = vpop.f32.mrf.mxu0
  %4168 = vmatprep.mubr.bf16.mxu0 0
  %4169 = vmatmul.mubr.bf16.gmra.mxu0 %v2278
  %v4170 = vpop.f32.mrf.mxu0
  %v4171 = vadd.f32 0.0, %v4170
  %v4172 = vpop.f32.mrf.mxu0
  %v4173 = vpop.f32.mrf.mxu0
  %v4174 = vadd.f32 0.0, %v4173
  %v4175 = vpop.f32.mrf.mxu0
  %4176 = vmatprep.mubr.bf16.mxu0 0
  %4177 = vmatmul.mubr.bf16.gmra.mxu0 %v2281
  %v4178 = vpop.f32.mrf.mxu0
  %v4179 = vadd.f32 0.0, %v4178
  %v4180 = vpop.f32.mrf.mxu0
  %v4181 = vpop.f32.mrf.mxu0
  %v4182 = vadd.f32 0.0, %v4181
  %v4183 = vpop.f32.mrf.mxu0
  %4184 = vmatprep.mubr.bf16.mxu0 0
  %4185 = vmatmul.mubr.bf16.gmra.mxu0 %v2284
  %v4186 = vpop.f32.mrf.mxu0
  %v4187 = vadd.f32 0.0, %v4186
  %v4188 = vpop.f32.mrf.mxu0
  %v4189 = vpop.f32.mrf.mxu0
  %v4190 = vadd.f32 0.0, %v4189
  %v4191 = vpop.f32.mrf.mxu0
  %4192 = vmatprep.mubr.bf16.mxu0 0
  %4193 = vmatmul.mubr.bf16.gmra.mxu0 %v2287
  %v4194 = vpop.f32.mrf.mxu0
  %v4195 = vadd.f32 0.0, %v4194
  %v4196 = vpop.f32.mrf.mxu0
  %v4197 = vpop.f32.mrf.mxu0
  %v4198 = vadd.f32 0.0, %v4197
  %v4199 = vpop.f32.mrf.mxu0
  %4200 = vdwg.mxu0
  %v4201 = vadd.f32 %v3658, %v3947
  %v4202 = vadd.f32 %v3661, %v3950
  %v4203 = vadd.f32 %v3666, %v3955
  %v4204 = vadd.f32 %v3669, %v3958
  %v4205 = vadd.f32 %v3674, %v3963
  %v4206 = vadd.f32 %v3677, %v3966
  %v4207 = vadd.f32 %v3682, %v3971
  %v4208 = vadd.f32 %v3685, %v3974
  %v4209 = vadd.f32 %v3690, %v3979
  %v4210 = vadd.f32 %v3693, %v3982
  %v4211 = vadd.f32 %v3698, %v3987
  %v4212 = vadd.f32 %v3701, %v3990
  %v4213 = vadd.f32 %v3706, %v3995
  %v4214 = vadd.f32 %v3709, %v3998
  %v4215 = vadd.f32 %v3714, %v4003
  %v4216 = vadd.f32 %v3717, %v4006
  %v4217 = vadd.f32 %v3722, %v4011
  %v4218 = vadd.f32 %v3725, %v4014
  %v4219 = vadd.f32 %v3730, %v4019
  %v4220 = vadd.f32 %v3733, %v4022
  %v4221 = vadd.f32 %v3738, %v4027
  %v4222 = vadd.f32 %v3741, %v4030
  %v4223 = vadd.f32 %v3746, %v4035
  %v4224 = vadd.f32 %v3749, %v4038
  %v4225 = vadd.f32 %v3754, %v4043
  %v4226 = vadd.f32 %v3757, %v4046
  %v4227 = vadd.f32 %v3762, %v4051
  %v4228 = vadd.f32 %v3765, %v4054
  %v4229 = vadd.f32 %v3770, %v4059
  %v4230 = vadd.f32 %v3773, %v4062
  %v4231 = vadd.f32 %v3778, %v4067
  %v4232 = vadd.f32 %v3781, %v4070
  %v4233 = vadd.f32 %v3786, %v4075
  %v4234 = vadd.f32 %v3789, %v4078
  %v4235 = vadd.f32 %v3794, %v4083
  %v4236 = vadd.f32 %v3797, %v4086
  %v4237 = vadd.f32 %v3802, %v4091
  %v4238 = vadd.f32 %v3805, %v4094
  %v4239 = vadd.f32 %v3810, %v4099
  %v4240 = vadd.f32 %v3813, %v4102
  %v4241 = vadd.f32 %v3818, %v4107
  %v4242 = vadd.f32 %v3821, %v4110
  %v4243 = vadd.f32 %v3826, %v4115
  %v4244 = vadd.f32 %v3829, %v4118
  %v4245 = vadd.f32 %v3834, %v4123
  %v4246 = vadd.f32 %v3837, %v4126
  %v4247 = vadd.f32 %v3842, %v4131
  %v4248 = vadd.f32 %v3845, %v4134
  %v4249 = vadd.f32 %v3850, %v4139
  %v4250 = vadd.f32 %v3853, %v4142
  %v4251 = vadd.f32 %v3858, %v4147
  %v4252 = vadd.f32 %v3861, %v4150
  %v4253 = vadd.f32 %v3866, %v4155
  %v4254 = vadd.f32 %v3869, %v4158
  %v4255 = vadd.f32 %v3874, %v4163
  %v4256 = vadd.f32 %v3877, %v4166
  %v4257 = vadd.f32 %v3882, %v4171
  %v4258 = vadd.f32 %v3885, %v4174
  %v4259 = vadd.f32 %v3890, %v4179
  %v4260 = vadd.f32 %v3893, %v4182
  %v4261 = vadd.f32 %v3898, %v4187
  %v4262 = vadd.f32 %v3901, %v4190
  %v4263 = vadd.f32 %v3906, %v4195
  %v4264 = vadd.f32 %v3909, %v4198
  %4265 = vmatprep.subr.bf16.mxu0 0
  %4266 = vmatpush1.bf16.msra.mxu0 0
  %4267 = vmatprep.subr.bf16.mxu0 0
  %4268 = vmatpush1.bf16.msra.mxu0 0
  %4269 = vmatprep.subr.bf16.mxu0 0
  %4270 = vmatpush1.bf16.msra.mxu0 0
  %4271 = vmatprep.subr.bf16.mxu0 0
  %4272 = vmatpush1.bf16.msra.mxu0 0
  %4273 = vmatprep.subr.bf16.mxu0 0
  %4274 = vmatpush1.bf16.msra.mxu0 0
  %4275 = vmatprep.subr.bf16.mxu0 0
  %4276 = vmatpush1.bf16.msra.mxu0 0
  %4277 = vmatprep.subr.bf16.mxu0 0
  %4278 = vmatpush1.bf16.msra.mxu0 %v2290
  %4279 = vmatprep.subr.bf16.mxu0 0
  %4280 = vmatpush1.bf16.msra.mxu0 %v2190
  %4281 = vmatprep.subr.bf16.mxu0 0
  %4282 = vmatpush2.bf16.msra.mxu0 0
  %4283 = vmatprep.subr.bf16.mxu0 0
  %4284 = vmatpush2.bf16.msra.mxu0 0
  %4285 = vmatprep.subr.bf16.mxu0 0
  %4286 = vmatpush2.bf16.msra.mxu0 0
  %4287 = vmatprep.subr.bf16.mxu0 0
  %4288 = vmatpush2.bf16.msra.mxu0 0
  %4289 = vmatprep.subr.bf16.mxu0 0
  %4290 = vmatpush2.bf16.msra.mxu0 0
  %4291 = vmatprep.subr.bf16.mxu0 0
  %4292 = vmatpush2.bf16.msra.mxu0 0
  %4293 = vmatprep.subr.bf16.mxu0 0
  %4294 = vmatpush2.bf16.msra.mxu0 0
  %4295 = vmatprep.subr.bf16.mxu0 0
  %4296 = vmatpush2.bf16.msra.mxu0 0
  %4297 = vmatprep.mubr.bf16.mxu0 0
  %4298 = vmatmul.mubr.bf16.gmra.mxu0 %v2883
  %v4299 = vpop.f32.mrf.mxu0
  %v4300 = vadd.f32 0.0, %v4299
  %v4301 = vpop.f32.mrf.mxu0
  %v4302 = vpop.f32.mrf.mxu0
  %v4303 = vadd.f32 0.0, %v4302
  %v4304 = vpop.f32.mrf.mxu0
  %4305 = vmatprep.mubr.bf16.mxu0 0
  %4306 = vmatmul.mubr.bf16.gmra.mxu0 %v2886
  %v4307 = vpop.f32.mrf.mxu0
  %v4308 = vadd.f32 0.0, %v4307
  %v4309 = vpop.f32.mrf.mxu0
  %v4310 = vpop.f32.mrf.mxu0
  %v4311 = vadd.f32 0.0, %v4310
  %v4312 = vpop.f32.mrf.mxu0
  %4313 = vmatprep.mubr.bf16.mxu0 0
  %4314 = vmatmul.mubr.bf16.gmra.mxu0 %v2889
  %v4315 = vpop.f32.mrf.mxu0
  %v4316 = vadd.f32 0.0, %v4315
  %v4317 = vpop.f32.mrf.mxu0
  %v4318 = vpop.f32.mrf.mxu0
  %v4319 = vadd.f32 0.0, %v4318
  %v4320 = vpop.f32.mrf.mxu0
  %4321 = vmatprep.mubr.bf16.mxu0 0
  %4322 = vmatmul.mubr.bf16.gmra.mxu0 %v2892
  %v4323 = vpop.f32.mrf.mxu0
  %v4324 = vadd.f32 0.0, %v4323
  %v4325 = vpop.f32.mrf.mxu0
  %v4326 = vpop.f32.mrf.mxu0
  %v4327 = vadd.f32 0.0, %v4326
  %v4328 = vpop.f32.mrf.mxu0
  %4329 = vmatprep.mubr.bf16.mxu0 0
  %4330 = vmatmul.mubr.bf16.gmra.mxu0 %v2895
  %v4331 = vpop.f32.mrf.mxu0
  %v4332 = vadd.f32 0.0, %v4331
  %v4333 = vpop.f32.mrf.mxu0
  %v4334 = vpop.f32.mrf.mxu0
  %v4335 = vadd.f32 0.0, %v4334
  %v4336 = vpop.f32.mrf.mxu0
  %4337 = vmatprep.mubr.bf16.mxu0 0
  %4338 = vmatmul.mubr.bf16.gmra.mxu0 %v2898
  %v4339 = vpop.f32.mrf.mxu0
  %v4340 = vadd.f32 0.0, %v4339
  %v4341 = vpop.f32.mrf.mxu0
  %v4342 = vpop.f32.mrf.mxu0
  %v4343 = vadd.f32 0.0, %v4342
  %v4344 = vpop.f32.mrf.mxu0
  %4345 = vmatprep.mubr.bf16.mxu0 0
  %4346 = vmatmul.mubr.bf16.gmra.mxu0 %v2901
  %v4347 = vpop.f32.mrf.mxu0
  %v4348 = vadd.f32 0.0, %v4347
  %v4349 = vpop.f32.mrf.mxu0
  %v4350 = vpop.f32.mrf.mxu0
  %v4351 = vadd.f32 0.0, %v4350
  %v4352 = vpop.f32.mrf.mxu0
  %4353 = vmatprep.mubr.bf16.mxu0 0
  %4354 = vmatmul.mubr.bf16.gmra.mxu0 %v2904
  %v4355 = vpop.f32.mrf.mxu0
  %v4356 = vadd.f32 0.0, %v4355
  %v4357 = vpop.f32.mrf.mxu0
  %v4358 = vpop.f32.mrf.mxu0
  %v4359 = vadd.f32 0.0, %v4358
  %v4360 = vpop.f32.mrf.mxu0
  %4361 = vmatprep.mubr.bf16.mxu0 0
  %4362 = vmatmul.mubr.bf16.gmra.mxu0 %v2907
  %v4363 = vpop.f32.mrf.mxu0
  %v4364 = vadd.f32 0.0, %v4363
  %v4365 = vpop.f32.mrf.mxu0
  %v4366 = vpop.f32.mrf.mxu0
  %v4367 = vadd.f32 0.0, %v4366
  %v4368 = vpop.f32.mrf.mxu0
  %4369 = vmatprep.mubr.bf16.mxu0 0
  %4370 = vmatmul.mubr.bf16.gmra.mxu0 %v2910
  %v4371 = vpop.f32.mrf.mxu0
  %v4372 = vadd.f32 0.0, %v4371
  %v4373 = vpop.f32.mrf.mxu0
  %v4374 = vpop.f32.mrf.mxu0
  %v4375 = vadd.f32 0.0, %v4374
  %v4376 = vpop.f32.mrf.mxu0
  %4377 = vmatprep.mubr.bf16.mxu0 0
  %4378 = vmatmul.mubr.bf16.gmra.mxu0 %v2913
  %v4379 = vpop.f32.mrf.mxu0
  %v4380 = vadd.f32 0.0, %v4379
  %v4381 = vpop.f32.mrf.mxu0
  %v4382 = vpop.f32.mrf.mxu0
  %v4383 = vadd.f32 0.0, %v4382
  %v4384 = vpop.f32.mrf.mxu0
  %4385 = vmatprep.mubr.bf16.mxu0 0
  %4386 = vmatmul.mubr.bf16.gmra.mxu0 %v2916
  %v4387 = vpop.f32.mrf.mxu0
  %v4388 = vadd.f32 0.0, %v4387
  %v4389 = vpop.f32.mrf.mxu0
  %v4390 = vpop.f32.mrf.mxu0
  %v4391 = vadd.f32 0.0, %v4390
  %v4392 = vpop.f32.mrf.mxu0
  %4393 = vmatprep.mubr.bf16.mxu0 0
  %4394 = vmatmul.mubr.bf16.gmra.mxu0 %v2919
  %v4395 = vpop.f32.mrf.mxu0
  %v4396 = vadd.f32 0.0, %v4395
  %v4397 = vpop.f32.mrf.mxu0
  %v4398 = vpop.f32.mrf.mxu0
  %v4399 = vadd.f32 0.0, %v4398
  %v4400 = vpop.f32.mrf.mxu0
  %4401 = vmatprep.mubr.bf16.mxu0 0
  %4402 = vmatmul.mubr.bf16.gmra.mxu0 %v2922
  %v4403 = vpop.f32.mrf.mxu0
  %v4404 = vadd.f32 0.0, %v4403
  %v4405 = vpop.f32.mrf.mxu0
  %v4406 = vpop.f32.mrf.mxu0
  %v4407 = vadd.f32 0.0, %v4406
  %v4408 = vpop.f32.mrf.mxu0
  %4409 = vmatprep.mubr.bf16.mxu0 0
  %4410 = vmatmul.mubr.bf16.gmra.mxu0 %v2925
  %v4411 = vpop.f32.mrf.mxu0
  %v4412 = vadd.f32 0.0, %v4411
  %v4413 = vpop.f32.mrf.mxu0
  %v4414 = vpop.f32.mrf.mxu0
  %v4415 = vadd.f32 0.0, %v4414
  %v4416 = vpop.f32.mrf.mxu0
  %4417 = vmatprep.mubr.bf16.mxu0 0
  %4418 = vmatmul.mubr.bf16.gmra.mxu0 %v2928
  %v4419 = vpop.f32.mrf.mxu0
  %v4420 = vadd.f32 0.0, %v4419
  %v4421 = vpop.f32.mrf.mxu0
  %v4422 = vpop.f32.mrf.mxu0
  %v4423 = vadd.f32 0.0, %v4422
  %v4424 = vpop.f32.mrf.mxu0
  %4425 = vmatprep.mubr.bf16.mxu0 0
  %4426 = vmatmul.mubr.bf16.gmra.mxu0 %v2931
  %v4427 = vpop.f32.mrf.mxu0
  %v4428 = vadd.f32 0.0, %v4427
  %v4429 = vpop.f32.mrf.mxu0
  %v4430 = vpop.f32.mrf.mxu0
  %v4431 = vadd.f32 0.0, %v4430
  %v4432 = vpop.f32.mrf.mxu0
  %4433 = vmatprep.mubr.bf16.mxu0 0
  %4434 = vmatmul.mubr.bf16.gmra.mxu0 %v2934
  %v4435 = vpop.f32.mrf.mxu0
  %v4436 = vadd.f32 0.0, %v4435
  %v4437 = vpop.f32.mrf.mxu0
  %v4438 = vpop.f32.mrf.mxu0
  %v4439 = vadd.f32 0.0, %v4438
  %v4440 = vpop.f32.mrf.mxu0
  %4441 = vmatprep.mubr.bf16.mxu0 0
  %4442 = vmatmul.mubr.bf16.gmra.mxu0 %v2937
  %v4443 = vpop.f32.mrf.mxu0
  %v4444 = vadd.f32 0.0, %v4443
  %v4445 = vpop.f32.mrf.mxu0
  %v4446 = vpop.f32.mrf.mxu0
  %v4447 = vadd.f32 0.0, %v4446
  %v4448 = vpop.f32.mrf.mxu0
  %4449 = vmatprep.mubr.bf16.mxu0 0
  %4450 = vmatmul.mubr.bf16.gmra.mxu0 %v2940
  %v4451 = vpop.f32.mrf.mxu0
  %v4452 = vadd.f32 0.0, %v4451
  %v4453 = vpop.f32.mrf.mxu0
  %v4454 = vpop.f32.mrf.mxu0
  %v4455 = vadd.f32 0.0, %v4454
  %v4456 = vpop.f32.mrf.mxu0
  %4457 = vmatprep.mubr.bf16.mxu0 0
  %4458 = vmatmul.mubr.bf16.gmra.mxu0 %v2943
  %v4459 = vpop.f32.mrf.mxu0
  %v4460 = vadd.f32 0.0, %v4459
  %v4461 = vpop.f32.mrf.mxu0
  %v4462 = vpop.f32.mrf.mxu0
  %v4463 = vadd.f32 0.0, %v4462
  %v4464 = vpop.f32.mrf.mxu0
  %4465 = vmatprep.mubr.bf16.mxu0 0
  %4466 = vmatmul.mubr.bf16.gmra.mxu0 %v2946
  %v4467 = vpop.f32.mrf.mxu0
  %v4468 = vadd.f32 0.0, %v4467
  %v4469 = vpop.f32.mrf.mxu0
  %v4470 = vpop.f32.mrf.mxu0
  %v4471 = vadd.f32 0.0, %v4470
  %v4472 = vpop.f32.mrf.mxu0
  %4473 = vmatprep.mubr.bf16.mxu0 0
  %4474 = vmatmul.mubr.bf16.gmra.mxu0 %v2949
  %v4475 = vpop.f32.mrf.mxu0
  %v4476 = vadd.f32 0.0, %v4475
  %v4477 = vpop.f32.mrf.mxu0
  %v4478 = vpop.f32.mrf.mxu0
  %v4479 = vadd.f32 0.0, %v4478
  %v4480 = vpop.f32.mrf.mxu0
  %4481 = vmatprep.mubr.bf16.mxu0 0
  %4482 = vmatmul.mubr.bf16.gmra.mxu0 %v2952
  %v4483 = vpop.f32.mrf.mxu0
  %v4484 = vadd.f32 0.0, %v4483
  %v4485 = vpop.f32.mrf.mxu0
  %v4486 = vpop.f32.mrf.mxu0
  %v4487 = vadd.f32 0.0, %v4486
  %v4488 = vpop.f32.mrf.mxu0
  %4489 = vmatprep.mubr.bf16.mxu0 0
  %4490 = vmatmul.mubr.bf16.gmra.mxu0 %v2955
  %v4491 = vpop.f32.mrf.mxu0
  %v4492 = vadd.f32 0.0, %v4491
  %v4493 = vpop.f32.mrf.mxu0
  %v4494 = vpop.f32.mrf.mxu0
  %v4495 = vadd.f32 0.0, %v4494
  %v4496 = vpop.f32.mrf.mxu0
  %4497 = vmatprep.mubr.bf16.mxu0 0
  %4498 = vmatmul.mubr.bf16.gmra.mxu0 %v2958
  %v4499 = vpop.f32.mrf.mxu0
  %v4500 = vadd.f32 0.0, %v4499
  %v4501 = vpop.f32.mrf.mxu0
  %v4502 = vpop.f32.mrf.mxu0
  %v4503 = vadd.f32 0.0, %v4502
  %v4504 = vpop.f32.mrf.mxu0
  %4505 = vmatprep.mubr.bf16.mxu0 0
  %4506 = vmatmul.mubr.bf16.gmra.mxu0 %v2961
  %v4507 = vpop.f32.mrf.mxu0
  %v4508 = vadd.f32 0.0, %v4507
  %v4509 = vpop.f32.mrf.mxu0
  %v4510 = vpop.f32.mrf.mxu0
  %v4511 = vadd.f32 0.0, %v4510
  %v4512 = vpop.f32.mrf.mxu0
  %4513 = vmatprep.mubr.bf16.mxu0 0
  %4514 = vmatmul.mubr.bf16.gmra.mxu0 %v2964
  %v4515 = vpop.f32.mrf.mxu0
  %v4516 = vadd.f32 0.0, %v4515
  %v4517 = vpop.f32.mrf.mxu0
  %v4518 = vpop.f32.mrf.mxu0
  %v4519 = vadd.f32 0.0, %v4518
  %v4520 = vpop.f32.mrf.mxu0
  %4521 = vmatprep.mubr.bf16.mxu0 0
  %4522 = vmatmul.mubr.bf16.gmra.mxu0 %v2967
  %v4523 = vpop.f32.mrf.mxu0
  %v4524 = vadd.f32 0.0, %v4523
  %v4525 = vpop.f32.mrf.mxu0
  %v4526 = vpop.f32.mrf.mxu0
  %v4527 = vadd.f32 0.0, %v4526
  %v4528 = vpop.f32.mrf.mxu0
  %4529 = vmatprep.mubr.bf16.mxu0 0
  %4530 = vmatmul.mubr.bf16.gmra.mxu0 %v2970
  %v4531 = vpop.f32.mrf.mxu0
  %v4532 = vadd.f32 0.0, %v4531
  %v4533 = vpop.f32.mrf.mxu0
  %v4534 = vpop.f32.mrf.mxu0
  %v4535 = vadd.f32 0.0, %v4534
  %v4536 = vpop.f32.mrf.mxu0
  %4537 = vmatprep.mubr.bf16.mxu0 0
  %4538 = vmatmul.mubr.bf16.gmra.mxu0 %v2973
  %v4539 = vpop.f32.mrf.mxu0
  %v4540 = vadd.f32 0.0, %v4539
  %v4541 = vpop.f32.mrf.mxu0
  %v4542 = vpop.f32.mrf.mxu0
  %v4543 = vadd.f32 0.0, %v4542
  %v4544 = vpop.f32.mrf.mxu0
  %4545 = vmatprep.mubr.bf16.mxu0 0
  %4546 = vmatmul.mubr.bf16.gmra.mxu0 %v2976
  %v4547 = vpop.f32.mrf.mxu0
  %v4548 = vadd.f32 0.0, %v4547
  %v4549 = vpop.f32.mrf.mxu0
  %v4550 = vpop.f32.mrf.mxu0
  %v4551 = vadd.f32 0.0, %v4550
  %v4552 = vpop.f32.mrf.mxu0
  %4553 = vdwg.mxu0
  %v4554 = vadd.f32 %v4201, %v4300
  %v4555 = vadd.f32 %v4202, %v4303
  %v4556 = vadd.f32 %v4203, %v4308
  %v4557 = vadd.f32 %v4204, %v4311
  %v4558 = vadd.f32 %v4205, %v4316
  %v4559 = vadd.f32 %v4206, %v4319
  %v4560 = vadd.f32 %v4207, %v4324
  %v4561 = vadd.f32 %v4208, %v4327
  %v4562 = vadd.f32 %v4209, %v4332
  %v4563 = vadd.f32 %v4210, %v4335
  %v4564 = vadd.f32 %v4211, %v4340
  %v4565 = vadd.f32 %v4212, %v4343
  %v4566 = vadd.f32 %v4213, %v4348
  %v4567 = vadd.f32 %v4214, %v4351
  %v4568 = vadd.f32 %v4215, %v4356
  %v4569 = vadd.f32 %v4216, %v4359
  %v4570 = vadd.f32 %v4217, %v4364
  %v4571 = vadd.f32 %v4218, %v4367
  %v4572 = vadd.f32 %v4219, %v4372
  %v4573 = vadd.f32 %v4220, %v4375
  %v4574 = vadd.f32 %v4221, %v4380
  %v4575 = vadd.f32 %v4222, %v4383
  %v4576 = vadd.f32 %v4223, %v4388
  %v4577 = vadd.f32 %v4224, %v4391
  %v4578 = vadd.f32 %v4225, %v4396
  %v4579 = vadd.f32 %v4226, %v4399
  %v4580 = vadd.f32 %v4227, %v4404
  %v4581 = vadd.f32 %v4228, %v4407
  %v4582 = vadd.f32 %v4229, %v4412
  %v4583 = vadd.f32 %v4230, %v4415
  %v4584 = vadd.f32 %v4231, %v4420
  %v4585 = vadd.f32 %v4232, %v4423
  %v4586 = vadd.f32 %v4233, %v4428
  %v4587 = vadd.f32 %v4234, %v4431
  %v4588 = vadd.f32 %v4235, %v4436
  %v4589 = vadd.f32 %v4236, %v4439
  %v4590 = vadd.f32 %v4237, %v4444
  %v4591 = vadd.f32 %v4238, %v4447
  %v4592 = vadd.f32 %v4239, %v4452
  %v4593 = vadd.f32 %v4240, %v4455
  %v4594 = vadd.f32 %v4241, %v4460
  %v4595 = vadd.f32 %v4242, %v4463
  %v4596 = vadd.f32 %v4243, %v4468
  %v4597 = vadd.f32 %v4244, %v4471
  %v4598 = vadd.f32 %v4245, %v4476
  %v4599 = vadd.f32 %v4246, %v4479
  %v4600 = vadd.f32 %v4247, %v4484
  %v4601 = vadd.f32 %v4248, %v4487
  %v4602 = vadd.f32 %v4249, %v4492
  %v4603 = vadd.f32 %v4250, %v4495
  %v4604 = vadd.f32 %v4251, %v4500
  %v4605 = vadd.f32 %v4252, %v4503
  %v4606 = vadd.f32 %v4253, %v4508
  %v4607 = vadd.f32 %v4254, %v4511
  %v4608 = vadd.f32 %v4255, %v4516
  %v4609 = vadd.f32 %v4256, %v4519
  %v4610 = vadd.f32 %v4257, %v4524
  %v4611 = vadd.f32 %v4258, %v4527
  %v4612 = vadd.f32 %v4259, %v4532
  %v4613 = vadd.f32 %v4260, %v4535
  %v4614 = vadd.f32 %v4261, %v4540
  %v4615 = vadd.f32 %v4262, %v4543
  %v4616 = vadd.f32 %v4263, %v4548
  %v4617 = vadd.f32 %v4264, %v4551
  %v4618 = vld [vmem:[%s82 + $0x10] sm:$0xf]
  %v4619 = vld [vmem:[%s82 + $0x14] sm:$0xf]
  %v4620 = vld [vmem:[%s82 + $0x18] sm:$0xf]
  %v4621 = vld [vmem:[%s82 + $0x1c] sm:$0xf]
  %v4622 = vld [vmem:[%s82 + $0x20] sm:$0xf]
  %v4623 = vld [vmem:[%s82 + $0x24] sm:$0xf]
  %v4624 = vld [vmem:[%s82 + $0x28] sm:$0xf]
  %v4625 = vld [vmem:[%s82 + $0x2c] sm:$0xf]
  %v4626 = vld [vmem:[%s82 + $0x30] sm:$0xf]
  %v4627 = vld [vmem:[%s82 + $0x34] sm:$0xf]
  %v4628 = vld [vmem:[%s82 + $0x38] sm:$0xf]
  %v4629 = vld [vmem:[%s82 + $0x3c] sm:$0xf]
  %v4630 = vld [vmem:[%s82 + $0x40] sm:$0xf]
  %v4631 = vld [vmem:[%s82 + $0x44] sm:$0xf]
  %v4632 = vld [vmem:[%s82 + $0x48] sm:$0xf]
  %v4633 = vld [vmem:[%s82 + $0x4c] sm:$0xf]
  %v4634 = vld [vmem:[%s82 + $0x50] sm:$0xf]
  %v4635 = vld [vmem:[%s82 + $0x54] sm:$0xf]
  %v4636 = vld [vmem:[%s82 + $0x58] sm:$0xf]
  %v4637 = vld [vmem:[%s82 + $0x5c] sm:$0xf]
  %v4638 = vld [vmem:[%s82 + $0x60] sm:$0xf]
  %v4639 = vld [vmem:[%s82 + $0x64] sm:$0xf]
  %v4640 = vld [vmem:[%s82 + $0x68] sm:$0xf]
  %v4641 = vld [vmem:[%s82 + $0x6c] sm:$0xf]
  %v4642 = vld [vmem:[%s82 + $0x70] sm:$0xf]
  %v4643 = vld [vmem:[%s82 + $0x74] sm:$0xf]
  %v4644 = vld [vmem:[%s82 + $0x78] sm:$0xf]
  %v4645 = vld [vmem:[%s82 + $0x7c] sm:$0xf]
  %v4646 = vld [vmem:[%s82 + $0x80] sm:$0xf]
  %v4647 = vld [vmem:[%s82 + $0x84] sm:$0xf]
  %v4648 = vld [vmem:[%s82 + $0x88] sm:$0xf]
  %v4649 = vld [vmem:[%s82 + $0x8c] sm:$0xf]
  %v4650 = vld [vmem:[%s82 + $0x130] sm:$0xf]
  %v4651 = vld [vmem:[%s82 + $0x134] sm:$0xf]
  %v4652 = vld [vmem:[%s82 + $0x138] sm:$0xf]
  %v4653 = vld [vmem:[%s82 + $0x13c] sm:$0xf]
  %v4654 = vld [vmem:[%s82 + $0x140] sm:$0xf]
  %v4655 = vld [vmem:[%s82 + $0x144] sm:$0xf]
  %v4656 = vld [vmem:[%s82 + $0x148] sm:$0xf]
  %v4657 = vld [vmem:[%s82 + $0x14c] sm:$0xf]
  %v4658 = vld [vmem:[%s82 + $0x150] sm:$0xf]
  %v4659 = vld [vmem:[%s82 + $0x154] sm:$0xf]
  %v4660 = vld [vmem:[%s82 + $0x158] sm:$0xf]
  %v4661 = vld [vmem:[%s82 + $0x15c] sm:$0xf]
  %v4662 = vld [vmem:[%s82 + $0x160] sm:$0xf]
  %v4663 = vld [vmem:[%s82 + $0x164] sm:$0xf]
  %v4664 = vld [vmem:[%s82 + $0x168] sm:$0xf]
  %v4665 = vld [vmem:[%s82 + $0x16c] sm:$0xf]
  %v4666 = vld [vmem:[%s82 + $0x170] sm:$0xf]
  %v4667 = vld [vmem:[%s82 + $0x174] sm:$0xf]
  %v4668 = vld [vmem:[%s82 + $0x178] sm:$0xf]
  %v4669 = vld [vmem:[%s82 + $0x17c] sm:$0xf]
  %v4670 = vld [vmem:[%s82 + $0x180] sm:$0xf]
  %v4671 = vld [vmem:[%s82 + $0x184] sm:$0xf]
  %v4672 = vld [vmem:[%s82 + $0x188] sm:$0xf]
  %v4673 = vld [vmem:[%s82 + $0x18c] sm:$0xf]
  %v4674 = vld [vmem:[%s82 + $0x190] sm:$0xf]
  %v4675 = vld [vmem:[%s82 + $0x194] sm:$0xf]
  %v4676 = vld [vmem:[%s82 + $0x198] sm:$0xf]
  %v4677 = vld [vmem:[%s82 + $0x19c] sm:$0xf]
  %v4678 = vld [vmem:[%s82 + $0x1a0] sm:$0xf]
  %v4679 = vld [vmem:[%s82 + $0x1a4] sm:$0xf]
  %v4680 = vld [vmem:[%s82 + $0x1a8] sm:$0xf]
  %v4681 = vld [vmem:[%s82 + $0x1ac] sm:$0xf]
  %v4746 = vunpack.c.l.b16 %v4618
  %v4747 = vunpack.c.l.b16 %v4619
  %v4748 = vunpack.c.l.b16 %v4620
  %v4749 = vunpack.c.l.b16 %v4621
  %v4750 = vunpack.c.l.b16 %v4622
  %v4751 = vunpack.c.l.b16 %v4623
  %v4752 = vunpack.c.l.b16 %v4624
  %v4753 = vunpack.c.l.b16 %v4625
  %v4754 = vunpack.c.l.b16 %v4626
  %v4755 = vunpack.c.l.b16 %v4627
  %v4756 = vunpack.c.l.b16 %v4628
  %v4757 = vunpack.c.l.b16 %v4629
  %v4758 = vunpack.c.l.b16 %v4630
  %v4759 = vunpack.c.l.b16 %v4631
  %v4760 = vunpack.c.l.b16 %v4632
  %v4761 = vunpack.c.l.b16 %v4633
  %v4762 = vunpack.c.l.b16 %v4634
  %v4763 = vunpack.c.l.b16 %v4635
  %v4764 = vunpack.c.l.b16 %v4636
  %v4765 = vunpack.c.l.b16 %v4637
  %v4766 = vunpack.c.l.b16 %v4638
  %v4767 = vunpack.c.l.b16 %v4639
  %v4768 = vunpack.c.l.b16 %v4640
  %v4769 = vunpack.c.l.b16 %v4641
  %v4770 = vunpack.c.l.b16 %v4642
  %v4771 = vunpack.c.l.b16 %v4643
  %v4772 = vunpack.c.l.b16 %v4644
  %v4773 = vunpack.c.l.b16 %v4645
  %v4774 = vunpack.c.l.b16 %v4646
  %v4775 = vunpack.c.l.b16 %v4647
  %v4776 = vunpack.c.l.b16 %v4648
  %v4777 = vunpack.c.l.b16 %v4649
  %v4778 = vunpack.c.l.b16 %v4650
  %v4779 = vunpack.c.l.b16 %v4651
  %v4780 = vunpack.c.l.b16 %v4652
  %v4781 = vunpack.c.l.b16 %v4653
  %v4782 = vunpack.c.l.b16 %v4654
  %v4783 = vunpack.c.l.b16 %v4655
  %v4784 = vunpack.c.l.b16 %v4656
  %v4785 = vunpack.c.l.b16 %v4657
  %v4786 = vunpack.c.l.b16 %v4658
  %v4787 = vunpack.c.l.b16 %v4659
  %v4788 = vunpack.c.l.b16 %v4660
  %v4789 = vunpack.c.l.b16 %v4661
  %v4790 = vunpack.c.l.b16 %v4662
  %v4791 = vunpack.c.l.b16 %v4663
  %v4792 = vunpack.c.l.b16 %v4664
  %v4793 = vunpack.c.l.b16 %v4665
  %v4794 = vunpack.c.l.b16 %v4666
  %v4795 = vunpack.c.l.b16 %v4667
  %v4796 = vunpack.c.l.b16 %v4668
  %v4797 = vunpack.c.l.b16 %v4669
  %v4798 = vunpack.c.l.b16 %v4670
  %v4799 = vunpack.c.l.b16 %v4671
  %v4800 = vunpack.c.l.b16 %v4672
  %v4801 = vunpack.c.l.b16 %v4673
  %v4802 = vunpack.c.l.b16 %v4674
  %v4803 = vunpack.c.l.b16 %v4675
  %v4804 = vunpack.c.l.b16 %v4676
  %v4805 = vunpack.c.l.b16 %v4677
  %v4806 = vunpack.c.l.b16 %v4678
  %v4807 = vunpack.c.l.b16 %v4679
  %v4808 = vunpack.c.l.b16 %v4680
  %v4809 = vunpack.c.l.b16 %v4681
  %v4810 = vpack.c.b16 %v4747, %v4746
  %v4811 = vpack.c.b16 %v4749, %v4748
  %v4812 = vpack.c.b16 %v4751, %v4750
  %v4813 = vpack.c.b16 %v4753, %v4752
  %v4814 = vpack.c.b16 %v4755, %v4754
  %v4815 = vpack.c.b16 %v4757, %v4756
  %v4816 = vpack.c.b16 %v4759, %v4758
  %v4817 = vpack.c.b16 %v4761, %v4760
  %v4818 = vpack.c.b16 %v4763, %v4762
  %v4819 = vpack.c.b16 %v4765, %v4764
  %v4820 = vpack.c.b16 %v4767, %v4766
  %v4821 = vpack.c.b16 %v4769, %v4768
  %v4822 = vpack.c.b16 %v4771, %v4770
  %v4823 = vpack.c.b16 %v4773, %v4772
  %v4824 = vpack.c.b16 %v4775, %v4774
  %v4825 = vpack.c.b16 %v4777, %v4776
  %v4826 = vpack.c.b16 %v4779, %v4778
  %v4827 = vpack.c.b16 %v4781, %v4780
  %v4828 = vpack.c.b16 %v4783, %v4782
  %v4829 = vpack.c.b16 %v4785, %v4784
  %v4830 = vpack.c.b16 %v4787, %v4786
  %v4831 = vpack.c.b16 %v4789, %v4788
  %v4832 = vpack.c.b16 %v4791, %v4790
  %v4833 = vpack.c.b16 %v4793, %v4792
  %v4834 = vpack.c.b16 %v4795, %v4794
  %v4835 = vpack.c.b16 %v4797, %v4796
  %v4836 = vpack.c.b16 %v4799, %v4798
  %v4837 = vpack.c.b16 %v4801, %v4800
  %v4838 = vpack.c.b16 %v4803, %v4802
  %v4839 = vpack.c.b16 %v4805, %v4804
  %v4840 = vpack.c.b16 %v4807, %v4806
  %v4841 = vpack.c.b16 %v4809, %v4808
  %v4843 = vsel %vm320, %v4810, 0
  %v4846 = vsel %vm320, %v4811, 0
  %v4849 = vsel %vm320, %v4812, 0
  %v4852 = vsel %vm320, %v4813, 0
  %v4855 = vsel %vm320, %v4814, 0
  %v4858 = vsel %vm320, %v4815, 0
  %v4861 = vsel %vm320, %v4816, 0
  %v4864 = vsel %vm320, %v4817, 0
  %v4867 = vsel %vm320, %v4818, 0
  %v4870 = vsel %vm320, %v4819, 0
  %v4873 = vsel %vm320, %v4820, 0
  %v4876 = vsel %vm320, %v4821, 0
  %v4879 = vsel %vm320, %v4822, 0
  %v4882 = vsel %vm320, %v4823, 0
  %v4885 = vsel %vm320, %v4824, 0
  %v4888 = vsel %vm320, %v4825, 0
  %v4891 = vsel %vm320, %v4826, 0
  %v4894 = vsel %vm320, %v4827, 0
  %v4897 = vsel %vm320, %v4828, 0
  %v4900 = vsel %vm320, %v4829, 0
  %v4903 = vsel %vm320, %v4830, 0
  %v4906 = vsel %vm320, %v4831, 0
  %v4909 = vsel %vm320, %v4832, 0
  %v4912 = vsel %vm320, %v4833, 0
  %v4915 = vsel %vm320, %v4834, 0
  %v4918 = vsel %vm320, %v4835, 0
  %v4921 = vsel %vm320, %v4836, 0
  %v4924 = vsel %vm320, %v4837, 0
  %v4927 = vsel %vm320, %v4838, 0
  %v4930 = vsel %vm320, %v4839, 0
  %v4933 = vsel %vm320, %v4840, 0
  %v4936 = vsel %vm320, %v4841, 0
  %4938 = vmatprep.subr.bf16.mxu0 0
  %4939 = vmatpush1.bf16.msra.mxu0 0
  %4940 = vmatprep.subr.bf16.mxu0 0
  %4941 = vmatpush1.bf16.msra.mxu0 0
  %4942 = vmatprep.subr.bf16.mxu0 0
  %4943 = vmatpush1.bf16.msra.mxu0 0
  %4944 = vmatprep.subr.bf16.mxu0 0
  %4945 = vmatpush1.bf16.msra.mxu0 0
  %4946 = vmatprep.subr.bf16.mxu0 0
  %4947 = vmatpush1.bf16.msra.mxu0 0
  %4948 = vmatprep.subr.bf16.mxu0 0
  %4949 = vmatpush1.bf16.msra.mxu0 0
  %4950 = vmatprep.subr.bf16.mxu0 0
  %4951 = vmatpush1.bf16.msra.mxu0 %v2979
  %4952 = vmatprep.subr.bf16.mxu0 0
  %4953 = vmatpush1.bf16.msra.mxu0 %v2879
  %4954 = vmatprep.subr.bf16.mxu0 0
  %4955 = vmatpush2.bf16.msra.mxu0 0
  %4956 = vmatprep.subr.bf16.mxu0 0
  %4957 = vmatpush2.bf16.msra.mxu0 0
  %4958 = vmatprep.subr.bf16.mxu0 0
  %4959 = vmatpush2.bf16.msra.mxu0 0
  %4960 = vmatprep.subr.bf16.mxu0 0
  %4961 = vmatpush2.bf16.msra.mxu0 0
  %4962 = vmatprep.subr.bf16.mxu0 0
  %4963 = vmatpush2.bf16.msra.mxu0 0
  %4964 = vmatprep.subr.bf16.mxu0 0
  %4965 = vmatpush2.bf16.msra.mxu0 0
  %4966 = vmatprep.subr.bf16.mxu0 0
  %4967 = vmatpush2.bf16.msra.mxu0 0
  %4968 = vmatprep.subr.bf16.mxu0 0
  %4969 = vmatpush2.bf16.msra.mxu0 0
  %4970 = vmatprep.mubr.bf16.mxu0 0
  %4971 = vmatmul.mubr.bf16.gmra.mxu0 %v4843
  %v4972 = vpop.f32.mrf.mxu0
  %v4973 = vadd.f32 0.0, %v4972
  %v4974 = vpop.f32.mrf.mxu0
  %v4975 = vpop.f32.mrf.mxu0
  %v4976 = vadd.f32 0.0, %v4975
  %v4977 = vpop.f32.mrf.mxu0
  %4978 = vmatprep.mubr.bf16.mxu0 0
  %4979 = vmatmul.mubr.bf16.gmra.mxu0 %v4846
  %v4980 = vpop.f32.mrf.mxu0
  %v4981 = vadd.f32 0.0, %v4980
  %v4982 = vpop.f32.mrf.mxu0
  %v4983 = vpop.f32.mrf.mxu0
  %v4984 = vadd.f32 0.0, %v4983
  %v4985 = vpop.f32.mrf.mxu0
  %4986 = vmatprep.mubr.bf16.mxu0 0
  %4987 = vmatmul.mubr.bf16.gmra.mxu0 %v4849
  %v4988 = vpop.f32.mrf.mxu0
  %v4989 = vadd.f32 0.0, %v4988
  %v4990 = vpop.f32.mrf.mxu0
  %v4991 = vpop.f32.mrf.mxu0
  %v4992 = vadd.f32 0.0, %v4991
  %v4993 = vpop.f32.mrf.mxu0
  %4994 = vmatprep.mubr.bf16.mxu0 0
  %4995 = vmatmul.mubr.bf16.gmra.mxu0 %v4852
  %v4996 = vpop.f32.mrf.mxu0
  %v4997 = vadd.f32 0.0, %v4996
  %v4998 = vpop.f32.mrf.mxu0
  %v4999 = vpop.f32.mrf.mxu0
  %v5000 = vadd.f32 0.0, %v4999
  %v5001 = vpop.f32.mrf.mxu0
  %5002 = vmatprep.mubr.bf16.mxu0 0
  %5003 = vmatmul.mubr.bf16.gmra.mxu0 %v4855
  %v5004 = vpop.f32.mrf.mxu0
  %v5005 = vadd.f32 0.0, %v5004
  %v5006 = vpop.f32.mrf.mxu0
  %v5007 = vpop.f32.mrf.mxu0
  %v5008 = vadd.f32 0.0, %v5007
  %v5009 = vpop.f32.mrf.mxu0
  %5010 = vmatprep.mubr.bf16.mxu0 0
  %5011 = vmatmul.mubr.bf16.gmra.mxu0 %v4858
  %v5012 = vpop.f32.mrf.mxu0
  %v5013 = vadd.f32 0.0, %v5012
  %v5014 = vpop.f32.mrf.mxu0
  %v5015 = vpop.f32.mrf.mxu0
  %v5016 = vadd.f32 0.0, %v5015
  %v5017 = vpop.f32.mrf.mxu0
  %5018 = vmatprep.mubr.bf16.mxu0 0
  %5019 = vmatmul.mubr.bf16.gmra.mxu0 %v4861
  %v5020 = vpop.f32.mrf.mxu0
  %v5021 = vadd.f32 0.0, %v5020
  %v5022 = vpop.f32.mrf.mxu0
  %v5023 = vpop.f32.mrf.mxu0
  %v5024 = vadd.f32 0.0, %v5023
  %v5025 = vpop.f32.mrf.mxu0
  %5026 = vmatprep.mubr.bf16.mxu0 0
  %5027 = vmatmul.mubr.bf16.gmra.mxu0 %v4864
  %v5028 = vpop.f32.mrf.mxu0
  %v5029 = vadd.f32 0.0, %v5028
  %v5030 = vpop.f32.mrf.mxu0
  %v5031 = vpop.f32.mrf.mxu0
  %v5032 = vadd.f32 0.0, %v5031
  %v5033 = vpop.f32.mrf.mxu0
  %5034 = vmatprep.mubr.bf16.mxu0 0
  %5035 = vmatmul.mubr.bf16.gmra.mxu0 %v4867
  %v5036 = vpop.f32.mrf.mxu0
  %v5037 = vadd.f32 0.0, %v5036
  %v5038 = vpop.f32.mrf.mxu0
  %v5039 = vpop.f32.mrf.mxu0
  %v5040 = vadd.f32 0.0, %v5039
  %v5041 = vpop.f32.mrf.mxu0
  %5042 = vmatprep.mubr.bf16.mxu0 0
  %5043 = vmatmul.mubr.bf16.gmra.mxu0 %v4870
  %v5044 = vpop.f32.mrf.mxu0
  %v5045 = vadd.f32 0.0, %v5044
  %v5046 = vpop.f32.mrf.mxu0
  %v5047 = vpop.f32.mrf.mxu0
  %v5048 = vadd.f32 0.0, %v5047
  %v5049 = vpop.f32.mrf.mxu0
  %5050 = vmatprep.mubr.bf16.mxu0 0
  %5051 = vmatmul.mubr.bf16.gmra.mxu0 %v4873
  %v5052 = vpop.f32.mrf.mxu0
  %v5053 = vadd.f32 0.0, %v5052
  %v5054 = vpop.f32.mrf.mxu0
  %v5055 = vpop.f32.mrf.mxu0
  %v5056 = vadd.f32 0.0, %v5055
  %v5057 = vpop.f32.mrf.mxu0
  %5058 = vmatprep.mubr.bf16.mxu0 0
  %5059 = vmatmul.mubr.bf16.gmra.mxu0 %v4876
  %v5060 = vpop.f32.mrf.mxu0
  %v5061 = vadd.f32 0.0, %v5060
  %v5062 = vpop.f32.mrf.mxu0
  %v5063 = vpop.f32.mrf.mxu0
  %v5064 = vadd.f32 0.0, %v5063
  %v5065 = vpop.f32.mrf.mxu0
  %5066 = vmatprep.mubr.bf16.mxu0 0
  %5067 = vmatmul.mubr.bf16.gmra.mxu0 %v4879
  %v5068 = vpop.f32.mrf.mxu0
  %v5069 = vadd.f32 0.0, %v5068
  %v5070 = vpop.f32.mrf.mxu0
  %v5071 = vpop.f32.mrf.mxu0
  %v5072 = vadd.f32 0.0, %v5071
  %v5073 = vpop.f32.mrf.mxu0
  %5074 = vmatprep.mubr.bf16.mxu0 0
  %5075 = vmatmul.mubr.bf16.gmra.mxu0 %v4882
  %v5076 = vpop.f32.mrf.mxu0
  %v5077 = vadd.f32 0.0, %v5076
  %v5078 = vpop.f32.mrf.mxu0
  %v5079 = vpop.f32.mrf.mxu0
  %v5080 = vadd.f32 0.0, %v5079
  %v5081 = vpop.f32.mrf.mxu0
  %5082 = vmatprep.mubr.bf16.mxu0 0
  %5083 = vmatmul.mubr.bf16.gmra.mxu0 %v4885
  %v5084 = vpop.f32.mrf.mxu0
  %v5085 = vadd.f32 0.0, %v5084
  %v5086 = vpop.f32.mrf.mxu0
  %v5087 = vpop.f32.mrf.mxu0
  %v5088 = vadd.f32 0.0, %v5087
  %v5089 = vpop.f32.mrf.mxu0
  %5090 = vmatprep.mubr.bf16.mxu0 0
  %5091 = vmatmul.mubr.bf16.gmra.mxu0 %v4888
  %v5092 = vpop.f32.mrf.mxu0
  %v5093 = vadd.f32 0.0, %v5092
  %v5094 = vpop.f32.mrf.mxu0
  %v5095 = vpop.f32.mrf.mxu0
  %v5096 = vadd.f32 0.0, %v5095
  %v5097 = vpop.f32.mrf.mxu0
  %5098 = vmatprep.mubr.bf16.mxu0 0
  %5099 = vmatmul.mubr.bf16.gmra.mxu0 %v4891
  %v5100 = vpop.f32.mrf.mxu0
  %v5101 = vadd.f32 0.0, %v5100
  %v5102 = vpop.f32.mrf.mxu0
  %v5103 = vpop.f32.mrf.mxu0
  %v5104 = vadd.f32 0.0, %v5103
  %v5105 = vpop.f32.mrf.mxu0
  %5106 = vmatprep.mubr.bf16.mxu0 0
  %5107 = vmatmul.mubr.bf16.gmra.mxu0 %v4894
  %v5108 = vpop.f32.mrf.mxu0
  %v5109 = vadd.f32 0.0, %v5108
  %v5110 = vpop.f32.mrf.mxu0
  %v5111 = vpop.f32.mrf.mxu0
  %v5112 = vadd.f32 0.0, %v5111
  %v5113 = vpop.f32.mrf.mxu0
  %5114 = vmatprep.mubr.bf16.mxu0 0
  %5115 = vmatmul.mubr.bf16.gmra.mxu0 %v4897
  %v5116 = vpop.f32.mrf.mxu0
  %v5117 = vadd.f32 0.0, %v5116
  %v5118 = vpop.f32.mrf.mxu0
  %v5119 = vpop.f32.mrf.mxu0
  %v5120 = vadd.f32 0.0, %v5119
  %v5121 = vpop.f32.mrf.mxu0
  %5122 = vmatprep.mubr.bf16.mxu0 0
  %5123 = vmatmul.mubr.bf16.gmra.mxu0 %v4900
  %v5124 = vpop.f32.mrf.mxu0
  %v5125 = vadd.f32 0.0, %v5124
  %v5126 = vpop.f32.mrf.mxu0
  %v5127 = vpop.f32.mrf.mxu0
  %v5128 = vadd.f32 0.0, %v5127
  %v5129 = vpop.f32.mrf.mxu0
  %5130 = vmatprep.mubr.bf16.mxu0 0
  %5131 = vmatmul.mubr.bf16.gmra.mxu0 %v4903
  %v5132 = vpop.f32.mrf.mxu0
  %v5133 = vadd.f32 0.0, %v5132
  %v5134 = vpop.f32.mrf.mxu0
  %v5135 = vpop.f32.mrf.mxu0
  %v5136 = vadd.f32 0.0, %v5135
  %v5137 = vpop.f32.mrf.mxu0
  %5138 = vmatprep.mubr.bf16.mxu0 0
  %5139 = vmatmul.mubr.bf16.gmra.mxu0 %v4906
  %v5140 = vpop.f32.mrf.mxu0
  %v5141 = vadd.f32 0.0, %v5140
  %v5142 = vpop.f32.mrf.mxu0
  %v5143 = vpop.f32.mrf.mxu0
  %v5144 = vadd.f32 0.0, %v5143
  %v5145 = vpop.f32.mrf.mxu0
  %5146 = vmatprep.mubr.bf16.mxu0 0
  %5147 = vmatmul.mubr.bf16.gmra.mxu0 %v4909
  %v5148 = vpop.f32.mrf.mxu0
  %v5149 = vadd.f32 0.0, %v5148
  %v5150 = vpop.f32.mrf.mxu0
  %v5151 = vpop.f32.mrf.mxu0
  %v5152 = vadd.f32 0.0, %v5151
  %v5153 = vpop.f32.mrf.mxu0
  %5154 = vmatprep.mubr.bf16.mxu0 0
  %5155 = vmatmul.mubr.bf16.gmra.mxu0 %v4912
  %v5156 = vpop.f32.mrf.mxu0
  %v5157 = vadd.f32 0.0, %v5156
  %v5158 = vpop.f32.mrf.mxu0
  %v5159 = vpop.f32.mrf.mxu0
  %v5160 = vadd.f32 0.0, %v5159
  %v5161 = vpop.f32.mrf.mxu0
  %5162 = vmatprep.mubr.bf16.mxu0 0
  %5163 = vmatmul.mubr.bf16.gmra.mxu0 %v4915
  %v5164 = vpop.f32.mrf.mxu0
  %v5165 = vadd.f32 0.0, %v5164
  %v5166 = vpop.f32.mrf.mxu0
  %v5167 = vpop.f32.mrf.mxu0
  %v5168 = vadd.f32 0.0, %v5167
  %v5169 = vpop.f32.mrf.mxu0
  %5170 = vmatprep.mubr.bf16.mxu0 0
  %5171 = vmatmul.mubr.bf16.gmra.mxu0 %v4918
  %v5172 = vpop.f32.mrf.mxu0
  %v5173 = vadd.f32 0.0, %v5172
  %v5174 = vpop.f32.mrf.mxu0
  %v5175 = vpop.f32.mrf.mxu0
  %v5176 = vadd.f32 0.0, %v5175
  %v5177 = vpop.f32.mrf.mxu0
  %5178 = vmatprep.mubr.bf16.mxu0 0
  %5179 = vmatmul.mubr.bf16.gmra.mxu0 %v4921
  %v5180 = vpop.f32.mrf.mxu0
  %v5181 = vadd.f32 0.0, %v5180
  %v5182 = vpop.f32.mrf.mxu0
  %v5183 = vpop.f32.mrf.mxu0
  %v5184 = vadd.f32 0.0, %v5183
  %v5185 = vpop.f32.mrf.mxu0
  %5186 = vmatprep.mubr.bf16.mxu0 0
  %5187 = vmatmul.mubr.bf16.gmra.mxu0 %v4924
  %v5188 = vpop.f32.mrf.mxu0
  %v5189 = vadd.f32 0.0, %v5188
  %v5190 = vpop.f32.mrf.mxu0
  %v5191 = vpop.f32.mrf.mxu0
  %v5192 = vadd.f32 0.0, %v5191
  %v5193 = vpop.f32.mrf.mxu0
  %5194 = vmatprep.mubr.bf16.mxu0 0
  %5195 = vmatmul.mubr.bf16.gmra.mxu0 %v4927
  %v5196 = vpop.f32.mrf.mxu0
  %v5197 = vadd.f32 0.0, %v5196
  %v5198 = vpop.f32.mrf.mxu0
  %v5199 = vpop.f32.mrf.mxu0
  %v5200 = vadd.f32 0.0, %v5199
  %v5201 = vpop.f32.mrf.mxu0
  %5202 = vmatprep.mubr.bf16.mxu0 0
  %5203 = vmatmul.mubr.bf16.gmra.mxu0 %v4930
  %v5204 = vpop.f32.mrf.mxu0
  %v5205 = vadd.f32 0.0, %v5204
  %v5206 = vpop.f32.mrf.mxu0
  %v5207 = vpop.f32.mrf.mxu0
  %v5208 = vadd.f32 0.0, %v5207
  %v5209 = vpop.f32.mrf.mxu0
  %5210 = vmatprep.mubr.bf16.mxu0 0
  %5211 = vmatmul.mubr.bf16.gmra.mxu0 %v4933
  %v5212 = vpop.f32.mrf.mxu0
  %v5213 = vadd.f32 0.0, %v5212
  %v5214 = vpop.f32.mrf.mxu0
  %v5215 = vpop.f32.mrf.mxu0
  %v5216 = vadd.f32 0.0, %v5215
  %v5217 = vpop.f32.mrf.mxu0
  %5218 = vmatprep.mubr.bf16.mxu0 0
  %5219 = vmatmul.mubr.bf16.gmra.mxu0 %v4936
  %v5220 = vpop.f32.mrf.mxu0
  %v5221 = vadd.f32 0.0, %v5220
  %v5222 = vpop.f32.mrf.mxu0
  %v5223 = vpop.f32.mrf.mxu0
  %v5224 = vadd.f32 0.0, %v5223
  %v5225 = vpop.f32.mrf.mxu0
  %5226 = vdwg.mxu0
  %v5227 = vadd.f32 %v4554, %v4973
  %v5228 = vadd.f32 %v4555, %v4976
  %v5229 = vadd.f32 %v4556, %v4981
  %v5230 = vadd.f32 %v4557, %v4984
  %v5231 = vadd.f32 %v4558, %v4989
  %v5232 = vadd.f32 %v4559, %v4992
  %v5233 = vadd.f32 %v4560, %v4997
  %v5234 = vadd.f32 %v4561, %v5000
  %v5235 = vadd.f32 %v4562, %v5005
  %v5236 = vadd.f32 %v4563, %v5008
  %v5237 = vadd.f32 %v4564, %v5013
  %v5238 = vadd.f32 %v4565, %v5016
  %v5239 = vadd.f32 %v4566, %v5021
  %v5240 = vadd.f32 %v4567, %v5024
  %v5241 = vadd.f32 %v4568, %v5029
  %v5242 = vadd.f32 %v4569, %v5032
  %v5243 = vadd.f32 %v4570, %v5037
  %v5244 = vadd.f32 %v4571, %v5040
  %v5245 = vadd.f32 %v4572, %v5045
  %v5246 = vadd.f32 %v4573, %v5048
  %v5247 = vadd.f32 %v4574, %v5053
  %v5248 = vadd.f32 %v4575, %v5056
  %v5249 = vadd.f32 %v4576, %v5061
  %v5250 = vadd.f32 %v4577, %v5064
  %v5251 = vadd.f32 %v4578, %v5069
  %v5252 = vadd.f32 %v4579, %v5072
  %v5253 = vadd.f32 %v4580, %v5077
  %v5254 = vadd.f32 %v4581, %v5080
  %v5255 = vadd.f32 %v4582, %v5085
  %v5256 = vadd.f32 %v4583, %v5088
  %v5257 = vadd.f32 %v4584, %v5093
  %v5258 = vadd.f32 %v4585, %v5096
  %v5259 = vadd.f32 %v4586, %v5101
  %v5260 = vadd.f32 %v4587, %v5104
  %v5261 = vadd.f32 %v4588, %v5109
  %v5262 = vadd.f32 %v4589, %v5112
  %v5263 = vadd.f32 %v4590, %v5117
  %v5264 = vadd.f32 %v4591, %v5120
  %v5265 = vadd.f32 %v4592, %v5125
  %v5266 = vadd.f32 %v4593, %v5128
  %v5267 = vadd.f32 %v4594, %v5133
  %v5268 = vadd.f32 %v4595, %v5136
  %v5269 = vadd.f32 %v4596, %v5141
  %v5270 = vadd.f32 %v4597, %v5144
  %v5271 = vadd.f32 %v4598, %v5149
  %v5272 = vadd.f32 %v4599, %v5152
  %v5273 = vadd.f32 %v4600, %v5157
  %v5274 = vadd.f32 %v4601, %v5160
  %v5275 = vadd.f32 %v4602, %v5165
  %v5276 = vadd.f32 %v4603, %v5168
  %v5277 = vadd.f32 %v4604, %v5173
  %v5278 = vadd.f32 %v4605, %v5176
  %v5279 = vadd.f32 %v4606, %v5181
  %v5280 = vadd.f32 %v4607, %v5184
  %v5281 = vadd.f32 %v4608, %v5189
  %v5282 = vadd.f32 %v4609, %v5192
  %v5283 = vadd.f32 %v4610, %v5197
  %v5284 = vadd.f32 %v4611, %v5200
  %v5285 = vadd.f32 %v4612, %v5205
  %v5286 = vadd.f32 %v4613, %v5208
  %v5287 = vadd.f32 %v4614, %v5213
  %v5288 = vadd.f32 %v4615, %v5216
  %v5289 = vadd.f32 %v4616, %v5221
  %v5290 = vadd.f32 %v4617, %v5224
  %v5291 = vmax.f32 %v3270, %v5227
  %v5292 = vmax.f32 %v3271, %v5228
  %v5293 = vmax.f32 %v3272, %v5229
  %v5294 = vmax.f32 %v3273, %v5230
  %v5295 = vmax.f32 %v3274, %v5231
  %v5296 = vmax.f32 %v3275, %v5232
  %v5297 = vmax.f32 %v3276, %v5233
  %v5298 = vmax.f32 %v3277, %v5234
  %v5299 = vmax.f32 %v3278, %v5235
  %v5300 = vmax.f32 %v3279, %v5236
  %v5301 = vmax.f32 %v3280, %v5237
  %v5302 = vmax.f32 %v3281, %v5238
  %v5303 = vmax.f32 %v3282, %v5239
  %v5304 = vmax.f32 %v3283, %v5240
  %v5305 = vmax.f32 %v3284, %v5241
  %v5306 = vmax.f32 %v3285, %v5242
  %v5307 = vmax.f32 %v3286, %v5243
  %v5308 = vmax.f32 %v3287, %v5244
  %v5309 = vmax.f32 %v3288, %v5245
  %v5310 = vmax.f32 %v3289, %v5246
  %v5311 = vmax.f32 %v3290, %v5247
  %v5312 = vmax.f32 %v3291, %v5248
  %v5313 = vmax.f32 %v3292, %v5249
  %v5314 = vmax.f32 %v3293, %v5250
  %v5315 = vmax.f32 %v3294, %v5251
  %v5316 = vmax.f32 %v3295, %v5252
  %v5317 = vmax.f32 %v3296, %v5253
  %v5318 = vmax.f32 %v3297, %v5254
  %v5319 = vmax.f32 %v3298, %v5255
  %v5320 = vmax.f32 %v3299, %v5256
  %v5321 = vmax.f32 %v3300, %v5257
  %v5322 = vmax.f32 %v3301, %v5258
  %v5323 = vmax.f32 %v3302, %v5259
  %v5324 = vmax.f32 %v3303, %v5260
  %v5325 = vmax.f32 %v3304, %v5261
  %v5326 = vmax.f32 %v3305, %v5262
  %v5327 = vmax.f32 %v3306, %v5263
  %v5328 = vmax.f32 %v3307, %v5264
  %v5329 = vmax.f32 %v3308, %v5265
  %v5330 = vmax.f32 %v3309, %v5266
  %v5331 = vmax.f32 %v3310, %v5267
  %v5332 = vmax.f32 %v3311, %v5268
  %v5333 = vmax.f32 %v3312, %v5269
  %v5334 = vmax.f32 %v3313, %v5270
  %v5335 = vmax.f32 %v3314, %v5271
  %v5336 = vmax.f32 %v3315, %v5272
  %v5337 = vmax.f32 %v3316, %v5273
  %v5338 = vmax.f32 %v3317, %v5274
  %v5339 = vmax.f32 %v3318, %v5275
  %v5340 = vmax.f32 %v3319, %v5276
  %v5341 = vmax.f32 %v3320, %v5277
  %v5342 = vmax.f32 %v3321, %v5278
  %v5343 = vmax.f32 %v3322, %v5279
  %v5344 = vmax.f32 %v3323, %v5280
  %v5345 = vmax.f32 %v3324, %v5281
  %v5346 = vmax.f32 %v3325, %v5282
  %v5347 = vmax.f32 %v3326, %v5283
  %v5348 = vmax.f32 %v3327, %v5284
  %v5349 = vmax.f32 %v3328, %v5285
  %v5350 = vmax.f32 %v3329, %v5286
  %v5351 = vmax.f32 %v3330, %v5287
  %v5352 = vmax.f32 %v3331, %v5288
  %v5353 = vmax.f32 %v3332, %v5289
  %v5354 = vmax.f32 %v3333, %v5290
  %5419 = vrot.lane.b32.xlu0 %v5291, 96
  %v5420 = vpop.permute.xlu0 %5419
  %5421 = vrot.lane.b32.xlu0 %v5292, 96
  %v5422 = vpop.permute.xlu0 %5421
  %5423 = vrot.lane.b32.xlu0 %v5293, 96
  %v5424 = vpop.permute.xlu0 %5423
  %5425 = vrot.lane.b32.xlu0 %v5294, 96
  %v5426 = vpop.permute.xlu0 %5425
  %5427 = vrot.lane.b32.xlu0 %v5295, 96
  %v5428 = vpop.permute.xlu0 %5427
  %5429 = vrot.lane.b32.xlu0 %v5296, 96
  %v5430 = vpop.permute.xlu0 %5429
  %5431 = vrot.lane.b32.xlu0 %v5297, 96
  %v5432 = vpop.permute.xlu0 %5431
  %5433 = vrot.lane.b32.xlu0 %v5298, 96
  %v5434 = vpop.permute.xlu0 %5433
  %5435 = vrot.lane.b32.xlu0 %v5299, 96
  %v5436 = vpop.permute.xlu0 %5435
  %5437 = vrot.lane.b32.xlu0 %v5300, 96
  %v5438 = vpop.permute.xlu0 %5437
  %5439 = vrot.lane.b32.xlu0 %v5301, 96
  %v5440 = vpop.permute.xlu0 %5439
  %5441 = vrot.lane.b32.xlu0 %v5302, 96
  %v5442 = vpop.permute.xlu0 %5441
  %5443 = vrot.lane.b32.xlu0 %v5303, 96
  %v5444 = vpop.permute.xlu0 %5443
  %5445 = vrot.lane.b32.xlu0 %v5304, 96
  %v5446 = vpop.permute.xlu0 %5445
  %5447 = vrot.lane.b32.xlu0 %v5305, 96
  %v5448 = vpop.permute.xlu0 %5447
  %5449 = vrot.lane.b32.xlu0 %v5306, 96
  %v5450 = vpop.permute.xlu0 %5449
  %5451 = vrot.lane.b32.xlu0 %v5307, 96
  %v5452 = vpop.permute.xlu0 %5451
  %5453 = vrot.lane.b32.xlu0 %v5308, 96
  %v5454 = vpop.permute.xlu0 %5453
  %5455 = vrot.lane.b32.xlu0 %v5309, 96
  %v5456 = vpop.permute.xlu0 %5455
  %5457 = vrot.lane.b32.xlu0 %v5310, 96
  %v5458 = vpop.permute.xlu0 %5457
  %5459 = vrot.lane.b32.xlu0 %v5311, 96
  %v5460 = vpop.permute.xlu0 %5459
  %5461 = vrot.lane.b32.xlu0 %v5312, 96
  %v5462 = vpop.permute.xlu0 %5461
  %5463 = vrot.lane.b32.xlu0 %v5313, 96
  %v5464 = vpop.permute.xlu0 %5463
  %5465 = vrot.lane.b32.xlu0 %v5314, 96
  %v5466 = vpop.permute.xlu0 %5465
  %5467 = vrot.lane.b32.xlu0 %v5315, 96
  %v5468 = vpop.permute.xlu0 %5467
  %5469 = vrot.lane.b32.xlu0 %v5316, 96
  %v5470 = vpop.permute.xlu0 %5469
  %5471 = vrot.lane.b32.xlu0 %v5317, 96
  %v5472 = vpop.permute.xlu0 %5471
  %5473 = vrot.lane.b32.xlu0 %v5318, 96
  %v5474 = vpop.permute.xlu0 %5473
  %5475 = vrot.lane.b32.xlu0 %v5319, 96
  %v5476 = vpop.permute.xlu0 %5475
  %5477 = vrot.lane.b32.xlu0 %v5320, 96
  %v5478 = vpop.permute.xlu0 %5477
  %5479 = vrot.lane.b32.xlu0 %v5321, 96
  %v5480 = vpop.permute.xlu0 %5479
  %5481 = vrot.lane.b32.xlu0 %v5322, 96
  %v5482 = vpop.permute.xlu0 %5481
  %5483 = vrot.lane.b32.xlu0 %v5323, 96
  %v5484 = vpop.permute.xlu0 %5483
  %5485 = vrot.lane.b32.xlu0 %v5324, 96
  %v5486 = vpop.permute.xlu0 %5485
  %5487 = vrot.lane.b32.xlu0 %v5325, 96
  %v5488 = vpop.permute.xlu0 %5487
  %5489 = vrot.lane.b32.xlu0 %v5326, 96
  %v5490 = vpop.permute.xlu0 %5489
  %5491 = vrot.lane.b32.xlu0 %v5327, 96
  %v5492 = vpop.permute.xlu0 %5491
  %5493 = vrot.lane.b32.xlu0 %v5328, 96
  %v5494 = vpop.permute.xlu0 %5493
  %5495 = vrot.lane.b32.xlu0 %v5329, 96
  %v5496 = vpop.permute.xlu0 %5495
  %5497 = vrot.lane.b32.xlu0 %v5330, 96
  %v5498 = vpop.permute.xlu0 %5497
  %5499 = vrot.lane.b32.xlu0 %v5331, 96
  %v5500 = vpop.permute.xlu0 %5499
  %5501 = vrot.lane.b32.xlu0 %v5332, 96
  %v5502 = vpop.permute.xlu0 %5501
  %5503 = vrot.lane.b32.xlu0 %v5333, 96
  %v5504 = vpop.permute.xlu0 %5503
  %5505 = vrot.lane.b32.xlu0 %v5334, 96
  %v5506 = vpop.permute.xlu0 %5505
  %5507 = vrot.lane.b32.xlu0 %v5335, 96
  %v5508 = vpop.permute.xlu0 %5507
  %5509 = vrot.lane.b32.xlu0 %v5336, 96
  %v5510 = vpop.permute.xlu0 %5509
  %5511 = vrot.lane.b32.xlu0 %v5337, 96
  %v5512 = vpop.permute.xlu0 %5511
  %5513 = vrot.lane.b32.xlu0 %v5338, 96
  %v5514 = vpop.permute.xlu0 %5513
  %5515 = vrot.lane.b32.xlu0 %v5339, 96
  %v5516 = vpop.permute.xlu0 %5515
  %5517 = vrot.lane.b32.xlu0 %v5340, 96
  %v5518 = vpop.permute.xlu0 %5517
  %5519 = vrot.lane.b32.xlu0 %v5341, 96
  %v5520 = vpop.permute.xlu0 %5519
  %5521 = vrot.lane.b32.xlu0 %v5342, 96
  %v5522 = vpop.permute.xlu0 %5521
  %5523 = vrot.lane.b32.xlu0 %v5343, 96
  %v5524 = vpop.permute.xlu0 %5523
  %5525 = vrot.lane.b32.xlu0 %v5344, 96
  %v5526 = vpop.permute.xlu0 %5525
  %5527 = vrot.lane.b32.xlu0 %v5345, 96
  %v5528 = vpop.permute.xlu0 %5527
  %5529 = vrot.lane.b32.xlu0 %v5346, 96
  %v5530 = vpop.permute.xlu0 %5529
  %5531 = vrot.lane.b32.xlu0 %v5347, 96
  %v5532 = vpop.permute.xlu0 %5531
  %5533 = vrot.lane.b32.xlu0 %v5348, 96
  %v5534 = vpop.permute.xlu0 %5533
  %5535 = vrot.lane.b32.xlu0 %v5349, 96
  %v5536 = vpop.permute.xlu0 %5535
  %5537 = vrot.lane.b32.xlu0 %v5350, 96
  %v5538 = vpop.permute.xlu0 %5537
  %5539 = vrot.lane.b32.xlu0 %v5351, 96
  %v5540 = vpop.permute.xlu0 %5539
  %5541 = vrot.lane.b32.xlu0 %v5352, 96
  %v5542 = vpop.permute.xlu0 %5541
  %5543 = vrot.lane.b32.xlu0 %v5353, 96
  %v5544 = vpop.permute.xlu0 %5543
  %5545 = vrot.lane.b32.xlu0 %v5354, 96
  %v5546 = vpop.permute.xlu0 %5545
  %v5611 = vmax.f32 %v5291, %v5420
  %v5612 = vmax.f32 %v5292, %v5422
  %v5613 = vmax.f32 %v5293, %v5424
  %v5614 = vmax.f32 %v5294, %v5426
  %v5615 = vmax.f32 %v5295, %v5428
  %v5616 = vmax.f32 %v5296, %v5430
  %v5617 = vmax.f32 %v5297, %v5432
  %v5618 = vmax.f32 %v5298, %v5434
  %v5619 = vmax.f32 %v5299, %v5436
  %v5620 = vmax.f32 %v5300, %v5438
  %v5621 = vmax.f32 %v5301, %v5440
  %v5622 = vmax.f32 %v5302, %v5442
  %v5623 = vmax.f32 %v5303, %v5444
  %v5624 = vmax.f32 %v5304, %v5446
  %v5625 = vmax.f32 %v5305, %v5448
  %v5626 = vmax.f32 %v5306, %v5450
  %v5627 = vmax.f32 %v5307, %v5452
  %v5628 = vmax.f32 %v5308, %v5454
  %v5629 = vmax.f32 %v5309, %v5456
  %v5630 = vmax.f32 %v5310, %v5458
  %v5631 = vmax.f32 %v5311, %v5460
  %v5632 = vmax.f32 %v5312, %v5462
  %v5633 = vmax.f32 %v5313, %v5464
  %v5634 = vmax.f32 %v5314, %v5466
  %v5635 = vmax.f32 %v5315, %v5468
  %v5636 = vmax.f32 %v5316, %v5470
  %v5637 = vmax.f32 %v5317, %v5472
  %v5638 = vmax.f32 %v5318, %v5474
  %v5639 = vmax.f32 %v5319, %v5476
  %v5640 = vmax.f32 %v5320, %v5478
  %v5641 = vmax.f32 %v5321, %v5480
  %v5642 = vmax.f32 %v5322, %v5482
  %v5643 = vmax.f32 %v5323, %v5484
  %v5644 = vmax.f32 %v5324, %v5486
  %v5645 = vmax.f32 %v5325, %v5488
  %v5646 = vmax.f32 %v5326, %v5490
  %v5647 = vmax.f32 %v5327, %v5492
  %v5648 = vmax.f32 %v5328, %v5494
  %v5649 = vmax.f32 %v5329, %v5496
  %v5650 = vmax.f32 %v5330, %v5498
  %v5651 = vmax.f32 %v5331, %v5500
  %v5652 = vmax.f32 %v5332, %v5502
  %v5653 = vmax.f32 %v5333, %v5504
  %v5654 = vmax.f32 %v5334, %v5506
  %v5655 = vmax.f32 %v5335, %v5508
  %v5656 = vmax.f32 %v5336, %v5510
  %v5657 = vmax.f32 %v5337, %v5512
  %v5658 = vmax.f32 %v5338, %v5514
  %v5659 = vmax.f32 %v5339, %v5516
  %v5660 = vmax.f32 %v5340, %v5518
  %v5661 = vmax.f32 %v5341, %v5520
  %v5662 = vmax.f32 %v5342, %v5522
  %v5663 = vmax.f32 %v5343, %v5524
  %v5664 = vmax.f32 %v5344, %v5526
  %v5665 = vmax.f32 %v5345, %v5528
  %v5666 = vmax.f32 %v5346, %v5530
  %v5667 = vmax.f32 %v5347, %v5532
  %v5668 = vmax.f32 %v5348, %v5534
  %v5669 = vmax.f32 %v5349, %v5536
  %v5670 = vmax.f32 %v5350, %v5538
  %v5671 = vmax.f32 %v5351, %v5540
  %v5672 = vmax.f32 %v5352, %v5542
  %v5673 = vmax.f32 %v5353, %v5544
  %v5674 = vmax.f32 %v5354, %v5546
  %v5675 = vld [vmem:[%s2] sm:$0x1]
  %v5677 = vlaneseq
  %v5678 = vshrl.u32 %v5677, 7
  %v5679 = vsub.s32 0, %v5678
  %v5680 = vrot.slane %v5675, %v5679
  %v5682 = vadd.f32 %v5611, %v5680
  %v5683 = vadd.f32 %v5612, %v5680
  %v5684 = vadd.f32 %v5613, %v5680
  %v5685 = vadd.f32 %v5614, %v5680
  %v5686 = vadd.f32 %v5615, %v5680
  %v5687 = vadd.f32 %v5616, %v5680
  %v5688 = vadd.f32 %v5617, %v5680
  %v5689 = vadd.f32 %v5618, %v5680
  %v5690 = vadd.f32 %v5619, %v5680
  %v5691 = vadd.f32 %v5620, %v5680
  %v5692 = vadd.f32 %v5621, %v5680
  %v5693 = vadd.f32 %v5622, %v5680
  %v5694 = vadd.f32 %v5623, %v5680
  %v5695 = vadd.f32 %v5624, %v5680
  %v5696 = vadd.f32 %v5625, %v5680
  %v5697 = vadd.f32 %v5626, %v5680
  %v5698 = vadd.f32 %v5627, %v5680
  %v5699 = vadd.f32 %v5628, %v5680
  %v5700 = vadd.f32 %v5629, %v5680
  %v5701 = vadd.f32 %v5630, %v5680
  %v5702 = vadd.f32 %v5631, %v5680
  %v5703 = vadd.f32 %v5632, %v5680
  %v5704 = vadd.f32 %v5633, %v5680
  %v5705 = vadd.f32 %v5634, %v5680
  %v5706 = vadd.f32 %v5635, %v5680
  %v5707 = vadd.f32 %v5636, %v5680
  %v5708 = vadd.f32 %v5637, %v5680
  %v5709 = vadd.f32 %v5638, %v5680
  %v5710 = vadd.f32 %v5639, %v5680
  %v5711 = vadd.f32 %v5640, %v5680
  %v5712 = vadd.f32 %v5641, %v5680
  %v5713 = vadd.f32 %v5642, %v5680
  %v5714 = vadd.f32 %v5643, %v5680
  %v5715 = vadd.f32 %v5644, %v5680
  %v5716 = vadd.f32 %v5645, %v5680
  %v5717 = vadd.f32 %v5646, %v5680
  %v5718 = vadd.f32 %v5647, %v5680
  %v5719 = vadd.f32 %v5648, %v5680
  %v5720 = vadd.f32 %v5649, %v5680
  %v5721 = vadd.f32 %v5650, %v5680
  %v5722 = vadd.f32 %v5651, %v5680
  %v5723 = vadd.f32 %v5652, %v5680
  %v5724 = vadd.f32 %v5653, %v5680
  %v5725 = vadd.f32 %v5654, %v5680
  %v5726 = vadd.f32 %v5655, %v5680
  %v5727 = vadd.f32 %v5656, %v5680
  %v5728 = vadd.f32 %v5657, %v5680
  %v5729 = vadd.f32 %v5658, %v5680
  %v5730 = vadd.f32 %v5659, %v5680
  %v5731 = vadd.f32 %v5660, %v5680
  %v5732 = vadd.f32 %v5661, %v5680
  %v5733 = vadd.f32 %v5662, %v5680
  %v5734 = vadd.f32 %v5663, %v5680
  %v5735 = vadd.f32 %v5664, %v5680
  %v5736 = vadd.f32 %v5665, %v5680
  %v5737 = vadd.f32 %v5666, %v5680
  %v5738 = vadd.f32 %v5667, %v5680
  %v5739 = vadd.f32 %v5668, %v5680
  %v5740 = vadd.f32 %v5669, %v5680
  %v5741 = vadd.f32 %v5670, %v5680
  %v5742 = vadd.f32 %v5671, %v5680
  %v5743 = vadd.f32 %v5672, %v5680
  %v5744 = vadd.f32 %v5673, %v5680
  %v5745 = vadd.f32 %v5674, %v5680
  %v5746 = vpack.c.bf16 %v5683, %v5682
  %v5747 = vpack.c.bf16 %v5685, %v5684
  %v5748 = vpack.c.bf16 %v5687, %v5686
  %v5749 = vpack.c.bf16 %v5689, %v5688
  %v5750 = vpack.c.bf16 %v5691, %v5690
  %v5751 = vpack.c.bf16 %v5693, %v5692
  %v5752 = vpack.c.bf16 %v5695, %v5694
  %v5753 = vpack.c.bf16 %v5697, %v5696
  %v5754 = vpack.c.bf16 %v5699, %v5698
  %v5755 = vpack.c.bf16 %v5701, %v5700
  %v5756 = vpack.c.bf16 %v5703, %v5702
  %v5757 = vpack.c.bf16 %v5705, %v5704
  %v5758 = vpack.c.bf16 %v5707, %v5706
  %v5759 = vpack.c.bf16 %v5709, %v5708
  %v5760 = vpack.c.bf16 %v5711, %v5710
  %v5761 = vpack.c.bf16 %v5713, %v5712
  %v5762 = vpack.c.bf16 %v5715, %v5714
  %v5763 = vpack.c.bf16 %v5717, %v5716
  %v5764 = vpack.c.bf16 %v5719, %v5718
  %v5765 = vpack.c.bf16 %v5721, %v5720
  %v5766 = vpack.c.bf16 %v5723, %v5722
  %v5767 = vpack.c.bf16 %v5725, %v5724
  %v5768 = vpack.c.bf16 %v5727, %v5726
  %v5769 = vpack.c.bf16 %v5729, %v5728
  %v5770 = vpack.c.bf16 %v5731, %v5730
  %v5771 = vpack.c.bf16 %v5733, %v5732
  %v5772 = vpack.c.bf16 %v5735, %v5734
  %v5773 = vpack.c.bf16 %v5737, %v5736
  %v5774 = vpack.c.bf16 %v5739, %v5738
  %v5775 = vpack.c.bf16 %v5741, %v5740
  %v5776 = vpack.c.bf16 %v5743, %v5742
  %v5777 = vpack.c.bf16 %v5745, %v5744
  %v5810 = vunpack.c.l.b16 %v5746
  %v5811 = vunpack.c.h.b16 %v5746
  %v5812 = vunpack.c.l.b16 %v5747
  %v5813 = vunpack.c.h.b16 %v5747
  %v5814 = vunpack.c.l.b16 %v5748
  %v5815 = vunpack.c.h.b16 %v5748
  %v5816 = vunpack.c.l.b16 %v5749
  %v5817 = vunpack.c.h.b16 %v5749
  %v5818 = vunpack.c.l.b16 %v5750
  %v5819 = vunpack.c.h.b16 %v5750
  %v5820 = vunpack.c.l.b16 %v5751
  %v5821 = vunpack.c.h.b16 %v5751
  %v5822 = vunpack.c.l.b16 %v5752
  %v5823 = vunpack.c.h.b16 %v5752
  %v5824 = vunpack.c.l.b16 %v5753
  %v5825 = vunpack.c.h.b16 %v5753
  %v5826 = vunpack.c.l.b16 %v5754
  %v5827 = vunpack.c.h.b16 %v5754
  %v5828 = vunpack.c.l.b16 %v5755
  %v5829 = vunpack.c.h.b16 %v5755
  %v5830 = vunpack.c.l.b16 %v5756
  %v5831 = vunpack.c.h.b16 %v5756
  %v5832 = vunpack.c.l.b16 %v5757
  %v5833 = vunpack.c.h.b16 %v5757
  %v5834 = vunpack.c.l.b16 %v5758
  %v5835 = vunpack.c.h.b16 %v5758
  %v5836 = vunpack.c.l.b16 %v5759
  %v5837 = vunpack.c.h.b16 %v5759
  %v5838 = vunpack.c.l.b16 %v5760
  %v5839 = vunpack.c.h.b16 %v5760
  %v5840 = vunpack.c.l.b16 %v5761
  %v5841 = vunpack.c.h.b16 %v5761
  %v5842 = vunpack.c.l.b16 %v5762
  %v5843 = vunpack.c.h.b16 %v5762
  %v5844 = vunpack.c.l.b16 %v5763
  %v5845 = vunpack.c.h.b16 %v5763
  %v5846 = vunpack.c.l.b16 %v5764
  %v5847 = vunpack.c.h.b16 %v5764
  %v5848 = vunpack.c.l.b16 %v5765
  %v5849 = vunpack.c.h.b16 %v5765
  %v5850 = vunpack.c.l.b16 %v5766
  %v5851 = vunpack.c.h.b16 %v5766
  %v5852 = vunpack.c.l.b16 %v5767
  %v5853 = vunpack.c.h.b16 %v5767
  %v5854 = vunpack.c.l.b16 %v5768
  %v5855 = vunpack.c.h.b16 %v5768
  %v5856 = vunpack.c.l.b16 %v5769
  %v5857 = vunpack.c.h.b16 %v5769
  %v5858 = vunpack.c.l.b16 %v5770
  %v5859 = vunpack.c.h.b16 %v5770
  %v5860 = vunpack.c.l.b16 %v5771
  %v5861 = vunpack.c.h.b16 %v5771
  %v5862 = vunpack.c.l.b16 %v5772
  %v5863 = vunpack.c.h.b16 %v5772
  %v5864 = vunpack.c.l.b16 %v5773
  %v5865 = vunpack.c.h.b16 %v5773
  %v5866 = vunpack.c.l.b16 %v5774
  %v5867 = vunpack.c.h.b16 %v5774
  %v5868 = vunpack.c.l.b16 %v5775
  %v5869 = vunpack.c.h.b16 %v5775
  %v5870 = vunpack.c.l.b16 %v5776
  %v5871 = vunpack.c.h.b16 %v5776
  %v5872 = vunpack.c.l.b16 %v5777
  %v5873 = vunpack.c.h.b16 %v5777
  %v5874 = vpack.c.b16 %v5810, %v5810
  %v5875 = vpack.c.b16 %v5811, %v5811
  %v5876 = vpack.c.b16 %v5812, %v5812
  %v5877 = vpack.c.b16 %v5813, %v5813
  %v5878 = vpack.c.b16 %v5814, %v5814
  %v5879 = vpack.c.b16 %v5815, %v5815
  %v5880 = vpack.c.b16 %v5816, %v5816
  %v5881 = vpack.c.b16 %v5817, %v5817
  %v5882 = vpack.c.b16 %v5818, %v5818
  %v5883 = vpack.c.b16 %v5819, %v5819
  %v5884 = vpack.c.b16 %v5820, %v5820
  %v5885 = vpack.c.b16 %v5821, %v5821
  %v5886 = vpack.c.b16 %v5822, %v5822
  %v5887 = vpack.c.b16 %v5823, %v5823
  %v5888 = vpack.c.b16 %v5824, %v5824
  %v5889 = vpack.c.b16 %v5825, %v5825
  %v5890 = vpack.c.b16 %v5826, %v5826
  %v5891 = vpack.c.b16 %v5827, %v5827
  %v5892 = vpack.c.b16 %v5828, %v5828
  %v5893 = vpack.c.b16 %v5829, %v5829
  %v5894 = vpack.c.b16 %v5830, %v5830
  %v5895 = vpack.c.b16 %v5831, %v5831
  %v5896 = vpack.c.b16 %v5832, %v5832
  %v5897 = vpack.c.b16 %v5833, %v5833
  %v5898 = vpack.c.b16 %v5834, %v5834
  %v5899 = vpack.c.b16 %v5835, %v5835
  %v5900 = vpack.c.b16 %v5836, %v5836
  %v5901 = vpack.c.b16 %v5837, %v5837
  %v5902 = vpack.c.b16 %v5838, %v5838
  %v5903 = vpack.c.b16 %v5839, %v5839
  %v5904 = vpack.c.b16 %v5840, %v5840
  %v5905 = vpack.c.b16 %v5841, %v5841
  %v5906 = vpack.c.b16 %v5842, %v5842
  %v5907 = vpack.c.b16 %v5843, %v5843
  %v5908 = vpack.c.b16 %v5844, %v5844
  %v5909 = vpack.c.b16 %v5845, %v5845
  %v5910 = vpack.c.b16 %v5846, %v5846
  %v5911 = vpack.c.b16 %v5847, %v5847
  %v5912 = vpack.c.b16 %v5848, %v5848
  %v5913 = vpack.c.b16 %v5849, %v5849
  %v5914 = vpack.c.b16 %v5850, %v5850
  %v5915 = vpack.c.b16 %v5851, %v5851
  %v5916 = vpack.c.b16 %v5852, %v5852
  %v5917 = vpack.c.b16 %v5853, %v5853
  %v5918 = vpack.c.b16 %v5854, %v5854
  %v5919 = vpack.c.b16 %v5855, %v5855
  %v5920 = vpack.c.b16 %v5856, %v5856
  %v5921 = vpack.c.b16 %v5857, %v5857
  %v5922 = vpack.c.b16 %v5858, %v5858
  %v5923 = vpack.c.b16 %v5859, %v5859
  %v5924 = vpack.c.b16 %v5860, %v5860
  %v5925 = vpack.c.b16 %v5861, %v5861
  %v5926 = vpack.c.b16 %v5862, %v5862
  %v5927 = vpack.c.b16 %v5863, %v5863
  %v5928 = vpack.c.b16 %v5864, %v5864
  %v5929 = vpack.c.b16 %v5865, %v5865
  %v5930 = vpack.c.b16 %v5866, %v5866
  %v5931 = vpack.c.b16 %v5867, %v5867
  %v5932 = vpack.c.b16 %v5868, %v5868
  %v5933 = vpack.c.b16 %v5869, %v5869
  %v5934 = vpack.c.b16 %v5870, %v5870
  %v5935 = vpack.c.b16 %v5871, %v5871
  %v5936 = vpack.c.b16 %v5872, %v5872
  %v5937 = vpack.c.b16 %v5873, %v5873
  %vm6002 = vcmask 257024
  %6003 = vst.msk [vmem:[%s3] sm:$0xf] %vm6002, %v5874
  %6004 = vst.msk [vmem:[%s3 + $0x4] sm:$0xf] %vm6002, %v5875
  %6005 = vst.msk [vmem:[%s3 + $0x8] sm:$0xf] %vm6002, %v5876
  %6006 = vst.msk [vmem:[%s3 + $0xc] sm:$0xf] %vm6002, %v5877
  %6007 = vst.msk [vmem:[%s3 + $0x10] sm:$0xf] %vm6002, %v5878
  %6008 = vst.msk [vmem:[%s3 + $0x14] sm:$0xf] %vm6002, %v5879
  %6009 = vst.msk [vmem:[%s3 + $0x18] sm:$0xf] %vm6002, %v5880
  %6010 = vst.msk [vmem:[%s3 + $0x1c] sm:$0xf] %vm6002, %v5881
  %6011 = vst.msk [vmem:[%s3 + $0x20] sm:$0xf] %vm6002, %v5882
  %6012 = vst.msk [vmem:[%s3 + $0x24] sm:$0xf] %vm6002, %v5883
  %6013 = vst.msk [vmem:[%s3 + $0x28] sm:$0xf] %vm6002, %v5884
  %6014 = vst.msk [vmem:[%s3 + $0x2c] sm:$0xf] %vm6002, %v5885
  %6015 = vst.msk [vmem:[%s3 + $0x30] sm:$0xf] %vm6002, %v5886
  %6016 = vst.msk [vmem:[%s3 + $0x34] sm:$0xf] %vm6002, %v5887
  %6017 = vst.msk [vmem:[%s3 + $0x38] sm:$0xf] %vm6002, %v5888
  %6018 = vst.msk [vmem:[%s3 + $0x3c] sm:$0xf] %vm6002, %v5889
  %6019 = vst.msk [vmem:[%s3 + $0x40] sm:$0xf] %vm6002, %v5890
  %6020 = vst.msk [vmem:[%s3 + $0x44] sm:$0xf] %vm6002, %v5891
  %6021 = vst.msk [vmem:[%s3 + $0x48] sm:$0xf] %vm6002, %v5892
  %6022 = vst.msk [vmem:[%s3 + $0x4c] sm:$0xf] %vm6002, %v5893
  %6023 = vst.msk [vmem:[%s3 + $0x50] sm:$0xf] %vm6002, %v5894
  %6024 = vst.msk [vmem:[%s3 + $0x54] sm:$0xf] %vm6002, %v5895
  %6025 = vst.msk [vmem:[%s3 + $0x58] sm:$0xf] %vm6002, %v5896
  %6026 = vst.msk [vmem:[%s3 + $0x5c] sm:$0xf] %vm6002, %v5897
  %6027 = vst.msk [vmem:[%s3 + $0x60] sm:$0xf] %vm6002, %v5898
  %6028 = vst.msk [vmem:[%s3 + $0x64] sm:$0xf] %vm6002, %v5899
  %6029 = vst.msk [vmem:[%s3 + $0x68] sm:$0xf] %vm6002, %v5900
  %6030 = vst.msk [vmem:[%s3 + $0x6c] sm:$0xf] %vm6002, %v5901
  %6031 = vst.msk [vmem:[%s3 + $0x70] sm:$0xf] %vm6002, %v5902
  %6032 = vst.msk [vmem:[%s3 + $0x74] sm:$0xf] %vm6002, %v5903
  %6033 = vst.msk [vmem:[%s3 + $0x78] sm:$0xf] %vm6002, %v5904
  %6034 = vst.msk [vmem:[%s3 + $0x7c] sm:$0xf] %vm6002, %v5905
  %6035 = vst.msk [vmem:[%s3 + $0x80] sm:$0xf] %vm6002, %v5906
  %6036 = vst.msk [vmem:[%s3 + $0x84] sm:$0xf] %vm6002, %v5907
  %6037 = vst.msk [vmem:[%s3 + $0x88] sm:$0xf] %vm6002, %v5908
  %6038 = vst.msk [vmem:[%s3 + $0x8c] sm:$0xf] %vm6002, %v5909
  %6039 = vst.msk [vmem:[%s3 + $0x90] sm:$0xf] %vm6002, %v5910
  %6040 = vst.msk [vmem:[%s3 + $0x94] sm:$0xf] %vm6002, %v5911
  %6041 = vst.msk [vmem:[%s3 + $0x98] sm:$0xf] %vm6002, %v5912
  %6042 = vst.msk [vmem:[%s3 + $0x9c] sm:$0xf] %vm6002, %v5913
  %6043 = vst.msk [vmem:[%s3 + $0xa0] sm:$0xf] %vm6002, %v5914
  %6044 = vst.msk [vmem:[%s3 + $0xa4] sm:$0xf] %vm6002, %v5915
  %6045 = vst.msk [vmem:[%s3 + $0xa8] sm:$0xf] %vm6002, %v5916
  %6046 = vst.msk [vmem:[%s3 + $0xac] sm:$0xf] %vm6002, %v5917
  %6047 = vst.msk [vmem:[%s3 + $0xb0] sm:$0xf] %vm6002, %v5918
  %6048 = vst.msk [vmem:[%s3 + $0xb4] sm:$0xf] %vm6002, %v5919
  %6049 = vst.msk [vmem:[%s3 + $0xb8] sm:$0xf] %vm6002, %v5920
  %6050 = vst.msk [vmem:[%s3 + $0xbc] sm:$0xf] %vm6002, %v5921
  %6051 = vst.msk [vmem:[%s3 + $0xc0] sm:$0xf] %vm6002, %v5922
  %6052 = vst.msk [vmem:[%s3 + $0xc4] sm:$0xf] %vm6002, %v5923
  %6053 = vst.msk [vmem:[%s3 + $0xc8] sm:$0xf] %vm6002, %v5924
  %6054 = vst.msk [vmem:[%s3 + $0xcc] sm:$0xf] %vm6002, %v5925
  %6055 = vst.msk [vmem:[%s3 + $0xd0] sm:$0xf] %vm6002, %v5926
  %6056 = vst.msk [vmem:[%s3 + $0xd4] sm:$0xf] %vm6002, %v5927
  %6057 = vst.msk [vmem:[%s3 + $0xd8] sm:$0xf] %vm6002, %v5928
  %6058 = vst.msk [vmem:[%s3 + $0xdc] sm:$0xf] %vm6002, %v5929
  %6059 = vst.msk [vmem:[%s3 + $0xe0] sm:$0xf] %vm6002, %v5930
  %6060 = vst.msk [vmem:[%s3 + $0xe4] sm:$0xf] %vm6002, %v5931
  %6061 = vst.msk [vmem:[%s3 + $0xe8] sm:$0xf] %vm6002, %v5932
  %6062 = vst.msk [vmem:[%s3 + $0xec] sm:$0xf] %vm6002, %v5933
  %6063 = vst.msk [vmem:[%s3 + $0xf0] sm:$0xf] %vm6002, %v5934
  %6064 = vst.msk [vmem:[%s3 + $0xf4] sm:$0xf] %vm6002, %v5935
  %6065 = vst.msk [vmem:[%s3 + $0xf8] sm:$0xf] %vm6002, %v5936
  %6066 = vst.msk [vmem:[%s3 + $0xfc] sm:$0xf] %vm6002, %v5937
  // Predicated region
  $region14: #{forward.3} parent=0 // pred_check
    _
  $region15: #{forward.3} parent=0 // pred_check_branch
    %6068 = sbr.rel (0) target = $region17
  $region16: #{forward.3} parent=0 // pred_region
    _
  $region17: #{forward.3} parent=0 // pred_fallthru
    _
  // Predicated region
  $region18: #{forward.3} parent=0 // pred_check
    _
  $region19: #{forward.3} parent=0 // pred_check_branch
    %6070 = sbr.rel (0) target = $region21
  $region20: #{forward.3} parent=0 // pred_region
    _
  $region21: #{forward.3} parent=0 // pred_fallthru
    _

// kernel: forward.4
$region0: #{forward.4}
  #allocation0 [shape = 'u32[]', space=smem, size = 0x4, offset = 0x4, fixed_abs, tag = 'smem constant byte address 0x4 - core index']
  #allocation1 [shape = 'u32[144,128]{1,0:T(1,128)}', space=vmem, size = 0x12000, scoped, tag = 'internal scratch']
  %s0 = inlined_call_operand.vmem [shape: bf16[2,2,80,192], index: 0, kind: input, shape index: {}]
  %s1 = inlined_call_operand.vmem [shape: bf16[5,192,64], index: 1, kind: input, shape index: {}]
  %s2 = inlined_call_operand.vmem [shape: f32[1,32], index: 2, kind: input, shape index: {}]
  %s3 = inlined_call_operand.vmem [shape: bf16[2,64,32], index: 3, kind: output, shape index: {}]
  %s4 = sld [smem:[#allocation0]]
  $region22: #{forward.4} parent=0
    _
  %s6 = ssub.s32 1, %s4
  %s7 = scalar_select 0, %s6, %s4
  // Predicated region
  $region2: #{forward.4} parent=0 // pred_check
    _
  $region3: #{forward.4} parent=0 // pred_check_branch
    %9 = sbr.rel (0) target = $region5
  $region4: #{forward.4} parent=0 // pred_region
    _
  $region5: #{forward.4} parent=0 // pred_fallthru
    _
  // Predicated region
  $region6: #{forward.4} parent=0 // pred_check
    _
  $region7: #{forward.4} parent=0 // pred_check_branch
    %11 = sbr.rel (0) target = $region9
  $region8: #{forward.4} parent=0 // pred_region
    _
  $region9: #{forward.4} parent=0 // pred_fallthru
    _
  // Predicated region
  $region10: #{forward.4} parent=0 // pred_check
    _
  $region11: #{forward.4} parent=0 // pred_check_branch
    %13 = sbr.rel (0) target = $region13
  $region12: #{forward.4} parent=0 // pred_region
    _
  $region13: #{forward.4} parent=0 // pred_fallthru
    _
  %v15 = vld [vmem:[%s0] sm:$0xff]
  %v16 = vld [vmem:[%s0 + $0x8] sm:$0xff]
  %v17 = vld [vmem:[%s0 + $0x10] sm:$0xff]
  %v18 = vld [vmem:[%s0 + $0x18] sm:$0xff]
  %v19 = vld [vmem:[%s0 + $0x20] sm:$0xff]
  %v20 = vld [vmem:[%s0 + $0x28] sm:$0xff]
  %v21 = vld [vmem:[%s0 + $0x30] sm:$0xff]
  %v22 = vld [vmem:[%s0 + $0x38] sm:$0xff]
  %v23 = vld [vmem:[%s0 + $0xa0] sm:$0xff]
  %v24 = vld [vmem:[%s0 + $0xa8] sm:$0xff]
  %v25 = vld [vmem:[%s0 + $0xb0] sm:$0xff]
  %v26 = vld [vmem:[%s0 + $0xb8] sm:$0xff]
  %v27 = vld [vmem:[%s0 + $0xc0] sm:$0xff]
  %v28 = vld [vmem:[%s0 + $0xc8] sm:$0xff]
  %v29 = vld [vmem:[%s0 + $0xd0] sm:$0xff]
  %v30 = vld [vmem:[%s0 + $0xd8] sm:$0xff]
  %v31 = vld [vmem:[%s1] sm:$0xf]
  %v32 = vld [vmem:[%s1 + $0x4] sm:$0xf]
  %v33 = vld [vmem:[%s1 + $0x8] sm:$0xf]
  %v34 = vld [vmem:[%s1 + $0xc] sm:$0xf]
  %v35 = vld [vmem:[%s1 + $0x10] sm:$0xf]
  %v36 = vld [vmem:[%s1 + $0x14] sm:$0xf]
  %v37 = vld [vmem:[%s1 + $0x18] sm:$0xf]
  %v38 = vld [vmem:[%s1 + $0x1c] sm:$0xf]
  %v39 = vld [vmem:[%s1 + $0x20] sm:$0xf]
  %v40 = vld [vmem:[%s1 + $0x24] sm:$0xf]
  %v41 = vld [vmem:[%s1 + $0x28] sm:$0xf]
  %v42 = vld [vmem:[%s1 + $0x2c] sm:$0xf]
  %v43 = vld [vmem:[%s1 + $0x30] sm:$0xf]
  %v44 = vld [vmem:[%s1 + $0x34] sm:$0xf]
  %v45 = vld [vmem:[%s1 + $0x38] sm:$0xf]
  %v46 = vld [vmem:[%s1 + $0x3c] sm:$0xf]
  %v47 = vld [vmem:[%s1 + $0x40] sm:$0xf]
  %v48 = vld [vmem:[%s1 + $0x44] sm:$0xf]
  %v49 = vld [vmem:[%s1 + $0x48] sm:$0xf]
  %v50 = vld [vmem:[%s1 + $0x4c] sm:$0xf]
  %v51 = vld [vmem:[%s1 + $0x50] sm:$0xf]
  %v52 = vld [vmem:[%s1 + $0x54] sm:$0xf]
  %v53 = vld [vmem:[%s1 + $0x58] sm:$0xf]
  %v54 = vld [vmem:[%s1 + $0x5c] sm:$0xf]
  %s55 = scalar_lea.vmem %s0, 80
  %v56 = vld [vmem:[%s55] sm:$0xff]
  %v57 = vld [vmem:[%s55 + $0x8] sm:$0xff]
  %v58 = vld [vmem:[%s55 + $0x10] sm:$0xff]
  %v59 = vld [vmem:[%s55 + $0x18] sm:$0xff]
  %v60 = vld [vmem:[%s55 + $0x20] sm:$0xff]
  %v61 = vld [vmem:[%s55 + $0x28] sm:$0xff]
  %v62 = vld [vmem:[%s55 + $0x30] sm:$0xff]
  %v63 = vld [vmem:[%s55 + $0x38] sm:$0xff]
  %v64 = vld [vmem:[%s55 + $0xa0] sm:$0xff]
  %v65 = vld [vmem:[%s55 + $0xa8] sm:$0xff]
  %v66 = vld [vmem:[%s55 + $0xb0] sm:$0xff]
  %v67 = vld [vmem:[%s55 + $0xb8] sm:$0xff]
  %v68 = vld [vmem:[%s55 + $0xc0] sm:$0xff]
  %v69 = vld [vmem:[%s55 + $0xc8] sm:$0xff]
  %v70 = vld [vmem:[%s55 + $0xd0] sm:$0xff]
  %v71 = vld [vmem:[%s55 + $0xd8] sm:$0xff]
  %s72 = scalar_lea.vmem %s1, 96
  %v73 = vld [vmem:[%s72] sm:$0xf]
  %v74 = vld [vmem:[%s72 + $0x4] sm:$0xf]
  %v75 = vld [vmem:[%s72 + $0x8] sm:$0xf]
  %v76 = vld [vmem:[%s72 + $0xc] sm:$0xf]
  %v77 = vld [vmem:[%s72 + $0x10] sm:$0xf]
  %v78 = vld [vmem:[%s72 + $0x14] sm:$0xf]
  %v79 = vld [vmem:[%s72 + $0x18] sm:$0xf]
  %v80 = vld [vmem:[%s72 + $0x1c] sm:$0xf]
  %v81 = vld [vmem:[%s72 + $0x20] sm:$0xf]
  %v82 = vld [vmem:[%s72 + $0x24] sm:$0xf]
  %v83 = vld [vmem:[%s72 + $0x28] sm:$0xf]
  %v84 = vld [vmem:[%s72 + $0x2c] sm:$0xf]
  %v85 = vld [vmem:[%s72 + $0x30] sm:$0xf]
  %v86 = vld [vmem:[%s72 + $0x34] sm:$0xf]
  %v87 = vld [vmem:[%s72 + $0x38] sm:$0xf]
  %v88 = vld [vmem:[%s72 + $0x3c] sm:$0xf]
  %v89 = vld [vmem:[%s72 + $0x40] sm:$0xf]
  %v90 = vld [vmem:[%s72 + $0x44] sm:$0xf]
  %v91 = vld [vmem:[%s72 + $0x48] sm:$0xf]
  %v92 = vld [vmem:[%s72 + $0x4c] sm:$0xf]
  %v93 = vld [vmem:[%s72 + $0x50] sm:$0xf]
  %v94 = vld [vmem:[%s72 + $0x54] sm:$0xf]
  %v95 = vld [vmem:[%s72 + $0x58] sm:$0xf]
  %v96 = vld [vmem:[%s72 + $0x5c] sm:$0xf]
  %v113 = vunpack.c.l.b16 %v56
  %v114 = vunpack.c.h.b16 %v56
  %v115 = vunpack.c.l.b16 %v57
  %v116 = vunpack.c.h.b16 %v57
  %v117 = vunpack.c.l.b16 %v58
  %v118 = vunpack.c.h.b16 %v58
  %v119 = vunpack.c.l.b16 %v59
  %v120 = vunpack.c.h.b16 %v59
  %v121 = vunpack.c.l.b16 %v60
  %v122 = vunpack.c.h.b16 %v60
  %v123 = vunpack.c.l.b16 %v61
  %v124 = vunpack.c.h.b16 %v61
  %v125 = vunpack.c.l.b16 %v62
  %v126 = vunpack.c.h.b16 %v62
  %v127 = vunpack.c.l.b16 %v63
  %v128 = vunpack.c.h.b16 %v63
  %v129 = vunpack.c.l.b16 %v64
  %v130 = vunpack.c.h.b16 %v64
  %v131 = vunpack.c.l.b16 %v65
  %v132 = vunpack.c.h.b16 %v65
  %v133 = vunpack.c.l.b16 %v66
  %v134 = vunpack.c.h.b16 %v66
  %v135 = vunpack.c.l.b16 %v67
  %v136 = vunpack.c.h.b16 %v67
  %v137 = vunpack.c.l.b16 %v68
  %v138 = vunpack.c.h.b16 %v68
  %v139 = vunpack.c.l.b16 %v69
  %v140 = vunpack.c.h.b16 %v69
  %v141 = vunpack.c.l.b16 %v70
  %v142 = vunpack.c.h.b16 %v70
  %v143 = vunpack.c.l.b16 %v71
  %v144 = vunpack.c.h.b16 %v71
  %v145 = vpack.c.b16 %v115, %v113
  %v146 = vpack.c.b16 %v116, %v114
  %v147 = vpack.c.b16 %v119, %v117
  %v148 = vpack.c.b16 %v120, %v118
  %v149 = vpack.c.b16 %v123, %v121
  %v150 = vpack.c.b16 %v124, %v122
  %v151 = vpack.c.b16 %v127, %v125
  %v152 = vpack.c.b16 %v128, %v126
  %v153 = vpack.c.b16 %v131, %v129
  %v154 = vpack.c.b16 %v132, %v130
  %v155 = vpack.c.b16 %v135, %v133
  %v156 = vpack.c.b16 %v136, %v134
  %v157 = vpack.c.b16 %v139, %v137
  %v158 = vpack.c.b16 %v140, %v138
  %v159 = vpack.c.b16 %v143, %v141
  %v160 = vpack.c.b16 %v144, %v142
  %v193 = vunpack.c.l.b16 %v73
  %v194 = vunpack.c.l.b16 %v74
  %v195 = vunpack.c.l.b16 %v75
  %v196 = vunpack.c.l.b16 %v76
  %v197 = vunpack.c.l.b16 %v77
  %v198 = vunpack.c.l.b16 %v78
  %v199 = vunpack.c.l.b16 %v79
  %v200 = vunpack.c.l.b16 %v80
  %v201 = vunpack.c.l.b16 %v81
  %v202 = vunpack.c.l.b16 %v82
  %v203 = vunpack.c.l.b16 %v83
  %v204 = vunpack.c.l.b16 %v84
  %v205 = vunpack.c.l.b16 %v85
  %v206 = vunpack.c.l.b16 %v86
  %v207 = vunpack.c.l.b16 %v87
  %v208 = vunpack.c.l.b16 %v88
  %v209 = vunpack.c.l.b16 %v89
  %v210 = vunpack.c.l.b16 %v90
  %v211 = vunpack.c.l.b16 %v91
  %v212 = vunpack.c.l.b16 %v92
  %v213 = vunpack.c.l.b16 %v93
  %v214 = vunpack.c.l.b16 %v94
  %v215 = vunpack.c.l.b16 %v95
  %v216 = vunpack.c.l.b16 %v96
  %v217 = vpack.c.b16 %v194, %v193
  %v218 = vpack.c.b16 %v196, %v195
  %v219 = vpack.c.b16 %v198, %v197
  %v220 = vpack.c.b16 %v200, %v199
  %v221 = vpack.c.b16 %v202, %v201
  %v222 = vpack.c.b16 %v204, %v203
  %v223 = vpack.c.b16 %v206, %v205
  %v224 = vpack.c.b16 %v208, %v207
  %v225 = vpack.c.b16 %v210, %v209
  %v226 = vpack.c.b16 %v212, %v211
  %v227 = vpack.c.b16 %v214, %v213
  %v228 = vpack.c.b16 %v216, %v215
  %vm241 = vcmask 523264
  %v243 = vsel %vm241, %v146, 0
  %v246 = vsel %vm241, %v148, 0
  %v249 = vsel %vm241, %v150, 0
  %v252 = vsel %vm241, %v152, 0
  %v255 = vsel %vm241, %v154, 0
  %v258 = vsel %vm241, %v156, 0
  %v261 = vsel %vm241, %v158, 0
  %v264 = vsel %vm241, %v160, 0
  %266 = vmatprep.subr.bf16.mxu0 0
  %267 = vmatpush1.bf16.msra.mxu0 %v224
  %268 = vmatprep.subr.bf16.mxu0 0
  %269 = vmatpush1.bf16.msra.mxu0 %v223
  %270 = vmatprep.subr.bf16.mxu0 0
  %271 = vmatpush1.bf16.msra.mxu0 %v222
  %272 = vmatprep.subr.bf16.mxu0 0
  %273 = vmatpush1.bf16.msra.mxu0 %v221
  %274 = vmatprep.subr.bf16.mxu0 0
  %275 = vmatpush1.bf16.msra.mxu0 %v220
  %276 = vmatprep.subr.bf16.mxu0 0
  %277 = vmatpush1.bf16.msra.mxu0 %v219
  %278 = vmatprep.subr.bf16.mxu0 0
  %279 = vmatpush1.bf16.msra.mxu0 %v218
  %280 = vmatprep.subr.bf16.mxu0 0
  %281 = vmatpush1.bf16.msra.mxu0 %v217
  %282 = vmatprep.subr.bf16.mxu0 0
  %283 = vmatpush2.bf16.msra.mxu0 0
  %284 = vmatprep.subr.bf16.mxu0 0
  %285 = vmatpush2.bf16.msra.mxu0 0
  %286 = vmatprep.subr.bf16.mxu0 0
  %287 = vmatpush2.bf16.msra.mxu0 0
  %288 = vmatprep.subr.bf16.mxu0 0
  %289 = vmatpush2.bf16.msra.mxu0 0
  %290 = vmatprep.subr.bf16.mxu0 0
  %291 = vmatpush2.bf16.msra.mxu0 %v228
  %292 = vmatprep.subr.bf16.mxu0 0
  %293 = vmatpush2.bf16.msra.mxu0 %v227
  %294 = vmatprep.subr.bf16.mxu0 0
  %295 = vmatpush2.bf16.msra.mxu0 %v226
  %296 = vmatprep.subr.bf16.mxu0 0
  %297 = vmatpush2.bf16.msra.mxu0 %v225
  %298 = vmatprep.mubr.bf16.mxu0 %v243
  %299 = vmatmul.mubr.bf16.gmra.mxu0 %v145
  %v300 = vpop.f32.mrf.mxu0
  %v301 = vadd.f32 0.0, %v300
  %v302 = vpop.f32.mrf.mxu0
  %v303 = vpop.f32.mrf.mxu0
  %v304 = vadd.f32 0.0, %v303
  %v305 = vpop.f32.mrf.mxu0
  %306 = vmatprep.mubr.bf16.mxu0 %v246
  %307 = vmatmul.mubr.bf16.gmra.mxu0 %v147
  %v308 = vpop.f32.mrf.mxu0
  %v309 = vadd.f32 0.0, %v308
  %v310 = vpop.f32.mrf.mxu0
  %v311 = vpop.f32.mrf.mxu0
  %v312 = vadd.f32 0.0, %v311
  %v313 = vpop.f32.mrf.mxu0
  %314 = vmatprep.mubr.bf16.mxu0 %v249
  %315 = vmatmul.mubr.bf16.gmra.mxu0 %v149
  %v316 = vpop.f32.mrf.mxu0
  %v317 = vadd.f32 0.0, %v316
  %v318 = vpop.f32.mrf.mxu0
  %v319 = vpop.f32.mrf.mxu0
  %v320 = vadd.f32 0.0, %v319
  %v321 = vpop.f32.mrf.mxu0
  %322 = vmatprep.mubr.bf16.mxu0 %v252
  %323 = vmatmul.mubr.bf16.gmra.mxu0 %v151
  %v324 = vpop.f32.mrf.mxu0
  %v325 = vadd.f32 0.0, %v324
  %v326 = vpop.f32.mrf.mxu0
  %v327 = vpop.f32.mrf.mxu0
  %v328 = vadd.f32 0.0, %v327
  %v329 = vpop.f32.mrf.mxu0
  %330 = vmatprep.mubr.bf16.mxu0 %v255
  %331 = vmatmul.mubr.bf16.gmra.mxu0 %v153
  %v332 = vpop.f32.mrf.mxu0
  %v333 = vadd.f32 0.0, %v332
  %v334 = vpop.f32.mrf.mxu0
  %v335 = vpop.f32.mrf.mxu0
  %v336 = vadd.f32 0.0, %v335
  %v337 = vpop.f32.mrf.mxu0
  %338 = vmatprep.mubr.bf16.mxu0 %v258
  %339 = vmatmul.mubr.bf16.gmra.mxu0 %v155
  %v340 = vpop.f32.mrf.mxu0
  %v341 = vadd.f32 0.0, %v340
  %v342 = vpop.f32.mrf.mxu0
  %v343 = vpop.f32.mrf.mxu0
  %v344 = vadd.f32 0.0, %v343
  %v345 = vpop.f32.mrf.mxu0
  %346 = vmatprep.mubr.bf16.mxu0 %v261
  %347 = vmatmul.mubr.bf16.gmra.mxu0 %v157
  %v348 = vpop.f32.mrf.mxu0
  %v349 = vadd.f32 0.0, %v348
  %v350 = vpop.f32.mrf.mxu0
  %v351 = vpop.f32.mrf.mxu0
  %v352 = vadd.f32 0.0, %v351
  %v353 = vpop.f32.mrf.mxu0
  %354 = vmatprep.mubr.bf16.mxu0 %v264
  %355 = vmatmul.mubr.bf16.gmra.mxu0 %v159
  %v356 = vpop.f32.mrf.mxu0
  %v357 = vadd.f32 0.0, %v356
  %v358 = vpop.f32.mrf.mxu0
  %v359 = vpop.f32.mrf.mxu0
  %v360 = vadd.f32 0.0, %v359
  %v361 = vpop.f32.mrf.mxu0
  %362 = vdwg.mxu0
  %v379 = vunpack.c.l.b16 %v15
  %v380 = vunpack.c.h.b16 %v15
  %v381 = vunpack.c.l.b16 %v16
  %v382 = vunpack.c.h.b16 %v16
  %v383 = vunpack.c.l.b16 %v17
  %v384 = vunpack.c.h.b16 %v17
  %v385 = vunpack.c.l.b16 %v18
  %v386 = vunpack.c.h.b16 %v18
  %v387 = vunpack.c.l.b16 %v19
  %v388 = vunpack.c.h.b16 %v19
  %v389 = vunpack.c.l.b16 %v20
  %v390 = vunpack.c.h.b16 %v20
  %v391 = vunpack.c.l.b16 %v21
  %v392 = vunpack.c.h.b16 %v21
  %v393 = vunpack.c.l.b16 %v22
  %v394 = vunpack.c.h.b16 %v22
  %v395 = vunpack.c.l.b16 %v23
  %v396 = vunpack.c.h.b16 %v23
  %v397 = vunpack.c.l.b16 %v24
  %v398 = vunpack.c.h.b16 %v24
  %v399 = vunpack.c.l.b16 %v25
  %v400 = vunpack.c.h.b16 %v25
  %v401 = vunpack.c.l.b16 %v26
  %v402 = vunpack.c.h.b16 %v26
  %v403 = vunpack.c.l.b16 %v27
  %v404 = vunpack.c.h.b16 %v27
  %v405 = vunpack.c.l.b16 %v28
  %v406 = vunpack.c.h.b16 %v28
  %v407 = vunpack.c.l.b16 %v29
  %v408 = vunpack.c.h.b16 %v29
  %v409 = vunpack.c.l.b16 %v30
  %v410 = vunpack.c.h.b16 %v30
  %v411 = vpack.c.b16 %v381, %v379
  %v412 = vpack.c.b16 %v382, %v380
  %v413 = vpack.c.b16 %v385, %v383
  %v414 = vpack.c.b16 %v386, %v384
  %v415 = vpack.c.b16 %v389, %v387
  %v416 = vpack.c.b16 %v390, %v388
  %v417 = vpack.c.b16 %v393, %v391
  %v418 = vpack.c.b16 %v394, %v392
  %v419 = vpack.c.b16 %v397, %v395
  %v420 = vpack.c.b16 %v398, %v396
  %v421 = vpack.c.b16 %v401, %v399
  %v422 = vpack.c.b16 %v402, %v400
  %v423 = vpack.c.b16 %v405, %v403
  %v424 = vpack.c.b16 %v406, %v404
  %v425 = vpack.c.b16 %v409, %v407
  %v426 = vpack.c.b16 %v410, %v408
  %v459 = vunpack.c.l.b16 %v31
  %v460 = vunpack.c.l.b16 %v32
  %v461 = vunpack.c.l.b16 %v33
  %v462 = vunpack.c.l.b16 %v34
  %v463 = vunpack.c.l.b16 %v35
  %v464 = vunpack.c.l.b16 %v36
  %v465 = vunpack.c.l.b16 %v37
  %v466 = vunpack.c.l.b16 %v38
  %v467 = vunpack.c.l.b16 %v39
  %v468 = vunpack.c.l.b16 %v40
  %v469 = vunpack.c.l.b16 %v41
  %v470 = vunpack.c.l.b16 %v42
  %v471 = vunpack.c.l.b16 %v43
  %v472 = vunpack.c.l.b16 %v44
  %v473 = vunpack.c.l.b16 %v45
  %v474 = vunpack.c.l.b16 %v46
  %v475 = vunpack.c.l.b16 %v47
  %v476 = vunpack.c.l.b16 %v48
  %v477 = vunpack.c.l.b16 %v49
  %v478 = vunpack.c.l.b16 %v50
  %v479 = vunpack.c.l.b16 %v51
  %v480 = vunpack.c.l.b16 %v52
  %v481 = vunpack.c.l.b16 %v53
  %v482 = vunpack.c.l.b16 %v54
  %v483 = vpack.c.b16 %v460, %v459
  %v484 = vpack.c.b16 %v462, %v461
  %v485 = vpack.c.b16 %v464, %v463
  %v486 = vpack.c.b16 %v466, %v465
  %v487 = vpack.c.b16 %v468, %v467
  %v488 = vpack.c.b16 %v470, %v469
  %v489 = vpack.c.b16 %v472, %v471
  %v490 = vpack.c.b16 %v474, %v473
  %v491 = vpack.c.b16 %v476, %v475
  %v492 = vpack.c.b16 %v478, %v477
  %v493 = vpack.c.b16 %v480, %v479
  %v494 = vpack.c.b16 %v482, %v481
  %v508 = vsel %vm241, %v412, 0
  %v511 = vsel %vm241, %v414, 0
  %v514 = vsel %vm241, %v416, 0
  %v517 = vsel %vm241, %v418, 0
  %v520 = vsel %vm241, %v420, 0
  %v523 = vsel %vm241, %v422, 0
  %v526 = vsel %vm241, %v424, 0
  %v529 = vsel %vm241, %v426, 0
  %531 = vmatprep.subr.bf16.mxu0 0
  %532 = vmatpush1.bf16.msra.mxu0 %v490
  %533 = vmatprep.subr.bf16.mxu0 0
  %534 = vmatpush1.bf16.msra.mxu0 %v489
  %535 = vmatprep.subr.bf16.mxu0 0
  %536 = vmatpush1.bf16.msra.mxu0 %v488
  %537 = vmatprep.subr.bf16.mxu0 0
  %538 = vmatpush1.bf16.msra.mxu0 %v487
  %539 = vmatprep.subr.bf16.mxu0 0
  %540 = vmatpush1.bf16.msra.mxu0 %v486
  %541 = vmatprep.subr.bf16.mxu0 0
  %542 = vmatpush1.bf16.msra.mxu0 %v485
  %543 = vmatprep.subr.bf16.mxu0 0
  %544 = vmatpush1.bf16.msra.mxu0 %v484
  %545 = vmatprep.subr.bf16.mxu0 0
  %546 = vmatpush1.bf16.msra.mxu0 %v483
  %547 = vmatprep.subr.bf16.mxu0 0
  %548 = vmatpush2.bf16.msra.mxu0 0
  %549 = vmatprep.subr.bf16.mxu0 0
  %550 = vmatpush2.bf16.msra.mxu0 0
  %551 = vmatprep.subr.bf16.mxu0 0
  %552 = vmatpush2.bf16.msra.mxu0 0
  %553 = vmatprep.subr.bf16.mxu0 0
  %554 = vmatpush2.bf16.msra.mxu0 0
  %555 = vmatprep.subr.bf16.mxu0 0
  %556 = vmatpush2.bf16.msra.mxu0 %v494
  %557 = vmatprep.subr.bf16.mxu0 0
  %558 = vmatpush2.bf16.msra.mxu0 %v493
  %559 = vmatprep.subr.bf16.mxu0 0
  %560 = vmatpush2.bf16.msra.mxu0 %v492
  %561 = vmatprep.subr.bf16.mxu0 0
  %562 = vmatpush2.bf16.msra.mxu0 %v491
  %563 = vmatprep.mubr.bf16.mxu0 %v508
  %564 = vmatmul.mubr.bf16.gmra.mxu0 %v411
  %v565 = vpop.f32.mrf.mxu0
  %v566 = vadd.f32 %v301, %v565
  %v567 = vpop.f32.mrf.mxu0
  %v568 = vpop.f32.mrf.mxu0
  %v569 = vadd.f32 %v304, %v568
  %v570 = vpop.f32.mrf.mxu0
  %571 = vmatprep.mubr.bf16.mxu0 %v511
  %572 = vmatmul.mubr.bf16.gmra.mxu0 %v413
  %v573 = vpop.f32.mrf.mxu0
  %v574 = vadd.f32 %v309, %v573
  %v575 = vpop.f32.mrf.mxu0
  %v576 = vpop.f32.mrf.mxu0
  %v577 = vadd.f32 %v312, %v576
  %v578 = vpop.f32.mrf.mxu0
  %579 = vmatprep.mubr.bf16.mxu0 %v514
  %580 = vmatmul.mubr.bf16.gmra.mxu0 %v415
  %v581 = vpop.f32.mrf.mxu0
  %v582 = vadd.f32 %v317, %v581
  %v583 = vpop.f32.mrf.mxu0
  %v584 = vpop.f32.mrf.mxu0
  %v585 = vadd.f32 %v320, %v584
  %v586 = vpop.f32.mrf.mxu0
  %587 = vmatprep.mubr.bf16.mxu0 %v517
  %588 = vmatmul.mubr.bf16.gmra.mxu0 %v417
  %v589 = vpop.f32.mrf.mxu0
  %v590 = vadd.f32 %v325, %v589
  %v591 = vpop.f32.mrf.mxu0
  %v592 = vpop.f32.mrf.mxu0
  %v593 = vadd.f32 %v328, %v592
  %v594 = vpop.f32.mrf.mxu0
  %595 = vmatprep.mubr.bf16.mxu0 %v520
  %596 = vmatmul.mubr.bf16.gmra.mxu0 %v419
  %v597 = vpop.f32.mrf.mxu0
  %v598 = vadd.f32 %v333, %v597
  %v599 = vpop.f32.mrf.mxu0
  %v600 = vpop.f32.mrf.mxu0
  %v601 = vadd.f32 %v336, %v600
  %v602 = vpop.f32.mrf.mxu0
  %603 = vmatprep.mubr.bf16.mxu0 %v523
  %604 = vmatmul.mubr.bf16.gmra.mxu0 %v421
  %v605 = vpop.f32.mrf.mxu0
  %v606 = vadd.f32 %v341, %v605
  %v607 = vpop.f32.mrf.mxu0
  %v608 = vpop.f32.mrf.mxu0
  %v609 = vadd.f32 %v344, %v608
  %v610 = vpop.f32.mrf.mxu0
  %611 = vmatprep.mubr.bf16.mxu0 %v526
  %612 = vmatmul.mubr.bf16.gmra.mxu0 %v423
  %v613 = vpop.f32.mrf.mxu0
  %v614 = vadd.f32 %v349, %v613
  %v615 = vpop.f32.mrf.mxu0
  %v616 = vpop.f32.mrf.mxu0
  %v617 = vadd.f32 %v352, %v616
  %v618 = vpop.f32.mrf.mxu0
  %619 = vmatprep.mubr.bf16.mxu0 %v529
  %620 = vmatmul.mubr.bf16.gmra.mxu0 %v425
  %v621 = vpop.f32.mrf.mxu0
  %v622 = vadd.f32 %v357, %v621
  %v623 = vpop.f32.mrf.mxu0
  %v624 = vpop.f32.mrf.mxu0
  %v625 = vadd.f32 %v360, %v624
  %v626 = vpop.f32.mrf.mxu0
  %627 = vdwg.mxu0
  %v628 = vld [vmem:[%s0 + $0x8] sm:$0xff]
  %v629 = vld [vmem:[%s0 + $0x10] sm:$0xff]
  %v630 = vld [vmem:[%s0 + $0x18] sm:$0xff]
  %v631 = vld [vmem:[%s0 + $0x20] sm:$0xff]
  %v632 = vld [vmem:[%s0 + $0x28] sm:$0xff]
  %v633 = vld [vmem:[%s0 + $0x30] sm:$0xff]
  %v634 = vld [vmem:[%s0 + $0x38] sm:$0xff]
  %v635 = vld [vmem:[%s0 + $0x40] sm:$0xff]
  %v636 = vld [vmem:[%s0 + $0xa8] sm:$0xff]
  %v637 = vld [vmem:[%s0 + $0xb0] sm:$0xff]
  %v638 = vld [vmem:[%s0 + $0xb8] sm:$0xff]
  %v639 = vld [vmem:[%s0 + $0xc0] sm:$0xff]
  %v640 = vld [vmem:[%s0 + $0xc8] sm:$0xff]
  %v641 = vld [vmem:[%s0 + $0xd0] sm:$0xff]
  %v642 = vld [vmem:[%s0 + $0xd8] sm:$0xff]
  %v643 = vld [vmem:[%s0 + $0xe0] sm:$0xff]
  %s644 = scalar_lea.vmem %s1, 192
  %v645 = vld [vmem:[%s644] sm:$0xf]
  %v646 = vld [vmem:[%s644 + $0x4] sm:$0xf]
  %v647 = vld [vmem:[%s644 + $0x8] sm:$0xf]
  %v648 = vld [vmem:[%s644 + $0xc] sm:$0xf]
  %v649 = vld [vmem:[%s644 + $0x10] sm:$0xf]
  %v650 = vld [vmem:[%s644 + $0x14] sm:$0xf]
  %v651 = vld [vmem:[%s644 + $0x18] sm:$0xf]
  %v652 = vld [vmem:[%s644 + $0x1c] sm:$0xf]
  %v653 = vld [vmem:[%s644 + $0x20] sm:$0xf]
  %v654 = vld [vmem:[%s644 + $0x24] sm:$0xf]
  %v655 = vld [vmem:[%s644 + $0x28] sm:$0xf]
  %v656 = vld [vmem:[%s644 + $0x2c] sm:$0xf]
  %v657 = vld [vmem:[%s644 + $0x30] sm:$0xf]
  %v658 = vld [vmem:[%s644 + $0x34] sm:$0xf]
  %v659 = vld [vmem:[%s644 + $0x38] sm:$0xf]
  %v660 = vld [vmem:[%s644 + $0x3c] sm:$0xf]
  %v661 = vld [vmem:[%s644 + $0x40] sm:$0xf]
  %v662 = vld [vmem:[%s644 + $0x44] sm:$0xf]
  %v663 = vld [vmem:[%s644 + $0x48] sm:$0xf]
  %v664 = vld [vmem:[%s644 + $0x4c] sm:$0xf]
  %v665 = vld [vmem:[%s644 + $0x50] sm:$0xf]
  %v666 = vld [vmem:[%s644 + $0x54] sm:$0xf]
  %v667 = vld [vmem:[%s644 + $0x58] sm:$0xf]
  %v668 = vld [vmem:[%s644 + $0x5c] sm:$0xf]
  %v685 = vunpack.c.l.b16 %v628
  %v686 = vunpack.c.h.b16 %v628
  %v687 = vunpack.c.l.b16 %v629
  %v688 = vunpack.c.h.b16 %v629
  %v689 = vunpack.c.l.b16 %v630
  %v690 = vunpack.c.h.b16 %v630
  %v691 = vunpack.c.l.b16 %v631
  %v692 = vunpack.c.h.b16 %v631
  %v693 = vunpack.c.l.b16 %v632
  %v694 = vunpack.c.h.b16 %v632
  %v695 = vunpack.c.l.b16 %v633
  %v696 = vunpack.c.h.b16 %v633
  %v697 = vunpack.c.l.b16 %v634
  %v698 = vunpack.c.h.b16 %v634
  %v699 = vunpack.c.l.b16 %v635
  %v700 = vunpack.c.h.b16 %v635
  %v701 = vunpack.c.l.b16 %v636
  %v702 = vunpack.c.h.b16 %v636
  %v703 = vunpack.c.l.b16 %v637
  %v704 = vunpack.c.h.b16 %v637
  %v705 = vunpack.c.l.b16 %v638
  %v706 = vunpack.c.h.b16 %v638
  %v707 = vunpack.c.l.b16 %v639
  %v708 = vunpack.c.h.b16 %v639
  %v709 = vunpack.c.l.b16 %v640
  %v710 = vunpack.c.h.b16 %v640
  %v711 = vunpack.c.l.b16 %v641
  %v712 = vunpack.c.h.b16 %v641
  %v713 = vunpack.c.l.b16 %v642
  %v714 = vunpack.c.h.b16 %v642
  %v715 = vunpack.c.l.b16 %v643
  %v716 = vunpack.c.h.b16 %v643
  %v717 = vpack.c.b16 %v687, %v685
  %v718 = vpack.c.b16 %v688, %v686
  %v719 = vpack.c.b16 %v691, %v689
  %v720 = vpack.c.b16 %v692, %v690
  %v721 = vpack.c.b16 %v695, %v693
  %v722 = vpack.c.b16 %v696, %v694
  %v723 = vpack.c.b16 %v699, %v697
  %v724 = vpack.c.b16 %v700, %v698
  %v725 = vpack.c.b16 %v703, %v701
  %v726 = vpack.c.b16 %v704, %v702
  %v727 = vpack.c.b16 %v707, %v705
  %v728 = vpack.c.b16 %v708, %v706
  %v729 = vpack.c.b16 %v711, %v709
  %v730 = vpack.c.b16 %v712, %v710
  %v731 = vpack.c.b16 %v715, %v713
  %v732 = vpack.c.b16 %v716, %v714
  %v765 = vunpack.c.l.b16 %v645
  %v766 = vunpack.c.l.b16 %v646
  %v767 = vunpack.c.l.b16 %v647
  %v768 = vunpack.c.l.b16 %v648
  %v769 = vunpack.c.l.b16 %v649
  %v770 = vunpack.c.l.b16 %v650
  %v771 = vunpack.c.l.b16 %v651
  %v772 = vunpack.c.l.b16 %v652
  %v773 = vunpack.c.l.b16 %v653
  %v774 = vunpack.c.l.b16 %v654
  %v775 = vunpack.c.l.b16 %v655
  %v776 = vunpack.c.l.b16 %v656
  %v777 = vunpack.c.l.b16 %v657
  %v778 = vunpack.c.l.b16 %v658
  %v779 = vunpack.c.l.b16 %v659
  %v780 = vunpack.c.l.b16 %v660
  %v781 = vunpack.c.l.b16 %v661
  %v782 = vunpack.c.l.b16 %v662
  %v783 = vunpack.c.l.b16 %v663
  %v784 = vunpack.c.l.b16 %v664
  %v785 = vunpack.c.l.b16 %v665
  %v786 = vunpack.c.l.b16 %v666
  %v787 = vunpack.c.l.b16 %v667
  %v788 = vunpack.c.l.b16 %v668
  %v789 = vpack.c.b16 %v766, %v765
  %v790 = vpack.c.b16 %v768, %v767
  %v791 = vpack.c.b16 %v770, %v769
  %v792 = vpack.c.b16 %v772, %v771
  %v793 = vpack.c.b16 %v774, %v773
  %v794 = vpack.c.b16 %v776, %v775
  %v795 = vpack.c.b16 %v778, %v777
  %v796 = vpack.c.b16 %v780, %v779
  %v797 = vpack.c.b16 %v782, %v781
  %v798 = vpack.c.b16 %v784, %v783
  %v799 = vpack.c.b16 %v786, %v785
  %v800 = vpack.c.b16 %v788, %v787
  %v814 = vsel %vm241, %v718, 0
  %v817 = vsel %vm241, %v720, 0
  %v820 = vsel %vm241, %v722, 0
  %v823 = vsel %vm241, %v724, 0
  %v826 = vsel %vm241, %v726, 0
  %v829 = vsel %vm241, %v728, 0
  %v832 = vsel %vm241, %v730, 0
  %v835 = vsel %vm241, %v732, 0
  %837 = vmatprep.subr.bf16.mxu0 0
  %838 = vmatpush1.bf16.msra.mxu0 %v796
  %839 = vmatprep.subr.bf16.mxu0 0
  %840 = vmatpush1.bf16.msra.mxu0 %v795
  %841 = vmatprep.subr.bf16.mxu0 0
  %842 = vmatpush1.bf16.msra.mxu0 %v794
  %843 = vmatprep.subr.bf16.mxu0 0
  %844 = vmatpush1.bf16.msra.mxu0 %v793
  %845 = vmatprep.subr.bf16.mxu0 0
  %846 = vmatpush1.bf16.msra.mxu0 %v792
  %847 = vmatprep.subr.bf16.mxu0 0
  %848 = vmatpush1.bf16.msra.mxu0 %v791
  %849 = vmatprep.subr.bf16.mxu0 0
  %850 = vmatpush1.bf16.msra.mxu0 %v790
  %851 = vmatprep.subr.bf16.mxu0 0
  %852 = vmatpush1.bf16.msra.mxu0 %v789
  %853 = vmatprep.subr.bf16.mxu0 0
  %854 = vmatpush2.bf16.msra.mxu0 0
  %855 = vmatprep.subr.bf16.mxu0 0
  %856 = vmatpush2.bf16.msra.mxu0 0
  %857 = vmatprep.subr.bf16.mxu0 0
  %858 = vmatpush2.bf16.msra.mxu0 0
  %859 = vmatprep.subr.bf16.mxu0 0
  %860 = vmatpush2.bf16.msra.mxu0 0
  %861 = vmatprep.subr.bf16.mxu0 0
  %862 = vmatpush2.bf16.msra.mxu0 %v800
  %863 = vmatprep.subr.bf16.mxu0 0
  %864 = vmatpush2.bf16.msra.mxu0 %v799
  %865 = vmatprep.subr.bf16.mxu0 0
  %866 = vmatpush2.bf16.msra.mxu0 %v798
  %867 = vmatprep.subr.bf16.mxu0 0
  %868 = vmatpush2.bf16.msra.mxu0 %v797
  %869 = vmatprep.mubr.bf16.mxu0 %v814
  %870 = vmatmul.mubr.bf16.gmra.mxu0 %v717
  %v871 = vpop.f32.mrf.mxu0
  %v872 = vadd.f32 0.0, %v871
  %v873 = vpop.f32.mrf.mxu0
  %v874 = vpop.f32.mrf.mxu0
  %v875 = vadd.f32 0.0, %v874
  %v876 = vpop.f32.mrf.mxu0
  %877 = vmatprep.mubr.bf16.mxu0 %v817
  %878 = vmatmul.mubr.bf16.gmra.mxu0 %v719
  %v879 = vpop.f32.mrf.mxu0
  %v880 = vadd.f32 0.0, %v879
  %v881 = vpop.f32.mrf.mxu0
  %v882 = vpop.f32.mrf.mxu0
  %v883 = vadd.f32 0.0, %v882
  %v884 = vpop.f32.mrf.mxu0
  %885 = vmatprep.mubr.bf16.mxu0 %v820
  %886 = vmatmul.mubr.bf16.gmra.mxu0 %v721
  %v887 = vpop.f32.mrf.mxu0
  %v888 = vadd.f32 0.0, %v887
  %v889 = vpop.f32.mrf.mxu0
  %v890 = vpop.f32.mrf.mxu0
  %v891 = vadd.f32 0.0, %v890
  %v892 = vpop.f32.mrf.mxu0
  %893 = vmatprep.mubr.bf16.mxu0 %v823
  %894 = vmatmul.mubr.bf16.gmra.mxu0 %v723
  %v895 = vpop.f32.mrf.mxu0
  %v896 = vadd.f32 0.0, %v895
  %v897 = vpop.f32.mrf.mxu0
  %v898 = vpop.f32.mrf.mxu0
  %v899 = vadd.f32 0.0, %v898
  %v900 = vpop.f32.mrf.mxu0
  %901 = vmatprep.mubr.bf16.mxu0 %v826
  %902 = vmatmul.mubr.bf16.gmra.mxu0 %v725
  %v903 = vpop.f32.mrf.mxu0
  %v904 = vadd.f32 0.0, %v903
  %v905 = vpop.f32.mrf.mxu0
  %v906 = vpop.f32.mrf.mxu0
  %v907 = vadd.f32 0.0, %v906
  %v908 = vpop.f32.mrf.mxu0
  %909 = vmatprep.mubr.bf16.mxu0 %v829
  %910 = vmatmul.mubr.bf16.gmra.mxu0 %v727
  %v911 = vpop.f32.mrf.mxu0
  %v912 = vadd.f32 0.0, %v911
  %v913 = vpop.f32.mrf.mxu0
  %v914 = vpop.f32.mrf.mxu0
  %v915 = vadd.f32 0.0, %v914
  %v916 = vpop.f32.mrf.mxu0
  %917 = vmatprep.mubr.bf16.mxu0 %v832
  %918 = vmatmul.mubr.bf16.gmra.mxu0 %v729
  %v919 = vpop.f32.mrf.mxu0
  %v920 = vadd.f32 0.0, %v919
  %v921 = vpop.f32.mrf.mxu0
  %v922 = vpop.f32.mrf.mxu0
  %v923 = vadd.f32 0.0, %v922
  %v924 = vpop.f32.mrf.mxu0
  %925 = vmatprep.mubr.bf16.mxu0 %v835
  %926 = vmatmul.mubr.bf16.gmra.mxu0 %v731
  %v927 = vpop.f32.mrf.mxu0
  %v928 = vadd.f32 0.0, %v927
  %v929 = vpop.f32.mrf.mxu0
  %v930 = vpop.f32.mrf.mxu0
  %v931 = vadd.f32 0.0, %v930
  %v932 = vpop.f32.mrf.mxu0
  %933 = vdwg.mxu0
  %v934 = vadd.f32 %v566, %v872
  %v935 = vadd.f32 %v569, %v875
  %v936 = vadd.f32 %v574, %v880
  %v937 = vadd.f32 %v577, %v883
  %v938 = vadd.f32 %v582, %v888
  %v939 = vadd.f32 %v585, %v891
  %v940 = vadd.f32 %v590, %v896
  %v941 = vadd.f32 %v593, %v899
  %v942 = vadd.f32 %v598, %v904
  %v943 = vadd.f32 %v601, %v907
  %v944 = vadd.f32 %v606, %v912
  %v945 = vadd.f32 %v609, %v915
  %v946 = vadd.f32 %v614, %v920
  %v947 = vadd.f32 %v617, %v923
  %v948 = vadd.f32 %v622, %v928
  %v949 = vadd.f32 %v625, %v931
  %v950 = vld [vmem:[%s55 + $0x8] sm:$0xff]
  %v951 = vld [vmem:[%s55 + $0x10] sm:$0xff]
  %v952 = vld [vmem:[%s55 + $0x18] sm:$0xff]
  %v953 = vld [vmem:[%s55 + $0x20] sm:$0xff]
  %v954 = vld [vmem:[%s55 + $0x28] sm:$0xff]
  %v955 = vld [vmem:[%s55 + $0x30] sm:$0xff]
  %v956 = vld [vmem:[%s55 + $0x38] sm:$0xff]
  %v957 = vld [vmem:[%s55 + $0x40] sm:$0xff]
  %v958 = vld [vmem:[%s55 + $0xa8] sm:$0xff]
  %v959 = vld [vmem:[%s55 + $0xb0] sm:$0xff]
  %v960 = vld [vmem:[%s55 + $0xb8] sm:$0xff]
  %v961 = vld [vmem:[%s55 + $0xc0] sm:$0xff]
  %v962 = vld [vmem:[%s55 + $0xc8] sm:$0xff]
  %v963 = vld [vmem:[%s55 + $0xd0] sm:$0xff]
  %v964 = vld [vmem:[%s55 + $0xd8] sm:$0xff]
  %v965 = vld [vmem:[%s55 + $0xe0] sm:$0xff]
  %s966 = scalar_lea.vmem %s1, 288
  %v967 = vld [vmem:[%s966] sm:$0xf]
  %v968 = vld [vmem:[%s966 + $0x4] sm:$0xf]
  %v969 = vld [vmem:[%s966 + $0x8] sm:$0xf]
  %v970 = vld [vmem:[%s966 + $0xc] sm:$0xf]
  %v971 = vld [vmem:[%s966 + $0x10] sm:$0xf]
  %v972 = vld [vmem:[%s966 + $0x14] sm:$0xf]
  %v973 = vld [vmem:[%s966 + $0x18] sm:$0xf]
  %v974 = vld [vmem:[%s966 + $0x1c] sm:$0xf]
  %v975 = vld [vmem:[%s966 + $0x20] sm:$0xf]
  %v976 = vld [vmem:[%s966 + $0x24] sm:$0xf]
  %v977 = vld [vmem:[%s966 + $0x28] sm:$0xf]
  %v978 = vld [vmem:[%s966 + $0x2c] sm:$0xf]
  %v979 = vld [vmem:[%s966 + $0x30] sm:$0xf]
  %v980 = vld [vmem:[%s966 + $0x34] sm:$0xf]
  %v981 = vld [vmem:[%s966 + $0x38] sm:$0xf]
  %v982 = vld [vmem:[%s966 + $0x3c] sm:$0xf]
  %v983 = vld [vmem:[%s966 + $0x40] sm:$0xf]
  %v984 = vld [vmem:[%s966 + $0x44] sm:$0xf]
  %v985 = vld [vmem:[%s966 + $0x48] sm:$0xf]
  %v986 = vld [vmem:[%s966 + $0x4c] sm:$0xf]
  %v987 = vld [vmem:[%s966 + $0x50] sm:$0xf]
  %v988 = vld [vmem:[%s966 + $0x54] sm:$0xf]
  %v989 = vld [vmem:[%s966 + $0x58] sm:$0xf]
  %v990 = vld [vmem:[%s966 + $0x5c] sm:$0xf]
  %v1007 = vunpack.c.l.b16 %v950
  %v1008 = vunpack.c.h.b16 %v950
  %v1009 = vunpack.c.l.b16 %v951
  %v1010 = vunpack.c.h.b16 %v951
  %v1011 = vunpack.c.l.b16 %v952
  %v1012 = vunpack.c.h.b16 %v952
  %v1013 = vunpack.c.l.b16 %v953
  %v1014 = vunpack.c.h.b16 %v953
  %v1015 = vunpack.c.l.b16 %v954
  %v1016 = vunpack.c.h.b16 %v954
  %v1017 = vunpack.c.l.b16 %v955
  %v1018 = vunpack.c.h.b16 %v955
  %v1019 = vunpack.c.l.b16 %v956
  %v1020 = vunpack.c.h.b16 %v956
  %v1021 = vunpack.c.l.b16 %v957
  %v1022 = vunpack.c.h.b16 %v957
  %v1023 = vunpack.c.l.b16 %v958
  %v1024 = vunpack.c.h.b16 %v958
  %v1025 = vunpack.c.l.b16 %v959
  %v1026 = vunpack.c.h.b16 %v959
  %v1027 = vunpack.c.l.b16 %v960
  %v1028 = vunpack.c.h.b16 %v960
  %v1029 = vunpack.c.l.b16 %v961
  %v1030 = vunpack.c.h.b16 %v961
  %v1031 = vunpack.c.l.b16 %v962
  %v1032 = vunpack.c.h.b16 %v962
  %v1033 = vunpack.c.l.b16 %v963
  %v1034 = vunpack.c.h.b16 %v963
  %v1035 = vunpack.c.l.b16 %v964
  %v1036 = vunpack.c.h.b16 %v964
  %v1037 = vunpack.c.l.b16 %v965
  %v1038 = vunpack.c.h.b16 %v965
  %v1039 = vpack.c.b16 %v1009, %v1007
  %v1040 = vpack.c.b16 %v1010, %v1008
  %v1041 = vpack.c.b16 %v1013, %v1011
  %v1042 = vpack.c.b16 %v1014, %v1012
  %v1043 = vpack.c.b16 %v1017, %v1015
  %v1044 = vpack.c.b16 %v1018, %v1016
  %v1045 = vpack.c.b16 %v1021, %v1019
  %v1046 = vpack.c.b16 %v1022, %v1020
  %v1047 = vpack.c.b16 %v1025, %v1023
  %v1048 = vpack.c.b16 %v1026, %v1024
  %v1049 = vpack.c.b16 %v1029, %v1027
  %v1050 = vpack.c.b16 %v1030, %v1028
  %v1051 = vpack.c.b16 %v1033, %v1031
  %v1052 = vpack.c.b16 %v1034, %v1032
  %v1053 = vpack.c.b16 %v1037, %v1035
  %v1054 = vpack.c.b16 %v1038, %v1036
  %v1087 = vunpack.c.l.b16 %v967
  %v1088 = vunpack.c.l.b16 %v968
  %v1089 = vunpack.c.l.b16 %v969
  %v1090 = vunpack.c.l.b16 %v970
  %v1091 = vunpack.c.l.b16 %v971
  %v1092 = vunpack.c.l.b16 %v972
  %v1093 = vunpack.c.l.b16 %v973
  %v1094 = vunpack.c.l.b16 %v974
  %v1095 = vunpack.c.l.b16 %v975
  %v1096 = vunpack.c.l.b16 %v976
  %v1097 = vunpack.c.l.b16 %v977
  %v1098 = vunpack.c.l.b16 %v978
  %v1099 = vunpack.c.l.b16 %v979
  %v1100 = vunpack.c.l.b16 %v980
  %v1101 = vunpack.c.l.b16 %v981
  %v1102 = vunpack.c.l.b16 %v982
  %v1103 = vunpack.c.l.b16 %v983
  %v1104 = vunpack.c.l.b16 %v984
  %v1105 = vunpack.c.l.b16 %v985
  %v1106 = vunpack.c.l.b16 %v986
  %v1107 = vunpack.c.l.b16 %v987
  %v1108 = vunpack.c.l.b16 %v988
  %v1109 = vunpack.c.l.b16 %v989
  %v1110 = vunpack.c.l.b16 %v990
  %v1111 = vpack.c.b16 %v1088, %v1087
  %v1112 = vpack.c.b16 %v1090, %v1089
  %v1113 = vpack.c.b16 %v1092, %v1091
  %v1114 = vpack.c.b16 %v1094, %v1093
  %v1115 = vpack.c.b16 %v1096, %v1095
  %v1116 = vpack.c.b16 %v1098, %v1097
  %v1117 = vpack.c.b16 %v1100, %v1099
  %v1118 = vpack.c.b16 %v1102, %v1101
  %v1119 = vpack.c.b16 %v1104, %v1103
  %v1120 = vpack.c.b16 %v1106, %v1105
  %v1121 = vpack.c.b16 %v1108, %v1107
  %v1122 = vpack.c.b16 %v1110, %v1109
  %v1136 = vsel %vm241, %v1040, 0
  %v1139 = vsel %vm241, %v1042, 0
  %v1142 = vsel %vm241, %v1044, 0
  %v1145 = vsel %vm241, %v1046, 0
  %v1148 = vsel %vm241, %v1048, 0
  %v1151 = vsel %vm241, %v1050, 0
  %v1154 = vsel %vm241, %v1052, 0
  %v1157 = vsel %vm241, %v1054, 0
  %1159 = vmatprep.subr.bf16.mxu0 0
  %1160 = vmatpush1.bf16.msra.mxu0 %v1118
  %1161 = vmatprep.subr.bf16.mxu0 0
  %1162 = vmatpush1.bf16.msra.mxu0 %v1117
  %1163 = vmatprep.subr.bf16.mxu0 0
  %1164 = vmatpush1.bf16.msra.mxu0 %v1116
  %1165 = vmatprep.subr.bf16.mxu0 0
  %1166 = vmatpush1.bf16.msra.mxu0 %v1115
  %1167 = vmatprep.subr.bf16.mxu0 0
  %1168 = vmatpush1.bf16.msra.mxu0 %v1114
  %1169 = vmatprep.subr.bf16.mxu0 0
  %1170 = vmatpush1.bf16.msra.mxu0 %v1113
  %1171 = vmatprep.subr.bf16.mxu0 0
  %1172 = vmatpush1.bf16.msra.mxu0 %v1112
  %1173 = vmatprep.subr.bf16.mxu0 0
  %1174 = vmatpush1.bf16.msra.mxu0 %v1111
  %1175 = vmatprep.subr.bf16.mxu0 0
  %1176 = vmatpush2.bf16.msra.mxu0 0
  %1177 = vmatprep.subr.bf16.mxu0 0
  %1178 = vmatpush2.bf16.msra.mxu0 0
  %1179 = vmatprep.subr.bf16.mxu0 0
  %1180 = vmatpush2.bf16.msra.mxu0 0
  %1181 = vmatprep.subr.bf16.mxu0 0
  %1182 = vmatpush2.bf16.msra.mxu0 0
  %1183 = vmatprep.subr.bf16.mxu0 0
  %1184 = vmatpush2.bf16.msra.mxu0 %v1122
  %1185 = vmatprep.subr.bf16.mxu0 0
  %1186 = vmatpush2.bf16.msra.mxu0 %v1121
  %1187 = vmatprep.subr.bf16.mxu0 0
  %1188 = vmatpush2.bf16.msra.mxu0 %v1120
  %1189 = vmatprep.subr.bf16.mxu0 0
  %1190 = vmatpush2.bf16.msra.mxu0 %v1119
  %1191 = vmatprep.mubr.bf16.mxu0 %v1136
  %1192 = vmatmul.mubr.bf16.gmra.mxu0 %v1039
  %v1193 = vpop.f32.mrf.mxu0
  %v1194 = vadd.f32 0.0, %v1193
  %v1195 = vpop.f32.mrf.mxu0
  %v1196 = vpop.f32.mrf.mxu0
  %v1197 = vadd.f32 0.0, %v1196
  %v1198 = vpop.f32.mrf.mxu0
  %1199 = vmatprep.mubr.bf16.mxu0 %v1139
  %1200 = vmatmul.mubr.bf16.gmra.mxu0 %v1041
  %v1201 = vpop.f32.mrf.mxu0
  %v1202 = vadd.f32 0.0, %v1201
  %v1203 = vpop.f32.mrf.mxu0
  %v1204 = vpop.f32.mrf.mxu0
  %v1205 = vadd.f32 0.0, %v1204
  %v1206 = vpop.f32.mrf.mxu0
  %1207 = vmatprep.mubr.bf16.mxu0 %v1142
  %1208 = vmatmul.mubr.bf16.gmra.mxu0 %v1043
  %v1209 = vpop.f32.mrf.mxu0
  %v1210 = vadd.f32 0.0, %v1209
  %v1211 = vpop.f32.mrf.mxu0
  %v1212 = vpop.f32.mrf.mxu0
  %v1213 = vadd.f32 0.0, %v1212
  %v1214 = vpop.f32.mrf.mxu0
  %1215 = vmatprep.mubr.bf16.mxu0 %v1145
  %1216 = vmatmul.mubr.bf16.gmra.mxu0 %v1045
  %v1217 = vpop.f32.mrf.mxu0
  %v1218 = vadd.f32 0.0, %v1217
  %v1219 = vpop.f32.mrf.mxu0
  %v1220 = vpop.f32.mrf.mxu0
  %v1221 = vadd.f32 0.0, %v1220
  %v1222 = vpop.f32.mrf.mxu0
  %1223 = vmatprep.mubr.bf16.mxu0 %v1148
  %1224 = vmatmul.mubr.bf16.gmra.mxu0 %v1047
  %v1225 = vpop.f32.mrf.mxu0
  %v1226 = vadd.f32 0.0, %v1225
  %v1227 = vpop.f32.mrf.mxu0
  %v1228 = vpop.f32.mrf.mxu0
  %v1229 = vadd.f32 0.0, %v1228
  %v1230 = vpop.f32.mrf.mxu0
  %1231 = vmatprep.mubr.bf16.mxu0 %v1151
  %1232 = vmatmul.mubr.bf16.gmra.mxu0 %v1049
  %v1233 = vpop.f32.mrf.mxu0
  %v1234 = vadd.f32 0.0, %v1233
  %v1235 = vpop.f32.mrf.mxu0
  %v1236 = vpop.f32.mrf.mxu0
  %v1237 = vadd.f32 0.0, %v1236
  %v1238 = vpop.f32.mrf.mxu0
  %1239 = vmatprep.mubr.bf16.mxu0 %v1154
  %1240 = vmatmul.mubr.bf16.gmra.mxu0 %v1051
  %v1241 = vpop.f32.mrf.mxu0
  %v1242 = vadd.f32 0.0, %v1241
  %v1243 = vpop.f32.mrf.mxu0
  %v1244 = vpop.f32.mrf.mxu0
  %v1245 = vadd.f32 0.0, %v1244
  %v1246 = vpop.f32.mrf.mxu0
  %1247 = vmatprep.mubr.bf16.mxu0 %v1157
  %1248 = vmatmul.mubr.bf16.gmra.mxu0 %v1053
  %v1249 = vpop.f32.mrf.mxu0
  %v1250 = vadd.f32 0.0, %v1249
  %v1251 = vpop.f32.mrf.mxu0
  %v1252 = vpop.f32.mrf.mxu0
  %v1253 = vadd.f32 0.0, %v1252
  %v1254 = vpop.f32.mrf.mxu0
  %1255 = vdwg.mxu0
  %v1256 = vadd.f32 %v934, %v1194
  %v1257 = vadd.f32 %v935, %v1197
  %v1258 = vadd.f32 %v936, %v1202
  %v1259 = vadd.f32 %v937, %v1205
  %v1260 = vadd.f32 %v938, %v1210
  %v1261 = vadd.f32 %v939, %v1213
  %v1262 = vadd.f32 %v940, %v1218
  %v1263 = vadd.f32 %v941, %v1221
  %v1264 = vadd.f32 %v942, %v1226
  %v1265 = vadd.f32 %v943, %v1229
  %v1266 = vadd.f32 %v944, %v1234
  %v1267 = vadd.f32 %v945, %v1237
  %v1268 = vadd.f32 %v946, %v1242
  %v1269 = vadd.f32 %v947, %v1245
  %v1270 = vadd.f32 %v948, %v1250
  %v1271 = vadd.f32 %v949, %v1253
  %v1272 = vld [vmem:[%s0 + $0x10] sm:$0xff]
  %v1273 = vld [vmem:[%s0 + $0x18] sm:$0xff]
  %v1274 = vld [vmem:[%s0 + $0x20] sm:$0xff]
  %v1275 = vld [vmem:[%s0 + $0x28] sm:$0xff]
  %v1276 = vld [vmem:[%s0 + $0x30] sm:$0xff]
  %v1277 = vld [vmem:[%s0 + $0x38] sm:$0xff]
  %v1278 = vld [vmem:[%s0 + $0x40] sm:$0xff]
  %v1279 = vld [vmem:[%s0 + $0x48] sm:$0xff]
  %v1280 = vld [vmem:[%s0 + $0xb0] sm:$0xff]
  %v1281 = vld [vmem:[%s0 + $0xb8] sm:$0xff]
  %v1282 = vld [vmem:[%s0 + $0xc0] sm:$0xff]
  %v1283 = vld [vmem:[%s0 + $0xc8] sm:$0xff]
  %v1284 = vld [vmem:[%s0 + $0xd0] sm:$0xff]
  %v1285 = vld [vmem:[%s0 + $0xd8] sm:$0xff]
  %v1286 = vld [vmem:[%s0 + $0xe0] sm:$0xff]
  %v1287 = vld [vmem:[%s0 + $0xe8] sm:$0xff]
  %s1288 = scalar_lea.vmem %s1, 384
  %v1289 = vld [vmem:[%s1288] sm:$0xf]
  %v1290 = vld [vmem:[%s1288 + $0x4] sm:$0xf]
  %v1291 = vld [vmem:[%s1288 + $0x8] sm:$0xf]
  %v1292 = vld [vmem:[%s1288 + $0xc] sm:$0xf]
  %v1293 = vld [vmem:[%s1288 + $0x10] sm:$0xf]
  %v1294 = vld [vmem:[%s1288 + $0x14] sm:$0xf]
  %v1295 = vld [vmem:[%s1288 + $0x18] sm:$0xf]
  %v1296 = vld [vmem:[%s1288 + $0x1c] sm:$0xf]
  %v1297 = vld [vmem:[%s1288 + $0x20] sm:$0xf]
  %v1298 = vld [vmem:[%s1288 + $0x24] sm:$0xf]
  %v1299 = vld [vmem:[%s1288 + $0x28] sm:$0xf]
  %v1300 = vld [vmem:[%s1288 + $0x2c] sm:$0xf]
  %v1301 = vld [vmem:[%s1288 + $0x30] sm:$0xf]
  %v1302 = vld [vmem:[%s1288 + $0x34] sm:$0xf]
  %v1303 = vld [vmem:[%s1288 + $0x38] sm:$0xf]
  %v1304 = vld [vmem:[%s1288 + $0x3c] sm:$0xf]
  %v1305 = vld [vmem:[%s1288 + $0x40] sm:$0xf]
  %v1306 = vld [vmem:[%s1288 + $0x44] sm:$0xf]
  %v1307 = vld [vmem:[%s1288 + $0x48] sm:$0xf]
  %v1308 = vld [vmem:[%s1288 + $0x4c] sm:$0xf]
  %v1309 = vld [vmem:[%s1288 + $0x50] sm:$0xf]
  %v1310 = vld [vmem:[%s1288 + $0x54] sm:$0xf]
  %v1311 = vld [vmem:[%s1288 + $0x58] sm:$0xf]
  %v1312 = vld [vmem:[%s1288 + $0x5c] sm:$0xf]
  %v1329 = vunpack.c.l.b16 %v1272
  %v1330 = vunpack.c.h.b16 %v1272
  %v1331 = vunpack.c.l.b16 %v1273
  %v1332 = vunpack.c.h.b16 %v1273
  %v1333 = vunpack.c.l.b16 %v1274
  %v1334 = vunpack.c.h.b16 %v1274
  %v1335 = vunpack.c.l.b16 %v1275
  %v1336 = vunpack.c.h.b16 %v1275
  %v1337 = vunpack.c.l.b16 %v1276
  %v1338 = vunpack.c.h.b16 %v1276
  %v1339 = vunpack.c.l.b16 %v1277
  %v1340 = vunpack.c.h.b16 %v1277
  %v1341 = vunpack.c.l.b16 %v1278
  %v1342 = vunpack.c.h.b16 %v1278
  %v1343 = vunpack.c.l.b16 %v1279
  %v1344 = vunpack.c.h.b16 %v1279
  %v1345 = vunpack.c.l.b16 %v1280
  %v1346 = vunpack.c.h.b16 %v1280
  %v1347 = vunpack.c.l.b16 %v1281
  %v1348 = vunpack.c.h.b16 %v1281
  %v1349 = vunpack.c.l.b16 %v1282
  %v1350 = vunpack.c.h.b16 %v1282
  %v1351 = vunpack.c.l.b16 %v1283
  %v1352 = vunpack.c.h.b16 %v1283
  %v1353 = vunpack.c.l.b16 %v1284
  %v1354 = vunpack.c.h.b16 %v1284
  %v1355 = vunpack.c.l.b16 %v1285
  %v1356 = vunpack.c.h.b16 %v1285
  %v1357 = vunpack.c.l.b16 %v1286
  %v1358 = vunpack.c.h.b16 %v1286
  %v1359 = vunpack.c.l.b16 %v1287
  %v1360 = vunpack.c.h.b16 %v1287
  %v1361 = vpack.c.b16 %v1331, %v1329
  %v1362 = vpack.c.b16 %v1332, %v1330
  %v1363 = vpack.c.b16 %v1335, %v1333
  %v1364 = vpack.c.b16 %v1336, %v1334
  %v1365 = vpack.c.b16 %v1339, %v1337
  %v1366 = vpack.c.b16 %v1340, %v1338
  %v1367 = vpack.c.b16 %v1343, %v1341
  %v1368 = vpack.c.b16 %v1344, %v1342
  %v1369 = vpack.c.b16 %v1347, %v1345
  %v1370 = vpack.c.b16 %v1348, %v1346
  %v1371 = vpack.c.b16 %v1351, %v1349
  %v1372 = vpack.c.b16 %v1352, %v1350
  %v1373 = vpack.c.b16 %v1355, %v1353
  %v1374 = vpack.c.b16 %v1356, %v1354
  %v1375 = vpack.c.b16 %v1359, %v1357
  %v1376 = vpack.c.b16 %v1360, %v1358
  %v1409 = vunpack.c.l.b16 %v1289
  %v1410 = vunpack.c.l.b16 %v1290
  %v1411 = vunpack.c.l.b16 %v1291
  %v1412 = vunpack.c.l.b16 %v1292
  %v1413 = vunpack.c.l.b16 %v1293
  %v1414 = vunpack.c.l.b16 %v1294
  %v1415 = vunpack.c.l.b16 %v1295
  %v1416 = vunpack.c.l.b16 %v1296
  %v1417 = vunpack.c.l.b16 %v1297
  %v1418 = vunpack.c.l.b16 %v1298
  %v1419 = vunpack.c.l.b16 %v1299
  %v1420 = vunpack.c.l.b16 %v1300
  %v1421 = vunpack.c.l.b16 %v1301
  %v1422 = vunpack.c.l.b16 %v1302
  %v1423 = vunpack.c.l.b16 %v1303
  %v1424 = vunpack.c.l.b16 %v1304
  %v1425 = vunpack.c.l.b16 %v1305
  %v1426 = vunpack.c.l.b16 %v1306
  %v1427 = vunpack.c.l.b16 %v1307
  %v1428 = vunpack.c.l.b16 %v1308
  %v1429 = vunpack.c.l.b16 %v1309
  %v1430 = vunpack.c.l.b16 %v1310
  %v1431 = vunpack.c.l.b16 %v1311
  %v1432 = vunpack.c.l.b16 %v1312
  %v1433 = vpack.c.b16 %v1410, %v1409
  %v1434 = vpack.c.b16 %v1412, %v1411
  %v1435 = vpack.c.b16 %v1414, %v1413
  %v1436 = vpack.c.b16 %v1416, %v1415
  %v1437 = vpack.c.b16 %v1418, %v1417
  %v1438 = vpack.c.b16 %v1420, %v1419
  %v1439 = vpack.c.b16 %v1422, %v1421
  %v1440 = vpack.c.b16 %v1424, %v1423
  %v1441 = vpack.c.b16 %v1426, %v1425
  %v1442 = vpack.c.b16 %v1428, %v1427
  %v1443 = vpack.c.b16 %v1430, %v1429
  %v1444 = vpack.c.b16 %v1432, %v1431
  %v1458 = vsel %vm241, %v1362, 0
  %v1461 = vsel %vm241, %v1364, 0
  %v1464 = vsel %vm241, %v1366, 0
  %v1467 = vsel %vm241, %v1368, 0
  %v1470 = vsel %vm241, %v1370, 0
  %v1473 = vsel %vm241, %v1372, 0
  %v1476 = vsel %vm241, %v1374, 0
  %v1479 = vsel %vm241, %v1376, 0
  %1481 = vmatprep.subr.bf16.mxu0 0
  %1482 = vmatpush1.bf16.msra.mxu0 %v1440
  %1483 = vmatprep.subr.bf16.mxu0 0
  %1484 = vmatpush1.bf16.msra.mxu0 %v1439
  %1485 = vmatprep.subr.bf16.mxu0 0
  %1486 = vmatpush1.bf16.msra.mxu0 %v1438
  %1487 = vmatprep.subr.bf16.mxu0 0
  %1488 = vmatpush1.bf16.msra.mxu0 %v1437
  %1489 = vmatprep.subr.bf16.mxu0 0
  %1490 = vmatpush1.bf16.msra.mxu0 %v1436
  %1491 = vmatprep.subr.bf16.mxu0 0
  %1492 = vmatpush1.bf16.msra.mxu0 %v1435
  %1493 = vmatprep.subr.bf16.mxu0 0
  %1494 = vmatpush1.bf16.msra.mxu0 %v1434
  %1495 = vmatprep.subr.bf16.mxu0 0
  %1496 = vmatpush1.bf16.msra.mxu0 %v1433
  %1497 = vmatprep.subr.bf16.mxu0 0
  %1498 = vmatpush2.bf16.msra.mxu0 0
  %1499 = vmatprep.subr.bf16.mxu0 0
  %1500 = vmatpush2.bf16.msra.mxu0 0
  %1501 = vmatprep.subr.bf16.mxu0 0
  %1502 = vmatpush2.bf16.msra.mxu0 0
  %1503 = vmatprep.subr.bf16.mxu0 0
  %1504 = vmatpush2.bf16.msra.mxu0 0
  %1505 = vmatprep.subr.bf16.mxu0 0
  %1506 = vmatpush2.bf16.msra.mxu0 %v1444
  %1507 = vmatprep.subr.bf16.mxu0 0
  %1508 = vmatpush2.bf16.msra.mxu0 %v1443
  %1509 = vmatprep.subr.bf16.mxu0 0
  %1510 = vmatpush2.bf16.msra.mxu0 %v1442
  %1511 = vmatprep.subr.bf16.mxu0 0
  %1512 = vmatpush2.bf16.msra.mxu0 %v1441
  %1513 = vmatprep.mubr.bf16.mxu0 %v1458
  %1514 = vmatmul.mubr.bf16.gmra.mxu0 %v1361
  %v1515 = vpop.f32.mrf.mxu0
  %v1516 = vadd.f32 0.0, %v1515
  %v1517 = vpop.f32.mrf.mxu0
  %v1518 = vpop.f32.mrf.mxu0
  %v1519 = vadd.f32 0.0, %v1518
  %v1520 = vpop.f32.mrf.mxu0
  %1521 = vmatprep.mubr.bf16.mxu0 %v1461
  %1522 = vmatmul.mubr.bf16.gmra.mxu0 %v1363
  %v1523 = vpop.f32.mrf.mxu0
  %v1524 = vadd.f32 0.0, %v1523
  %v1525 = vpop.f32.mrf.mxu0
  %v1526 = vpop.f32.mrf.mxu0
  %v1527 = vadd.f32 0.0, %v1526
  %v1528 = vpop.f32.mrf.mxu0
  %1529 = vmatprep.mubr.bf16.mxu0 %v1464
  %1530 = vmatmul.mubr.bf16.gmra.mxu0 %v1365
  %v1531 = vpop.f32.mrf.mxu0
  %v1532 = vadd.f32 0.0, %v1531
  %v1533 = vpop.f32.mrf.mxu0
  %v1534 = vpop.f32.mrf.mxu0
  %v1535 = vadd.f32 0.0, %v1534
  %v1536 = vpop.f32.mrf.mxu0
  %1537 = vmatprep.mubr.bf16.mxu0 %v1467
  %1538 = vmatmul.mubr.bf16.gmra.mxu0 %v1367
  %v1539 = vpop.f32.mrf.mxu0
  %v1540 = vadd.f32 0.0, %v1539
  %v1541 = vpop.f32.mrf.mxu0
  %v1542 = vpop.f32.mrf.mxu0
  %v1543 = vadd.f32 0.0, %v1542
  %v1544 = vpop.f32.mrf.mxu0
  %1545 = vmatprep.mubr.bf16.mxu0 %v1470
  %1546 = vmatmul.mubr.bf16.gmra.mxu0 %v1369
  %v1547 = vpop.f32.mrf.mxu0
  %v1548 = vadd.f32 0.0, %v1547
  %v1549 = vpop.f32.mrf.mxu0
  %v1550 = vpop.f32.mrf.mxu0
  %v1551 = vadd.f32 0.0, %v1550
  %v1552 = vpop.f32.mrf.mxu0
  %1553 = vmatprep.mubr.bf16.mxu0 %v1473
  %1554 = vmatmul.mubr.bf16.gmra.mxu0 %v1371
  %v1555 = vpop.f32.mrf.mxu0
  %v1556 = vadd.f32 0.0, %v1555
  %v1557 = vpop.f32.mrf.mxu0
  %v1558 = vpop.f32.mrf.mxu0
  %v1559 = vadd.f32 0.0, %v1558
  %v1560 = vpop.f32.mrf.mxu0
  %1561 = vmatprep.mubr.bf16.mxu0 %v1476
  %1562 = vmatmul.mubr.bf16.gmra.mxu0 %v1373
  %v1563 = vpop.f32.mrf.mxu0
  %v1564 = vadd.f32 0.0, %v1563
  %v1565 = vpop.f32.mrf.mxu0
  %v1566 = vpop.f32.mrf.mxu0
  %v1567 = vadd.f32 0.0, %v1566
  %v1568 = vpop.f32.mrf.mxu0
  %1569 = vmatprep.mubr.bf16.mxu0 %v1479
  %1570 = vmatmul.mubr.bf16.gmra.mxu0 %v1375
  %v1571 = vpop.f32.mrf.mxu0
  %v1572 = vadd.f32 0.0, %v1571
  %v1573 = vpop.f32.mrf.mxu0
  %v1574 = vpop.f32.mrf.mxu0
  %v1575 = vadd.f32 0.0, %v1574
  %v1576 = vpop.f32.mrf.mxu0
  %1577 = vdwg.mxu0
  %v1578 = vadd.f32 %v1256, %v1516
  %v1579 = vadd.f32 %v1257, %v1519
  %v1580 = vadd.f32 %v1258, %v1524
  %v1581 = vadd.f32 %v1259, %v1527
  %v1582 = vadd.f32 %v1260, %v1532
  %v1583 = vadd.f32 %v1261, %v1535
  %v1584 = vadd.f32 %v1262, %v1540
  %v1585 = vadd.f32 %v1263, %v1543
  %v1586 = vadd.f32 %v1264, %v1548
  %v1587 = vadd.f32 %v1265, %v1551
  %v1588 = vadd.f32 %v1266, %v1556
  %v1589 = vadd.f32 %v1267, %v1559
  %v1590 = vadd.f32 %v1268, %v1564
  %v1591 = vadd.f32 %v1269, %v1567
  %v1592 = vadd.f32 %v1270, %v1572
  %v1593 = vadd.f32 %v1271, %v1575
  %1594 = vmatprep.subr.bf16.mxu0 0
  %1595 = vmatpush1.bf16.msra.mxu0 %v224
  %1596 = vmatprep.subr.bf16.mxu0 0
  %1597 = vmatpush1.bf16.msra.mxu0 %v223
  %1598 = vmatprep.subr.bf16.mxu0 0
  %1599 = vmatpush1.bf16.msra.mxu0 %v222
  %1600 = vmatprep.subr.bf16.mxu0 0
  %1601 = vmatpush1.bf16.msra.mxu0 %v221
  %1602 = vmatprep.subr.bf16.mxu0 0
  %1603 = vmatpush1.bf16.msra.mxu0 %v220
  %1604 = vmatprep.subr.bf16.mxu0 0
  %1605 = vmatpush1.bf16.msra.mxu0 %v219
  %1606 = vmatprep.subr.bf16.mxu0 0
  %1607 = vmatpush1.bf16.msra.mxu0 %v218
  %1608 = vmatprep.subr.bf16.mxu0 0
  %1609 = vmatpush1.bf16.msra.mxu0 %v217
  %1610 = vmatprep.subr.bf16.mxu0 0
  %1611 = vmatpush2.bf16.msra.mxu0 0
  %1612 = vmatprep.subr.bf16.mxu0 0
  %1613 = vmatpush2.bf16.msra.mxu0 0
  %1614 = vmatprep.subr.bf16.mxu0 0
  %1615 = vmatpush2.bf16.msra.mxu0 0
  %1616 = vmatprep.subr.bf16.mxu0 0
  %1617 = vmatpush2.bf16.msra.mxu0 0
  %1618 = vmatprep.subr.bf16.mxu0 0
  %1619 = vmatpush2.bf16.msra.mxu0 %v228
  %1620 = vmatprep.subr.bf16.mxu0 0
  %1621 = vmatpush2.bf16.msra.mxu0 %v227
  %1622 = vmatprep.subr.bf16.mxu0 0
  %1623 = vmatpush2.bf16.msra.mxu0 %v226
  %1624 = vmatprep.subr.bf16.mxu0 0
  %1625 = vmatpush2.bf16.msra.mxu0 %v225
  %1626 = vmatprep.mubr.bf16.mxu0 %v814
  %1627 = vmatmul.mubr.bf16.gmra.mxu0 %v717
  %v1628 = vpop.f32.mrf.mxu0
  %v1629 = vadd.f32 0.0, %v1628
  %v1630 = vpop.f32.mrf.mxu0
  %v1631 = vpop.f32.mrf.mxu0
  %v1632 = vadd.f32 0.0, %v1631
  %v1633 = vpop.f32.mrf.mxu0
  %1634 = vmatprep.mubr.bf16.mxu0 %v817
  %1635 = vmatmul.mubr.bf16.gmra.mxu0 %v719
  %v1636 = vpop.f32.mrf.mxu0
  %v1637 = vadd.f32 0.0, %v1636
  %v1638 = vpop.f32.mrf.mxu0
  %v1639 = vpop.f32.mrf.mxu0
  %v1640 = vadd.f32 0.0, %v1639
  %v1641 = vpop.f32.mrf.mxu0
  %1642 = vmatprep.mubr.bf16.mxu0 %v820
  %1643 = vmatmul.mubr.bf16.gmra.mxu0 %v721
  %v1644 = vpop.f32.mrf.mxu0
  %v1645 = vadd.f32 0.0, %v1644
  %v1646 = vpop.f32.mrf.mxu0
  %v1647 = vpop.f32.mrf.mxu0
  %v1648 = vadd.f32 0.0, %v1647
  %v1649 = vpop.f32.mrf.mxu0
  %1650 = vmatprep.mubr.bf16.mxu0 %v823
  %1651 = vmatmul.mubr.bf16.gmra.mxu0 %v723
  %v1652 = vpop.f32.mrf.mxu0
  %v1653 = vadd.f32 0.0, %v1652
  %v1654 = vpop.f32.mrf.mxu0
  %v1655 = vpop.f32.mrf.mxu0
  %v1656 = vadd.f32 0.0, %v1655
  %v1657 = vpop.f32.mrf.mxu0
  %1658 = vmatprep.mubr.bf16.mxu0 %v826
  %1659 = vmatmul.mubr.bf16.gmra.mxu0 %v725
  %v1660 = vpop.f32.mrf.mxu0
  %v1661 = vadd.f32 0.0, %v1660
  %v1662 = vpop.f32.mrf.mxu0
  %v1663 = vpop.f32.mrf.mxu0
  %v1664 = vadd.f32 0.0, %v1663
  %v1665 = vpop.f32.mrf.mxu0
  %1666 = vmatprep.mubr.bf16.mxu0 %v829
  %1667 = vmatmul.mubr.bf16.gmra.mxu0 %v727
  %v1668 = vpop.f32.mrf.mxu0
  %v1669 = vadd.f32 0.0, %v1668
  %v1670 = vpop.f32.mrf.mxu0
  %v1671 = vpop.f32.mrf.mxu0
  %v1672 = vadd.f32 0.0, %v1671
  %v1673 = vpop.f32.mrf.mxu0
  %1674 = vmatprep.mubr.bf16.mxu0 %v832
  %1675 = vmatmul.mubr.bf16.gmra.mxu0 %v729
  %v1676 = vpop.f32.mrf.mxu0
  %v1677 = vadd.f32 0.0, %v1676
  %v1678 = vpop.f32.mrf.mxu0
  %v1679 = vpop.f32.mrf.mxu0
  %v1680 = vadd.f32 0.0, %v1679
  %v1681 = vpop.f32.mrf.mxu0
  %1682 = vmatprep.mubr.bf16.mxu0 %v835
  %1683 = vmatmul.mubr.bf16.gmra.mxu0 %v731
  %v1684 = vpop.f32.mrf.mxu0
  %v1685 = vadd.f32 0.0, %v1684
  %v1686 = vpop.f32.mrf.mxu0
  %v1687 = vpop.f32.mrf.mxu0
  %v1688 = vadd.f32 0.0, %v1687
  %v1689 = vpop.f32.mrf.mxu0
  %1690 = vdwg.mxu0
  %1691 = vmatprep.subr.bf16.mxu0 0
  %1692 = vmatpush1.bf16.msra.mxu0 %v490
  %1693 = vmatprep.subr.bf16.mxu0 0
  %1694 = vmatpush1.bf16.msra.mxu0 %v489
  %1695 = vmatprep.subr.bf16.mxu0 0
  %1696 = vmatpush1.bf16.msra.mxu0 %v488
  %1697 = vmatprep.subr.bf16.mxu0 0
  %1698 = vmatpush1.bf16.msra.mxu0 %v487
  %1699 = vmatprep.subr.bf16.mxu0 0
  %1700 = vmatpush1.bf16.msra.mxu0 %v486
  %1701 = vmatprep.subr.bf16.mxu0 0
  %1702 = vmatpush1.bf16.msra.mxu0 %v485
  %1703 = vmatprep.subr.bf16.mxu0 0
  %1704 = vmatpush1.bf16.msra.mxu0 %v484
  %1705 = vmatprep.subr.bf16.mxu0 0
  %1706 = vmatpush1.bf16.msra.mxu0 %v483
  %1707 = vmatprep.subr.bf16.mxu0 0
  %1708 = vmatpush2.bf16.msra.mxu0 0
  %1709 = vmatprep.subr.bf16.mxu0 0
  %1710 = vmatpush2.bf16.msra.mxu0 0
  %1711 = vmatprep.subr.bf16.mxu0 0
  %1712 = vmatpush2.bf16.msra.mxu0 0
  %1713 = vmatprep.subr.bf16.mxu0 0
  %1714 = vmatpush2.bf16.msra.mxu0 0
  %1715 = vmatprep.subr.bf16.mxu0 0
  %1716 = vmatpush2.bf16.msra.mxu0 %v494
  %1717 = vmatprep.subr.bf16.mxu0 0
  %1718 = vmatpush2.bf16.msra.mxu0 %v493
  %1719 = vmatprep.subr.bf16.mxu0 0
  %1720 = vmatpush2.bf16.msra.mxu0 %v492
  %1721 = vmatprep.subr.bf16.mxu0 0
  %1722 = vmatpush2.bf16.msra.mxu0 %v491
  %1723 = vmatprep.mubr.bf16.mxu0 %v243
  %1724 = vmatmul.mubr.bf16.gmra.mxu0 %v145
  %v1725 = vpop.f32.mrf.mxu0
  %v1726 = vadd.f32 %v1629, %v1725
  %v1727 = vpop.f32.mrf.mxu0
  %v1728 = vpop.f32.mrf.mxu0
  %v1729 = vadd.f32 %v1632, %v1728
  %v1730 = vpop.f32.mrf.mxu0
  %1731 = vmatprep.mubr.bf16.mxu0 %v246
  %1732 = vmatmul.mubr.bf16.gmra.mxu0 %v147
  %v1733 = vpop.f32.mrf.mxu0
  %v1734 = vadd.f32 %v1637, %v1733
  %v1735 = vpop.f32.mrf.mxu0
  %v1736 = vpop.f32.mrf.mxu0
  %v1737 = vadd.f32 %v1640, %v1736
  %v1738 = vpop.f32.mrf.mxu0
  %1739 = vmatprep.mubr.bf16.mxu0 %v249
  %1740 = vmatmul.mubr.bf16.gmra.mxu0 %v149
  %v1741 = vpop.f32.mrf.mxu0
  %v1742 = vadd.f32 %v1645, %v1741
  %v1743 = vpop.f32.mrf.mxu0
  %v1744 = vpop.f32.mrf.mxu0
  %v1745 = vadd.f32 %v1648, %v1744
  %v1746 = vpop.f32.mrf.mxu0
  %1747 = vmatprep.mubr.bf16.mxu0 %v252
  %1748 = vmatmul.mubr.bf16.gmra.mxu0 %v151
  %v1749 = vpop.f32.mrf.mxu0
  %v1750 = vadd.f32 %v1653, %v1749
  %v1751 = vpop.f32.mrf.mxu0
  %v1752 = vpop.f32.mrf.mxu0
  %v1753 = vadd.f32 %v1656, %v1752
  %v1754 = vpop.f32.mrf.mxu0
  %1755 = vmatprep.mubr.bf16.mxu0 %v255
  %1756 = vmatmul.mubr.bf16.gmra.mxu0 %v153
  %v1757 = vpop.f32.mrf.mxu0
  %v1758 = vadd.f32 %v1661, %v1757
  %v1759 = vpop.f32.mrf.mxu0
  %v1760 = vpop.f32.mrf.mxu0
  %v1761 = vadd.f32 %v1664, %v1760
  %v1762 = vpop.f32.mrf.mxu0
  %1763 = vmatprep.mubr.bf16.mxu0 %v258
  %1764 = vmatmul.mubr.bf16.gmra.mxu0 %v155
  %v1765 = vpop.f32.mrf.mxu0
  %v1766 = vadd.f32 %v1669, %v1765
  %v1767 = vpop.f32.mrf.mxu0
  %v1768 = vpop.f32.mrf.mxu0
  %v1769 = vadd.f32 %v1672, %v1768
  %v1770 = vpop.f32.mrf.mxu0
  %1771 = vmatprep.mubr.bf16.mxu0 %v261
  %1772 = vmatmul.mubr.bf16.gmra.mxu0 %v157
  %v1773 = vpop.f32.mrf.mxu0
  %v1774 = vadd.f32 %v1677, %v1773
  %v1775 = vpop.f32.mrf.mxu0
  %v1776 = vpop.f32.mrf.mxu0
  %v1777 = vadd.f32 %v1680, %v1776
  %v1778 = vpop.f32.mrf.mxu0
  %1779 = vmatprep.mubr.bf16.mxu0 %v264
  %1780 = vmatmul.mubr.bf16.gmra.mxu0 %v159
  %v1781 = vpop.f32.mrf.mxu0
  %v1782 = vadd.f32 %v1685, %v1781
  %v1783 = vpop.f32.mrf.mxu0
  %v1784 = vpop.f32.mrf.mxu0
  %v1785 = vadd.f32 %v1688, %v1784
  %v1786 = vpop.f32.mrf.mxu0
  %1787 = vdwg.mxu0
  %1788 = vmatprep.subr.bf16.mxu0 0
  %1789 = vmatpush1.bf16.msra.mxu0 %v796
  %1790 = vmatprep.subr.bf16.mxu0 0
  %1791 = vmatpush1.bf16.msra.mxu0 %v795
  %1792 = vmatprep.subr.bf16.mxu0 0
  %1793 = vmatpush1.bf16.msra.mxu0 %v794
  %1794 = vmatprep.subr.bf16.mxu0 0
  %1795 = vmatpush1.bf16.msra.mxu0 %v793
  %1796 = vmatprep.subr.bf16.mxu0 0
  %1797 = vmatpush1.bf16.msra.mxu0 %v792
  %1798 = vmatprep.subr.bf16.mxu0 0
  %1799 = vmatpush1.bf16.msra.mxu0 %v791
  %1800 = vmatprep.subr.bf16.mxu0 0
  %1801 = vmatpush1.bf16.msra.mxu0 %v790
  %1802 = vmatprep.subr.bf16.mxu0 0
  %1803 = vmatpush1.bf16.msra.mxu0 %v789
  %1804 = vmatprep.subr.bf16.mxu0 0
  %1805 = vmatpush2.bf16.msra.mxu0 0
  %1806 = vmatprep.subr.bf16.mxu0 0
  %1807 = vmatpush2.bf16.msra.mxu0 0
  %1808 = vmatprep.subr.bf16.mxu0 0
  %1809 = vmatpush2.bf16.msra.mxu0 0
  %1810 = vmatprep.subr.bf16.mxu0 0
  %1811 = vmatpush2.bf16.msra.mxu0 0
  %1812 = vmatprep.subr.bf16.mxu0 0
  %1813 = vmatpush2.bf16.msra.mxu0 %v800
  %1814 = vmatprep.subr.bf16.mxu0 0
  %1815 = vmatpush2.bf16.msra.mxu0 %v799
  %1816 = vmatprep.subr.bf16.mxu0 0
  %1817 = vmatpush2.bf16.msra.mxu0 %v798
  %1818 = vmatprep.subr.bf16.mxu0 0
  %1819 = vmatpush2.bf16.msra.mxu0 %v797
  %1820 = vmatprep.mubr.bf16.mxu0 %v1136
  %1821 = vmatmul.mubr.bf16.gmra.mxu0 %v1039
  %v1822 = vpop.f32.mrf.mxu0
  %v1823 = vadd.f32 0.0, %v1822
  %v1824 = vpop.f32.mrf.mxu0
  %v1825 = vpop.f32.mrf.mxu0
  %v1826 = vadd.f32 0.0, %v1825
  %v1827 = vpop.f32.mrf.mxu0
  %1828 = vmatprep.mubr.bf16.mxu0 %v1139
  %1829 = vmatmul.mubr.bf16.gmra.mxu0 %v1041
  %v1830 = vpop.f32.mrf.mxu0
  %v1831 = vadd.f32 0.0, %v1830
  %v1832 = vpop.f32.mrf.mxu0
  %v1833 = vpop.f32.mrf.mxu0
  %v1834 = vadd.f32 0.0, %v1833
  %v1835 = vpop.f32.mrf.mxu0
  %1836 = vmatprep.mubr.bf16.mxu0 %v1142
  %1837 = vmatmul.mubr.bf16.gmra.mxu0 %v1043
  %v1838 = vpop.f32.mrf.mxu0
  %v1839 = vadd.f32 0.0, %v1838
  %v1840 = vpop.f32.mrf.mxu0
  %v1841 = vpop.f32.mrf.mxu0
  %v1842 = vadd.f32 0.0, %v1841
  %v1843 = vpop.f32.mrf.mxu0
  %1844 = vmatprep.mubr.bf16.mxu0 %v1145
  %1845 = vmatmul.mubr.bf16.gmra.mxu0 %v1045
  %v1846 = vpop.f32.mrf.mxu0
  %v1847 = vadd.f32 0.0, %v1846
  %v1848 = vpop.f32.mrf.mxu0
  %v1849 = vpop.f32.mrf.mxu0
  %v1850 = vadd.f32 0.0, %v1849
  %v1851 = vpop.f32.mrf.mxu0
  %1852 = vmatprep.mubr.bf16.mxu0 %v1148
  %1853 = vmatmul.mubr.bf16.gmra.mxu0 %v1047
  %v1854 = vpop.f32.mrf.mxu0
  %v1855 = vadd.f32 0.0, %v1854
  %v1856 = vpop.f32.mrf.mxu0
  %v1857 = vpop.f32.mrf.mxu0
  %v1858 = vadd.f32 0.0, %v1857
  %v1859 = vpop.f32.mrf.mxu0
  %1860 = vmatprep.mubr.bf16.mxu0 %v1151
  %1861 = vmatmul.mubr.bf16.gmra.mxu0 %v1049
  %v1862 = vpop.f32.mrf.mxu0
  %v1863 = vadd.f32 0.0, %v1862
  %v1864 = vpop.f32.mrf.mxu0
  %v1865 = vpop.f32.mrf.mxu0
  %v1866 = vadd.f32 0.0, %v1865
  %v1867 = vpop.f32.mrf.mxu0
  %1868 = vmatprep.mubr.bf16.mxu0 %v1154
  %1869 = vmatmul.mubr.bf16.gmra.mxu0 %v1051
  %v1870 = vpop.f32.mrf.mxu0
  %v1871 = vadd.f32 0.0, %v1870
  %v1872 = vpop.f32.mrf.mxu0
  %v1873 = vpop.f32.mrf.mxu0
  %v1874 = vadd.f32 0.0, %v1873
  %v1875 = vpop.f32.mrf.mxu0
  %1876 = vmatprep.mubr.bf16.mxu0 %v1157
  %1877 = vmatmul.mubr.bf16.gmra.mxu0 %v1053
  %v1878 = vpop.f32.mrf.mxu0
  %v1879 = vadd.f32 0.0, %v1878
  %v1880 = vpop.f32.mrf.mxu0
  %v1881 = vpop.f32.mrf.mxu0
  %v1882 = vadd.f32 0.0, %v1881
  %v1883 = vpop.f32.mrf.mxu0
  %1884 = vdwg.mxu0
  %v1885 = vadd.f32 %v1726, %v1823
  %v1886 = vadd.f32 %v1729, %v1826
  %v1887 = vadd.f32 %v1734, %v1831
  %v1888 = vadd.f32 %v1737, %v1834
  %v1889 = vadd.f32 %v1742, %v1839
  %v1890 = vadd.f32 %v1745, %v1842
  %v1891 = vadd.f32 %v1750, %v1847
  %v1892 = vadd.f32 %v1753, %v1850
  %v1893 = vadd.f32 %v1758, %v1855
  %v1894 = vadd.f32 %v1761, %v1858
  %v1895 = vadd.f32 %v1766, %v1863
  %v1896 = vadd.f32 %v1769, %v1866
  %v1897 = vadd.f32 %v1774, %v1871
  %v1898 = vadd.f32 %v1777, %v1874
  %v1899 = vadd.f32 %v1782, %v1879
  %v1900 = vadd.f32 %v1785, %v1882
  %1901 = vmatprep.subr.bf16.mxu0 0
  %1902 = vmatpush1.bf16.msra.mxu0 %v1118
  %1903 = vmatprep.subr.bf16.mxu0 0
  %1904 = vmatpush1.bf16.msra.mxu0 %v1117
  %1905 = vmatprep.subr.bf16.mxu0 0
  %1906 = vmatpush1.bf16.msra.mxu0 %v1116
  %1907 = vmatprep.subr.bf16.mxu0 0
  %1908 = vmatpush1.bf16.msra.mxu0 %v1115
  %1909 = vmatprep.subr.bf16.mxu0 0
  %1910 = vmatpush1.bf16.msra.mxu0 %v1114
  %1911 = vmatprep.subr.bf16.mxu0 0
  %1912 = vmatpush1.bf16.msra.mxu0 %v1113
  %1913 = vmatprep.subr.bf16.mxu0 0
  %1914 = vmatpush1.bf16.msra.mxu0 %v1112
  %1915 = vmatprep.subr.bf16.mxu0 0
  %1916 = vmatpush1.bf16.msra.mxu0 %v1111
  %1917 = vmatprep.subr.bf16.mxu0 0
  %1918 = vmatpush2.bf16.msra.mxu0 0
  %1919 = vmatprep.subr.bf16.mxu0 0
  %1920 = vmatpush2.bf16.msra.mxu0 0
  %1921 = vmatprep.subr.bf16.mxu0 0
  %1922 = vmatpush2.bf16.msra.mxu0 0
  %1923 = vmatprep.subr.bf16.mxu0 0
  %1924 = vmatpush2.bf16.msra.mxu0 0
  %1925 = vmatprep.subr.bf16.mxu0 0
  %1926 = vmatpush2.bf16.msra.mxu0 %v1122
  %1927 = vmatprep.subr.bf16.mxu0 0
  %1928 = vmatpush2.bf16.msra.mxu0 %v1121
  %1929 = vmatprep.subr.bf16.mxu0 0
  %1930 = vmatpush2.bf16.msra.mxu0 %v1120
  %1931 = vmatprep.subr.bf16.mxu0 0
  %1932 = vmatpush2.bf16.msra.mxu0 %v1119
  %1933 = vmatprep.mubr.bf16.mxu0 %v1458
  %1934 = vmatmul.mubr.bf16.gmra.mxu0 %v1361
  %v1935 = vpop.f32.mrf.mxu0
  %v1936 = vadd.f32 0.0, %v1935
  %v1937 = vpop.f32.mrf.mxu0
  %v1938 = vpop.f32.mrf.mxu0
  %v1939 = vadd.f32 0.0, %v1938
  %v1940 = vpop.f32.mrf.mxu0
  %1941 = vmatprep.mubr.bf16.mxu0 %v1461
  %1942 = vmatmul.mubr.bf16.gmra.mxu0 %v1363
  %v1943 = vpop.f32.mrf.mxu0
  %v1944 = vadd.f32 0.0, %v1943
  %v1945 = vpop.f32.mrf.mxu0
  %v1946 = vpop.f32.mrf.mxu0
  %v1947 = vadd.f32 0.0, %v1946
  %v1948 = vpop.f32.mrf.mxu0
  %1949 = vmatprep.mubr.bf16.mxu0 %v1464
  %1950 = vmatmul.mubr.bf16.gmra.mxu0 %v1365
  %v1951 = vpop.f32.mrf.mxu0
  %v1952 = vadd.f32 0.0, %v1951
  %v1953 = vpop.f32.mrf.mxu0
  %v1954 = vpop.f32.mrf.mxu0
  %v1955 = vadd.f32 0.0, %v1954
  %v1956 = vpop.f32.mrf.mxu0
  %1957 = vmatprep.mubr.bf16.mxu0 %v1467
  %1958 = vmatmul.mubr.bf16.gmra.mxu0 %v1367
  %v1959 = vpop.f32.mrf.mxu0
  %v1960 = vadd.f32 0.0, %v1959
  %v1961 = vpop.f32.mrf.mxu0
  %v1962 = vpop.f32.mrf.mxu0
  %v1963 = vadd.f32 0.0, %v1962
  %v1964 = vpop.f32.mrf.mxu0
  %1965 = vmatprep.mubr.bf16.mxu0 %v1470
  %1966 = vmatmul.mubr.bf16.gmra.mxu0 %v1369
  %v1967 = vpop.f32.mrf.mxu0
  %v1968 = vadd.f32 0.0, %v1967
  %v1969 = vpop.f32.mrf.mxu0
  %v1970 = vpop.f32.mrf.mxu0
  %v1971 = vadd.f32 0.0, %v1970
  %v1972 = vpop.f32.mrf.mxu0
  %1973 = vmatprep.mubr.bf16.mxu0 %v1473
  %1974 = vmatmul.mubr.bf16.gmra.mxu0 %v1371
  %v1975 = vpop.f32.mrf.mxu0
  %v1976 = vadd.f32 0.0, %v1975
  %v1977 = vpop.f32.mrf.mxu0
  %v1978 = vpop.f32.mrf.mxu0
  %v1979 = vadd.f32 0.0, %v1978
  %v1980 = vpop.f32.mrf.mxu0
  %1981 = vmatprep.mubr.bf16.mxu0 %v1476
  %1982 = vmatmul.mubr.bf16.gmra.mxu0 %v1373
  %v1983 = vpop.f32.mrf.mxu0
  %v1984 = vadd.f32 0.0, %v1983
  %v1985 = vpop.f32.mrf.mxu0
  %v1986 = vpop.f32.mrf.mxu0
  %v1987 = vadd.f32 0.0, %v1986
  %v1988 = vpop.f32.mrf.mxu0
  %1989 = vmatprep.mubr.bf16.mxu0 %v1479
  %1990 = vmatmul.mubr.bf16.gmra.mxu0 %v1375
  %v1991 = vpop.f32.mrf.mxu0
  %v1992 = vadd.f32 0.0, %v1991
  %v1993 = vpop.f32.mrf.mxu0
  %v1994 = vpop.f32.mrf.mxu0
  %v1995 = vadd.f32 0.0, %v1994
  %v1996 = vpop.f32.mrf.mxu0
  %1997 = vdwg.mxu0
  %v1998 = vadd.f32 %v1885, %v1936
  %v1999 = vadd.f32 %v1886, %v1939
  %v2000 = vadd.f32 %v1887, %v1944
  %v2001 = vadd.f32 %v1888, %v1947
  %v2002 = vadd.f32 %v1889, %v1952
  %v2003 = vadd.f32 %v1890, %v1955
  %v2004 = vadd.f32 %v1891, %v1960
  %v2005 = vadd.f32 %v1892, %v1963
  %v2006 = vadd.f32 %v1893, %v1968
  %v2007 = vadd.f32 %v1894, %v1971
  %v2008 = vadd.f32 %v1895, %v1976
  %v2009 = vadd.f32 %v1896, %v1979
  %v2010 = vadd.f32 %v1897, %v1984
  %v2011 = vadd.f32 %v1898, %v1987
  %v2012 = vadd.f32 %v1899, %v1992
  %v2013 = vadd.f32 %v1900, %v1995
  %v2014 = vld [vmem:[%s55 + $0x10] sm:$0xff]
  %v2015 = vld [vmem:[%s55 + $0x18] sm:$0xff]
  %v2016 = vld [vmem:[%s55 + $0x20] sm:$0xff]
  %v2017 = vld [vmem:[%s55 + $0x28] sm:$0xff]
  %v2018 = vld [vmem:[%s55 + $0x30] sm:$0xff]
  %v2019 = vld [vmem:[%s55 + $0x38] sm:$0xff]
  %v2020 = vld [vmem:[%s55 + $0x40] sm:$0xff]
  %v2021 = vld [vmem:[%s55 + $0x48] sm:$0xff]
  %v2022 = vld [vmem:[%s55 + $0xb0] sm:$0xff]
  %v2023 = vld [vmem:[%s55 + $0xb8] sm:$0xff]
  %v2024 = vld [vmem:[%s55 + $0xc0] sm:$0xff]
  %v2025 = vld [vmem:[%s55 + $0xc8] sm:$0xff]
  %v2026 = vld [vmem:[%s55 + $0xd0] sm:$0xff]
  %v2027 = vld [vmem:[%s55 + $0xd8] sm:$0xff]
  %v2028 = vld [vmem:[%s55 + $0xe0] sm:$0xff]
  %v2029 = vld [vmem:[%s55 + $0xe8] sm:$0xff]
  %v2046 = vunpack.c.l.b16 %v2014
  %v2047 = vunpack.c.h.b16 %v2014
  %v2048 = vunpack.c.l.b16 %v2015
  %v2049 = vunpack.c.h.b16 %v2015
  %v2050 = vunpack.c.l.b16 %v2016
  %v2051 = vunpack.c.h.b16 %v2016
  %v2052 = vunpack.c.l.b16 %v2017
  %v2053 = vunpack.c.h.b16 %v2017
  %v2054 = vunpack.c.l.b16 %v2018
  %v2055 = vunpack.c.h.b16 %v2018
  %v2056 = vunpack.c.l.b16 %v2019
  %v2057 = vunpack.c.h.b16 %v2019
  %v2058 = vunpack.c.l.b16 %v2020
  %v2059 = vunpack.c.h.b16 %v2020
  %v2060 = vunpack.c.l.b16 %v2021
  %v2061 = vunpack.c.h.b16 %v2021
  %v2062 = vunpack.c.l.b16 %v2022
  %v2063 = vunpack.c.h.b16 %v2022
  %v2064 = vunpack.c.l.b16 %v2023
  %v2065 = vunpack.c.h.b16 %v2023
  %v2066 = vunpack.c.l.b16 %v2024
  %v2067 = vunpack.c.h.b16 %v2024
  %v2068 = vunpack.c.l.b16 %v2025
  %v2069 = vunpack.c.h.b16 %v2025
  %v2070 = vunpack.c.l.b16 %v2026
  %v2071 = vunpack.c.h.b16 %v2026
  %v2072 = vunpack.c.l.b16 %v2027
  %v2073 = vunpack.c.h.b16 %v2027
  %v2074 = vunpack.c.l.b16 %v2028
  %v2075 = vunpack.c.h.b16 %v2028
  %v2076 = vunpack.c.l.b16 %v2029
  %v2077 = vunpack.c.h.b16 %v2029
  %v2078 = vpack.c.b16 %v2048, %v2046
  %v2079 = vpack.c.b16 %v2049, %v2047
  %v2080 = vpack.c.b16 %v2052, %v2050
  %v2081 = vpack.c.b16 %v2053, %v2051
  %v2082 = vpack.c.b16 %v2056, %v2054
  %v2083 = vpack.c.b16 %v2057, %v2055
  %v2084 = vpack.c.b16 %v2060, %v2058
  %v2085 = vpack.c.b16 %v2061, %v2059
  %v2086 = vpack.c.b16 %v2064, %v2062
  %v2087 = vpack.c.b16 %v2065, %v2063
  %v2088 = vpack.c.b16 %v2068, %v2066
  %v2089 = vpack.c.b16 %v2069, %v2067
  %v2090 = vpack.c.b16 %v2072, %v2070
  %v2091 = vpack.c.b16 %v2073, %v2071
  %v2092 = vpack.c.b16 %v2076, %v2074
  %v2093 = vpack.c.b16 %v2077, %v2075
  %v2103 = vsel %vm241, %v2079, 0
  %v2106 = vsel %vm241, %v2081, 0
  %v2109 = vsel %vm241, %v2083, 0
  %v2112 = vsel %vm241, %v2085, 0
  %v2115 = vsel %vm241, %v2087, 0
  %v2118 = vsel %vm241, %v2089, 0
  %v2121 = vsel %vm241, %v2091, 0
  %v2124 = vsel %vm241, %v2093, 0
  %2126 = vmatprep.subr.bf16.mxu0 0
  %2127 = vmatpush1.bf16.msra.mxu0 %v1440
  %2128 = vmatprep.subr.bf16.mxu0 0
  %2129 = vmatpush1.bf16.msra.mxu0 %v1439
  %2130 = vmatprep.subr.bf16.mxu0 0
  %2131 = vmatpush1.bf16.msra.mxu0 %v1438
  %2132 = vmatprep.subr.bf16.mxu0 0
  %2133 = vmatpush1.bf16.msra.mxu0 %v1437
  %2134 = vmatprep.subr.bf16.mxu0 0
  %2135 = vmatpush1.bf16.msra.mxu0 %v1436
  %2136 = vmatprep.subr.bf16.mxu0 0
  %2137 = vmatpush1.bf16.msra.mxu0 %v1435
  %2138 = vmatprep.subr.bf16.mxu0 0
  %2139 = vmatpush1.bf16.msra.mxu0 %v1434
  %2140 = vmatprep.subr.bf16.mxu0 0
  %2141 = vmatpush1.bf16.msra.mxu0 %v1433
  %2142 = vmatprep.subr.bf16.mxu0 0
  %2143 = vmatpush2.bf16.msra.mxu0 0
  %2144 = vmatprep.subr.bf16.mxu0 0
  %2145 = vmatpush2.bf16.msra.mxu0 0
  %2146 = vmatprep.subr.bf16.mxu0 0
  %2147 = vmatpush2.bf16.msra.mxu0 0
  %2148 = vmatprep.subr.bf16.mxu0 0
  %2149 = vmatpush2.bf16.msra.mxu0 0
  %2150 = vmatprep.subr.bf16.mxu0 0
  %2151 = vmatpush2.bf16.msra.mxu0 %v1444
  %2152 = vmatprep.subr.bf16.mxu0 0
  %2153 = vmatpush2.bf16.msra.mxu0 %v1443
  %2154 = vmatprep.subr.bf16.mxu0 0
  %2155 = vmatpush2.bf16.msra.mxu0 %v1442
  %2156 = vmatprep.subr.bf16.mxu0 0
  %2157 = vmatpush2.bf16.msra.mxu0 %v1441
  %2158 = vmatprep.mubr.bf16.mxu0 %v2103
  %2159 = vmatmul.mubr.bf16.gmra.mxu0 %v2078
  %v2160 = vpop.f32.mrf.mxu0
  %v2161 = vadd.f32 0.0, %v2160
  %v2162 = vpop.f32.mrf.mxu0
  %v2163 = vpop.f32.mrf.mxu0
  %v2164 = vadd.f32 0.0, %v2163
  %v2165 = vpop.f32.mrf.mxu0
  %2166 = vmatprep.mubr.bf16.mxu0 %v2106
  %2167 = vmatmul.mubr.bf16.gmra.mxu0 %v2080
  %v2168 = vpop.f32.mrf.mxu0
  %v2169 = vadd.f32 0.0, %v2168
  %v2170 = vpop.f32.mrf.mxu0
  %v2171 = vpop.f32.mrf.mxu0
  %v2172 = vadd.f32 0.0, %v2171
  %v2173 = vpop.f32.mrf.mxu0
  %2174 = vmatprep.mubr.bf16.mxu0 %v2109
  %2175 = vmatmul.mubr.bf16.gmra.mxu0 %v2082
  %v2176 = vpop.f32.mrf.mxu0
  %v2177 = vadd.f32 0.0, %v2176
  %v2178 = vpop.f32.mrf.mxu0
  %v2179 = vpop.f32.mrf.mxu0
  %v2180 = vadd.f32 0.0, %v2179
  %v2181 = vpop.f32.mrf.mxu0
  %2182 = vmatprep.mubr.bf16.mxu0 %v2112
  %2183 = vmatmul.mubr.bf16.gmra.mxu0 %v2084
  %v2184 = vpop.f32.mrf.mxu0
  %v2185 = vadd.f32 0.0, %v2184
  %v2186 = vpop.f32.mrf.mxu0
  %v2187 = vpop.f32.mrf.mxu0
  %v2188 = vadd.f32 0.0, %v2187
  %v2189 = vpop.f32.mrf.mxu0
  %2190 = vmatprep.mubr.bf16.mxu0 %v2115
  %2191 = vmatmul.mubr.bf16.gmra.mxu0 %v2086
  %v2192 = vpop.f32.mrf.mxu0
  %v2193 = vadd.f32 0.0, %v2192
  %v2194 = vpop.f32.mrf.mxu0
  %v2195 = vpop.f32.mrf.mxu0
  %v2196 = vadd.f32 0.0, %v2195
  %v2197 = vpop.f32.mrf.mxu0
  %2198 = vmatprep.mubr.bf16.mxu0 %v2118
  %2199 = vmatmul.mubr.bf16.gmra.mxu0 %v2088
  %v2200 = vpop.f32.mrf.mxu0
  %v2201 = vadd.f32 0.0, %v2200
  %v2202 = vpop.f32.mrf.mxu0
  %v2203 = vpop.f32.mrf.mxu0
  %v2204 = vadd.f32 0.0, %v2203
  %v2205 = vpop.f32.mrf.mxu0
  %2206 = vmatprep.mubr.bf16.mxu0 %v2121
  %2207 = vmatmul.mubr.bf16.gmra.mxu0 %v2090
  %v2208 = vpop.f32.mrf.mxu0
  %v2209 = vadd.f32 0.0, %v2208
  %v2210 = vpop.f32.mrf.mxu0
  %v2211 = vpop.f32.mrf.mxu0
  %v2212 = vadd.f32 0.0, %v2211
  %v2213 = vpop.f32.mrf.mxu0
  %2214 = vmatprep.mubr.bf16.mxu0 %v2124
  %2215 = vmatmul.mubr.bf16.gmra.mxu0 %v2092
  %v2216 = vpop.f32.mrf.mxu0
  %v2217 = vadd.f32 0.0, %v2216
  %v2218 = vpop.f32.mrf.mxu0
  %v2219 = vpop.f32.mrf.mxu0
  %v2220 = vadd.f32 0.0, %v2219
  %v2221 = vpop.f32.mrf.mxu0
  %2222 = vdwg.mxu0
  %v2223 = vadd.f32 %v1998, %v2161
  %v2224 = vadd.f32 %v1999, %v2164
  %v2225 = vadd.f32 %v2000, %v2169
  %v2226 = vadd.f32 %v2001, %v2172
  %v2227 = vadd.f32 %v2002, %v2177
  %v2228 = vadd.f32 %v2003, %v2180
  %v2229 = vadd.f32 %v2004, %v2185
  %v2230 = vadd.f32 %v2005, %v2188
  %v2231 = vadd.f32 %v2006, %v2193
  %v2232 = vadd.f32 %v2007, %v2196
  %v2233 = vadd.f32 %v2008, %v2201
  %v2234 = vadd.f32 %v2009, %v2204
  %v2235 = vadd.f32 %v2010, %v2209
  %v2236 = vadd.f32 %v2011, %v2212
  %v2237 = vadd.f32 %v2012, %v2217
  %v2238 = vadd.f32 %v2013, %v2220
  %v2239 = vmax.f32 %v1578, %v2223
  %v2240 = vmax.f32 %v1579, %v2224
  %v2241 = vmax.f32 %v1580, %v2225
  %v2242 = vmax.f32 %v1581, %v2226
  %v2243 = vmax.f32 %v1582, %v2227
  %v2244 = vmax.f32 %v1583, %v2228
  %v2245 = vmax.f32 %v1584, %v2229
  %v2246 = vmax.f32 %v1585, %v2230
  %v2247 = vmax.f32 %v1586, %v2231
  %v2248 = vmax.f32 %v1587, %v2232
  %v2249 = vmax.f32 %v1588, %v2233
  %v2250 = vmax.f32 %v1589, %v2234
  %v2251 = vmax.f32 %v1590, %v2235
  %v2252 = vmax.f32 %v1591, %v2236
  %v2253 = vmax.f32 %v1592, %v2237
  %v2254 = vmax.f32 %v1593, %v2238
  %2271 = vrot.lane.b32.xlu0 %v2239, 96
  %v2272 = vpop.permute.xlu0 %2271
  %2273 = vrot.lane.b32.xlu0 %v2240, 96
  %v2274 = vpop.permute.xlu0 %2273
  %2275 = vrot.lane.b32.xlu0 %v2241, 96
  %v2276 = vpop.permute.xlu0 %2275
  %2277 = vrot.lane.b32.xlu0 %v2242, 96
  %v2278 = vpop.permute.xlu0 %2277
  %2279 = vrot.lane.b32.xlu0 %v2243, 96
  %v2280 = vpop.permute.xlu0 %2279
  %2281 = vrot.lane.b32.xlu0 %v2244, 96
  %v2282 = vpop.permute.xlu0 %2281
  %2283 = vrot.lane.b32.xlu0 %v2245, 96
  %v2284 = vpop.permute.xlu0 %2283
  %2285 = vrot.lane.b32.xlu0 %v2246, 96
  %v2286 = vpop.permute.xlu0 %2285
  %2287 = vrot.lane.b32.xlu0 %v2247, 96
  %v2288 = vpop.permute.xlu0 %2287
  %2289 = vrot.lane.b32.xlu0 %v2248, 96
  %v2290 = vpop.permute.xlu0 %2289
  %2291 = vrot.lane.b32.xlu0 %v2249, 96
  %v2292 = vpop.permute.xlu0 %2291
  %2293 = vrot.lane.b32.xlu0 %v2250, 96
  %v2294 = vpop.permute.xlu0 %2293
  %2295 = vrot.lane.b32.xlu0 %v2251, 96
  %v2296 = vpop.permute.xlu0 %2295
  %2297 = vrot.lane.b32.xlu0 %v2252, 96
  %v2298 = vpop.permute.xlu0 %2297
  %2299 = vrot.lane.b32.xlu0 %v2253, 96
  %v2300 = vpop.permute.xlu0 %2299
  %2301 = vrot.lane.b32.xlu0 %v2254, 96
  %v2302 = vpop.permute.xlu0 %2301
  %v2319 = vmax.f32 %v2239, %v2272
  %v2320 = vmax.f32 %v2240, %v2274
  %v2321 = vmax.f32 %v2241, %v2276
  %v2322 = vmax.f32 %v2242, %v2278
  %v2323 = vmax.f32 %v2243, %v2280
  %v2324 = vmax.f32 %v2244, %v2282
  %v2325 = vmax.f32 %v2245, %v2284
  %v2326 = vmax.f32 %v2246, %v2286
  %v2327 = vmax.f32 %v2247, %v2288
  %v2328 = vmax.f32 %v2248, %v2290
  %v2329 = vmax.f32 %v2249, %v2292
  %v2330 = vmax.f32 %v2250, %v2294
  %v2331 = vmax.f32 %v2251, %v2296
  %v2332 = vmax.f32 %v2252, %v2298
  %v2333 = vmax.f32 %v2253, %v2300
  %v2334 = vmax.f32 %v2254, %v2302
  %v2335 = vld [vmem:[%s2] sm:$0x1]
  %v2337 = vlaneseq
  %v2338 = vshrl.u32 %v2337, 7
  %v2339 = vsub.s32 0, %v2338
  %v2340 = vrot.slane %v2335, %v2339
  %v2342 = vadd.f32 %v2319, %v2340
  %v2343 = vadd.f32 %v2320, %v2340
  %v2344 = vadd.f32 %v2321, %v2340
  %v2345 = vadd.f32 %v2322, %v2340
  %v2346 = vadd.f32 %v2323, %v2340
  %v2347 = vadd.f32 %v2324, %v2340
  %v2348 = vadd.f32 %v2325, %v2340
  %v2349 = vadd.f32 %v2326, %v2340
  %v2350 = vadd.f32 %v2327, %v2340
  %v2351 = vadd.f32 %v2328, %v2340
  %v2352 = vadd.f32 %v2329, %v2340
  %v2353 = vadd.f32 %v2330, %v2340
  %v2354 = vadd.f32 %v2331, %v2340
  %v2355 = vadd.f32 %v2332, %v2340
  %v2356 = vadd.f32 %v2333, %v2340
  %v2357 = vadd.f32 %v2334, %v2340
  %v2358 = vpack.c.bf16 %v2343, %v2342
  %v2359 = vpack.c.bf16 %v2345, %v2344
  %v2360 = vpack.c.bf16 %v2347, %v2346
  %v2361 = vpack.c.bf16 %v2349, %v2348
  %v2362 = vpack.c.bf16 %v2351, %v2350
  %v2363 = vpack.c.bf16 %v2353, %v2352
  %v2364 = vpack.c.bf16 %v2355, %v2354
  %v2365 = vpack.c.bf16 %v2357, %v2356
  %v2374 = vunpack.c.l.b16 %v2358
  %v2375 = vunpack.c.h.b16 %v2358
  %v2376 = vunpack.c.l.b16 %v2359
  %v2377 = vunpack.c.h.b16 %v2359
  %v2378 = vunpack.c.l.b16 %v2360
  %v2379 = vunpack.c.h.b16 %v2360
  %v2380 = vunpack.c.l.b16 %v2361
  %v2381 = vunpack.c.h.b16 %v2361
  %v2382 = vunpack.c.l.b16 %v2362
  %v2383 = vunpack.c.h.b16 %v2362
  %v2384 = vunpack.c.l.b16 %v2363
  %v2385 = vunpack.c.h.b16 %v2363
  %v2386 = vunpack.c.l.b16 %v2364
  %v2387 = vunpack.c.h.b16 %v2364
  %v2388 = vunpack.c.l.b16 %v2365
  %v2389 = vunpack.c.h.b16 %v2365
  %v2390 = vpack.c.b16 %v2374, %v2374
  %v2391 = vpack.c.b16 %v2375, %v2375
  %v2392 = vpack.c.b16 %v2376, %v2376
  %v2393 = vpack.c.b16 %v2377, %v2377
  %v2394 = vpack.c.b16 %v2378, %v2378
  %v2395 = vpack.c.b16 %v2379, %v2379
  %v2396 = vpack.c.b16 %v2380, %v2380
  %v2397 = vpack.c.b16 %v2381, %v2381
  %v2398 = vpack.c.b16 %v2382, %v2382
  %v2399 = vpack.c.b16 %v2383, %v2383
  %v2400 = vpack.c.b16 %v2384, %v2384
  %v2401 = vpack.c.b16 %v2385, %v2385
  %v2402 = vpack.c.b16 %v2386, %v2386
  %v2403 = vpack.c.b16 %v2387, %v2387
  %v2404 = vpack.c.b16 %v2388, %v2388
  %v2405 = vpack.c.b16 %v2389, %v2389
  %vm2422 = vcmask 257024
  %2423 = vst.msk [vmem:[%s3] sm:$0xf] %vm2422, %v2390
  %2424 = vst.msk [vmem:[%s3 + $0x4] sm:$0xf] %vm2422, %v2391
  %2425 = vst.msk [vmem:[%s3 + $0x8] sm:$0xf] %vm2422, %v2392
  %2426 = vst.msk [vmem:[%s3 + $0xc] sm:$0xf] %vm2422, %v2393
  %2427 = vst.msk [vmem:[%s3 + $0x10] sm:$0xf] %vm2422, %v2394
  %2428 = vst.msk [vmem:[%s3 + $0x14] sm:$0xf] %vm2422, %v2395
  %2429 = vst.msk [vmem:[%s3 + $0x18] sm:$0xf] %vm2422, %v2396
  %2430 = vst.msk [vmem:[%s3 + $0x1c] sm:$0xf] %vm2422, %v2397
  %2431 = vst.msk [vmem:[%s3 + $0x20] sm:$0xf] %vm2422, %v2398
  %2432 = vst.msk [vmem:[%s3 + $0x24] sm:$0xf] %vm2422, %v2399
  %2433 = vst.msk [vmem:[%s3 + $0x28] sm:$0xf] %vm2422, %v2400
  %2434 = vst.msk [vmem:[%s3 + $0x2c] sm:$0xf] %vm2422, %v2401
  %2435 = vst.msk [vmem:[%s3 + $0x30] sm:$0xf] %vm2422, %v2402
  %2436 = vst.msk [vmem:[%s3 + $0x34] sm:$0xf] %vm2422, %v2403
  %2437 = vst.msk [vmem:[%s3 + $0x38] sm:$0xf] %vm2422, %v2404
  %2438 = vst.msk [vmem:[%s3 + $0x3c] sm:$0xf] %vm2422, %v2405
  // Predicated region
  $region14: #{forward.4} parent=0 // pred_check
    _
  $region15: #{forward.4} parent=0 // pred_check_branch
    %2440 = sbr.rel (0) target = $region17
  $region16: #{forward.4} parent=0 // pred_region
    _
  $region17: #{forward.4} parent=0 // pred_fallthru
    _
  // Predicated region
  $region18: #{forward.4} parent=0 // pred_check
    _
  $region19: #{forward.4} parent=0 // pred_check_branch
    %2442 = sbr.rel (0) target = $region21
  $region20: #{forward.4} parent=0 // pred_region
    _
  $region21: #{forward.4} parent=0 // pred_fallthru
    _

// kernel: forward.5
$region0: #{forward.5}
  #allocation0 [shape = 'u32[]', space=smem, size = 0x4, offset = 0x4, fixed_abs, tag = 'smem constant byte address 0x4 - core index']
  #allocation1 [shape = 'u32[144,128]{1,0:T(1,128)}', space=vmem, size = 0x12000, scoped, tag = 'internal scratch']
  %s0 = inlined_call_operand.vmem [shape: bf16[2,2,24,192], index: 0, kind: input, shape index: {}]
  %s1 = inlined_call_operand.vmem [shape: bf16[5,192,128], index: 1, kind: input, shape index: {}]
  %s2 = inlined_call_operand.vmem [shape: f32[1,64], index: 2, kind: input, shape index: {}]
  %s3 = inlined_call_operand.vmem [shape: bf16[16,64,64], index: 3, kind: input, shape index: {}]
  %s4 = inlined_call_operand.vmem [shape: f32[1,64], index: 4, kind: input, shape index: {}]
  %s5 = inlined_call_operand.vmem [shape: bf16[64,128], index: 5, kind: input, shape index: {}]
  %s6 = inlined_call_operand.vmem [shape: f32[1,128], index: 6, kind: input, shape index: {}]
  %s7 = inlined_call_operand.hbm [shape: f32[1,2,128], index: 7, kind: output, shape index: {}]
  %s8 = sld [smem:[#allocation0]]
  $region38: #{forward.5} parent=0
    _
  %s10 = ssub.s32 1, %s8
  %s11 = scalar_select 0, %s10, %s8
  $region1: #{forward.5} parent=0
    #allocation2 [shape = 'u8[1024]{0}', space=vmem, size = 0x400, scoped, tag = 'output window, operand 0, single buffered']
    #allocation3 [shape = 's32[1]{0}', space=sflag, size = 0x4, scoped, tag = 'scoped memory for forward.5']
    %12 = vsyncpa [#allocation3], 0
    // Predicated region
    $region2: #{forward.5} parent=1 // pred_check
      _
    $region3: #{forward.5} parent=1 // pred_check_branch
      %14 = sbr.rel (0) target = $region5
    $region4: #{forward.5} parent=1 // pred_region
      _
    $region5: #{forward.5} parent=1 // pred_fallthru
      _
    // Predicated region
    $region6: #{forward.5} parent=1 // pred_check
      _
    $region7: #{forward.5} parent=1 // pred_check_branch
      %16 = sbr.rel (0) target = $region9
    $region8: #{forward.5} parent=1 // pred_region
      _
    $region9: #{forward.5} parent=1 // pred_fallthru
      _
    // Predicated region
    $region10: #{forward.5} parent=1 // pred_check
      _
    $region11: #{forward.5} parent=1 // pred_check_branch
      %18 = sbr.rel (0) target = $region13
    $region12: #{forward.5} parent=1 // pred_region
      _
    $region13: #{forward.5} parent=1 // pred_fallthru
      _
    // Predicated region
    $region14: #{forward.5} parent=1 // pred_check
      _
    $region15: #{forward.5} parent=1 // pred_check_branch
      %20 = sbr.rel (0) target = $region17
    $region16: #{forward.5} parent=1 // pred_region
      _
    $region17: #{forward.5} parent=1 // pred_fallthru
      _
    // Predicated region
    $region18: #{forward.5} parent=1 // pred_check
      _
    $region19: #{forward.5} parent=1 // pred_check_branch
      %22 = sbr.rel (0) target = $region21
    $region20: #{forward.5} parent=1 // pred_region
      _
    $region21: #{forward.5} parent=1 // pred_fallthru
      _
    // Predicated region
    $region22: #{forward.5} parent=1 // pred_check
      _
    $region23: #{forward.5} parent=1 // pred_check_branch
      %24 = sbr.rel (0) target = $region25
    $region24: #{forward.5} parent=1 // pred_region
      _
    $region25: #{forward.5} parent=1 // pred_fallthru
      _
    // Predicated region
    $region26: #{forward.5} parent=1 // pred_check
      _
    $region27: #{forward.5} parent=1 // pred_check_branch
      %26 = sbr.rel (0) target = $region29
    $region28: #{forward.5} parent=1 // pred_region
      _
    $region29: #{forward.5} parent=1 // pred_fallthru
      _
    %v28 = vld [vmem:[%s0] sm:$0xff]
    %v29 = vld [vmem:[%s0 + $0x8] sm:$0xff]
    %v30 = vld [vmem:[%s0 + $0x30] sm:$0xff]
    %v31 = vld [vmem:[%s0 + $0x38] sm:$0xff]
    %v32 = vld [vmem:[%s1] sm:$0xf]
    %v33 = vld [vmem:[%s1 + $0x4] sm:$0xf]
    %v34 = vld [vmem:[%s1 + $0x8] sm:$0xf]
    %v35 = vld [vmem:[%s1 + $0xc] sm:$0xf]
    %v36 = vld [vmem:[%s1 + $0x10] sm:$0xf]
    %v37 = vld [vmem:[%s1 + $0x14] sm:$0xf]
    %v38 = vld [vmem:[%s1 + $0x18] sm:$0xf]
    %v39 = vld [vmem:[%s1 + $0x1c] sm:$0xf]
    %v40 = vld [vmem:[%s1 + $0x20] sm:$0xf]
    %v41 = vld [vmem:[%s1 + $0x24] sm:$0xf]
    %v42 = vld [vmem:[%s1 + $0x28] sm:$0xf]
    %v43 = vld [vmem:[%s1 + $0x2c] sm:$0xf]
    %v44 = vld [vmem:[%s1 + $0x30] sm:$0xf]
    %v45 = vld [vmem:[%s1 + $0x34] sm:$0xf]
    %v46 = vld [vmem:[%s1 + $0x38] sm:$0xf]
    %v47 = vld [vmem:[%s1 + $0x3c] sm:$0xf]
    %v48 = vld [vmem:[%s1 + $0x40] sm:$0xf]
    %v49 = vld [vmem:[%s1 + $0x44] sm:$0xf]
    %v50 = vld [vmem:[%s1 + $0x48] sm:$0xf]
    %v51 = vld [vmem:[%s1 + $0x4c] sm:$0xf]
    %v52 = vld [vmem:[%s1 + $0x50] sm:$0xf]
    %v53 = vld [vmem:[%s1 + $0x54] sm:$0xf]
    %v54 = vld [vmem:[%s1 + $0x58] sm:$0xf]
    %v55 = vld [vmem:[%s1 + $0x5c] sm:$0xf]
    %s56 = scalar_lea.vmem %s0, 24
    %v57 = vld [vmem:[%s56] sm:$0xff]
    %v58 = vld [vmem:[%s56 + $0x8] sm:$0xff]
    %v59 = vld [vmem:[%s56 + $0x30] sm:$0xff]
    %v60 = vld [vmem:[%s56 + $0x38] sm:$0xff]
    %s61 = scalar_lea.vmem %s1, 96
    %v62 = vld [vmem:[%s61] sm:$0xf]
    %v63 = vld [vmem:[%s61 + $0x4] sm:$0xf]
    %v64 = vld [vmem:[%s61 + $0x8] sm:$0xf]
    %v65 = vld [vmem:[%s61 + $0xc] sm:$0xf]
    %v66 = vld [vmem:[%s61 + $0x10] sm:$0xf]
    %v67 = vld [vmem:[%s61 + $0x14] sm:$0xf]
    %v68 = vld [vmem:[%s61 + $0x18] sm:$0xf]
    %v69 = vld [vmem:[%s61 + $0x1c] sm:$0xf]
    %v70 = vld [vmem:[%s61 + $0x20] sm:$0xf]
    %v71 = vld [vmem:[%s61 + $0x24] sm:$0xf]
    %v72 = vld [vmem:[%s61 + $0x28] sm:$0xf]
    %v73 = vld [vmem:[%s61 + $0x2c] sm:$0xf]
    %v74 = vld [vmem:[%s61 + $0x30] sm:$0xf]
    %v75 = vld [vmem:[%s61 + $0x34] sm:$0xf]
    %v76 = vld [vmem:[%s61 + $0x38] sm:$0xf]
    %v77 = vld [vmem:[%s61 + $0x3c] sm:$0xf]
    %v78 = vld [vmem:[%s61 + $0x40] sm:$0xf]
    %v79 = vld [vmem:[%s61 + $0x44] sm:$0xf]
    %v80 = vld [vmem:[%s61 + $0x48] sm:$0xf]
    %v81 = vld [vmem:[%s61 + $0x4c] sm:$0xf]
    %v82 = vld [vmem:[%s61 + $0x50] sm:$0xf]
    %v83 = vld [vmem:[%s61 + $0x54] sm:$0xf]
    %v84 = vld [vmem:[%s61 + $0x58] sm:$0xf]
    %v85 = vld [vmem:[%s61 + $0x5c] sm:$0xf]
    %v90 = vunpack.c.l.b16 %v57
    %v91 = vunpack.c.h.b16 %v57
    %v92 = vunpack.c.l.b16 %v58
    %v93 = vunpack.c.h.b16 %v58
    %v94 = vunpack.c.l.b16 %v59
    %v95 = vunpack.c.h.b16 %v59
    %v96 = vunpack.c.l.b16 %v60
    %v97 = vunpack.c.h.b16 %v60
    %v98 = vpack.c.b16 %v92, %v90
    %v99 = vpack.c.b16 %v93, %v91
    %v100 = vpack.c.b16 %v96, %v94
    %v101 = vpack.c.b16 %v97, %v95
    %v128 = vunpack.c.l.b16 %v62
    %v129 = vunpack.c.l.b16 %v63
    %v130 = vunpack.c.l.b16 %v64
    %v131 = vunpack.c.l.b16 %v65
    %v132 = vunpack.c.l.b16 %v66
    %v133 = vunpack.c.l.b16 %v67
    %v134 = vunpack.c.l.b16 %v68
    %v135 = vunpack.c.l.b16 %v69
    %v136 = vunpack.c.l.b16 %v70
    %v137 = vunpack.c.l.b16 %v71
    %v138 = vunpack.c.l.b16 %v72
    %v139 = vunpack.c.l.b16 %v73
    %v140 = vunpack.c.l.b16 %v74
    %v141 = vunpack.c.l.b16 %v75
    %v142 = vunpack.c.l.b16 %v76
    %v143 = vunpack.c.l.b16 %v77
    %v144 = vunpack.c.l.b16 %v78
    %v145 = vunpack.c.l.b16 %v79
    %v146 = vunpack.c.l.b16 %v80
    %v147 = vunpack.c.l.b16 %v81
    %v148 = vunpack.c.l.b16 %v82
    %v149 = vunpack.c.l.b16 %v83
    %v150 = vunpack.c.l.b16 %v84
    %v151 = vunpack.c.l.b16 %v85
    %v152 = vpack.c.b16 %v129, %v128
    %v153 = vpack.c.b16 %v131, %v130
    %v154 = vpack.c.b16 %v133, %v132
    %v155 = vpack.c.b16 %v135, %v134
    %v156 = vpack.c.b16 %v137, %v136
    %v157 = vpack.c.b16 %v139, %v138
    %v158 = vpack.c.b16 %v141, %v140
    %v159 = vpack.c.b16 %v143, %v142
    %v160 = vpack.c.b16 %v145, %v144
    %v161 = vpack.c.b16 %v147, %v146
    %v162 = vpack.c.b16 %v149, %v148
    %v163 = vpack.c.b16 %v151, %v150
    %vm176 = vcmask 523264
    %v178 = vsel %vm176, %v99, 0
    %v181 = vsel %vm176, %v101, 0
    %183 = vmatprep.subr.bf16.mxu0 0
    %184 = vmatpush1.bf16.msra.mxu0 %v159
    %185 = vmatprep.subr.bf16.mxu0 0
    %186 = vmatpush1.bf16.msra.mxu0 %v158
    %187 = vmatprep.subr.bf16.mxu0 0
    %188 = vmatpush1.bf16.msra.mxu0 %v157
    %189 = vmatprep.subr.bf16.mxu0 0
    %190 = vmatpush1.bf16.msra.mxu0 %v156
    %191 = vmatprep.subr.bf16.mxu0 0
    %192 = vmatpush1.bf16.msra.mxu0 %v155
    %193 = vmatprep.subr.bf16.mxu0 0
    %194 = vmatpush1.bf16.msra.mxu0 %v154
    %195 = vmatprep.subr.bf16.mxu0 0
    %196 = vmatpush1.bf16.msra.mxu0 %v153
    %197 = vmatprep.subr.bf16.mxu0 0
    %198 = vmatpush1.bf16.msra.mxu0 %v152
    %199 = vmatprep.subr.bf16.mxu0 0
    %200 = vmatpush2.bf16.msra.mxu0 0
    %201 = vmatprep.subr.bf16.mxu0 0
    %202 = vmatpush2.bf16.msra.mxu0 0
    %203 = vmatprep.subr.bf16.mxu0 0
    %204 = vmatpush2.bf16.msra.mxu0 0
    %205 = vmatprep.subr.bf16.mxu0 0
    %206 = vmatpush2.bf16.msra.mxu0 0
    %207 = vmatprep.subr.bf16.mxu0 0
    %208 = vmatpush2.bf16.msra.mxu0 %v163
    %209 = vmatprep.subr.bf16.mxu0 0
    %210 = vmatpush2.bf16.msra.mxu0 %v162
    %211 = vmatprep.subr.bf16.mxu0 0
    %212 = vmatpush2.bf16.msra.mxu0 %v161
    %213 = vmatprep.subr.bf16.mxu0 0
    %214 = vmatpush2.bf16.msra.mxu0 %v160
    %215 = vmatprep.mubr.bf16.mxu0 %v178
    %216 = vmatmul.mubr.bf16.gmra.mxu0 %v98
    %v217 = vpop.f32.mrf.mxu0
    %v218 = vadd.f32 0.0, %v217
    %v219 = vpop.f32.mrf.mxu0
    %v220 = vpop.f32.mrf.mxu0
    %v221 = vadd.f32 0.0, %v220
    %v222 = vpop.f32.mrf.mxu0
    %223 = vmatprep.mubr.bf16.mxu0 %v181
    %224 = vmatmul.mubr.bf16.gmra.mxu0 %v100
    %v225 = vpop.f32.mrf.mxu0
    %v226 = vadd.f32 0.0, %v225
    %v227 = vpop.f32.mrf.mxu0
    %v228 = vpop.f32.mrf.mxu0
    %v229 = vadd.f32 0.0, %v228
    %v230 = vpop.f32.mrf.mxu0
    %231 = vdwg.mxu0
    %v236 = vunpack.c.l.b16 %v28
    %v237 = vunpack.c.h.b16 %v28
    %v238 = vunpack.c.l.b16 %v29
    %v239 = vunpack.c.h.b16 %v29
    %v240 = vunpack.c.l.b16 %v30
    %v241 = vunpack.c.h.b16 %v30
    %v242 = vunpack.c.l.b16 %v31
    %v243 = vunpack.c.h.b16 %v31
    %v244 = vpack.c.b16 %v238, %v236
    %v245 = vpack.c.b16 %v239, %v237
    %v246 = vpack.c.b16 %v242, %v240
    %v247 = vpack.c.b16 %v243, %v241
    %v274 = vunpack.c.l.b16 %v32
    %v275 = vunpack.c.l.b16 %v33
    %v276 = vunpack.c.l.b16 %v34
    %v277 = vunpack.c.l.b16 %v35
    %v278 = vunpack.c.l.b16 %v36
    %v279 = vunpack.c.l.b16 %v37
    %v280 = vunpack.c.l.b16 %v38
    %v281 = vunpack.c.l.b16 %v39
    %v282 = vunpack.c.l.b16 %v40
    %v283 = vunpack.c.l.b16 %v41
    %v284 = vunpack.c.l.b16 %v42
    %v285 = vunpack.c.l.b16 %v43
    %v286 = vunpack.c.l.b16 %v44
    %v287 = vunpack.c.l.b16 %v45
    %v288 = vunpack.c.l.b16 %v46
    %v289 = vunpack.c.l.b16 %v47
    %v290 = vunpack.c.l.b16 %v48
    %v291 = vunpack.c.l.b16 %v49
    %v292 = vunpack.c.l.b16 %v50
    %v293 = vunpack.c.l.b16 %v51
    %v294 = vunpack.c.l.b16 %v52
    %v295 = vunpack.c.l.b16 %v53
    %v296 = vunpack.c.l.b16 %v54
    %v297 = vunpack.c.l.b16 %v55
    %v298 = vpack.c.b16 %v275, %v274
    %v299 = vpack.c.b16 %v277, %v276
    %v300 = vpack.c.b16 %v279, %v278
    %v301 = vpack.c.b16 %v281, %v280
    %v302 = vpack.c.b16 %v283, %v282
    %v303 = vpack.c.b16 %v285, %v284
    %v304 = vpack.c.b16 %v287, %v286
    %v305 = vpack.c.b16 %v289, %v288
    %v306 = vpack.c.b16 %v291, %v290
    %v307 = vpack.c.b16 %v293, %v292
    %v308 = vpack.c.b16 %v295, %v294
    %v309 = vpack.c.b16 %v297, %v296
    %v323 = vsel %vm176, %v245, 0
    %v326 = vsel %vm176, %v247, 0
    %328 = vmatprep.subr.bf16.mxu0 0
    %329 = vmatpush1.bf16.msra.mxu0 %v305
    %330 = vmatprep.subr.bf16.mxu0 0
    %331 = vmatpush1.bf16.msra.mxu0 %v304
    %332 = vmatprep.subr.bf16.mxu0 0
    %333 = vmatpush1.bf16.msra.mxu0 %v303
    %334 = vmatprep.subr.bf16.mxu0 0
    %335 = vmatpush1.bf16.msra.mxu0 %v302
    %336 = vmatprep.subr.bf16.mxu0 0
    %337 = vmatpush1.bf16.msra.mxu0 %v301
    %338 = vmatprep.subr.bf16.mxu0 0
    %339 = vmatpush1.bf16.msra.mxu0 %v300
    %340 = vmatprep.subr.bf16.mxu0 0
    %341 = vmatpush1.bf16.msra.mxu0 %v299
    %342 = vmatprep.subr.bf16.mxu0 0
    %343 = vmatpush1.bf16.msra.mxu0 %v298
    %344 = vmatprep.subr.bf16.mxu0 0
    %345 = vmatpush2.bf16.msra.mxu0 0
    %346 = vmatprep.subr.bf16.mxu0 0
    %347 = vmatpush2.bf16.msra.mxu0 0
    %348 = vmatprep.subr.bf16.mxu0 0
    %349 = vmatpush2.bf16.msra.mxu0 0
    %350 = vmatprep.subr.bf16.mxu0 0
    %351 = vmatpush2.bf16.msra.mxu0 0
    %352 = vmatprep.subr.bf16.mxu0 0
    %353 = vmatpush2.bf16.msra.mxu0 %v309
    %354 = vmatprep.subr.bf16.mxu0 0
    %355 = vmatpush2.bf16.msra.mxu0 %v308
    %356 = vmatprep.subr.bf16.mxu0 0
    %357 = vmatpush2.bf16.msra.mxu0 %v307
    %358 = vmatprep.subr.bf16.mxu0 0
    %359 = vmatpush2.bf16.msra.mxu0 %v306
    %360 = vmatprep.mubr.bf16.mxu0 %v323
    %361 = vmatmul.mubr.bf16.gmra.mxu0 %v244
    %v362 = vpop.f32.mrf.mxu0
    %v363 = vadd.f32 %v218, %v362
    %v364 = vpop.f32.mrf.mxu0
    %v365 = vpop.f32.mrf.mxu0
    %v366 = vadd.f32 %v221, %v365
    %v367 = vpop.f32.mrf.mxu0
    %368 = vmatprep.mubr.bf16.mxu0 %v326
    %369 = vmatmul.mubr.bf16.gmra.mxu0 %v246
    %v370 = vpop.f32.mrf.mxu0
    %v371 = vadd.f32 %v226, %v370
    %v372 = vpop.f32.mrf.mxu0
    %v373 = vpop.f32.mrf.mxu0
    %v374 = vadd.f32 %v229, %v373
    %v375 = vpop.f32.mrf.mxu0
    %376 = vdwg.mxu0
    %v377 = vld [vmem:[%s0] sm:$0xcc]
    %v378 = vld [vmem:[%s0 + $0x8] sm:$0xff]
    %v379 = vld [vmem:[%s0 + $0x10] sm:$0x33]
    %v380 = vld [vmem:[%s0 + $0x30] sm:$0xcc]
    %v381 = vld [vmem:[%s0 + $0x38] sm:$0xff]
    %v382 = vld [vmem:[%s0 + $0x40] sm:$0x33]
    %vm389 = vcmask 1041408
    %vm390 = vcmask 1045508
    %vm391 = vmor %vm389, %vm390
    %v392 = vrot.slane %v377, 6
    %v393 = vrot.slane %v392, 4
    %v394 = vrot.slane %v378, 6
    %v395 = vsel %vm391, %v393, %v394
    %v396 = vrot.slane %v394, 4
    %v397 = vrot.slane %v379, 6
    %v398 = vsel %vm391, %v396, %v397
    %v399 = vrot.slane %v380, 6
    %v400 = vrot.slane %v399, 4
    %v401 = vrot.slane %v381, 6
    %v402 = vsel %vm391, %v400, %v401
    %v403 = vrot.slane %v401, 4
    %v404 = vrot.slane %v382, 6
    %v405 = vsel %vm391, %v403, %v404
    %s406 = scalar_lea.vmem %s1, 192
    %v407 = vld [vmem:[%s406] sm:$0xf]
    %v408 = vld [vmem:[%s406 + $0x4] sm:$0xf]
    %v409 = vld [vmem:[%s406 + $0x8] sm:$0xf]
    %v410 = vld [vmem:[%s406 + $0xc] sm:$0xf]
    %v411 = vld [vmem:[%s406 + $0x10] sm:$0xf]
    %v412 = vld [vmem:[%s406 + $0x14] sm:$0xf]
    %v413 = vld [vmem:[%s406 + $0x18] sm:$0xf]
    %v414 = vld [vmem:[%s406 + $0x1c] sm:$0xf]
    %v415 = vld [vmem:[%s406 + $0x20] sm:$0xf]
    %v416 = vld [vmem:[%s406 + $0x24] sm:$0xf]
    %v417 = vld [vmem:[%s406 + $0x28] sm:$0xf]
    %v418 = vld [vmem:[%s406 + $0x2c] sm:$0xf]
    %v419 = vld [vmem:[%s406 + $0x30] sm:$0xf]
    %v420 = vld [vmem:[%s406 + $0x34] sm:$0xf]
    %v421 = vld [vmem:[%s406 + $0x38] sm:$0xf]
    %v422 = vld [vmem:[%s406 + $0x3c] sm:$0xf]
    %v423 = vld [vmem:[%s406 + $0x40] sm:$0xf]
    %v424 = vld [vmem:[%s406 + $0x44] sm:$0xf]
    %v425 = vld [vmem:[%s406 + $0x48] sm:$0xf]
    %v426 = vld [vmem:[%s406 + $0x4c] sm:$0xf]
    %v427 = vld [vmem:[%s406 + $0x50] sm:$0xf]
    %v428 = vld [vmem:[%s406 + $0x54] sm:$0xf]
    %v429 = vld [vmem:[%s406 + $0x58] sm:$0xf]
    %v430 = vld [vmem:[%s406 + $0x5c] sm:$0xf]
    %v431 = vunpack.c.l.b16 %v395
    %v432 = vunpack.c.h.b16 %v395
    %v433 = vunpack.c.l.b16 %v398
    %v434 = vunpack.c.h.b16 %v398
    %v435 = vunpack.c.l.b16 %v402
    %v436 = vunpack.c.h.b16 %v402
    %v437 = vunpack.c.l.b16 %v405
    %v438 = vunpack.c.h.b16 %v405
    %v439 = vpack.c.b16 %v433, %v431
    %v440 = vpack.c.b16 %v434, %v432
    %v441 = vpack.c.b16 %v437, %v435
    %v442 = vpack.c.b16 %v438, %v436
    %v469 = vunpack.c.l.b16 %v407
    %v470 = vunpack.c.l.b16 %v408
    %v471 = vunpack.c.l.b16 %v409
    %v472 = vunpack.c.l.b16 %v410
    %v473 = vunpack.c.l.b16 %v411
    %v474 = vunpack.c.l.b16 %v412
    %v475 = vunpack.c.l.b16 %v413
    %v476 = vunpack.c.l.b16 %v414
    %v477 = vunpack.c.l.b16 %v415
    %v478 = vunpack.c.l.b16 %v416
    %v479 = vunpack.c.l.b16 %v417
    %v480 = vunpack.c.l.b16 %v418
    %v481 = vunpack.c.l.b16 %v419
    %v482 = vunpack.c.l.b16 %v420
    %v483 = vunpack.c.l.b16 %v421
    %v484 = vunpack.c.l.b16 %v422
    %v485 = vunpack.c.l.b16 %v423
    %v486 = vunpack.c.l.b16 %v424
    %v487 = vunpack.c.l.b16 %v425
    %v488 = vunpack.c.l.b16 %v426
    %v489 = vunpack.c.l.b16 %v427
    %v490 = vunpack.c.l.b16 %v428
    %v491 = vunpack.c.l.b16 %v429
    %v492 = vunpack.c.l.b16 %v430
    %v493 = vpack.c.b16 %v470, %v469
    %v494 = vpack.c.b16 %v472, %v471
    %v495 = vpack.c.b16 %v474, %v473
    %v496 = vpack.c.b16 %v476, %v475
    %v497 = vpack.c.b16 %v478, %v477
    %v498 = vpack.c.b16 %v480, %v479
    %v499 = vpack.c.b16 %v482, %v481
    %v500 = vpack.c.b16 %v484, %v483
    %v501 = vpack.c.b16 %v486, %v485
    %v502 = vpack.c.b16 %v488, %v487
    %v503 = vpack.c.b16 %v490, %v489
    %v504 = vpack.c.b16 %v492, %v491
    %v518 = vsel %vm176, %v440, 0
    %v521 = vsel %vm176, %v442, 0
    %523 = vmatprep.subr.bf16.mxu0 0
    %524 = vmatpush1.bf16.msra.mxu0 %v500
    %525 = vmatprep.subr.bf16.mxu0 0
    %526 = vmatpush1.bf16.msra.mxu0 %v499
    %527 = vmatprep.subr.bf16.mxu0 0
    %528 = vmatpush1.bf16.msra.mxu0 %v498
    %529 = vmatprep.subr.bf16.mxu0 0
    %530 = vmatpush1.bf16.msra.mxu0 %v497
    %531 = vmatprep.subr.bf16.mxu0 0
    %532 = vmatpush1.bf16.msra.mxu0 %v496
    %533 = vmatprep.subr.bf16.mxu0 0
    %534 = vmatpush1.bf16.msra.mxu0 %v495
    %535 = vmatprep.subr.bf16.mxu0 0
    %536 = vmatpush1.bf16.msra.mxu0 %v494
    %537 = vmatprep.subr.bf16.mxu0 0
    %538 = vmatpush1.bf16.msra.mxu0 %v493
    %539 = vmatprep.subr.bf16.mxu0 0
    %540 = vmatpush2.bf16.msra.mxu0 0
    %541 = vmatprep.subr.bf16.mxu0 0
    %542 = vmatpush2.bf16.msra.mxu0 0
    %543 = vmatprep.subr.bf16.mxu0 0
    %544 = vmatpush2.bf16.msra.mxu0 0
    %545 = vmatprep.subr.bf16.mxu0 0
    %546 = vmatpush2.bf16.msra.mxu0 0
    %547 = vmatprep.subr.bf16.mxu0 0
    %548 = vmatpush2.bf16.msra.mxu0 %v504
    %549 = vmatprep.subr.bf16.mxu0 0
    %550 = vmatpush2.bf16.msra.mxu0 %v503
    %551 = vmatprep.subr.bf16.mxu0 0
    %552 = vmatpush2.bf16.msra.mxu0 %v502
    %553 = vmatprep.subr.bf16.mxu0 0
    %554 = vmatpush2.bf16.msra.mxu0 %v501
    %555 = vmatprep.mubr.bf16.mxu0 %v518
    %556 = vmatmul.mubr.bf16.gmra.mxu0 %v439
    %v557 = vpop.f32.mrf.mxu0
    %v558 = vadd.f32 0.0, %v557
    %v559 = vpop.f32.mrf.mxu0
    %v560 = vpop.f32.mrf.mxu0
    %v561 = vadd.f32 0.0, %v560
    %v562 = vpop.f32.mrf.mxu0
    %563 = vmatprep.mubr.bf16.mxu0 %v521
    %564 = vmatmul.mubr.bf16.gmra.mxu0 %v441
    %v565 = vpop.f32.mrf.mxu0
    %v566 = vadd.f32 0.0, %v565
    %v567 = vpop.f32.mrf.mxu0
    %v568 = vpop.f32.mrf.mxu0
    %v569 = vadd.f32 0.0, %v568
    %v570 = vpop.f32.mrf.mxu0
    %571 = vdwg.mxu0
    %v572 = vadd.f32 %v363, %v558
    %v573 = vadd.f32 %v366, %v561
    %v574 = vadd.f32 %v371, %v566
    %v575 = vadd.f32 %v374, %v569
    %v576 = vld [vmem:[%s56] sm:$0xcc]
    %v577 = vld [vmem:[%s56 + $0x8] sm:$0xff]
    %v578 = vld [vmem:[%s56 + $0x10] sm:$0x33]
    %v579 = vld [vmem:[%s56 + $0x30] sm:$0xcc]
    %v580 = vld [vmem:[%s56 + $0x38] sm:$0xff]
    %v581 = vld [vmem:[%s56 + $0x40] sm:$0x33]
    %v588 = vrot.slane %v576, 6
    %v589 = vrot.slane %v588, 4
    %v590 = vrot.slane %v577, 6
    %v591 = vsel %vm391, %v589, %v590
    %v592 = vrot.slane %v590, 4
    %v593 = vrot.slane %v578, 6
    %v594 = vsel %vm391, %v592, %v593
    %v595 = vrot.slane %v579, 6
    %v596 = vrot.slane %v595, 4
    %v597 = vrot.slane %v580, 6
    %v598 = vsel %vm391, %v596, %v597
    %v599 = vrot.slane %v597, 4
    %v600 = vrot.slane %v581, 6
    %v601 = vsel %vm391, %v599, %v600
    %s602 = scalar_lea.vmem %s1, 288
    %v603 = vld [vmem:[%s602] sm:$0xf]
    %v604 = vld [vmem:[%s602 + $0x4] sm:$0xf]
    %v605 = vld [vmem:[%s602 + $0x8] sm:$0xf]
    %v606 = vld [vmem:[%s602 + $0xc] sm:$0xf]
    %v607 = vld [vmem:[%s602 + $0x10] sm:$0xf]
    %v608 = vld [vmem:[%s602 + $0x14] sm:$0xf]
    %v609 = vld [vmem:[%s602 + $0x18] sm:$0xf]
    %v610 = vld [vmem:[%s602 + $0x1c] sm:$0xf]
    %v611 = vld [vmem:[%s602 + $0x20] sm:$0xf]
    %v612 = vld [vmem:[%s602 + $0x24] sm:$0xf]
    %v613 = vld [vmem:[%s602 + $0x28] sm:$0xf]
    %v614 = vld [vmem:[%s602 + $0x2c] sm:$0xf]
    %v615 = vld [vmem:[%s602 + $0x30] sm:$0xf]
    %v616 = vld [vmem:[%s602 + $0x34] sm:$0xf]
    %v617 = vld [vmem:[%s602 + $0x38] sm:$0xf]
    %v618 = vld [vmem:[%s602 + $0x3c] sm:$0xf]
    %v619 = vld [vmem:[%s602 + $0x40] sm:$0xf]
    %v620 = vld [vmem:[%s602 + $0x44] sm:$0xf]
    %v621 = vld [vmem:[%s602 + $0x48] sm:$0xf]
    %v622 = vld [vmem:[%s602 + $0x4c] sm:$0xf]
    %v623 = vld [vmem:[%s602 + $0x50] sm:$0xf]
    %v624 = vld [vmem:[%s602 + $0x54] sm:$0xf]
    %v625 = vld [vmem:[%s602 + $0x58] sm:$0xf]
    %v626 = vld [vmem:[%s602 + $0x5c] sm:$0xf]
    %v627 = vunpack.c.l.b16 %v591
    %v628 = vunpack.c.h.b16 %v591
    %v629 = vunpack.c.l.b16 %v594
    %v630 = vunpack.c.h.b16 %v594
    %v631 = vunpack.c.l.b16 %v598
    %v632 = vunpack.c.h.b16 %v598
    %v633 = vunpack.c.l.b16 %v601
    %v634 = vunpack.c.h.b16 %v601
    %v635 = vpack.c.b16 %v629, %v627
    %v636 = vpack.c.b16 %v630, %v628
    %v637 = vpack.c.b16 %v633, %v631
    %v638 = vpack.c.b16 %v634, %v632
    %v665 = vunpack.c.l.b16 %v603
    %v666 = vunpack.c.l.b16 %v604
    %v667 = vunpack.c.l.b16 %v605
    %v668 = vunpack.c.l.b16 %v606
    %v669 = vunpack.c.l.b16 %v607
    %v670 = vunpack.c.l.b16 %v608
    %v671 = vunpack.c.l.b16 %v609
    %v672 = vunpack.c.l.b16 %v610
    %v673 = vunpack.c.l.b16 %v611
    %v674 = vunpack.c.l.b16 %v612
    %v675 = vunpack.c.l.b16 %v613
    %v676 = vunpack.c.l.b16 %v614
    %v677 = vunpack.c.l.b16 %v615
    %v678 = vunpack.c.l.b16 %v616
    %v679 = vunpack.c.l.b16 %v617
    %v680 = vunpack.c.l.b16 %v618
    %v681 = vunpack.c.l.b16 %v619
    %v682 = vunpack.c.l.b16 %v620
    %v683 = vunpack.c.l.b16 %v621
    %v684 = vunpack.c.l.b16 %v622
    %v685 = vunpack.c.l.b16 %v623
    %v686 = vunpack.c.l.b16 %v624
    %v687 = vunpack.c.l.b16 %v625
    %v688 = vunpack.c.l.b16 %v626
    %v689 = vpack.c.b16 %v666, %v665
    %v690 = vpack.c.b16 %v668, %v667
    %v691 = vpack.c.b16 %v670, %v669
    %v692 = vpack.c.b16 %v672, %v671
    %v693 = vpack.c.b16 %v674, %v673
    %v694 = vpack.c.b16 %v676, %v675
    %v695 = vpack.c.b16 %v678, %v677
    %v696 = vpack.c.b16 %v680, %v679
    %v697 = vpack.c.b16 %v682, %v681
    %v698 = vpack.c.b16 %v684, %v683
    %v699 = vpack.c.b16 %v686, %v685
    %v700 = vpack.c.b16 %v688, %v687
    %v714 = vsel %vm176, %v636, 0
    %v717 = vsel %vm176, %v638, 0
    %719 = vmatprep.subr.bf16.mxu0 0
    %720 = vmatpush1.bf16.msra.mxu0 %v696
    %721 = vmatprep.subr.bf16.mxu0 0
    %722 = vmatpush1.bf16.msra.mxu0 %v695
    %723 = vmatprep.subr.bf16.mxu0 0
    %724 = vmatpush1.bf16.msra.mxu0 %v694
    %725 = vmatprep.subr.bf16.mxu0 0
    %726 = vmatpush1.bf16.msra.mxu0 %v693
    %727 = vmatprep.subr.bf16.mxu0 0
    %728 = vmatpush1.bf16.msra.mxu0 %v692
    %729 = vmatprep.subr.bf16.mxu0 0
    %730 = vmatpush1.bf16.msra.mxu0 %v691
    %731 = vmatprep.subr.bf16.mxu0 0
    %732 = vmatpush1.bf16.msra.mxu0 %v690
    %733 = vmatprep.subr.bf16.mxu0 0
    %734 = vmatpush1.bf16.msra.mxu0 %v689
    %735 = vmatprep.subr.bf16.mxu0 0
    %736 = vmatpush2.bf16.msra.mxu0 0
    %737 = vmatprep.subr.bf16.mxu0 0
    %738 = vmatpush2.bf16.msra.mxu0 0
    %739 = vmatprep.subr.bf16.mxu0 0
    %740 = vmatpush2.bf16.msra.mxu0 0
    %741 = vmatprep.subr.bf16.mxu0 0
    %742 = vmatpush2.bf16.msra.mxu0 0
    %743 = vmatprep.subr.bf16.mxu0 0
    %744 = vmatpush2.bf16.msra.mxu0 %v700
    %745 = vmatprep.subr.bf16.mxu0 0
    %746 = vmatpush2.bf16.msra.mxu0 %v699
    %747 = vmatprep.subr.bf16.mxu0 0
    %748 = vmatpush2.bf16.msra.mxu0 %v698
    %749 = vmatprep.subr.bf16.mxu0 0
    %750 = vmatpush2.bf16.msra.mxu0 %v697
    %751 = vmatprep.mubr.bf16.mxu0 %v714
    %752 = vmatmul.mubr.bf16.gmra.mxu0 %v635
    %v753 = vpop.f32.mrf.mxu0
    %v754 = vadd.f32 0.0, %v753
    %v755 = vpop.f32.mrf.mxu0
    %v756 = vpop.f32.mrf.mxu0
    %v757 = vadd.f32 0.0, %v756
    %v758 = vpop.f32.mrf.mxu0
    %759 = vmatprep.mubr.bf16.mxu0 %v717
    %760 = vmatmul.mubr.bf16.gmra.mxu0 %v637
    %v761 = vpop.f32.mrf.mxu0
    %v762 = vadd.f32 0.0, %v761
    %v763 = vpop.f32.mrf.mxu0
    %v764 = vpop.f32.mrf.mxu0
    %v765 = vadd.f32 0.0, %v764
    %v766 = vpop.f32.mrf.mxu0
    %767 = vdwg.mxu0
    %v768 = vadd.f32 %v572, %v754
    %v769 = vadd.f32 %v573, %v757
    %v770 = vadd.f32 %v574, %v762
    %v771 = vadd.f32 %v575, %v765
    %v772 = vld [vmem:[%s0 + $0x10] sm:$0xff]
    %v773 = vld [vmem:[%s0 + $0x40] sm:$0xff]
    %s774 = scalar_lea.vmem %s1, 384
    %v775 = vld [vmem:[%s774] sm:$0xf]
    %v776 = vld [vmem:[%s774 + $0x4] sm:$0xf]
    %v777 = vld [vmem:[%s774 + $0x8] sm:$0xf]
    %v778 = vld [vmem:[%s774 + $0xc] sm:$0xf]
    %v779 = vld [vmem:[%s774 + $0x10] sm:$0xf]
    %v780 = vld [vmem:[%s774 + $0x14] sm:$0xf]
    %v781 = vld [vmem:[%s774 + $0x18] sm:$0xf]
    %v782 = vld [vmem:[%s774 + $0x1c] sm:$0xf]
    %v783 = vld [vmem:[%s774 + $0x20] sm:$0xf]
    %v784 = vld [vmem:[%s774 + $0x24] sm:$0xf]
    %v785 = vld [vmem:[%s774 + $0x28] sm:$0xf]
    %v786 = vld [vmem:[%s774 + $0x2c] sm:$0xf]
    %v787 = vld [vmem:[%s774 + $0x30] sm:$0xf]
    %v788 = vld [vmem:[%s774 + $0x34] sm:$0xf]
    %v789 = vld [vmem:[%s774 + $0x38] sm:$0xf]
    %v790 = vld [vmem:[%s774 + $0x3c] sm:$0xf]
    %v791 = vld [vmem:[%s774 + $0x40] sm:$0xf]
    %v792 = vld [vmem:[%s774 + $0x44] sm:$0xf]
    %v793 = vld [vmem:[%s774 + $0x48] sm:$0xf]
    %v794 = vld [vmem:[%s774 + $0x4c] sm:$0xf]
    %v795 = vld [vmem:[%s774 + $0x50] sm:$0xf]
    %v796 = vld [vmem:[%s774 + $0x54] sm:$0xf]
    %v797 = vld [vmem:[%s774 + $0x58] sm:$0xf]
    %v798 = vld [vmem:[%s774 + $0x5c] sm:$0xf]
    %v801 = vunpack.c.l.b16 %v378
    %v802 = vunpack.c.h.b16 %v378
    %v803 = vunpack.c.l.b16 %v772
    %v804 = vunpack.c.h.b16 %v772
    %v805 = vunpack.c.l.b16 %v381
    %v806 = vunpack.c.h.b16 %v381
    %v807 = vunpack.c.l.b16 %v773
    %v808 = vunpack.c.h.b16 %v773
    %v809 = vpack.c.b16 %v803, %v801
    %v810 = vpack.c.b16 %v804, %v802
    %v811 = vpack.c.b16 %v807, %v805
    %v812 = vpack.c.b16 %v808, %v806
    %v839 = vunpack.c.l.b16 %v775
    %v840 = vunpack.c.l.b16 %v776
    %v841 = vunpack.c.l.b16 %v777
    %v842 = vunpack.c.l.b16 %v778
    %v843 = vunpack.c.l.b16 %v779
    %v844 = vunpack.c.l.b16 %v780
    %v845 = vunpack.c.l.b16 %v781
    %v846 = vunpack.c.l.b16 %v782
    %v847 = vunpack.c.l.b16 %v783
    %v848 = vunpack.c.l.b16 %v784
    %v849 = vunpack.c.l.b16 %v785
    %v850 = vunpack.c.l.b16 %v786
    %v851 = vunpack.c.l.b16 %v787
    %v852 = vunpack.c.l.b16 %v788
    %v853 = vunpack.c.l.b16 %v789
    %v854 = vunpack.c.l.b16 %v790
    %v855 = vunpack.c.l.b16 %v791
    %v856 = vunpack.c.l.b16 %v792
    %v857 = vunpack.c.l.b16 %v793
    %v858 = vunpack.c.l.b16 %v794
    %v859 = vunpack.c.l.b16 %v795
    %v860 = vunpack.c.l.b16 %v796
    %v861 = vunpack.c.l.b16 %v797
    %v862 = vunpack.c.l.b16 %v798
    %v863 = vpack.c.b16 %v840, %v839
    %v864 = vpack.c.b16 %v842, %v841
    %v865 = vpack.c.b16 %v844, %v843
    %v866 = vpack.c.b16 %v846, %v845
    %v867 = vpack.c.b16 %v848, %v847
    %v868 = vpack.c.b16 %v850, %v849
    %v869 = vpack.c.b16 %v852, %v851
    %v870 = vpack.c.b16 %v854, %v853
    %v871 = vpack.c.b16 %v856, %v855
    %v872 = vpack.c.b16 %v858, %v857
    %v873 = vpack.c.b16 %v860, %v859
    %v874 = vpack.c.b16 %v862, %v861
    %v888 = vsel %vm176, %v810, 0
    %v891 = vsel %vm176, %v812, 0
    %893 = vmatprep.subr.bf16.mxu0 0
    %894 = vmatpush1.bf16.msra.mxu0 %v870
    %895 = vmatprep.subr.bf16.mxu0 0
    %896 = vmatpush1.bf16.msra.mxu0 %v869
    %897 = vmatprep.subr.bf16.mxu0 0
    %898 = vmatpush1.bf16.msra.mxu0 %v868
    %899 = vmatprep.subr.bf16.mxu0 0
    %900 = vmatpush1.bf16.msra.mxu0 %v867
    %901 = vmatprep.subr.bf16.mxu0 0
    %902 = vmatpush1.bf16.msra.mxu0 %v866
    %903 = vmatprep.subr.bf16.mxu0 0
    %904 = vmatpush1.bf16.msra.mxu0 %v865
    %905 = vmatprep.subr.bf16.mxu0 0
    %906 = vmatpush1.bf16.msra.mxu0 %v864
    %907 = vmatprep.subr.bf16.mxu0 0
    %908 = vmatpush1.bf16.msra.mxu0 %v863
    %909 = vmatprep.subr.bf16.mxu0 0
    %910 = vmatpush2.bf16.msra.mxu0 0
    %911 = vmatprep.subr.bf16.mxu0 0
    %912 = vmatpush2.bf16.msra.mxu0 0
    %913 = vmatprep.subr.bf16.mxu0 0
    %914 = vmatpush2.bf16.msra.mxu0 0
    %915 = vmatprep.subr.bf16.mxu0 0
    %916 = vmatpush2.bf16.msra.mxu0 0
    %917 = vmatprep.subr.bf16.mxu0 0
    %918 = vmatpush2.bf16.msra.mxu0 %v874
    %919 = vmatprep.subr.bf16.mxu0 0
    %920 = vmatpush2.bf16.msra.mxu0 %v873
    %921 = vmatprep.subr.bf16.mxu0 0
    %922 = vmatpush2.bf16.msra.mxu0 %v872
    %923 = vmatprep.subr.bf16.mxu0 0
    %924 = vmatpush2.bf16.msra.mxu0 %v871
    %925 = vmatprep.mubr.bf16.mxu0 %v888
    %926 = vmatmul.mubr.bf16.gmra.mxu0 %v809
    %v927 = vpop.f32.mrf.mxu0
    %v928 = vadd.f32 0.0, %v927
    %v929 = vpop.f32.mrf.mxu0
    %v930 = vpop.f32.mrf.mxu0
    %v931 = vadd.f32 0.0, %v930
    %v932 = vpop.f32.mrf.mxu0
    %933 = vmatprep.mubr.bf16.mxu0 %v891
    %934 = vmatmul.mubr.bf16.gmra.mxu0 %v811
    %v935 = vpop.f32.mrf.mxu0
    %v936 = vadd.f32 0.0, %v935
    %v937 = vpop.f32.mrf.mxu0
    %v938 = vpop.f32.mrf.mxu0
    %v939 = vadd.f32 0.0, %v938
    %v940 = vpop.f32.mrf.mxu0
    %941 = vdwg.mxu0
    %v942 = vadd.f32 %v768, %v928
    %v943 = vadd.f32 %v769, %v931
    %v944 = vadd.f32 %v770, %v936
    %v945 = vadd.f32 %v771, %v939
    %946 = vmatprep.subr.bf16.mxu0 0
    %947 = vmatpush1.bf16.msra.mxu0 %v159
    %948 = vmatprep.subr.bf16.mxu0 0
    %949 = vmatpush1.bf16.msra.mxu0 %v158
    %950 = vmatprep.subr.bf16.mxu0 0
    %951 = vmatpush1.bf16.msra.mxu0 %v157
    %952 = vmatprep.subr.bf16.mxu0 0
    %953 = vmatpush1.bf16.msra.mxu0 %v156
    %954 = vmatprep.subr.bf16.mxu0 0
    %955 = vmatpush1.bf16.msra.mxu0 %v155
    %956 = vmatprep.subr.bf16.mxu0 0
    %957 = vmatpush1.bf16.msra.mxu0 %v154
    %958 = vmatprep.subr.bf16.mxu0 0
    %959 = vmatpush1.bf16.msra.mxu0 %v153
    %960 = vmatprep.subr.bf16.mxu0 0
    %961 = vmatpush1.bf16.msra.mxu0 %v152
    %962 = vmatprep.subr.bf16.mxu0 0
    %963 = vmatpush2.bf16.msra.mxu0 0
    %964 = vmatprep.subr.bf16.mxu0 0
    %965 = vmatpush2.bf16.msra.mxu0 0
    %966 = vmatprep.subr.bf16.mxu0 0
    %967 = vmatpush2.bf16.msra.mxu0 0
    %968 = vmatprep.subr.bf16.mxu0 0
    %969 = vmatpush2.bf16.msra.mxu0 0
    %970 = vmatprep.subr.bf16.mxu0 0
    %971 = vmatpush2.bf16.msra.mxu0 %v163
    %972 = vmatprep.subr.bf16.mxu0 0
    %973 = vmatpush2.bf16.msra.mxu0 %v162
    %974 = vmatprep.subr.bf16.mxu0 0
    %975 = vmatpush2.bf16.msra.mxu0 %v161
    %976 = vmatprep.subr.bf16.mxu0 0
    %977 = vmatpush2.bf16.msra.mxu0 %v160
    %978 = vmatprep.mubr.bf16.mxu0 %v518
    %979 = vmatmul.mubr.bf16.gmra.mxu0 %v439
    %v980 = vpop.f32.mrf.mxu0
    %v981 = vadd.f32 0.0, %v980
    %v982 = vpop.f32.mrf.mxu0
    %v983 = vpop.f32.mrf.mxu0
    %v984 = vadd.f32 0.0, %v983
    %v985 = vpop.f32.mrf.mxu0
    %986 = vmatprep.mubr.bf16.mxu0 %v521
    %987 = vmatmul.mubr.bf16.gmra.mxu0 %v441
    %v988 = vpop.f32.mrf.mxu0
    %v989 = vadd.f32 0.0, %v988
    %v990 = vpop.f32.mrf.mxu0
    %v991 = vpop.f32.mrf.mxu0
    %v992 = vadd.f32 0.0, %v991
    %v993 = vpop.f32.mrf.mxu0
    %994 = vdwg.mxu0
    %995 = vmatprep.subr.bf16.mxu0 0
    %996 = vmatpush1.bf16.msra.mxu0 %v305
    %997 = vmatprep.subr.bf16.mxu0 0
    %998 = vmatpush1.bf16.msra.mxu0 %v304
    %999 = vmatprep.subr.bf16.mxu0 0
    %1000 = vmatpush1.bf16.msra.mxu0 %v303
    %1001 = vmatprep.subr.bf16.mxu0 0
    %1002 = vmatpush1.bf16.msra.mxu0 %v302
    %1003 = vmatprep.subr.bf16.mxu0 0
    %1004 = vmatpush1.bf16.msra.mxu0 %v301
    %1005 = vmatprep.subr.bf16.mxu0 0
    %1006 = vmatpush1.bf16.msra.mxu0 %v300
    %1007 = vmatprep.subr.bf16.mxu0 0
    %1008 = vmatpush1.bf16.msra.mxu0 %v299
    %1009 = vmatprep.subr.bf16.mxu0 0
    %1010 = vmatpush1.bf16.msra.mxu0 %v298
    %1011 = vmatprep.subr.bf16.mxu0 0
    %1012 = vmatpush2.bf16.msra.mxu0 0
    %1013 = vmatprep.subr.bf16.mxu0 0
    %1014 = vmatpush2.bf16.msra.mxu0 0
    %1015 = vmatprep.subr.bf16.mxu0 0
    %1016 = vmatpush2.bf16.msra.mxu0 0
    %1017 = vmatprep.subr.bf16.mxu0 0
    %1018 = vmatpush2.bf16.msra.mxu0 0
    %1019 = vmatprep.subr.bf16.mxu0 0
    %1020 = vmatpush2.bf16.msra.mxu0 %v309
    %1021 = vmatprep.subr.bf16.mxu0 0
    %1022 = vmatpush2.bf16.msra.mxu0 %v308
    %1023 = vmatprep.subr.bf16.mxu0 0
    %1024 = vmatpush2.bf16.msra.mxu0 %v307
    %1025 = vmatprep.subr.bf16.mxu0 0
    %1026 = vmatpush2.bf16.msra.mxu0 %v306
    %1027 = vmatprep.mubr.bf16.mxu0 %v178
    %1028 = vmatmul.mubr.bf16.gmra.mxu0 %v98
    %v1029 = vpop.f32.mrf.mxu0
    %v1030 = vadd.f32 %v981, %v1029
    %v1031 = vpop.f32.mrf.mxu0
    %v1032 = vpop.f32.mrf.mxu0
    %v1033 = vadd.f32 %v984, %v1032
    %v1034 = vpop.f32.mrf.mxu0
    %1035 = vmatprep.mubr.bf16.mxu0 %v181
    %1036 = vmatmul.mubr.bf16.gmra.mxu0 %v100
    %v1037 = vpop.f32.mrf.mxu0
    %v1038 = vadd.f32 %v989, %v1037
    %v1039 = vpop.f32.mrf.mxu0
    %v1040 = vpop.f32.mrf.mxu0
    %v1041 = vadd.f32 %v992, %v1040
    %v1042 = vpop.f32.mrf.mxu0
    %1043 = vdwg.mxu0
    %1044 = vmatprep.subr.bf16.mxu0 0
    %1045 = vmatpush1.bf16.msra.mxu0 %v500
    %1046 = vmatprep.subr.bf16.mxu0 0
    %1047 = vmatpush1.bf16.msra.mxu0 %v499
    %1048 = vmatprep.subr.bf16.mxu0 0
    %1049 = vmatpush1.bf16.msra.mxu0 %v498
    %1050 = vmatprep.subr.bf16.mxu0 0
    %1051 = vmatpush1.bf16.msra.mxu0 %v497
    %1052 = vmatprep.subr.bf16.mxu0 0
    %1053 = vmatpush1.bf16.msra.mxu0 %v496
    %1054 = vmatprep.subr.bf16.mxu0 0
    %1055 = vmatpush1.bf16.msra.mxu0 %v495
    %1056 = vmatprep.subr.bf16.mxu0 0
    %1057 = vmatpush1.bf16.msra.mxu0 %v494
    %1058 = vmatprep.subr.bf16.mxu0 0
    %1059 = vmatpush1.bf16.msra.mxu0 %v493
    %1060 = vmatprep.subr.bf16.mxu0 0
    %1061 = vmatpush2.bf16.msra.mxu0 0
    %1062 = vmatprep.subr.bf16.mxu0 0
    %1063 = vmatpush2.bf16.msra.mxu0 0
    %1064 = vmatprep.subr.bf16.mxu0 0
    %1065 = vmatpush2.bf16.msra.mxu0 0
    %1066 = vmatprep.subr.bf16.mxu0 0
    %1067 = vmatpush2.bf16.msra.mxu0 0
    %1068 = vmatprep.subr.bf16.mxu0 0
    %1069 = vmatpush2.bf16.msra.mxu0 %v504
    %1070 = vmatprep.subr.bf16.mxu0 0
    %1071 = vmatpush2.bf16.msra.mxu0 %v503
    %1072 = vmatprep.subr.bf16.mxu0 0
    %1073 = vmatpush2.bf16.msra.mxu0 %v502
    %1074 = vmatprep.subr.bf16.mxu0 0
    %1075 = vmatpush2.bf16.msra.mxu0 %v501
    %1076 = vmatprep.mubr.bf16.mxu0 %v714
    %1077 = vmatmul.mubr.bf16.gmra.mxu0 %v635
    %v1078 = vpop.f32.mrf.mxu0
    %v1079 = vadd.f32 0.0, %v1078
    %v1080 = vpop.f32.mrf.mxu0
    %v1081 = vpop.f32.mrf.mxu0
    %v1082 = vadd.f32 0.0, %v1081
    %v1083 = vpop.f32.mrf.mxu0
    %1084 = vmatprep.mubr.bf16.mxu0 %v717
    %1085 = vmatmul.mubr.bf16.gmra.mxu0 %v637
    %v1086 = vpop.f32.mrf.mxu0
    %v1087 = vadd.f32 0.0, %v1086
    %v1088 = vpop.f32.mrf.mxu0
    %v1089 = vpop.f32.mrf.mxu0
    %v1090 = vadd.f32 0.0, %v1089
    %v1091 = vpop.f32.mrf.mxu0
    %1092 = vdwg.mxu0
    %v1093 = vadd.f32 %v1030, %v1079
    %v1094 = vadd.f32 %v1033, %v1082
    %v1095 = vadd.f32 %v1038, %v1087
    %v1096 = vadd.f32 %v1041, %v1090
    %1097 = vmatprep.subr.bf16.mxu0 0
    %1098 = vmatpush1.bf16.msra.mxu0 %v696
    %1099 = vmatprep.subr.bf16.mxu0 0
    %1100 = vmatpush1.bf16.msra.mxu0 %v695
    %1101 = vmatprep.subr.bf16.mxu0 0
    %1102 = vmatpush1.bf16.msra.mxu0 %v694
    %1103 = vmatprep.subr.bf16.mxu0 0
    %1104 = vmatpush1.bf16.msra.mxu0 %v693
    %1105 = vmatprep.subr.bf16.mxu0 0
    %1106 = vmatpush1.bf16.msra.mxu0 %v692
    %1107 = vmatprep.subr.bf16.mxu0 0
    %1108 = vmatpush1.bf16.msra.mxu0 %v691
    %1109 = vmatprep.subr.bf16.mxu0 0
    %1110 = vmatpush1.bf16.msra.mxu0 %v690
    %1111 = vmatprep.subr.bf16.mxu0 0
    %1112 = vmatpush1.bf16.msra.mxu0 %v689
    %1113 = vmatprep.subr.bf16.mxu0 0
    %1114 = vmatpush2.bf16.msra.mxu0 0
    %1115 = vmatprep.subr.bf16.mxu0 0
    %1116 = vmatpush2.bf16.msra.mxu0 0
    %1117 = vmatprep.subr.bf16.mxu0 0
    %1118 = vmatpush2.bf16.msra.mxu0 0
    %1119 = vmatprep.subr.bf16.mxu0 0
    %1120 = vmatpush2.bf16.msra.mxu0 0
    %1121 = vmatprep.subr.bf16.mxu0 0
    %1122 = vmatpush2.bf16.msra.mxu0 %v700
    %1123 = vmatprep.subr.bf16.mxu0 0
    %1124 = vmatpush2.bf16.msra.mxu0 %v699
    %1125 = vmatprep.subr.bf16.mxu0 0
    %1126 = vmatpush2.bf16.msra.mxu0 %v698
    %1127 = vmatprep.subr.bf16.mxu0 0
    %1128 = vmatpush2.bf16.msra.mxu0 %v697
    %1129 = vmatprep.mubr.bf16.mxu0 %v888
    %1130 = vmatmul.mubr.bf16.gmra.mxu0 %v809
    %v1131 = vpop.f32.mrf.mxu0
    %v1132 = vadd.f32 0.0, %v1131
    %v1133 = vpop.f32.mrf.mxu0
    %v1134 = vpop.f32.mrf.mxu0
    %v1135 = vadd.f32 0.0, %v1134
    %v1136 = vpop.f32.mrf.mxu0
    %1137 = vmatprep.mubr.bf16.mxu0 %v891
    %1138 = vmatmul.mubr.bf16.gmra.mxu0 %v811
    %v1139 = vpop.f32.mrf.mxu0
    %v1140 = vadd.f32 0.0, %v1139
    %v1141 = vpop.f32.mrf.mxu0
    %v1142 = vpop.f32.mrf.mxu0
    %v1143 = vadd.f32 0.0, %v1142
    %v1144 = vpop.f32.mrf.mxu0
    %1145 = vdwg.mxu0
    %v1146 = vadd.f32 %v1093, %v1132
    %v1147 = vadd.f32 %v1094, %v1135
    %v1148 = vadd.f32 %v1095, %v1140
    %v1149 = vadd.f32 %v1096, %v1143
    %v1150 = vld [vmem:[%s56 + $0x10] sm:$0xff]
    %v1151 = vld [vmem:[%s56 + $0x40] sm:$0xff]
    %v1154 = vunpack.c.l.b16 %v577
    %v1155 = vunpack.c.h.b16 %v577
    %v1156 = vunpack.c.l.b16 %v1150
    %v1157 = vunpack.c.h.b16 %v1150
    %v1158 = vunpack.c.l.b16 %v580
    %v1159 = vunpack.c.h.b16 %v580
    %v1160 = vunpack.c.l.b16 %v1151
    %v1161 = vunpack.c.h.b16 %v1151
    %v1162 = vpack.c.b16 %v1156, %v1154
    %v1163 = vpack.c.b16 %v1157, %v1155
    %v1164 = vpack.c.b16 %v1160, %v1158
    %v1165 = vpack.c.b16 %v1161, %v1159
    %v1169 = vsel %vm176, %v1163, 0
    %v1172 = vsel %vm176, %v1165, 0
    %1174 = vmatprep.subr.bf16.mxu0 0
    %1175 = vmatpush1.bf16.msra.mxu0 %v870
    %1176 = vmatprep.subr.bf16.mxu0 0
    %1177 = vmatpush1.bf16.msra.mxu0 %v869
    %1178 = vmatprep.subr.bf16.mxu0 0
    %1179 = vmatpush1.bf16.msra.mxu0 %v868
    %1180 = vmatprep.subr.bf16.mxu0 0
    %1181 = vmatpush1.bf16.msra.mxu0 %v867
    %1182 = vmatprep.subr.bf16.mxu0 0
    %1183 = vmatpush1.bf16.msra.mxu0 %v866
    %1184 = vmatprep.subr.bf16.mxu0 0
    %1185 = vmatpush1.bf16.msra.mxu0 %v865
    %1186 = vmatprep.subr.bf16.mxu0 0
    %1187 = vmatpush1.bf16.msra.mxu0 %v864
    %1188 = vmatprep.subr.bf16.mxu0 0
    %1189 = vmatpush1.bf16.msra.mxu0 %v863
    %1190 = vmatprep.subr.bf16.mxu0 0
    %1191 = vmatpush2.bf16.msra.mxu0 0
    %1192 = vmatprep.subr.bf16.mxu0 0
    %1193 = vmatpush2.bf16.msra.mxu0 0
    %1194 = vmatprep.subr.bf16.mxu0 0
    %1195 = vmatpush2.bf16.msra.mxu0 0
    %1196 = vmatprep.subr.bf16.mxu0 0
    %1197 = vmatpush2.bf16.msra.mxu0 0
    %1198 = vmatprep.subr.bf16.mxu0 0
    %1199 = vmatpush2.bf16.msra.mxu0 %v874
    %1200 = vmatprep.subr.bf16.mxu0 0
    %1201 = vmatpush2.bf16.msra.mxu0 %v873
    %1202 = vmatprep.subr.bf16.mxu0 0
    %1203 = vmatpush2.bf16.msra.mxu0 %v872
    %1204 = vmatprep.subr.bf16.mxu0 0
    %1205 = vmatpush2.bf16.msra.mxu0 %v871
    %1206 = vmatprep.mubr.bf16.mxu0 %v1169
    %1207 = vmatmul.mubr.bf16.gmra.mxu0 %v1162
    %v1208 = vpop.f32.mrf.mxu0
    %v1209 = vadd.f32 0.0, %v1208
    %v1210 = vpop.f32.mrf.mxu0
    %v1211 = vpop.f32.mrf.mxu0
    %v1212 = vadd.f32 0.0, %v1211
    %v1213 = vpop.f32.mrf.mxu0
    %1214 = vmatprep.mubr.bf16.mxu0 %v1172
    %1215 = vmatmul.mubr.bf16.gmra.mxu0 %v1164
    %v1216 = vpop.f32.mrf.mxu0
    %v1217 = vadd.f32 0.0, %v1216
    %v1218 = vpop.f32.mrf.mxu0
    %v1219 = vpop.f32.mrf.mxu0
    %v1220 = vadd.f32 0.0, %v1219
    %v1221 = vpop.f32.mrf.mxu0
    %1222 = vdwg.mxu0
    %v1223 = vadd.f32 %v1146, %v1209
    %v1224 = vadd.f32 %v1147, %v1212
    %v1225 = vadd.f32 %v1148, %v1217
    %v1226 = vadd.f32 %v1149, %v1220
    %v1227 = vmax.f32 %v942, %v1223
    %v1228 = vmax.f32 %v943, %v1224
    %v1229 = vmax.f32 %v944, %v1225
    %v1230 = vmax.f32 %v945, %v1226
    %1235 = vrot.lane.b32.xlu0 %v1227, 64
    %v1236 = vpop.permute.xlu0 %1235
    %1237 = vrot.lane.b32.xlu0 %v1228, 64
    %v1238 = vpop.permute.xlu0 %1237
    %1239 = vrot.lane.b32.xlu0 %v1229, 64
    %v1240 = vpop.permute.xlu0 %1239
    %1241 = vrot.lane.b32.xlu0 %v1230, 64
    %v1242 = vpop.permute.xlu0 %1241
    %v1247 = vmax.f32 %v1227, %v1236
    %v1248 = vmax.f32 %v1228, %v1238
    %v1249 = vmax.f32 %v1229, %v1240
    %v1250 = vmax.f32 %v1230, %v1242
    %v1251 = vld [vmem:[%s2] sm:$0x1]
    %v1253 = vlaneseq
    %v1254 = vshrl.u32 %v1253, 7
    %v1255 = vsub.s32 0, %v1254
    %v1256 = vrot.slane %v1251, %v1255
    %v1258 = vadd.f32 %v1247, %v1256
    %v1259 = vadd.f32 %v1248, %v1256
    %v1260 = vadd.f32 %v1249, %v1256
    %v1261 = vadd.f32 %v1250, %v1256
    %v1262 = vpack.c.bf16 %v1259, %v1258
    %v1263 = vpack.c.bf16 %v1261, %v1260
    %v1264 = vld [vmem:[%s3] sm:$0xf]
    %v1265 = vld [vmem:[%s3 + $0x4] sm:$0xf]
    %v1266 = vld [vmem:[%s3 + $0x8] sm:$0xf]
    %v1267 = vld [vmem:[%s3 + $0xc] sm:$0xf]
    %v1268 = vld [vmem:[%s3 + $0x10] sm:$0xf]
    %v1269 = vld [vmem:[%s3 + $0x14] sm:$0xf]
    %v1270 = vld [vmem:[%s3 + $0x18] sm:$0xf]
    %v1271 = vld [vmem:[%s3 + $0x1c] sm:$0xf]
    %s1272 = scalar_lea.vmem %s3, 32
    %v1273 = vld [vmem:[%s1272] sm:$0xf]
    %v1274 = vld [vmem:[%s1272 + $0x4] sm:$0xf]
    %v1275 = vld [vmem:[%s1272 + $0x8] sm:$0xf]
    %v1276 = vld [vmem:[%s1272 + $0xc] sm:$0xf]
    %v1277 = vld [vmem:[%s1272 + $0x10] sm:$0xf]
    %v1278 = vld [vmem:[%s1272 + $0x14] sm:$0xf]
    %v1279 = vld [vmem:[%s1272 + $0x18] sm:$0xf]
    %v1280 = vld [vmem:[%s1272 + $0x1c] sm:$0xf]
    %v1283 = vunpack.c.l.b16 %v1262
    %v1284 = vunpack.c.l.b16 %v1263
    %v1285 = vrot.slane %v1283, 1
    %vm1286 = vcmask 1041409
    %v1287 = vsel %vm1286, %v1284, %v1285
    %v1288 = vpack.c.b16 %v1287, %v1287
    %v1297 = vunpack.c.l.b16 %v1273
    %v1298 = vunpack.c.l.b16 %v1274
    %v1299 = vunpack.c.l.b16 %v1275
    %v1300 = vunpack.c.l.b16 %v1276
    %v1301 = vunpack.c.l.b16 %v1277
    %v1302 = vunpack.c.l.b16 %v1278
    %v1303 = vunpack.c.l.b16 %v1279
    %v1304 = vunpack.c.l.b16 %v1280
    %v1305 = vpack.c.b16 %v1298, %v1297
    %v1306 = vpack.c.b16 %v1300, %v1299
    %v1307 = vpack.c.b16 %v1302, %v1301
    %v1308 = vpack.c.b16 %v1304, %v1303
    %v1314 = vsel %vm176, %v1288, 0
    %1316 = vmatprep.subr.bf16.mxu0 0
    %1317 = vmatpush1.bf16.msra.mxu0 0
    %1318 = vmatprep.subr.bf16.mxu0 0
    %1319 = vmatpush1.bf16.msra.mxu0 0
    %1320 = vmatprep.subr.bf16.mxu0 0
    %1321 = vmatpush1.bf16.msra.mxu0 0
    %1322 = vmatprep.subr.bf16.mxu0 0
    %1323 = vmatpush1.bf16.msra.mxu0 0
    %1324 = vmatprep.subr.bf16.mxu0 0
    %1325 = vmatpush1.bf16.msra.mxu0 %v1308
    %1326 = vmatprep.subr.bf16.mxu0 0
    %1327 = vmatpush1.bf16.msra.mxu0 %v1307
    %1328 = vmatprep.subr.bf16.mxu0 0
    %1329 = vmatpush1.bf16.msra.mxu0 %v1306
    %1330 = vmatprep.subr.bf16.mxu0 0
    %1331 = vmatpush1.bf16.msra.mxu0 %v1305
    %1332 = vmatprep.subr.bf16.mxu0 0
    %1333 = vmatpush2.bf16.msra.mxu0 0
    %1334 = vmatprep.subr.bf16.mxu0 0
    %1335 = vmatpush2.bf16.msra.mxu0 0
    %1336 = vmatprep.subr.bf16.mxu0 0
    %1337 = vmatpush2.bf16.msra.mxu0 0
    %1338 = vmatprep.subr.bf16.mxu0 0
    %1339 = vmatpush2.bf16.msra.mxu0 0
    %1340 = vmatprep.subr.bf16.mxu0 0
    %1341 = vmatpush2.bf16.msra.mxu0 0
    %1342 = vmatprep.subr.bf16.mxu0 0
    %1343 = vmatpush2.bf16.msra.mxu0 0
    %1344 = vmatprep.subr.bf16.mxu0 0
    %1345 = vmatpush2.bf16.msra.mxu0 0
    %1346 = vmatprep.subr.bf16.mxu0 0
    %1347 = vmatpush2.bf16.msra.mxu0 0
    %1348 = vmatprep.mubr.bf16.mxu0 0
    %1349 = vmatmul.mubr.bf16.gmra.mxu0 %v1314
    %v1350 = vpop.f32.mrf.mxu0
    %v1351 = vadd.f32 0.0, %v1350
    %v1352 = vpop.f32.mrf.mxu0
    %v1353 = vpop.f32.mrf.mxu0
    %v1354 = vpop.f32.mrf.mxu0
    %1355 = vdwg.mxu0
    %v1356 = vrot.slane %v1284, 7
    %v1357 = vsel %vm1286, %v1356, %v1283
    %v1358 = vpack.c.b16 %v1357, %v1357
    %v1367 = vunpack.c.l.b16 %v1264
    %v1368 = vunpack.c.l.b16 %v1265
    %v1369 = vunpack.c.l.b16 %v1266
    %v1370 = vunpack.c.l.b16 %v1267
    %v1371 = vunpack.c.l.b16 %v1268
    %v1372 = vunpack.c.l.b16 %v1269
    %v1373 = vunpack.c.l.b16 %v1270
    %v1374 = vunpack.c.l.b16 %v1271
    %v1375 = vpack.c.b16 %v1368, %v1367
    %v1376 = vpack.c.b16 %v1370, %v1369
    %v1377 = vpack.c.b16 %v1372, %v1371
    %v1378 = vpack.c.b16 %v1374, %v1373
    %v1384 = vsel %vm176, %v1358, 0
    %1386 = vmatprep.subr.bf16.mxu0 0
    %1387 = vmatpush1.bf16.msra.mxu0 0
    %1388 = vmatprep.subr.bf16.mxu0 0
    %1389 = vmatpush1.bf16.msra.mxu0 0
    %1390 = vmatprep.subr.bf16.mxu0 0
    %1391 = vmatpush1.bf16.msra.mxu0 0
    %1392 = vmatprep.subr.bf16.mxu0 0
    %1393 = vmatpush1.bf16.msra.mxu0 0
    %1394 = vmatprep.subr.bf16.mxu0 0
    %1395 = vmatpush1.bf16.msra.mxu0 %v1378
    %1396 = vmatprep.subr.bf16.mxu0 0
    %1397 = vmatpush1.bf16.msra.mxu0 %v1377
    %1398 = vmatprep.subr.bf16.mxu0 0
    %1399 = vmatpush1.bf16.msra.mxu0 %v1376
    %1400 = vmatprep.subr.bf16.mxu0 0
    %1401 = vmatpush1.bf16.msra.mxu0 %v1375
    %1402 = vmatprep.subr.bf16.mxu0 0
    %1403 = vmatpush2.bf16.msra.mxu0 0
    %1404 = vmatprep.subr.bf16.mxu0 0
    %1405 = vmatpush2.bf16.msra.mxu0 0
    %1406 = vmatprep.subr.bf16.mxu0 0
    %1407 = vmatpush2.bf16.msra.mxu0 0
    %1408 = vmatprep.subr.bf16.mxu0 0
    %1409 = vmatpush2.bf16.msra.mxu0 0
    %1410 = vmatprep.subr.bf16.mxu0 0
    %1411 = vmatpush2.bf16.msra.mxu0 0
    %1412 = vmatprep.subr.bf16.mxu0 0
    %1413 = vmatpush2.bf16.msra.mxu0 0
    %1414 = vmatprep.subr.bf16.mxu0 0
    %1415 = vmatpush2.bf16.msra.mxu0 0
    %1416 = vmatprep.subr.bf16.mxu0 0
    %1417 = vmatpush2.bf16.msra.mxu0 0
    %1418 = vmatprep.mubr.bf16.mxu0 0
    %1419 = vmatmul.mubr.bf16.gmra.mxu0 %v1384
    %v1420 = vpop.f32.mrf.mxu0
    %v1421 = vadd.f32 %v1351, %v1420
    %v1422 = vpop.f32.mrf.mxu0
    %v1423 = vpop.f32.mrf.mxu0
    %v1424 = vpop.f32.mrf.mxu0
    %1425 = vdwg.mxu0
    %s1426 = scalar_lea.vmem %s3, 64
    %v1427 = vld [vmem:[%s1426] sm:$0xf]
    %v1428 = vld [vmem:[%s1426 + $0x4] sm:$0xf]
    %v1429 = vld [vmem:[%s1426 + $0x8] sm:$0xf]
    %v1430 = vld [vmem:[%s1426 + $0xc] sm:$0xf]
    %v1431 = vld [vmem:[%s1426 + $0x10] sm:$0xf]
    %v1432 = vld [vmem:[%s1426 + $0x14] sm:$0xf]
    %v1433 = vld [vmem:[%s1426 + $0x18] sm:$0xf]
    %v1434 = vld [vmem:[%s1426 + $0x1c] sm:$0xf]
    %v1435 = vrot.slane %v1283, 2
    %v1436 = vrot.slane %v1284, 1
    %v1437 = vsel %vm1286, %v1436, %v1435
    %v1438 = vpack.c.b16 %v1437, %v1437
    %v1447 = vunpack.c.l.b16 %v1427
    %v1448 = vunpack.c.l.b16 %v1428
    %v1449 = vunpack.c.l.b16 %v1429
    %v1450 = vunpack.c.l.b16 %v1430
    %v1451 = vunpack.c.l.b16 %v1431
    %v1452 = vunpack.c.l.b16 %v1432
    %v1453 = vunpack.c.l.b16 %v1433
    %v1454 = vunpack.c.l.b16 %v1434
    %v1455 = vpack.c.b16 %v1448, %v1447
    %v1456 = vpack.c.b16 %v1450, %v1449
    %v1457 = vpack.c.b16 %v1452, %v1451
    %v1458 = vpack.c.b16 %v1454, %v1453
    %v1464 = vsel %vm176, %v1438, 0
    %1466 = vmatprep.subr.bf16.mxu0 0
    %1467 = vmatpush1.bf16.msra.mxu0 0
    %1468 = vmatprep.subr.bf16.mxu0 0
    %1469 = vmatpush1.bf16.msra.mxu0 0
    %1470 = vmatprep.subr.bf16.mxu0 0
    %1471 = vmatpush1.bf16.msra.mxu0 0
    %1472 = vmatprep.subr.bf16.mxu0 0
    %1473 = vmatpush1.bf16.msra.mxu0 0
    %1474 = vmatprep.subr.bf16.mxu0 0
    %1475 = vmatpush1.bf16.msra.mxu0 %v1458
    %1476 = vmatprep.subr.bf16.mxu0 0
    %1477 = vmatpush1.bf16.msra.mxu0 %v1457
    %1478 = vmatprep.subr.bf16.mxu0 0
    %1479 = vmatpush1.bf16.msra.mxu0 %v1456
    %1480 = vmatprep.subr.bf16.mxu0 0
    %1481 = vmatpush1.bf16.msra.mxu0 %v1455
    %1482 = vmatprep.subr.bf16.mxu0 0
    %1483 = vmatpush2.bf16.msra.mxu0 0
    %1484 = vmatprep.subr.bf16.mxu0 0
    %1485 = vmatpush2.bf16.msra.mxu0 0
    %1486 = vmatprep.subr.bf16.mxu0 0
    %1487 = vmatpush2.bf16.msra.mxu0 0
    %1488 = vmatprep.subr.bf16.mxu0 0
    %1489 = vmatpush2.bf16.msra.mxu0 0
    %1490 = vmatprep.subr.bf16.mxu0 0
    %1491 = vmatpush2.bf16.msra.mxu0 0
    %1492 = vmatprep.subr.bf16.mxu0 0
    %1493 = vmatpush2.bf16.msra.mxu0 0
    %1494 = vmatprep.subr.bf16.mxu0 0
    %1495 = vmatpush2.bf16.msra.mxu0 0
    %1496 = vmatprep.subr.bf16.mxu0 0
    %1497 = vmatpush2.bf16.msra.mxu0 0
    %1498 = vmatprep.mubr.bf16.mxu0 0
    %1499 = vmatmul.mubr.bf16.gmra.mxu0 %v1464
    %v1500 = vpop.f32.mrf.mxu0
    %v1501 = vadd.f32 0.0, %v1500
    %v1502 = vpop.f32.mrf.mxu0
    %v1503 = vpop.f32.mrf.mxu0
    %v1504 = vpop.f32.mrf.mxu0
    %1505 = vdwg.mxu0
    %v1506 = vadd.f32 %v1421, %v1501
    %s1507 = scalar_lea.vmem %s3, 96
    %v1508 = vld [vmem:[%s1507] sm:$0xf]
    %v1509 = vld [vmem:[%s1507 + $0x4] sm:$0xf]
    %v1510 = vld [vmem:[%s1507 + $0x8] sm:$0xf]
    %v1511 = vld [vmem:[%s1507 + $0xc] sm:$0xf]
    %v1512 = vld [vmem:[%s1507 + $0x10] sm:$0xf]
    %v1513 = vld [vmem:[%s1507 + $0x14] sm:$0xf]
    %v1514 = vld [vmem:[%s1507 + $0x18] sm:$0xf]
    %v1515 = vld [vmem:[%s1507 + $0x1c] sm:$0xf]
    %v1516 = vrot.slane %v1283, 3
    %v1517 = vrot.slane %v1284, 2
    %v1518 = vsel %vm1286, %v1517, %v1516
    %v1519 = vpack.c.b16 %v1518, %v1518
    %v1528 = vunpack.c.l.b16 %v1508
    %v1529 = vunpack.c.l.b16 %v1509
    %v1530 = vunpack.c.l.b16 %v1510
    %v1531 = vunpack.c.l.b16 %v1511
    %v1532 = vunpack.c.l.b16 %v1512
    %v1533 = vunpack.c.l.b16 %v1513
    %v1534 = vunpack.c.l.b16 %v1514
    %v1535 = vunpack.c.l.b16 %v1515
    %v1536 = vpack.c.b16 %v1529, %v1528
    %v1537 = vpack.c.b16 %v1531, %v1530
    %v1538 = vpack.c.b16 %v1533, %v1532
    %v1539 = vpack.c.b16 %v1535, %v1534
    %v1545 = vsel %vm176, %v1519, 0
    %1547 = vmatprep.subr.bf16.mxu0 0
    %1548 = vmatpush1.bf16.msra.mxu0 0
    %1549 = vmatprep.subr.bf16.mxu0 0
    %1550 = vmatpush1.bf16.msra.mxu0 0
    %1551 = vmatprep.subr.bf16.mxu0 0
    %1552 = vmatpush1.bf16.msra.mxu0 0
    %1553 = vmatprep.subr.bf16.mxu0 0
    %1554 = vmatpush1.bf16.msra.mxu0 0
    %1555 = vmatprep.subr.bf16.mxu0 0
    %1556 = vmatpush1.bf16.msra.mxu0 %v1539
    %1557 = vmatprep.subr.bf16.mxu0 0
    %1558 = vmatpush1.bf16.msra.mxu0 %v1538
    %1559 = vmatprep.subr.bf16.mxu0 0
    %1560 = vmatpush1.bf16.msra.mxu0 %v1537
    %1561 = vmatprep.subr.bf16.mxu0 0
    %1562 = vmatpush1.bf16.msra.mxu0 %v1536
    %1563 = vmatprep.subr.bf16.mxu0 0
    %1564 = vmatpush2.bf16.msra.mxu0 0
    %1565 = vmatprep.subr.bf16.mxu0 0
    %1566 = vmatpush2.bf16.msra.mxu0 0
    %1567 = vmatprep.subr.bf16.mxu0 0
    %1568 = vmatpush2.bf16.msra.mxu0 0
    %1569 = vmatprep.subr.bf16.mxu0 0
    %1570 = vmatpush2.bf16.msra.mxu0 0
    %1571 = vmatprep.subr.bf16.mxu0 0
    %1572 = vmatpush2.bf16.msra.mxu0 0
    %1573 = vmatprep.subr.bf16.mxu0 0
    %1574 = vmatpush2.bf16.msra.mxu0 0
    %1575 = vmatprep.subr.bf16.mxu0 0
    %1576 = vmatpush2.bf16.msra.mxu0 0
    %1577 = vmatprep.subr.bf16.mxu0 0
    %1578 = vmatpush2.bf16.msra.mxu0 0
    %1579 = vmatprep.mubr.bf16.mxu0 0
    %1580 = vmatmul.mubr.bf16.gmra.mxu0 %v1545
    %v1581 = vpop.f32.mrf.mxu0
    %v1582 = vadd.f32 0.0, %v1581
    %v1583 = vpop.f32.mrf.mxu0
    %v1584 = vpop.f32.mrf.mxu0
    %v1585 = vpop.f32.mrf.mxu0
    %1586 = vdwg.mxu0
    %v1587 = vadd.f32 %v1506, %v1582
    %s1588 = scalar_lea.vmem %s3, 128
    %v1589 = vld [vmem:[%s1588] sm:$0xf]
    %v1590 = vld [vmem:[%s1588 + $0x4] sm:$0xf]
    %v1591 = vld [vmem:[%s1588 + $0x8] sm:$0xf]
    %v1592 = vld [vmem:[%s1588 + $0xc] sm:$0xf]
    %v1593 = vld [vmem:[%s1588 + $0x10] sm:$0xf]
    %v1594 = vld [vmem:[%s1588 + $0x14] sm:$0xf]
    %v1595 = vld [vmem:[%s1588 + $0x18] sm:$0xf]
    %v1596 = vld [vmem:[%s1588 + $0x1c] sm:$0xf]
    %v1597 = vrot.slane %v1283, 4
    %v1598 = vrot.slane %v1284, 3
    %v1599 = vsel %vm1286, %v1598, %v1597
    %v1600 = vpack.c.b16 %v1599, %v1599
    %v1609 = vunpack.c.l.b16 %v1589
    %v1610 = vunpack.c.l.b16 %v1590
    %v1611 = vunpack.c.l.b16 %v1591
    %v1612 = vunpack.c.l.b16 %v1592
    %v1613 = vunpack.c.l.b16 %v1593
    %v1614 = vunpack.c.l.b16 %v1594
    %v1615 = vunpack.c.l.b16 %v1595
    %v1616 = vunpack.c.l.b16 %v1596
    %v1617 = vpack.c.b16 %v1610, %v1609
    %v1618 = vpack.c.b16 %v1612, %v1611
    %v1619 = vpack.c.b16 %v1614, %v1613
    %v1620 = vpack.c.b16 %v1616, %v1615
    %v1626 = vsel %vm176, %v1600, 0
    %1628 = vmatprep.subr.bf16.mxu0 0
    %1629 = vmatpush1.bf16.msra.mxu0 0
    %1630 = vmatprep.subr.bf16.mxu0 0
    %1631 = vmatpush1.bf16.msra.mxu0 0
    %1632 = vmatprep.subr.bf16.mxu0 0
    %1633 = vmatpush1.bf16.msra.mxu0 0
    %1634 = vmatprep.subr.bf16.mxu0 0
    %1635 = vmatpush1.bf16.msra.mxu0 0
    %1636 = vmatprep.subr.bf16.mxu0 0
    %1637 = vmatpush1.bf16.msra.mxu0 %v1620
    %1638 = vmatprep.subr.bf16.mxu0 0
    %1639 = vmatpush1.bf16.msra.mxu0 %v1619
    %1640 = vmatprep.subr.bf16.mxu0 0
    %1641 = vmatpush1.bf16.msra.mxu0 %v1618
    %1642 = vmatprep.subr.bf16.mxu0 0
    %1643 = vmatpush1.bf16.msra.mxu0 %v1617
    %1644 = vmatprep.subr.bf16.mxu0 0
    %1645 = vmatpush2.bf16.msra.mxu0 0
    %1646 = vmatprep.subr.bf16.mxu0 0
    %1647 = vmatpush2.bf16.msra.mxu0 0
    %1648 = vmatprep.subr.bf16.mxu0 0
    %1649 = vmatpush2.bf16.msra.mxu0 0
    %1650 = vmatprep.subr.bf16.mxu0 0
    %1651 = vmatpush2.bf16.msra.mxu0 0
    %1652 = vmatprep.subr.bf16.mxu0 0
    %1653 = vmatpush2.bf16.msra.mxu0 0
    %1654 = vmatprep.subr.bf16.mxu0 0
    %1655 = vmatpush2.bf16.msra.mxu0 0
    %1656 = vmatprep.subr.bf16.mxu0 0
    %1657 = vmatpush2.bf16.msra.mxu0 0
    %1658 = vmatprep.subr.bf16.mxu0 0
    %1659 = vmatpush2.bf16.msra.mxu0 0
    %1660 = vmatprep.mubr.bf16.mxu0 0
    %1661 = vmatmul.mubr.bf16.gmra.mxu0 %v1626
    %v1662 = vpop.f32.mrf.mxu0
    %v1663 = vadd.f32 0.0, %v1662
    %v1664 = vpop.f32.mrf.mxu0
    %v1665 = vpop.f32.mrf.mxu0
    %v1666 = vpop.f32.mrf.mxu0
    %1667 = vdwg.mxu0
    %v1668 = vadd.f32 %v1587, %v1663
    %s1669 = scalar_lea.vmem %s3, 160
    %v1670 = vld [vmem:[%s1669] sm:$0xf]
    %v1671 = vld [vmem:[%s1669 + $0x4] sm:$0xf]
    %v1672 = vld [vmem:[%s1669 + $0x8] sm:$0xf]
    %v1673 = vld [vmem:[%s1669 + $0xc] sm:$0xf]
    %v1674 = vld [vmem:[%s1669 + $0x10] sm:$0xf]
    %v1675 = vld [vmem:[%s1669 + $0x14] sm:$0xf]
    %v1676 = vld [vmem:[%s1669 + $0x18] sm:$0xf]
    %v1677 = vld [vmem:[%s1669 + $0x1c] sm:$0xf]
    %v1678 = vrot.slane %v1283, 5
    %v1679 = vrot.slane %v1284, 4
    %v1680 = vsel %vm1286, %v1679, %v1678
    %v1681 = vpack.c.b16 %v1680, %v1680
    %v1690 = vunpack.c.l.b16 %v1670
    %v1691 = vunpack.c.l.b16 %v1671
    %v1692 = vunpack.c.l.b16 %v1672
    %v1693 = vunpack.c.l.b16 %v1673
    %v1694 = vunpack.c.l.b16 %v1674
    %v1695 = vunpack.c.l.b16 %v1675
    %v1696 = vunpack.c.l.b16 %v1676
    %v1697 = vunpack.c.l.b16 %v1677
    %v1698 = vpack.c.b16 %v1691, %v1690
    %v1699 = vpack.c.b16 %v1693, %v1692
    %v1700 = vpack.c.b16 %v1695, %v1694
    %v1701 = vpack.c.b16 %v1697, %v1696
    %v1707 = vsel %vm176, %v1681, 0
    %1709 = vmatprep.subr.bf16.mxu0 0
    %1710 = vmatpush1.bf16.msra.mxu0 0
    %1711 = vmatprep.subr.bf16.mxu0 0
    %1712 = vmatpush1.bf16.msra.mxu0 0
    %1713 = vmatprep.subr.bf16.mxu0 0
    %1714 = vmatpush1.bf16.msra.mxu0 0
    %1715 = vmatprep.subr.bf16.mxu0 0
    %1716 = vmatpush1.bf16.msra.mxu0 0
    %1717 = vmatprep.subr.bf16.mxu0 0
    %1718 = vmatpush1.bf16.msra.mxu0 %v1701
    %1719 = vmatprep.subr.bf16.mxu0 0
    %1720 = vmatpush1.bf16.msra.mxu0 %v1700
    %1721 = vmatprep.subr.bf16.mxu0 0
    %1722 = vmatpush1.bf16.msra.mxu0 %v1699
    %1723 = vmatprep.subr.bf16.mxu0 0
    %1724 = vmatpush1.bf16.msra.mxu0 %v1698
    %1725 = vmatprep.subr.bf16.mxu0 0
    %1726 = vmatpush2.bf16.msra.mxu0 0
    %1727 = vmatprep.subr.bf16.mxu0 0
    %1728 = vmatpush2.bf16.msra.mxu0 0
    %1729 = vmatprep.subr.bf16.mxu0 0
    %1730 = vmatpush2.bf16.msra.mxu0 0
    %1731 = vmatprep.subr.bf16.mxu0 0
    %1732 = vmatpush2.bf16.msra.mxu0 0
    %1733 = vmatprep.subr.bf16.mxu0 0
    %1734 = vmatpush2.bf16.msra.mxu0 0
    %1735 = vmatprep.subr.bf16.mxu0 0
    %1736 = vmatpush2.bf16.msra.mxu0 0
    %1737 = vmatprep.subr.bf16.mxu0 0
    %1738 = vmatpush2.bf16.msra.mxu0 0
    %1739 = vmatprep.subr.bf16.mxu0 0
    %1740 = vmatpush2.bf16.msra.mxu0 0
    %1741 = vmatprep.mubr.bf16.mxu0 0
    %1742 = vmatmul.mubr.bf16.gmra.mxu0 %v1707
    %v1743 = vpop.f32.mrf.mxu0
    %v1744 = vadd.f32 0.0, %v1743
    %v1745 = vpop.f32.mrf.mxu0
    %v1746 = vpop.f32.mrf.mxu0
    %v1747 = vpop.f32.mrf.mxu0
    %1748 = vdwg.mxu0
    %v1749 = vadd.f32 %v1668, %v1744
    %s1750 = scalar_lea.vmem %s3, 192
    %v1751 = vld [vmem:[%s1750] sm:$0xf]
    %v1752 = vld [vmem:[%s1750 + $0x4] sm:$0xf]
    %v1753 = vld [vmem:[%s1750 + $0x8] sm:$0xf]
    %v1754 = vld [vmem:[%s1750 + $0xc] sm:$0xf]
    %v1755 = vld [vmem:[%s1750 + $0x10] sm:$0xf]
    %v1756 = vld [vmem:[%s1750 + $0x14] sm:$0xf]
    %v1757 = vld [vmem:[%s1750 + $0x18] sm:$0xf]
    %v1758 = vld [vmem:[%s1750 + $0x1c] sm:$0xf]
    %v1759 = vrot.slane %v1283, 6
    %v1760 = vrot.slane %v1284, 5
    %v1761 = vsel %vm1286, %v1760, %v1759
    %v1762 = vpack.c.b16 %v1761, %v1761
    %v1771 = vunpack.c.l.b16 %v1751
    %v1772 = vunpack.c.l.b16 %v1752
    %v1773 = vunpack.c.l.b16 %v1753
    %v1774 = vunpack.c.l.b16 %v1754
    %v1775 = vunpack.c.l.b16 %v1755
    %v1776 = vunpack.c.l.b16 %v1756
    %v1777 = vunpack.c.l.b16 %v1757
    %v1778 = vunpack.c.l.b16 %v1758
    %v1779 = vpack.c.b16 %v1772, %v1771
    %v1780 = vpack.c.b16 %v1774, %v1773
    %v1781 = vpack.c.b16 %v1776, %v1775
    %v1782 = vpack.c.b16 %v1778, %v1777
    %v1788 = vsel %vm176, %v1762, 0
    %1790 = vmatprep.subr.bf16.mxu0 0
    %1791 = vmatpush1.bf16.msra.mxu0 0
    %1792 = vmatprep.subr.bf16.mxu0 0
    %1793 = vmatpush1.bf16.msra.mxu0 0
    %1794 = vmatprep.subr.bf16.mxu0 0
    %1795 = vmatpush1.bf16.msra.mxu0 0
    %1796 = vmatprep.subr.bf16.mxu0 0
    %1797 = vmatpush1.bf16.msra.mxu0 0
    %1798 = vmatprep.subr.bf16.mxu0 0
    %1799 = vmatpush1.bf16.msra.mxu0 %v1782
    %1800 = vmatprep.subr.bf16.mxu0 0
    %1801 = vmatpush1.bf16.msra.mxu0 %v1781
    %1802 = vmatprep.subr.bf16.mxu0 0
    %1803 = vmatpush1.bf16.msra.mxu0 %v1780
    %1804 = vmatprep.subr.bf16.mxu0 0
    %1805 = vmatpush1.bf16.msra.mxu0 %v1779
    %1806 = vmatprep.subr.bf16.mxu0 0
    %1807 = vmatpush2.bf16.msra.mxu0 0
    %1808 = vmatprep.subr.bf16.mxu0 0
    %1809 = vmatpush2.bf16.msra.mxu0 0
    %1810 = vmatprep.subr.bf16.mxu0 0
    %1811 = vmatpush2.bf16.msra.mxu0 0
    %1812 = vmatprep.subr.bf16.mxu0 0
    %1813 = vmatpush2.bf16.msra.mxu0 0
    %1814 = vmatprep.subr.bf16.mxu0 0
    %1815 = vmatpush2.bf16.msra.mxu0 0
    %1816 = vmatprep.subr.bf16.mxu0 0
    %1817 = vmatpush2.bf16.msra.mxu0 0
    %1818 = vmatprep.subr.bf16.mxu0 0
    %1819 = vmatpush2.bf16.msra.mxu0 0
    %1820 = vmatprep.subr.bf16.mxu0 0
    %1821 = vmatpush2.bf16.msra.mxu0 0
    %1822 = vmatprep.mubr.bf16.mxu0 0
    %1823 = vmatmul.mubr.bf16.gmra.mxu0 %v1788
    %v1824 = vpop.f32.mrf.mxu0
    %v1825 = vadd.f32 0.0, %v1824
    %v1826 = vpop.f32.mrf.mxu0
    %v1827 = vpop.f32.mrf.mxu0
    %v1828 = vpop.f32.mrf.mxu0
    %1829 = vdwg.mxu0
    %v1830 = vadd.f32 %v1749, %v1825
    %s1831 = scalar_lea.vmem %s3, 224
    %v1832 = vld [vmem:[%s1831] sm:$0xf]
    %v1833 = vld [vmem:[%s1831 + $0x4] sm:$0xf]
    %v1834 = vld [vmem:[%s1831 + $0x8] sm:$0xf]
    %v1835 = vld [vmem:[%s1831 + $0xc] sm:$0xf]
    %v1836 = vld [vmem:[%s1831 + $0x10] sm:$0xf]
    %v1837 = vld [vmem:[%s1831 + $0x14] sm:$0xf]
    %v1838 = vld [vmem:[%s1831 + $0x18] sm:$0xf]
    %v1839 = vld [vmem:[%s1831 + $0x1c] sm:$0xf]
    %v1840 = vrot.slane %v1283, 7
    %v1841 = vrot.slane %v1284, 6
    %v1842 = vsel %vm1286, %v1841, %v1840
    %v1843 = vpack.c.b16 %v1842, %v1842
    %v1852 = vunpack.c.l.b16 %v1832
    %v1853 = vunpack.c.l.b16 %v1833
    %v1854 = vunpack.c.l.b16 %v1834
    %v1855 = vunpack.c.l.b16 %v1835
    %v1856 = vunpack.c.l.b16 %v1836
    %v1857 = vunpack.c.l.b16 %v1837
    %v1858 = vunpack.c.l.b16 %v1838
    %v1859 = vunpack.c.l.b16 %v1839
    %v1860 = vpack.c.b16 %v1853, %v1852
    %v1861 = vpack.c.b16 %v1855, %v1854
    %v1862 = vpack.c.b16 %v1857, %v1856
    %v1863 = vpack.c.b16 %v1859, %v1858
    %v1869 = vsel %vm176, %v1843, 0
    %1871 = vmatprep.subr.bf16.mxu0 0
    %1872 = vmatpush1.bf16.msra.mxu0 0
    %1873 = vmatprep.subr.bf16.mxu0 0
    %1874 = vmatpush1.bf16.msra.mxu0 0
    %1875 = vmatprep.subr.bf16.mxu0 0
    %1876 = vmatpush1.bf16.msra.mxu0 0
    %1877 = vmatprep.subr.bf16.mxu0 0
    %1878 = vmatpush1.bf16.msra.mxu0 0
    %1879 = vmatprep.subr.bf16.mxu0 0
    %1880 = vmatpush1.bf16.msra.mxu0 %v1863
    %1881 = vmatprep.subr.bf16.mxu0 0
    %1882 = vmatpush1.bf16.msra.mxu0 %v1862
    %1883 = vmatprep.subr.bf16.mxu0 0
    %1884 = vmatpush1.bf16.msra.mxu0 %v1861
    %1885 = vmatprep.subr.bf16.mxu0 0
    %1886 = vmatpush1.bf16.msra.mxu0 %v1860
    %1887 = vmatprep.subr.bf16.mxu0 0
    %1888 = vmatpush2.bf16.msra.mxu0 0
    %1889 = vmatprep.subr.bf16.mxu0 0
    %1890 = vmatpush2.bf16.msra.mxu0 0
    %1891 = vmatprep.subr.bf16.mxu0 0
    %1892 = vmatpush2.bf16.msra.mxu0 0
    %1893 = vmatprep.subr.bf16.mxu0 0
    %1894 = vmatpush2.bf16.msra.mxu0 0
    %1895 = vmatprep.subr.bf16.mxu0 0
    %1896 = vmatpush2.bf16.msra.mxu0 0
    %1897 = vmatprep.subr.bf16.mxu0 0
    %1898 = vmatpush2.bf16.msra.mxu0 0
    %1899 = vmatprep.subr.bf16.mxu0 0
    %1900 = vmatpush2.bf16.msra.mxu0 0
    %1901 = vmatprep.subr.bf16.mxu0 0
    %1902 = vmatpush2.bf16.msra.mxu0 0
    %1903 = vmatprep.mubr.bf16.mxu0 0
    %1904 = vmatmul.mubr.bf16.gmra.mxu0 %v1869
    %v1905 = vpop.f32.mrf.mxu0
    %v1906 = vadd.f32 0.0, %v1905
    %v1907 = vpop.f32.mrf.mxu0
    %v1908 = vpop.f32.mrf.mxu0
    %v1909 = vpop.f32.mrf.mxu0
    %1910 = vdwg.mxu0
    %v1911 = vadd.f32 %v1830, %v1906
    %s1912 = scalar_lea.vmem %s3, 256
    %v1913 = vld [vmem:[%s1912] sm:$0xf]
    %v1914 = vld [vmem:[%s1912 + $0x4] sm:$0xf]
    %v1915 = vld [vmem:[%s1912 + $0x8] sm:$0xf]
    %v1916 = vld [vmem:[%s1912 + $0xc] sm:$0xf]
    %v1917 = vld [vmem:[%s1912 + $0x10] sm:$0xf]
    %v1918 = vld [vmem:[%s1912 + $0x14] sm:$0xf]
    %v1919 = vld [vmem:[%s1912 + $0x18] sm:$0xf]
    %v1920 = vld [vmem:[%s1912 + $0x1c] sm:$0xf]
    %v1921 = vunpack.c.h.b16 %v1262
    %v1922 = vunpack.c.h.b16 %v1263
    %v1923 = vrot.slane %v1922, 7
    %v1924 = vsel %vm1286, %v1923, %v1921
    %v1925 = vpack.c.b16 %v1924, %v1924
    %v1934 = vunpack.c.l.b16 %v1913
    %v1935 = vunpack.c.l.b16 %v1914
    %v1936 = vunpack.c.l.b16 %v1915
    %v1937 = vunpack.c.l.b16 %v1916
    %v1938 = vunpack.c.l.b16 %v1917
    %v1939 = vunpack.c.l.b16 %v1918
    %v1940 = vunpack.c.l.b16 %v1919
    %v1941 = vunpack.c.l.b16 %v1920
    %v1942 = vpack.c.b16 %v1935, %v1934
    %v1943 = vpack.c.b16 %v1937, %v1936
    %v1944 = vpack.c.b16 %v1939, %v1938
    %v1945 = vpack.c.b16 %v1941, %v1940
    %v1951 = vsel %vm176, %v1925, 0
    %1953 = vmatprep.subr.bf16.mxu0 0
    %1954 = vmatpush1.bf16.msra.mxu0 0
    %1955 = vmatprep.subr.bf16.mxu0 0
    %1956 = vmatpush1.bf16.msra.mxu0 0
    %1957 = vmatprep.subr.bf16.mxu0 0
    %1958 = vmatpush1.bf16.msra.mxu0 0
    %1959 = vmatprep.subr.bf16.mxu0 0
    %1960 = vmatpush1.bf16.msra.mxu0 0
    %1961 = vmatprep.subr.bf16.mxu0 0
    %1962 = vmatpush1.bf16.msra.mxu0 %v1945
    %1963 = vmatprep.subr.bf16.mxu0 0
    %1964 = vmatpush1.bf16.msra.mxu0 %v1944
    %1965 = vmatprep.subr.bf16.mxu0 0
    %1966 = vmatpush1.bf16.msra.mxu0 %v1943
    %1967 = vmatprep.subr.bf16.mxu0 0
    %1968 = vmatpush1.bf16.msra.mxu0 %v1942
    %1969 = vmatprep.subr.bf16.mxu0 0
    %1970 = vmatpush2.bf16.msra.mxu0 0
    %1971 = vmatprep.subr.bf16.mxu0 0
    %1972 = vmatpush2.bf16.msra.mxu0 0
    %1973 = vmatprep.subr.bf16.mxu0 0
    %1974 = vmatpush2.bf16.msra.mxu0 0
    %1975 = vmatprep.subr.bf16.mxu0 0
    %1976 = vmatpush2.bf16.msra.mxu0 0
    %1977 = vmatprep.subr.bf16.mxu0 0
    %1978 = vmatpush2.bf16.msra.mxu0 0
    %1979 = vmatprep.subr.bf16.mxu0 0
    %1980 = vmatpush2.bf16.msra.mxu0 0
    %1981 = vmatprep.subr.bf16.mxu0 0
    %1982 = vmatpush2.bf16.msra.mxu0 0
    %1983 = vmatprep.subr.bf16.mxu0 0
    %1984 = vmatpush2.bf16.msra.mxu0 0
    %1985 = vmatprep.mubr.bf16.mxu0 0
    %1986 = vmatmul.mubr.bf16.gmra.mxu0 %v1951
    %v1987 = vpop.f32.mrf.mxu0
    %v1988 = vadd.f32 0.0, %v1987
    %v1989 = vpop.f32.mrf.mxu0
    %v1990 = vpop.f32.mrf.mxu0
    %v1991 = vpop.f32.mrf.mxu0
    %1992 = vdwg.mxu0
    %v1993 = vadd.f32 %v1911, %v1988
    %s1994 = scalar_lea.vmem %s3, 288
    %v1995 = vld [vmem:[%s1994] sm:$0xf]
    %v1996 = vld [vmem:[%s1994 + $0x4] sm:$0xf]
    %v1997 = vld [vmem:[%s1994 + $0x8] sm:$0xf]
    %v1998 = vld [vmem:[%s1994 + $0xc] sm:$0xf]
    %v1999 = vld [vmem:[%s1994 + $0x10] sm:$0xf]
    %v2000 = vld [vmem:[%s1994 + $0x14] sm:$0xf]
    %v2001 = vld [vmem:[%s1994 + $0x18] sm:$0xf]
    %v2002 = vld [vmem:[%s1994 + $0x1c] sm:$0xf]
    %v2003 = vrot.slane %v1921, 1
    %v2004 = vsel %vm1286, %v1922, %v2003
    %v2005 = vpack.c.b16 %v2004, %v2004
    %v2014 = vunpack.c.l.b16 %v1995
    %v2015 = vunpack.c.l.b16 %v1996
    %v2016 = vunpack.c.l.b16 %v1997
    %v2017 = vunpack.c.l.b16 %v1998
    %v2018 = vunpack.c.l.b16 %v1999
    %v2019 = vunpack.c.l.b16 %v2000
    %v2020 = vunpack.c.l.b16 %v2001
    %v2021 = vunpack.c.l.b16 %v2002
    %v2022 = vpack.c.b16 %v2015, %v2014
    %v2023 = vpack.c.b16 %v2017, %v2016
    %v2024 = vpack.c.b16 %v2019, %v2018
    %v2025 = vpack.c.b16 %v2021, %v2020
    %v2031 = vsel %vm176, %v2005, 0
    %2033 = vmatprep.subr.bf16.mxu0 0
    %2034 = vmatpush1.bf16.msra.mxu0 0
    %2035 = vmatprep.subr.bf16.mxu0 0
    %2036 = vmatpush1.bf16.msra.mxu0 0
    %2037 = vmatprep.subr.bf16.mxu0 0
    %2038 = vmatpush1.bf16.msra.mxu0 0
    %2039 = vmatprep.subr.bf16.mxu0 0
    %2040 = vmatpush1.bf16.msra.mxu0 0
    %2041 = vmatprep.subr.bf16.mxu0 0
    %2042 = vmatpush1.bf16.msra.mxu0 %v2025
    %2043 = vmatprep.subr.bf16.mxu0 0
    %2044 = vmatpush1.bf16.msra.mxu0 %v2024
    %2045 = vmatprep.subr.bf16.mxu0 0
    %2046 = vmatpush1.bf16.msra.mxu0 %v2023
    %2047 = vmatprep.subr.bf16.mxu0 0
    %2048 = vmatpush1.bf16.msra.mxu0 %v2022
    %2049 = vmatprep.subr.bf16.mxu0 0
    %2050 = vmatpush2.bf16.msra.mxu0 0
    %2051 = vmatprep.subr.bf16.mxu0 0
    %2052 = vmatpush2.bf16.msra.mxu0 0
    %2053 = vmatprep.subr.bf16.mxu0 0
    %2054 = vmatpush2.bf16.msra.mxu0 0
    %2055 = vmatprep.subr.bf16.mxu0 0
    %2056 = vmatpush2.bf16.msra.mxu0 0
    %2057 = vmatprep.subr.bf16.mxu0 0
    %2058 = vmatpush2.bf16.msra.mxu0 0
    %2059 = vmatprep.subr.bf16.mxu0 0
    %2060 = vmatpush2.bf16.msra.mxu0 0
    %2061 = vmatprep.subr.bf16.mxu0 0
    %2062 = vmatpush2.bf16.msra.mxu0 0
    %2063 = vmatprep.subr.bf16.mxu0 0
    %2064 = vmatpush2.bf16.msra.mxu0 0
    %2065 = vmatprep.mubr.bf16.mxu0 0
    %2066 = vmatmul.mubr.bf16.gmra.mxu0 %v2031
    %v2067 = vpop.f32.mrf.mxu0
    %v2068 = vadd.f32 0.0, %v2067
    %v2069 = vpop.f32.mrf.mxu0
    %v2070 = vpop.f32.mrf.mxu0
    %v2071 = vpop.f32.mrf.mxu0
    %2072 = vdwg.mxu0
    %v2073 = vadd.f32 %v1993, %v2068
    %s2074 = scalar_lea.vmem %s3, 320
    %v2075 = vld [vmem:[%s2074] sm:$0xf]
    %v2076 = vld [vmem:[%s2074 + $0x4] sm:$0xf]
    %v2077 = vld [vmem:[%s2074 + $0x8] sm:$0xf]
    %v2078 = vld [vmem:[%s2074 + $0xc] sm:$0xf]
    %v2079 = vld [vmem:[%s2074 + $0x10] sm:$0xf]
    %v2080 = vld [vmem:[%s2074 + $0x14] sm:$0xf]
    %v2081 = vld [vmem:[%s2074 + $0x18] sm:$0xf]
    %v2082 = vld [vmem:[%s2074 + $0x1c] sm:$0xf]
    %v2083 = vrot.slane %v1921, 2
    %v2084 = vrot.slane %v1922, 1
    %v2085 = vsel %vm1286, %v2084, %v2083
    %v2086 = vpack.c.b16 %v2085, %v2085
    %v2095 = vunpack.c.l.b16 %v2075
    %v2096 = vunpack.c.l.b16 %v2076
    %v2097 = vunpack.c.l.b16 %v2077
    %v2098 = vunpack.c.l.b16 %v2078
    %v2099 = vunpack.c.l.b16 %v2079
    %v2100 = vunpack.c.l.b16 %v2080
    %v2101 = vunpack.c.l.b16 %v2081
    %v2102 = vunpack.c.l.b16 %v2082
    %v2103 = vpack.c.b16 %v2096, %v2095
    %v2104 = vpack.c.b16 %v2098, %v2097
    %v2105 = vpack.c.b16 %v2100, %v2099
    %v2106 = vpack.c.b16 %v2102, %v2101
    %v2112 = vsel %vm176, %v2086, 0
    %2114 = vmatprep.subr.bf16.mxu0 0
    %2115 = vmatpush1.bf16.msra.mxu0 0
    %2116 = vmatprep.subr.bf16.mxu0 0
    %2117 = vmatpush1.bf16.msra.mxu0 0
    %2118 = vmatprep.subr.bf16.mxu0 0
    %2119 = vmatpush1.bf16.msra.mxu0 0
    %2120 = vmatprep.subr.bf16.mxu0 0
    %2121 = vmatpush1.bf16.msra.mxu0 0
    %2122 = vmatprep.subr.bf16.mxu0 0
    %2123 = vmatpush1.bf16.msra.mxu0 %v2106
    %2124 = vmatprep.subr.bf16.mxu0 0
    %2125 = vmatpush1.bf16.msra.mxu0 %v2105
    %2126 = vmatprep.subr.bf16.mxu0 0
    %2127 = vmatpush1.bf16.msra.mxu0 %v2104
    %2128 = vmatprep.subr.bf16.mxu0 0
    %2129 = vmatpush1.bf16.msra.mxu0 %v2103
    %2130 = vmatprep.subr.bf16.mxu0 0
    %2131 = vmatpush2.bf16.msra.mxu0 0
    %2132 = vmatprep.subr.bf16.mxu0 0
    %2133 = vmatpush2.bf16.msra.mxu0 0
    %2134 = vmatprep.subr.bf16.mxu0 0
    %2135 = vmatpush2.bf16.msra.mxu0 0
    %2136 = vmatprep.subr.bf16.mxu0 0
    %2137 = vmatpush2.bf16.msra.mxu0 0
    %2138 = vmatprep.subr.bf16.mxu0 0
    %2139 = vmatpush2.bf16.msra.mxu0 0
    %2140 = vmatprep.subr.bf16.mxu0 0
    %2141 = vmatpush2.bf16.msra.mxu0 0
    %2142 = vmatprep.subr.bf16.mxu0 0
    %2143 = vmatpush2.bf16.msra.mxu0 0
    %2144 = vmatprep.subr.bf16.mxu0 0
    %2145 = vmatpush2.bf16.msra.mxu0 0
    %2146 = vmatprep.mubr.bf16.mxu0 0
    %2147 = vmatmul.mubr.bf16.gmra.mxu0 %v2112
    %v2148 = vpop.f32.mrf.mxu0
    %v2149 = vadd.f32 0.0, %v2148
    %v2150 = vpop.f32.mrf.mxu0
    %v2151 = vpop.f32.mrf.mxu0
    %v2152 = vpop.f32.mrf.mxu0
    %2153 = vdwg.mxu0
    %v2154 = vadd.f32 %v2073, %v2149
    %s2155 = scalar_lea.vmem %s3, 352
    %v2156 = vld [vmem:[%s2155] sm:$0xf]
    %v2157 = vld [vmem:[%s2155 + $0x4] sm:$0xf]
    %v2158 = vld [vmem:[%s2155 + $0x8] sm:$0xf]
    %v2159 = vld [vmem:[%s2155 + $0xc] sm:$0xf]
    %v2160 = vld [vmem:[%s2155 + $0x10] sm:$0xf]
    %v2161 = vld [vmem:[%s2155 + $0x14] sm:$0xf]
    %v2162 = vld [vmem:[%s2155 + $0x18] sm:$0xf]
    %v2163 = vld [vmem:[%s2155 + $0x1c] sm:$0xf]
    %v2164 = vrot.slane %v1921, 3
    %v2165 = vrot.slane %v1922, 2
    %v2166 = vsel %vm1286, %v2165, %v2164
    %v2167 = vpack.c.b16 %v2166, %v2166
    %v2176 = vunpack.c.l.b16 %v2156
    %v2177 = vunpack.c.l.b16 %v2157
    %v2178 = vunpack.c.l.b16 %v2158
    %v2179 = vunpack.c.l.b16 %v2159
    %v2180 = vunpack.c.l.b16 %v2160
    %v2181 = vunpack.c.l.b16 %v2161
    %v2182 = vunpack.c.l.b16 %v2162
    %v2183 = vunpack.c.l.b16 %v2163
    %v2184 = vpack.c.b16 %v2177, %v2176
    %v2185 = vpack.c.b16 %v2179, %v2178
    %v2186 = vpack.c.b16 %v2181, %v2180
    %v2187 = vpack.c.b16 %v2183, %v2182
    %v2193 = vsel %vm176, %v2167, 0
    %2195 = vmatprep.subr.bf16.mxu0 0
    %2196 = vmatpush1.bf16.msra.mxu0 0
    %2197 = vmatprep.subr.bf16.mxu0 0
    %2198 = vmatpush1.bf16.msra.mxu0 0
    %2199 = vmatprep.subr.bf16.mxu0 0
    %2200 = vmatpush1.bf16.msra.mxu0 0
    %2201 = vmatprep.subr.bf16.mxu0 0
    %2202 = vmatpush1.bf16.msra.mxu0 0
    %2203 = vmatprep.subr.bf16.mxu0 0
    %2204 = vmatpush1.bf16.msra.mxu0 %v2187
    %2205 = vmatprep.subr.bf16.mxu0 0
    %2206 = vmatpush1.bf16.msra.mxu0 %v2186
    %2207 = vmatprep.subr.bf16.mxu0 0
    %2208 = vmatpush1.bf16.msra.mxu0 %v2185
    %2209 = vmatprep.subr.bf16.mxu0 0
    %2210 = vmatpush1.bf16.msra.mxu0 %v2184
    %2211 = vmatprep.subr.bf16.mxu0 0
    %2212 = vmatpush2.bf16.msra.mxu0 0
    %2213 = vmatprep.subr.bf16.mxu0 0
    %2214 = vmatpush2.bf16.msra.mxu0 0
    %2215 = vmatprep.subr.bf16.mxu0 0
    %2216 = vmatpush2.bf16.msra.mxu0 0
    %2217 = vmatprep.subr.bf16.mxu0 0
    %2218 = vmatpush2.bf16.msra.mxu0 0
    %2219 = vmatprep.subr.bf16.mxu0 0
    %2220 = vmatpush2.bf16.msra.mxu0 0
    %2221 = vmatprep.subr.bf16.mxu0 0
    %2222 = vmatpush2.bf16.msra.mxu0 0
    %2223 = vmatprep.subr.bf16.mxu0 0
    %2224 = vmatpush2.bf16.msra.mxu0 0
    %2225 = vmatprep.subr.bf16.mxu0 0
    %2226 = vmatpush2.bf16.msra.mxu0 0
    %2227 = vmatprep.mubr.bf16.mxu0 0
    %2228 = vmatmul.mubr.bf16.gmra.mxu0 %v2193
    %v2229 = vpop.f32.mrf.mxu0
    %v2230 = vadd.f32 0.0, %v2229
    %v2231 = vpop.f32.mrf.mxu0
    %v2232 = vpop.f32.mrf.mxu0
    %v2233 = vpop.f32.mrf.mxu0
    %2234 = vdwg.mxu0
    %v2235 = vadd.f32 %v2154, %v2230
    %s2236 = scalar_lea.vmem %s3, 384
    %v2237 = vld [vmem:[%s2236] sm:$0xf]
    %v2238 = vld [vmem:[%s2236 + $0x4] sm:$0xf]
    %v2239 = vld [vmem:[%s2236 + $0x8] sm:$0xf]
    %v2240 = vld [vmem:[%s2236 + $0xc] sm:$0xf]
    %v2241 = vld [vmem:[%s2236 + $0x10] sm:$0xf]
    %v2242 = vld [vmem:[%s2236 + $0x14] sm:$0xf]
    %v2243 = vld [vmem:[%s2236 + $0x18] sm:$0xf]
    %v2244 = vld [vmem:[%s2236 + $0x1c] sm:$0xf]
    %v2245 = vrot.slane %v1921, 4
    %v2246 = vrot.slane %v1922, 3
    %v2247 = vsel %vm1286, %v2246, %v2245
    %v2248 = vpack.c.b16 %v2247, %v2247
    %v2257 = vunpack.c.l.b16 %v2237
    %v2258 = vunpack.c.l.b16 %v2238
    %v2259 = vunpack.c.l.b16 %v2239
    %v2260 = vunpack.c.l.b16 %v2240
    %v2261 = vunpack.c.l.b16 %v2241
    %v2262 = vunpack.c.l.b16 %v2242
    %v2263 = vunpack.c.l.b16 %v2243
    %v2264 = vunpack.c.l.b16 %v2244
    %v2265 = vpack.c.b16 %v2258, %v2257
    %v2266 = vpack.c.b16 %v2260, %v2259
    %v2267 = vpack.c.b16 %v2262, %v2261
    %v2268 = vpack.c.b16 %v2264, %v2263
    %v2274 = vsel %vm176, %v2248, 0
    %2276 = vmatprep.subr.bf16.mxu0 0
    %2277 = vmatpush1.bf16.msra.mxu0 0
    %2278 = vmatprep.subr.bf16.mxu0 0
    %2279 = vmatpush1.bf16.msra.mxu0 0
    %2280 = vmatprep.subr.bf16.mxu0 0
    %2281 = vmatpush1.bf16.msra.mxu0 0
    %2282 = vmatprep.subr.bf16.mxu0 0
    %2283 = vmatpush1.bf16.msra.mxu0 0
    %2284 = vmatprep.subr.bf16.mxu0 0
    %2285 = vmatpush1.bf16.msra.mxu0 %v2268
    %2286 = vmatprep.subr.bf16.mxu0 0
    %2287 = vmatpush1.bf16.msra.mxu0 %v2267
    %2288 = vmatprep.subr.bf16.mxu0 0
    %2289 = vmatpush1.bf16.msra.mxu0 %v2266
    %2290 = vmatprep.subr.bf16.mxu0 0
    %2291 = vmatpush1.bf16.msra.mxu0 %v2265
    %2292 = vmatprep.subr.bf16.mxu0 0
    %2293 = vmatpush2.bf16.msra.mxu0 0
    %2294 = vmatprep.subr.bf16.mxu0 0
    %2295 = vmatpush2.bf16.msra.mxu0 0
    %2296 = vmatprep.subr.bf16.mxu0 0
    %2297 = vmatpush2.bf16.msra.mxu0 0
    %2298 = vmatprep.subr.bf16.mxu0 0
    %2299 = vmatpush2.bf16.msra.mxu0 0
    %2300 = vmatprep.subr.bf16.mxu0 0
    %2301 = vmatpush2.bf16.msra.mxu0 0
    %2302 = vmatprep.subr.bf16.mxu0 0
    %2303 = vmatpush2.bf16.msra.mxu0 0
    %2304 = vmatprep.subr.bf16.mxu0 0
    %2305 = vmatpush2.bf16.msra.mxu0 0
    %2306 = vmatprep.subr.bf16.mxu0 0
    %2307 = vmatpush2.bf16.msra.mxu0 0
    %2308 = vmatprep.mubr.bf16.mxu0 0
    %2309 = vmatmul.mubr.bf16.gmra.mxu0 %v2274
    %v2310 = vpop.f32.mrf.mxu0
    %v2311 = vadd.f32 0.0, %v2310
    %v2312 = vpop.f32.mrf.mxu0
    %v2313 = vpop.f32.mrf.mxu0
    %v2314 = vpop.f32.mrf.mxu0
    %2315 = vdwg.mxu0
    %v2316 = vadd.f32 %v2235, %v2311
    %s2317 = scalar_lea.vmem %s3, 416
    %v2318 = vld [vmem:[%s2317] sm:$0xf]
    %v2319 = vld [vmem:[%s2317 + $0x4] sm:$0xf]
    %v2320 = vld [vmem:[%s2317 + $0x8] sm:$0xf]
    %v2321 = vld [vmem:[%s2317 + $0xc] sm:$0xf]
    %v2322 = vld [vmem:[%s2317 + $0x10] sm:$0xf]
    %v2323 = vld [vmem:[%s2317 + $0x14] sm:$0xf]
    %v2324 = vld [vmem:[%s2317 + $0x18] sm:$0xf]
    %v2325 = vld [vmem:[%s2317 + $0x1c] sm:$0xf]
    %v2326 = vrot.slane %v1921, 5
    %v2327 = vrot.slane %v1922, 4
    %v2328 = vsel %vm1286, %v2327, %v2326
    %v2329 = vpack.c.b16 %v2328, %v2328
    %v2338 = vunpack.c.l.b16 %v2318
    %v2339 = vunpack.c.l.b16 %v2319
    %v2340 = vunpack.c.l.b16 %v2320
    %v2341 = vunpack.c.l.b16 %v2321
    %v2342 = vunpack.c.l.b16 %v2322
    %v2343 = vunpack.c.l.b16 %v2323
    %v2344 = vunpack.c.l.b16 %v2324
    %v2345 = vunpack.c.l.b16 %v2325
    %v2346 = vpack.c.b16 %v2339, %v2338
    %v2347 = vpack.c.b16 %v2341, %v2340
    %v2348 = vpack.c.b16 %v2343, %v2342
    %v2349 = vpack.c.b16 %v2345, %v2344
    %v2355 = vsel %vm176, %v2329, 0
    %2357 = vmatprep.subr.bf16.mxu0 0
    %2358 = vmatpush1.bf16.msra.mxu0 0
    %2359 = vmatprep.subr.bf16.mxu0 0
    %2360 = vmatpush1.bf16.msra.mxu0 0
    %2361 = vmatprep.subr.bf16.mxu0 0
    %2362 = vmatpush1.bf16.msra.mxu0 0
    %2363 = vmatprep.subr.bf16.mxu0 0
    %2364 = vmatpush1.bf16.msra.mxu0 0
    %2365 = vmatprep.subr.bf16.mxu0 0
    %2366 = vmatpush1.bf16.msra.mxu0 %v2349
    %2367 = vmatprep.subr.bf16.mxu0 0
    %2368 = vmatpush1.bf16.msra.mxu0 %v2348
    %2369 = vmatprep.subr.bf16.mxu0 0
    %2370 = vmatpush1.bf16.msra.mxu0 %v2347
    %2371 = vmatprep.subr.bf16.mxu0 0
    %2372 = vmatpush1.bf16.msra.mxu0 %v2346
    %2373 = vmatprep.subr.bf16.mxu0 0
    %2374 = vmatpush2.bf16.msra.mxu0 0
    %2375 = vmatprep.subr.bf16.mxu0 0
    %2376 = vmatpush2.bf16.msra.mxu0 0
    %2377 = vmatprep.subr.bf16.mxu0 0
    %2378 = vmatpush2.bf16.msra.mxu0 0
    %2379 = vmatprep.subr.bf16.mxu0 0
    %2380 = vmatpush2.bf16.msra.mxu0 0
    %2381 = vmatprep.subr.bf16.mxu0 0
    %2382 = vmatpush2.bf16.msra.mxu0 0
    %2383 = vmatprep.subr.bf16.mxu0 0
    %2384 = vmatpush2.bf16.msra.mxu0 0
    %2385 = vmatprep.subr.bf16.mxu0 0
    %2386 = vmatpush2.bf16.msra.mxu0 0
    %2387 = vmatprep.subr.bf16.mxu0 0
    %2388 = vmatpush2.bf16.msra.mxu0 0
    %2389 = vmatprep.mubr.bf16.mxu0 0
    %2390 = vmatmul.mubr.bf16.gmra.mxu0 %v2355
    %v2391 = vpop.f32.mrf.mxu0
    %v2392 = vadd.f32 0.0, %v2391
    %v2393 = vpop.f32.mrf.mxu0
    %v2394 = vpop.f32.mrf.mxu0
    %v2395 = vpop.f32.mrf.mxu0
    %2396 = vdwg.mxu0
    %v2397 = vadd.f32 %v2316, %v2392
    %s2398 = scalar_lea.vmem %s3, 448
    %v2399 = vld [vmem:[%s2398] sm:$0xf]
    %v2400 = vld [vmem:[%s2398 + $0x4] sm:$0xf]
    %v2401 = vld [vmem:[%s2398 + $0x8] sm:$0xf]
    %v2402 = vld [vmem:[%s2398 + $0xc] sm:$0xf]
    %v2403 = vld [vmem:[%s2398 + $0x10] sm:$0xf]
    %v2404 = vld [vmem:[%s2398 + $0x14] sm:$0xf]
    %v2405 = vld [vmem:[%s2398 + $0x18] sm:$0xf]
    %v2406 = vld [vmem:[%s2398 + $0x1c] sm:$0xf]
    %v2407 = vrot.slane %v1921, 6
    %v2408 = vrot.slane %v1922, 5
    %v2409 = vsel %vm1286, %v2408, %v2407
    %v2410 = vpack.c.b16 %v2409, %v2409
    %v2419 = vunpack.c.l.b16 %v2399
    %v2420 = vunpack.c.l.b16 %v2400
    %v2421 = vunpack.c.l.b16 %v2401
    %v2422 = vunpack.c.l.b16 %v2402
    %v2423 = vunpack.c.l.b16 %v2403
    %v2424 = vunpack.c.l.b16 %v2404
    %v2425 = vunpack.c.l.b16 %v2405
    %v2426 = vunpack.c.l.b16 %v2406
    %v2427 = vpack.c.b16 %v2420, %v2419
    %v2428 = vpack.c.b16 %v2422, %v2421
    %v2429 = vpack.c.b16 %v2424, %v2423
    %v2430 = vpack.c.b16 %v2426, %v2425
    %v2436 = vsel %vm176, %v2410, 0
    %2438 = vmatprep.subr.bf16.mxu0 0
    %2439 = vmatpush1.bf16.msra.mxu0 0
    %2440 = vmatprep.subr.bf16.mxu0 0
    %2441 = vmatpush1.bf16.msra.mxu0 0
    %2442 = vmatprep.subr.bf16.mxu0 0
    %2443 = vmatpush1.bf16.msra.mxu0 0
    %2444 = vmatprep.subr.bf16.mxu0 0
    %2445 = vmatpush1.bf16.msra.mxu0 0
    %2446 = vmatprep.subr.bf16.mxu0 0
    %2447 = vmatpush1.bf16.msra.mxu0 %v2430
    %2448 = vmatprep.subr.bf16.mxu0 0
    %2449 = vmatpush1.bf16.msra.mxu0 %v2429
    %2450 = vmatprep.subr.bf16.mxu0 0
    %2451 = vmatpush1.bf16.msra.mxu0 %v2428
    %2452 = vmatprep.subr.bf16.mxu0 0
    %2453 = vmatpush1.bf16.msra.mxu0 %v2427
    %2454 = vmatprep.subr.bf16.mxu0 0
    %2455 = vmatpush2.bf16.msra.mxu0 0
    %2456 = vmatprep.subr.bf16.mxu0 0
    %2457 = vmatpush2.bf16.msra.mxu0 0
    %2458 = vmatprep.subr.bf16.mxu0 0
    %2459 = vmatpush2.bf16.msra.mxu0 0
    %2460 = vmatprep.subr.bf16.mxu0 0
    %2461 = vmatpush2.bf16.msra.mxu0 0
    %2462 = vmatprep.subr.bf16.mxu0 0
    %2463 = vmatpush2.bf16.msra.mxu0 0
    %2464 = vmatprep.subr.bf16.mxu0 0
    %2465 = vmatpush2.bf16.msra.mxu0 0
    %2466 = vmatprep.subr.bf16.mxu0 0
    %2467 = vmatpush2.bf16.msra.mxu0 0
    %2468 = vmatprep.subr.bf16.mxu0 0
    %2469 = vmatpush2.bf16.msra.mxu0 0
    %2470 = vmatprep.mubr.bf16.mxu0 0
    %2471 = vmatmul.mubr.bf16.gmra.mxu0 %v2436
    %v2472 = vpop.f32.mrf.mxu0
    %v2473 = vadd.f32 0.0, %v2472
    %v2474 = vpop.f32.mrf.mxu0
    %v2475 = vpop.f32.mrf.mxu0
    %v2476 = vpop.f32.mrf.mxu0
    %2477 = vdwg.mxu0
    %v2478 = vadd.f32 %v2397, %v2473
    %s2479 = scalar_lea.vmem %s3, 480
    %v2480 = vld [vmem:[%s2479] sm:$0xf]
    %v2481 = vld [vmem:[%s2479 + $0x4] sm:$0xf]
    %v2482 = vld [vmem:[%s2479 + $0x8] sm:$0xf]
    %v2483 = vld [vmem:[%s2479 + $0xc] sm:$0xf]
    %v2484 = vld [vmem:[%s2479 + $0x10] sm:$0xf]
    %v2485 = vld [vmem:[%s2479 + $0x14] sm:$0xf]
    %v2486 = vld [vmem:[%s2479 + $0x18] sm:$0xf]
    %v2487 = vld [vmem:[%s2479 + $0x1c] sm:$0xf]
    %v2488 = vrot.slane %v1921, 7
    %v2489 = vrot.slane %v1922, 6
    %v2490 = vsel %vm1286, %v2489, %v2488
    %v2491 = vpack.c.b16 %v2490, %v2490
    %v2500 = vunpack.c.l.b16 %v2480
    %v2501 = vunpack.c.l.b16 %v2481
    %v2502 = vunpack.c.l.b16 %v2482
    %v2503 = vunpack.c.l.b16 %v2483
    %v2504 = vunpack.c.l.b16 %v2484
    %v2505 = vunpack.c.l.b16 %v2485
    %v2506 = vunpack.c.l.b16 %v2486
    %v2507 = vunpack.c.l.b16 %v2487
    %v2508 = vpack.c.b16 %v2501, %v2500
    %v2509 = vpack.c.b16 %v2503, %v2502
    %v2510 = vpack.c.b16 %v2505, %v2504
    %v2511 = vpack.c.b16 %v2507, %v2506
    %v2517 = vsel %vm176, %v2491, 0
    %2519 = vmatprep.subr.bf16.mxu0 0
    %2520 = vmatpush1.bf16.msra.mxu0 0
    %2521 = vmatprep.subr.bf16.mxu0 0
    %2522 = vmatpush1.bf16.msra.mxu0 0
    %2523 = vmatprep.subr.bf16.mxu0 0
    %2524 = vmatpush1.bf16.msra.mxu0 0
    %2525 = vmatprep.subr.bf16.mxu0 0
    %2526 = vmatpush1.bf16.msra.mxu0 0
    %2527 = vmatprep.subr.bf16.mxu0 0
    %2528 = vmatpush1.bf16.msra.mxu0 %v2511
    %2529 = vmatprep.subr.bf16.mxu0 0
    %2530 = vmatpush1.bf16.msra.mxu0 %v2510
    %2531 = vmatprep.subr.bf16.mxu0 0
    %2532 = vmatpush1.bf16.msra.mxu0 %v2509
    %2533 = vmatprep.subr.bf16.mxu0 0
    %2534 = vmatpush1.bf16.msra.mxu0 %v2508
    %2535 = vmatprep.subr.bf16.mxu0 0
    %2536 = vmatpush2.bf16.msra.mxu0 0
    %2537 = vmatprep.subr.bf16.mxu0 0
    %2538 = vmatpush2.bf16.msra.mxu0 0
    %2539 = vmatprep.subr.bf16.mxu0 0
    %2540 = vmatpush2.bf16.msra.mxu0 0
    %2541 = vmatprep.subr.bf16.mxu0 0
    %2542 = vmatpush2.bf16.msra.mxu0 0
    %2543 = vmatprep.subr.bf16.mxu0 0
    %2544 = vmatpush2.bf16.msra.mxu0 0
    %2545 = vmatprep.subr.bf16.mxu0 0
    %2546 = vmatpush2.bf16.msra.mxu0 0
    %2547 = vmatprep.subr.bf16.mxu0 0
    %2548 = vmatpush2.bf16.msra.mxu0 0
    %2549 = vmatprep.subr.bf16.mxu0 0
    %2550 = vmatpush2.bf16.msra.mxu0 0
    %2551 = vmatprep.mubr.bf16.mxu0 0
    %2552 = vmatmul.mubr.bf16.gmra.mxu0 %v2517
    %v2553 = vpop.f32.mrf.mxu0
    %v2554 = vadd.f32 0.0, %v2553
    %v2555 = vpop.f32.mrf.mxu0
    %v2556 = vpop.f32.mrf.mxu0
    %v2557 = vpop.f32.mrf.mxu0
    %2558 = vdwg.mxu0
    %v2559 = vadd.f32 %v2478, %v2554
    %v2560 = vld [vmem:[%s4] sm:$0x1]
    %v2562 = vlaneseq
    %v2563 = vshrl.u32 %v2562, 7
    %v2564 = vsub.s32 0, %v2563
    %v2565 = vrot.slane %v2560, %v2564
    %v2567 = vadd.f32 %v2559, %v2565
    %v2568 = vpack.c.bf16 %v2567, %v2567
    %v2569 = vld [vmem:[%s5] sm:$0xf]
    %v2570 = vld [vmem:[%s5 + $0x4] sm:$0xf]
    %v2571 = vld [vmem:[%s5 + $0x8] sm:$0xf]
    %v2572 = vld [vmem:[%s5 + $0xc] sm:$0xf]
    %v2573 = vld [vmem:[%s5 + $0x10] sm:$0xf]
    %v2574 = vld [vmem:[%s5 + $0x14] sm:$0xf]
    %v2575 = vld [vmem:[%s5 + $0x18] sm:$0xf]
    %v2576 = vld [vmem:[%s5 + $0x1c] sm:$0xf]
    %v2577 = vld [vmem:[%s6] sm:$0x1]
    %v2579 = vlaneseq
    %v2580 = vshrl.u32 %v2579, 7
    %v2581 = vsub.s32 0, %v2580
    %v2582 = vrot.slane %v2577, %v2581
    %v2592 = vunpack.c.l.b16 %v2569
    %v2593 = vunpack.c.l.b16 %v2570
    %v2594 = vunpack.c.l.b16 %v2571
    %v2595 = vunpack.c.l.b16 %v2572
    %v2596 = vunpack.c.l.b16 %v2573
    %v2597 = vunpack.c.l.b16 %v2574
    %v2598 = vunpack.c.l.b16 %v2575
    %v2599 = vunpack.c.l.b16 %v2576
    %v2600 = vpack.c.b16 %v2593, %v2592
    %v2601 = vpack.c.b16 %v2595, %v2594
    %v2602 = vpack.c.b16 %v2597, %v2596
    %v2603 = vpack.c.b16 %v2599, %v2598
    %v2609 = vsel %vm176, %v2568, 0
    %2611 = vmatprep.subr.bf16.mxu0 0
    %2612 = vmatpush1.bf16.msra.mxu0 0
    %2613 = vmatprep.subr.bf16.mxu0 0
    %2614 = vmatpush1.bf16.msra.mxu0 0
    %2615 = vmatprep.subr.bf16.mxu0 0
    %2616 = vmatpush1.bf16.msra.mxu0 0
    %2617 = vmatprep.subr.bf16.mxu0 0
    %2618 = vmatpush1.bf16.msra.mxu0 0
    %2619 = vmatprep.subr.bf16.mxu0 0
    %2620 = vmatpush1.bf16.msra.mxu0 %v2603
    %2621 = vmatprep.subr.bf16.mxu0 0
    %2622 = vmatpush1.bf16.msra.mxu0 %v2602
    %2623 = vmatprep.subr.bf16.mxu0 0
    %2624 = vmatpush1.bf16.msra.mxu0 %v2601
    %2625 = vmatprep.subr.bf16.mxu0 0
    %2626 = vmatpush1.bf16.msra.mxu0 %v2600
    %2627 = vmatprep.subr.bf16.mxu0 0
    %2628 = vmatpush2.bf16.msra.mxu0 0
    %2629 = vmatprep.subr.bf16.mxu0 0
    %2630 = vmatpush2.bf16.msra.mxu0 0
    %2631 = vmatprep.subr.bf16.mxu0 0
    %2632 = vmatpush2.bf16.msra.mxu0 0
    %2633 = vmatprep.subr.bf16.mxu0 0
    %2634 = vmatpush2.bf16.msra.mxu0 0
    %2635 = vmatprep.subr.bf16.mxu0 0
    %2636 = vmatpush2.bf16.msra.mxu0 0
    %2637 = vmatprep.subr.bf16.mxu0 0
    %2638 = vmatpush2.bf16.msra.mxu0 0
    %2639 = vmatprep.subr.bf16.mxu0 0
    %2640 = vmatpush2.bf16.msra.mxu0 0
    %2641 = vmatprep.subr.bf16.mxu0 0
    %2642 = vmatpush2.bf16.msra.mxu0 0
    %2643 = vmatprep.mubr.bf16.mxu0 0
    %2644 = vmatmul.mubr.bf16.gmra.mxu0 %v2609
    %v2645 = vpop.f32.mrf.mxu0
    %v2646 = vadd.f32 %v2582, %v2645
    %v2647 = vpop.f32.mrf.mxu0
    %v2648 = vpop.f32.mrf.mxu0
    %v2649 = vpop.f32.mrf.mxu0
    %2650 = vdwg.mxu0
    %2651 = vst [vmem:[#allocation2] sm:$0x3] %v2646
    // Predicated region
    $region30: #{forward.5} parent=1 // pred_check
      _
    $region31: #{forward.5} parent=1 // pred_check_branch
      %2653 = sbr.rel (0) target = $region33
    $region32: #{forward.5} parent=1 // pred_region
      %s2655 = ssub.s32 32, 32
      %2656 = vsyncadd [#allocation3], %s2655
      %s2658 = sshll.u32 [#allocation2], 4
      %s2659 = int_to_ptr.vmem [resolvable:$true] %s2658
      %2661 = dma.vmem_to_hbm [thread:$0]  %s2659, 32, %s7, [#allocation3]
    $region33: #{forward.5} parent=1 // pred_fallthru
      _
    // Predicated region
    $region34: #{forward.5} parent=1 // pred_check
      _
    $region35: #{forward.5} parent=1 // pred_check_branch
      %2663 = sbr.rel (0) target = $region37
    $region36: #{forward.5} parent=1 // pred_region
      %2664 = dma.done [#allocation3], 32
    $region37: #{forward.5} parent=1 // pred_fallthru
      _
    %2665 = vsyncpa [#allocation3], 1

</llo_original>
